<compile_context>
chip_gen: v7x
topology: tpu7x:2x2x1
jax: 0.10.0
libtpu: 0.0.40
codegen_flags: <defaults>
</compile_context>

<pallas_src>
import jax
import jax.numpy as jnp
from jax import lax
from jax.experimental import pallas as pl
from jax.experimental.pallas import tpu as pltpu

EPS = 1e-5
LANES = 128


def _round_up(x, m):
    return (x + m - 1) // m * m


def _row_tile(rows, cp, target_bytes=2 << 20):
    """Largest divisor of `rows` (multiple of 8) giving ~target-sized f32 tiles."""
    cap = max(8, target_bytes // (4 * cp))
    if rows <= cap:
        return rows
    for d in range(int(cap), 7, -1):
        if rows % d == 0 and d % 8 == 0:
            return d
    return rows  # fallback: full dim is always a legal block shape


# --------------------------------------------------------------------------
# in-kernel helpers
# --------------------------------------------------------------------------
def _fill_padded(pad_ref, interior_bf16):
    """Write interior (1,H,W,C) into pad_ref (1,H+2,W+2,C); zero only the halo."""
    _, Hp, Wp, Cp = pad_ref.shape
    H, W = Hp - 2, Wp - 2
    zrow = jnp.zeros((1, 1, Wp, Cp), jnp.bfloat16)
    zcol = jnp.zeros((1, Hp, 1, Cp), jnp.bfloat16)
    pad_ref[:, 0:1, :, :] = zrow
    pad_ref[:, Hp - 1:Hp, :, :] = zrow
    pad_ref[:, :, 0:1, :] = zcol
    pad_ref[:, :, Wp - 1:Wp, :] = zcol
    pad_ref[:, 1:H + 1, 1:W + 1, :] = interior_bf16


def _conv3x3(pad_ref, w_ref, b_ref):
    """3x3 'same' conv as 3 row-grouped MXU dots (K = 3*Cp), f32 accumulation.

    No (M, 9*Cp) im2col buffer: only one (M, 3*Cp) bf16 group is live at a time.
    pad_ref : (1, H+2, W+2, Cp) bf16 VMEM scratch (halo already zeroed)
    w_ref   : (9*Cp, Cp)        bf16 (row index = (dy*3+dx)*Cp + c_in)
    b_ref   : (1, Cp)           f32
    returns : (H*W, Cp)         f32
    """
    _, Hp, Wp, Cp = pad_ref.shape
    H, W = Hp - 2, Wp - 2
    M = H * W
    acc = None
    for dy in range(3):
        taps = [pad_ref[:, dy:dy + H, dx:dx + W, :].reshape(M, Cp)
                for dx in range(3)]
        group = jnp.concatenate(taps, axis=-1)                 # (M, 3*Cp) bf16
        w_g = w_ref[dy * 3 * Cp:(dy + 1) * 3 * Cp, :]          # (3*Cp, Cp) bf16
        part = jnp.dot(group, w_g, preferred_element_type=jnp.float32)
        acc = part if acc is None else acc + part
    return acc + b_ref[...]


def _store_stats(st_ref, y):
    """Fused per-tile BN statistics: per-channel sum and sum-of-squares (f32)."""
    Cp = y.shape[-1]
    st_ref[:, 0:1, :] = jnp.sum(y, axis=0, keepdims=True).reshape(1, 1, Cp)
    st_ref[:, 1:2, :] = jnp.sum(y * y, axis=0, keepdims=True).reshape(1, 1, Cp)


# --------------------------------------------------------------------------
# kernels
# --------------------------------------------------------------------------
def _conv_stats_kernel(x_ref, w_ref, b_ref, y_ref, st_ref, pad_ref):
    """pass 1: y1 = conv1(x) + b1 (bf16 out); partial BN1 stats from the f32 acc."""
    _, H, W, Cp = x_ref.shape
    _fill_padded(pad_ref, x_ref[...].astype(jnp.bfloat16))
    y = _conv3x3(pad_ref, w_ref, b_ref)                        # (H*W, Cp) f32
    _store_stats(st_ref, y)
    y_ref[...] = y.reshape(1, H, W, Cp).astype(jnp.bfloat16)


def _bnrelu_conv_stats_kernel(y1_ref, sc_ref, sh_ref, w_ref, b_ref,
                              y2_ref, st_ref, pad_ref):
    """pass 2: h = relu(y1*scale1 + shift1); y2 = conv2(h) + b2; partial BN2 stats."""
    _, H, W, Cp = y1_ref.shape
    h = jnp.maximum(y1_ref[...].astype(jnp.float32) * sc_ref[...] + sh_ref[...],
                    0.0)                                       # f32 BN math
    _fill_padded(pad_ref, h.astype(jnp.bfloat16))
    y = _conv3x3(pad_ref, w_ref, b_ref)
    _store_stats(st_ref, y)
    y2_ref[...] = y.reshape(1, H, W, Cp).astype(jnp.bfloat16)


def _bn_residual_relu_kernel(y2_ref, x_ref, sc_ref, sh_ref, out_ref):
    """pass 3 (flattened rows): out = relu(y2*scale2 + shift2 + x)."""
    out_ref[...] = jnp.maximum(
        y2_ref[...].astype(jnp.float32) * sc_ref[...] + sh_ref[...] + x_ref[...],
        0.0)


# --------------------------------------------------------------------------
# wrapper
# --------------------------------------------------------------------------
def _bn_affine(stats, count, gamma, beta):
    """Reduce per-tile (sum, sumsq) partials to BN scale/shift vectors (f32)."""
    s = jnp.sum(stats, axis=0)                   # (2, Cp)
    mean = s[0] / count
    var = s[1] / count - mean * mean             # biased variance (training BN)
    scale = gamma * lax.rsqrt(var + EPS)         # (1, Cp)
    shift = beta - mean * scale                  # (1, Cp)
    return scale, shift


def _residual_block_nhwc(x, w1f, b1, g1, be1, w2f, b2, g2, be2):
    """x: (N,H,W,Cp) f32, Cp % 128 == 0; w*f: (9*Cp,Cp) bf16; vectors (1,Cp) f32."""
    N, H, W, Cp = x.shape
    count = N * H * W

    img = lambda: pl.BlockSpec((1, H, W, Cp), lambda n: (n, 0, 0, 0))
    wgt = pl.BlockSpec((9 * Cp, Cp), lambda n: (0, 0))   # constant -> resident
    vec = pl.BlockSpec((1, Cp), lambda n: (0, 0))
    st = pl.BlockSpec((1, 2, Cp), lambda n: (n, 0, 0))
    conv_params = pltpu.CompilerParams(
        dimension_semantics=("parallel",),
        vmem_limit_bytes=48 * 1024 * 1024)
    pad_scratch = pltpu.VMEM((1, H + 2, W + 2, Cp), jnp.bfloat16)

    act_bf16 = jax.ShapeDtypeStruct((N, H, W, Cp), jnp.bfloat16)
    st_shape = jax.ShapeDtypeStruct((N, 2, Cp), jnp.float32)

    conv_flops = 2 * 9 * Cp * Cp * count
    w_bytes = 9 * Cp * Cp * 2 + Cp * 4
    st_bytes = N * 2 * Cp * 4

    # ---- pass 1: conv1 + partial BN1 stats -------------------------------
    y1, st1 = pl.pallas_call(
        _conv_stats_kernel,
        out_shape=(act_bf16, st_shape),
        grid=(N,),
        in_specs=[img(), wgt, vec],
        out_specs=(img(), st),
        scratch_shapes=[pad_scratch],
        compiler_params=conv_params,
        cost_estimate=pl.CostEstimate(
            flops=conv_flops, transcendentals=0,
            bytes_accessed=count * Cp * (4 + 2) + w_bytes + st_bytes),
    )(x, w1f, b1)
    scale1, shift1 = _bn_affine(st1, count, g1, be1)

    # ---- pass 2: bn1 + relu + conv2 + partial BN2 stats -------------------
    y2, st2 = pl.pallas_call(
        _bnrelu_conv_stats_kernel,
        out_shape=(act_bf16, st_shape),
        grid=(N,),
        in_specs=[img(), vec, vec, wgt, vec],
        out_specs=(img(), st),
        scratch_shapes=[pad_scratch],
        compiler_params=conv_params,
        cost_estimate=pl.CostEstimate(
            flops=conv_flops, transcendentals=0,
            bytes_accessed=count * Cp * (2 + 2) + w_bytes + st_bytes),
    )(y1, scale1, shift1, w2f, b2)
    scale2, shift2 = _bn_affine(st2, count, g2, be2)

    # ---- pass 3: bn2 + residual + relu (flattened, big lane-dense tiles) ---
    R = count
    TR = _row_tile(R, Cp)
    row = lambda: pl.BlockSpec((TR, Cp), lambda i: (i, 0))
    vrow = pl.BlockSpec((1, Cp), lambda i: (0, 0))
    out_flat = pl.pallas_call(
        _bn_residual_relu_kernel,
        out_shape=jax.ShapeDtypeStruct((R, Cp), jnp.float32),
        grid=(R // TR,),
        in_specs=[row(), row(), vrow, vrow],
        out_specs=row(),
        compiler_params=pltpu.CompilerParams(dimension_semantics=("parallel",)),
        cost_estimate=pl.CostEstimate(
            flops=4 * R * Cp, transcendentals=0,
            bytes_accessed=R * Cp * (2 + 4 + 4) + 2 * Cp * 4),
    )(y2.reshape(R, Cp), x.reshape(R, Cp), scale2, shift2)
    return out_flat.reshape(N, H, W, Cp)


def residual_block_nchw(x_nchw, params):
    """Matches ResidualBlock.forward on an NCHW input (training-mode BN)."""
    w1, b1, g1, be1, w2, b2, g2, be2 = params    # conv weights in HWIO layout
    N, C, H, W = x_nchw.shape
    Cp = _round_up(C, LANES)
    pc = Cp - C

    # NCHW -> NHWC, lane-dense channel pad (zero channels stay exactly zero
    # through conv/BN/relu and are sliced off at the end).
    x = jnp.transpose(x_nchw, (0, 2, 3, 1)).astype(jnp.float32)
    if pc:
        x = jnp.pad(x, ((0, 0), (0, 0), (0, 0), (0, pc)))

    def prep_w(w):                               # (3,3,C,C) -> (9*Cp, Cp) bf16
        wp = jnp.pad(w.astype(jnp.float32),
                     ((0, 0), (0, 0), (0, pc), (0, pc)))
        return wp.reshape(9 * Cp, Cp).astype(jnp.bfloat16)

    def prep_v(v, fill=0.0):                     # (C,) -> (1, Cp) f32
        return jnp.pad(v.astype(jnp.float32), (0, pc),
                       constant_values=fill).reshape(1, Cp)

    out = _residual_block_nhwc(
        x, prep_w(w1), prep_v(b1), prep_v(g1, 1.0), prep_v(be1),
        prep_w(w2), prep_v(b2), prep_v(g2, 1.0), prep_v(be2))

    return jnp.transpose(out[..., :C], (0, 3, 1, 2))


# --------------------------------------------------------------------------
# validation
# --------------------------------------------------------------------------
def _reference_nchw(x_nchw, params):
    """Pure-JAX reference (lax.conv), mirroring the kernel's bf16 conv operands."""
    w1, b1, g1, be1, w2, b2, g2, be2 = params
    x = jnp.transpose(x_nchw, (0, 2, 3, 1)).astype(jnp.float32)
    dn = lax.conv_dimension_numbers(x.shape, w1.shape, ("NHWC", "HWIO", "NHWC"))

    def conv(z, w, b):
        return lax.conv_general_dilated(
            z.astype(jnp.bfloat16), w.astype(jnp.bfloat16), (1, 1), "SAME",
            dimension_numbers=dn, preferred_element_type=jnp.float32) + b

    def bn(z, g, be):
        m = z.mean(axis=(0, 1, 2), keepdims=True)
        v = ((z - m) ** 2).mean(axis=(0, 1, 2), keepdims=True)
        return (z - m) * lax.rsqrt(v + EPS) * g + be

    h = jax.nn.relu(bn(conv(x, w1, b1), g1, be1))
    y = jax.nn.relu(bn(conv(h, w2, b2), g2, be2) + x)
    return jnp.transpose(y, (0, 3, 1, 2))


if __name__ == "__main__":
    N, C, H, W = 2, 4, 16, 16
    key = jax.random.PRNGKey(0)
    kx, kw1, kb1, kw2, kb2 = jax.random.split(key, 5)

    # Input in PyTorch's NCHW convention.
    x = jax.random.normal(kx, (N, C, H, W), jnp.float32)

    # Conv weights stored as HWIO (== torch (C_out,C_in,3,3) permuted to (3,3,C_in,C_out)).
    w1 = jax.random.normal(kw1, (3, 3, C, C), jnp.float32) * 0.1
    b1 = jax.random.normal(kb1, (C,), jnp.float32) * 0.1
    w2 = jax.random.normal(kw2, (3, 3, C, C), jnp.float32) * 0.1
    b2 = jax.random.normal(kb2, (C,), jnp.float32) * 0.1
    g1 = jnp.ones((C,), jnp.float32)    # BatchNorm gamma init
    be1 = jnp.zeros((C,), jnp.float32)  # BatchNorm beta init
    g2 = jnp.ones((C,), jnp.float32)
    be2 = jnp.zeros((C,), jnp.float32)
    params = (w1, b1, g1, be1, w2, b2, g2, be2)

    out = jax.jit(residual_block_nchw)(x, params)
    out = jax.block_until_ready(out)

    ref = _reference_nchw(x, params)
    assert out.shape == (N, C, H, W)
    err = float(jnp.max(jnp.abs(out - ref)))
    # bf16 matmul operands + bf16 inter-pass activations; BN/residual math is
    # f32, so compare against a bf16-operand reference with matching tolerance.
    assert jnp.allclose(out, ref, rtol=2e-2, atol=2e-2), err
    print("KERNEL_OK")
</pallas_src>

<mosaic_0001>
module attributes {stable_mosaic.version = 11 : i64} {
  func.func @_bn_residual_relu_kernel(%arg0: i32, %arg1: memref<512x128xbf16, #tpu.memory_space<vmem>>, %arg2: memref<512x128xf32, #tpu.memory_space<vmem>>, %arg3: memref<1x128xf32, #tpu.memory_space<vmem>>, %arg4: memref<1x128xf32, #tpu.memory_space<vmem>>, %arg5: memref<512x128xf32, #tpu.memory_space<vmem>>) attributes {dimension_semantics = [#tpu.dimension_semantics<parallel>], iteration_bounds = array<i64: 1>, scalar_prefetch = 0 : i64, scratch_operands = 0 : i64, tpu.core_type = #tpu.core_type<tc>, window_params = [{transform_indices = @transform_0, window_bounds = array<i64: 512, 128>}, {transform_indices = @transform_1, window_bounds = array<i64: 512, 128>}, {pipeline_mode = #tpu.pipeline_mode<synchronous>, transform_indices = @transform_2, window_bounds = array<i64: 1, 128>}, {pipeline_mode = #tpu.pipeline_mode<synchronous>, transform_indices = @transform_3, window_bounds = array<i64: 1, 128>}, {transform_indices = @transform_4, window_bounds = array<i64: 512, 128>}]} {
    %c0 = arith.constant 0 : index
    %c0_0 = arith.constant 0 : index
    %0 = vector.load %arg1[%c0, %c0_0] : memref<512x128xbf16, #tpu.memory_space<vmem>>, vector<512x128xbf16>
    %1 = arith.extf %0 : vector<512x128xbf16> to vector<512x128xf32>
    %c0_1 = arith.constant 0 : index
    %c0_2 = arith.constant 0 : index
    %2 = vector.load %arg3[%c0_1, %c0_2] : memref<1x128xf32, #tpu.memory_space<vmem>>, vector<1x128xf32>
    %3 = vector.broadcast %2 : vector<1x128xf32> to vector<512x128xf32>
    %4 = arith.mulf %1, %3 : vector<512x128xf32>
    %c0_3 = arith.constant 0 : index
    %c0_4 = arith.constant 0 : index
    %5 = vector.load %arg4[%c0_3, %c0_4] : memref<1x128xf32, #tpu.memory_space<vmem>>, vector<1x128xf32>
    %6 = vector.broadcast %5 : vector<1x128xf32> to vector<512x128xf32>
    %7 = arith.addf %4, %6 : vector<512x128xf32>
    %c0_5 = arith.constant 0 : index
    %c0_6 = arith.constant 0 : index
    %8 = vector.load %arg2[%c0_5, %c0_6] : memref<512x128xf32, #tpu.memory_space<vmem>>, vector<512x128xf32>
    %9 = arith.addf %7, %8 : vector<512x128xf32>
    %cst = arith.constant 0.000000e+00 : f32
    %10 = vector.broadcast %cst : f32 to vector<512x128xf32>
    %11 = arith.maximumf %9, %10 : vector<512x128xf32>
    %c0_7 = arith.constant 0 : index
    %c0_8 = arith.constant 0 : index
    %12 = vector.load %arg5[%c0_7, %c0_8] : memref<512x128xf32, #tpu.memory_space<vmem>>, vector<512x128xf32>
    tpu.vector_store %arg5[%c0_7, %c0_8], %11 {strides = array<i32>} : memref<512x128xf32, #tpu.memory_space<vmem>>, vector<512x128xf32>,
    return
  }
  func.func @transform_0(%arg0: i32) -> (i32, i32) {
    %c0_i32 = arith.constant 0 : i32
    %c0_i32_0 = arith.constant 0 : i32
    return %arg0, %c0_i32 : i32, i32
  }
  func.func @transform_1(%arg0: i32) -> (i32, i32) {
    %c0_i32 = arith.constant 0 : i32
    %c0_i32_0 = arith.constant 0 : i32
    return %arg0, %c0_i32 : i32, i32
  }
  func.func @transform_2(%arg0: i32) -> (i32, i32) {
    %c0_i32 = arith.constant 0 : i32
    %c0_i32_0 = arith.constant 0 : i32
    %c0_i32_1 = arith.constant 0 : i32
    return %c0_i32, %c0_i32_0 : i32, i32
  }
  func.func @transform_3(%arg0: i32) -> (i32, i32) {
    %c0_i32 = arith.constant 0 : i32
    %c0_i32_0 = arith.constant 0 : i32
    %c0_i32_1 = arith.constant 0 : i32
    return %c0_i32, %c0_i32_0 : i32, i32
  }
  func.func @transform_4(%arg0: i32) -> (i32, i32) {
    %c0_i32 = arith.constant 0 : i32
    %c0_i32_0 = arith.constant 0 : i32
    return %arg0, %c0_i32 : i32, i32
  }
}

module attributes {stable_mosaic.version = 11 : i64} {
  func.func @_conv_stats_kernel(%arg0: i32, %arg1: memref<1x16x16x128xf32, #tpu.memory_space<vmem>>, %arg2: memref<1152x128xbf16, #tpu.memory_space<vmem>>, %arg3: memref<1x128xf32, #tpu.memory_space<vmem>>, %arg4: memref<1x16x16x128xbf16, #tpu.memory_space<vmem>>, %arg5: memref<1x2x128xf32, #tpu.memory_space<vmem>>, %arg6: memref<1x18x18x128xbf16, #tpu.memory_space<vmem>>) attributes {dimension_semantics = [#tpu.dimension_semantics<parallel>], iteration_bounds = array<i64: 2>, scalar_prefetch = 0 : i64, scratch_operands = 1 : i64, tpu.core_type = #tpu.core_type<tc>, window_params = [{transform_indices = @transform_0, window_bounds = array<i64: 1, 16, 16, 128>}, {pipeline_mode = #tpu.pipeline_mode<synchronous>, transform_indices = @transform_1, window_bounds = array<i64: 1152, 128>}, {pipeline_mode = #tpu.pipeline_mode<synchronous>, transform_indices = @transform_2, window_bounds = array<i64: 1, 128>}, {transform_indices = @transform_3, window_bounds = array<i64: 1, 16, 16, 128>}, {transform_indices = @transform_4, window_bounds = array<i64: 1, 2, 128>}]} {
    %c0 = arith.constant 0 : index
    %c0_0 = arith.constant 0 : index
    %c0_1 = arith.constant 0 : index
    %c0_2 = arith.constant 0 : index
    %0 = vector.load %arg1[%c0, %c0_0, %c0_1, %c0_2] : memref<1x16x16x128xf32, #tpu.memory_space<vmem>>, vector<1x16x16x128xf32>
    %1 = arith.truncf %0 : vector<1x16x16x128xf32> to vector<1x16x16x128xbf16>
    %cst = arith.constant 0.000000e+00 : bf16
    %2 = vector.broadcast %cst : bf16 to vector<1x1x18x128xbf16>
    %cst_3 = arith.constant 0.000000e+00 : bf16
    %3 = vector.broadcast %cst_3 : bf16 to vector<1x18x1x128xbf16>
    %c0_4 = arith.constant 0 : index
    %c0_5 = arith.constant 0 : index
    %c0_6 = arith.constant 0 : index
    %c0_7 = arith.constant 0 : index
    %4 = vector.load %arg6[%c0_4, %c0_5, %c0_6, %c0_7] : memref<1x18x18x128xbf16, #tpu.memory_space<vmem>>, vector<1x1x18x128xbf16>
    tpu.vector_store %arg6[%c0_4, %c0_5, %c0_6, %c0_7], %2 {strides = array<i32>} : memref<1x18x18x128xbf16, #tpu.memory_space<vmem>>, vector<1x1x18x128xbf16>,
    %c0_8 = arith.constant 0 : index
    %c17 = arith.constant 17 : index
    %c0_9 = arith.constant 0 : index
    %c0_10 = arith.constant 0 : index
    %5 = vector.load %arg6[%c0_8, %c17, %c0_9, %c0_10] : memref<1x18x18x128xbf16, #tpu.memory_space<vmem>>, vector<1x1x18x128xbf16>
    tpu.vector_store %arg6[%c0_8, %c17, %c0_9, %c0_10], %2 {strides = array<i32>} : memref<1x18x18x128xbf16, #tpu.memory_space<vmem>>, vector<1x1x18x128xbf16>,
    %c0_11 = arith.constant 0 : index
    %c0_12 = arith.constant 0 : index
    %c0_13 = arith.constant 0 : index
    %c0_14 = arith.constant 0 : index
    %6 = vector.load %arg6[%c0_11, %c0_12, %c0_13, %c0_14] : memref<1x18x18x128xbf16, #tpu.memory_space<vmem>>, vector<1x18x1x128xbf16>
    tpu.vector_store %arg6[%c0_11, %c0_12, %c0_13, %c0_14], %3 {strides = array<i32>} : memref<1x18x18x128xbf16, #tpu.memory_space<vmem>>, vector<1x18x1x128xbf16>,
    %c0_15 = arith.constant 0 : index
    %c0_16 = arith.constant 0 : index
    %c17_17 = arith.constant 17 : index
    %c0_18 = arith.constant 0 : index
    %7 = vector.load %arg6[%c0_15, %c0_16, %c17_17, %c0_18] : memref<1x18x18x128xbf16, #tpu.memory_space<vmem>>, vector<1x18x1x128xbf16>
    tpu.vector_store %arg6[%c0_15, %c0_16, %c17_17, %c0_18], %3 {strides = array<i32>} : memref<1x18x18x128xbf16, #tpu.memory_space<vmem>>, vector<1x18x1x128xbf16>,
    %c0_19 = arith.constant 0 : index
    %c1 = arith.constant 1 : index
    %c1_20 = arith.constant 1 : index
    %c0_21 = arith.constant 0 : index
    %8 = vector.load %arg6[%c0_19, %c1, %c1_20, %c0_21] : memref<1x18x18x128xbf16, #tpu.memory_space<vmem>>, vector<1x16x16x128xbf16>
    tpu.vector_store %arg6[%c0_19, %c1, %c1_20, %c0_21], %1 {strides = array<i32>} : memref<1x18x18x128xbf16, #tpu.memory_space<vmem>>, vector<1x16x16x128xbf16>,
    %c0_22 = arith.constant 0 : index
    %c0_23 = arith.constant 0 : index
    %c0_24 = arith.constant 0 : index
    %c0_25 = arith.constant 0 : index
    %9 = vector.load %arg6[%c0_22, %c0_23, %c0_24, %c0_25] : memref<1x18x18x128xbf16, #tpu.memory_space<vmem>>, vector<1x16x16x128xbf16>
    %10 = vector.shape_cast %9 : vector<1x16x16x128xbf16> to vector<256x128xbf16>
    %c0_26 = arith.constant 0 : index
    %c0_27 = arith.constant 0 : index
    %c1_28 = arith.constant 1 : index
    %c0_29 = arith.constant 0 : index
    %11 = vector.load %arg6[%c0_26, %c0_27, %c1_28, %c0_29] : memref<1x18x18x128xbf16, #tpu.memory_space<vmem>>, vector<1x16x16x128xbf16>
    %12 = vector.shape_cast %11 : vector<1x16x16x128xbf16> to vector<256x128xbf16>
    %c0_30 = arith.constant 0 : index
    %c0_31 = arith.constant 0 : index
    %c2 = arith.constant 2 : index
    %c0_32 = arith.constant 0 : index
    %13 = vector.load %arg6[%c0_30, %c0_31, %c2, %c0_32] : memref<1x18x18x128xbf16, #tpu.memory_space<vmem>>, vector<1x16x16x128xbf16>
    %14 = vector.shape_cast %13 : vector<1x16x16x128xbf16> to vector<256x128xbf16>
    %15 = tpu.concatenate %10, %12, %14 in 1 : vector<256x128xbf16>, vector<256x128xbf16>, vector<256x128xbf16> -> vector<256x384xbf16>
    %c0_33 = arith.constant 0 : index
    %c0_34 = arith.constant 0 : index
    %16 = vector.load %arg2[%c0_33, %c0_34] : memref<1152x128xbf16, #tpu.memory_space<vmem>>, vector<384x128xbf16>
    %cst_35 = arith.constant dense<0.000000e+00> : vector<256x128xf32>
    %17 = tpu.matmul %15, %16, %cst_35 {dimension_numbers = #tpu.dot_dimension_numbers<[1], [0], [0], [1], [0, 0, 1, 1], [], []>} : vector<256x384xbf16>, vector<384x128xbf16>, vector<256x128xf32> -> vector<256x128xf32>
    %c0_36 = arith.constant 0 : index
    %c1_37 = arith.constant 1 : index
    %c0_38 = arith.constant 0 : index
    %c0_39 = arith.constant 0 : index
    %18 = vector.load %arg6[%c0_36, %c1_37, %c0_38, %c0_39] : memref<1x18x18x128xbf16, #tpu.memory_space<vmem>>, vector<1x16x16x128xbf16>
    %19 = vector.shape_cast %18 : vector<1x16x16x128xbf16> to vector<256x128xbf16>
    %c0_40 = arith.constant 0 : index
    %c1_41 = arith.constant 1 : index
    %c1_42 = arith.constant 1 : index
    %c0_43 = arith.constant 0 : index
    %20 = vector.load %arg6[%c0_40, %c1_41, %c1_42, %c0_43] : memref<1x18x18x128xbf16, #tpu.memory_space<vmem>>, vector<1x16x16x128xbf16>
    %21 = vector.shape_cast %20 : vector<1x16x16x128xbf16> to vector<256x128xbf16>
    %c0_44 = arith.constant 0 : index
    %c1_45 = arith.constant 1 : index
    %c2_46 = arith.constant 2 : index
    %c0_47 = arith.constant 0 : index
    %22 = vector.load %arg6[%c0_44, %c1_45, %c2_46, %c0_47] : memref<1x18x18x128xbf16, #tpu.memory_space<vmem>>, vector<1x16x16x128xbf16>
    %23 = vector.shape_cast %22 : vector<1x16x16x128xbf16> to vector<256x128xbf16>
    %24 = tpu.concatenate %19, %21, %23 in 1 : vector<256x128xbf16>, vector<256x128xbf16>, vector<256x128xbf16> -> vector<256x384xbf16>
    %c384 = arith.constant 384 : index
    %c0_48 = arith.constant 0 : index
    %25 = vector.load %arg2[%c384, %c0_48] : memref<1152x128xbf16, #tpu.memory_space<vmem>>, vector<384x128xbf16>
    %cst_49 = arith.constant dense<0.000000e+00> : vector<256x128xf32>
    %26 = tpu.matmul %24, %25, %cst_49 {dimension_numbers = #tpu.dot_dimension_numbers<[1], [0], [0], [1], [0, 0, 1, 1], [], []>} : vector<256x384xbf16>, vector<384x128xbf16>, vector<256x128xf32> -> vector<256x128xf32>
    %27 = arith.addf %17, %26 : vector<256x128xf32>
    %c0_50 = arith.constant 0 : index
    %c2_51 = arith.constant 2 : index
    %c0_52 = arith.constant 0 : index
    %c0_53 = arith.constant 0 : index
    %28 = vector.load %arg6[%c0_50, %c2_51, %c0_52, %c0_53] : memref<1x18x18x128xbf16, #tpu.memory_space<vmem>>, vector<1x16x16x128xbf16>
    %29 = vector.shape_cast %28 : vector<1x16x16x128xbf16> to vector<256x128xbf16>
    %c0_54 = arith.constant 0 : index
    %c2_55 = arith.constant 2 : index
    %c1_56 = arith.constant 1 : index
    %c0_57 = arith.constant 0 : index
    %30 = vector.load %arg6[%c0_54, %c2_55, %c1_56, %c0_57] : memref<1x18x18x128xbf16, #tpu.memory_space<vmem>>, vector<1x16x16x128xbf16>
    %31 = vector.shape_cast %30 : vector<1x16x16x128xbf16> to vector<256x128xbf16>
    %c0_58 = arith.constant 0 : index
    %c2_59 = arith.constant 2 : index
    %c2_60 = arith.constant 2 : index
    %c0_61 = arith.constant 0 : index
    %32 = vector.load %arg6[%c0_58, %c2_59, %c2_60, %c0_61] : memref<1x18x18x128xbf16, #tpu.memory_space<vmem>>, vector<1x16x16x128xbf16>
    %33 = vector.shape_cast %32 : vector<1x16x16x128xbf16> to vector<256x128xbf16>
    %34 = tpu.concatenate %29, %31, %33 in 1 : vector<256x128xbf16>, vector<256x128xbf16>, vector<256x128xbf16> -> vector<256x384xbf16>
    %c768 = arith.constant 768 : index
    %c0_62 = arith.constant 0 : index
    %35 = vector.load %arg2[%c768, %c0_62] : memref<1152x128xbf16, #tpu.memory_space<vmem>>, vector<384x128xbf16>
    %cst_63 = arith.constant dense<0.000000e+00> : vector<256x128xf32>
    %36 = tpu.matmul %34, %35, %cst_63 {dimension_numbers = #tpu.dot_dimension_numbers<[1], [0], [0], [1], [0, 0, 1, 1], [], []>} : vector<256x384xbf16>, vector<384x128xbf16>, vector<256x128xf32> -> vector<256x128xf32>
    %37 = arith.addf %27, %36 : vector<256x128xf32>
    %c0_64 = arith.constant 0 : index
    %c0_65 = arith.constant 0 : index
    %38 = vector.load %arg3[%c0_64, %c0_65] : memref<1x128xf32, #tpu.memory_space<vmem>>, vector<1x128xf32>
    %39 = vector.broadcast %38 : vector<1x128xf32> to vector<256x128xf32>
    %40 = arith.addf %37, %39 : vector<256x128xf32>
    %cst_66 = arith.constant dense<0.000000e+00> : vector<128xf32>
    %41 = vector.multi_reduction <add>, %40, %cst_66 [0] : vector<256x128xf32> to vector<128xf32>
    %42 = vector.shape_cast %41 : vector<128xf32> to vector<1x128xf32>
    %43 = vector.shape_cast %42 : vector<1x128xf32> to vector<1x1x128xf32>
    %c0_67 = arith.constant 0 : index
    %c0_68 = arith.constant 0 : index
    %c0_69 = arith.constant 0 : index
    %44 = vector.load %arg5[%c0_67, %c0_68, %c0_69] : memref<1x2x128xf32, #tpu.memory_space<vmem>>, vector<1x1x128xf32>
    tpu.vector_store %arg5[%c0_67, %c0_68, %c0_69], %43 {strides = array<i32>} : memref<1x2x128xf32, #tpu.memory_space<vmem>>, vector<1x1x128xf32>,
    %45 = arith.mulf %40, %40 : vector<256x128xf32>
    %cst_70 = arith.constant dense<0.000000e+00> : vector<128xf32>
    %46 = vector.multi_reduction <add>, %45, %cst_70 [0] : vector<256x128xf32> to vector<128xf32>
    %47 = vector.shape_cast %46 : vector<128xf32> to vector<1x128xf32>
    %48 = vector.shape_cast %47 : vector<1x128xf32> to vector<1x1x128xf32>
    %c0_71 = arith.constant 0 : index
    %c1_72 = arith.constant 1 : index
    %c0_73 = arith.constant 0 : index
    %49 = vector.load %arg5[%c0_71, %c1_72, %c0_73] : memref<1x2x128xf32, #tpu.memory_space<vmem>>, vector<1x1x128xf32>
    tpu.vector_store %arg5[%c0_71, %c1_72, %c0_73], %48 {strides = array<i32>} : memref<1x2x128xf32, #tpu.memory_space<vmem>>, vector<1x1x128xf32>,
    %50 = vector.shape_cast %40 : vector<256x128xf32> to vector<1x16x16x128xf32>
    %51 = arith.truncf %50 : vector<1x16x16x128xf32> to vector<1x16x16x128xbf16>
    %c0_74 = arith.constant 0 : index
    %c0_75 = arith.constant 0 : index
    %c0_76 = arith.constant 0 : index
    %c0_77 = arith.constant 0 : index
    %52 = vector.load %arg4[%c0_74, %c0_75, %c0_76, %c0_77] : memref<1x16x16x128xbf16, #tpu.memory_space<vmem>>, vector<1x16x16x128xbf16>
    tpu.vector_store %arg4[%c0_74, %c0_75, %c0_76, %c0_77], %51 {strides = array<i32>} : memref<1x16x16x128xbf16, #tpu.memory_space<vmem>>, vector<1x16x16x128xbf16>,
    return
  }
  func.func @transform_0(%arg0: i32) -> (i32, i32, i32, i32) {
    %c0_i32 = arith.constant 0 : i32
    %c0_i32_0 = arith.constant 0 : i32
    %c0_i32_1 = arith.constant 0 : i32
    %c0_i32_2 = arith.constant 0 : i32
    return %arg0, %c0_i32, %c0_i32_0, %c0_i32_1 : i32, i32, i32, i32
  }
  func.func @transform_1(%arg0: i32) -> (i32, i32) {
    %c0_i32 = arith.constant 0 : i32
    %c0_i32_0 = arith.constant 0 : i32
    %c0_i32_1 = arith.constant 0 : i32
    return %c0_i32, %c0_i32_0 : i32, i32
  }
  func.func @transform_2(%arg0: i32) -> (i32, i32) {
    %c0_i32 = arith.constant 0 : i32
    %c0_i32_0 = arith.constant 0 : i32
    %c0_i32_1 = arith.constant 0 : i32
    return %c0_i32, %c0_i32_0 : i32, i32
  }
  func.func @transform_3(%arg0: i32) -> (i32, i32, i32, i32) {
    %c0_i32 = arith.constant 0 : i32
    %c0_i32_0 = arith.constant 0 : i32
    %c0_i32_1 = arith.constant 0 : i32
    %c0_i32_2 = arith.constant 0 : i32
    return %arg0, %c0_i32, %c0_i32_0, %c0_i32_1 : i32, i32, i32, i32
  }
  func.func @transform_4(%arg0: i32) -> (i32, i32, i32) {
    %c0_i32 = arith.constant 0 : i32
    %c0_i32_0 = arith.constant 0 : i32
    %c0_i32_1 = arith.constant 0 : i32
    return %arg0, %c0_i32, %c0_i32_0 : i32, i32, i32
  }
}

module attributes {stable_mosaic.version = 11 : i64} {
  func.func @_bnrelu_conv_stats_kernel(%arg0: i32, %arg1: memref<1x16x16x128xbf16, #tpu.memory_space<vmem>>, %arg2: memref<1x128xf32, #tpu.memory_space<vmem>>, %arg3: memref<1x128xf32, #tpu.memory_space<vmem>>, %arg4: memref<1152x128xbf16, #tpu.memory_space<vmem>>, %arg5: memref<1x128xf32, #tpu.memory_space<vmem>>, %arg6: memref<1x16x16x128xbf16, #tpu.memory_space<vmem>>, %arg7: memref<1x2x128xf32, #tpu.memory_space<vmem>>, %arg8: memref<1x18x18x128xbf16, #tpu.memory_space<vmem>>) attributes {dimension_semantics = [#tpu.dimension_semantics<parallel>], iteration_bounds = array<i64: 2>, scalar_prefetch = 0 : i64, scratch_operands = 1 : i64, tpu.core_type = #tpu.core_type<tc>, window_params = [{transform_indices = @transform_0, window_bounds = array<i64: 1, 16, 16, 128>}, {pipeline_mode = #tpu.pipeline_mode<synchronous>, transform_indices = @transform_1, window_bounds = array<i64: 1, 128>}, {pipeline_mode = #tpu.pipeline_mode<synchronous>, transform_indices = @transform_2, window_bounds = array<i64: 1, 128>}, {pipeline_mode = #tpu.pipeline_mode<synchronous>, transform_indices = @transform_3, window_bounds = array<i64: 1152, 128>}, {pipeline_mode = #tpu.pipeline_mode<synchronous>, transform_indices = @transform_4, window_bounds = array<i64: 1, 128>}, {transform_indices = @transform_5, window_bounds = array<i64: 1, 16, 16, 128>}, {transform_indices = @transform_6, window_bounds = array<i64: 1, 2, 128>}]} {
    %c0 = arith.constant 0 : index
    %c0_0 = arith.constant 0 : index
    %c0_1 = arith.constant 0 : index
    %c0_2 = arith.constant 0 : index
    %0 = vector.load %arg1[%c0, %c0_0, %c0_1, %c0_2] : memref<1x16x16x128xbf16, #tpu.memory_space<vmem>>, vector<1x16x16x128xbf16>
    %1 = arith.extf %0 : vector<1x16x16x128xbf16> to vector<1x16x16x128xf32>
    %c0_3 = arith.constant 0 : index
    %c0_4 = arith.constant 0 : index
    %2 = vector.load %arg2[%c0_3, %c0_4] : memref<1x128xf32, #tpu.memory_space<vmem>>, vector<1x128xf32>
    %3 = vector.shape_cast %2 : vector<1x128xf32> to vector<1x1x1x128xf32>
    %4 = vector.broadcast %3 : vector<1x1x1x128xf32> to vector<1x16x16x128xf32>
    %5 = arith.mulf %1, %4 : vector<1x16x16x128xf32>
    %c0_5 = arith.constant 0 : index
    %c0_6 = arith.constant 0 : index
    %6 = vector.load %arg3[%c0_5, %c0_6] : memref<1x128xf32, #tpu.memory_space<vmem>>, vector<1x128xf32>
    %7 = vector.shape_cast %6 : vector<1x128xf32> to vector<1x1x1x128xf32>
    %8 = vector.broadcast %7 : vector<1x1x1x128xf32> to vector<1x16x16x128xf32>
    %9 = arith.addf %5, %8 : vector<1x16x16x128xf32>
    %cst = arith.constant 0.000000e+00 : f32
    %10 = vector.broadcast %cst : f32 to vector<1x16x16x128xf32>
    %11 = arith.maximumf %9, %10 : vector<1x16x16x128xf32>
    %12 = arith.truncf %11 : vector<1x16x16x128xf32> to vector<1x16x16x128xbf16>
    %cst_7 = arith.constant 0.000000e+00 : bf16
    %13 = vector.broadcast %cst_7 : bf16 to vector<1x1x18x128xbf16>
    %cst_8 = arith.constant 0.000000e+00 : bf16
    %14 = vector.broadcast %cst_8 : bf16 to vector<1x18x1x128xbf16>
    %c0_9 = arith.constant 0 : index
    %c0_10 = arith.constant 0 : index
    %c0_11 = arith.constant 0 : index
    %c0_12 = arith.constant 0 : index
    %15 = vector.load %arg8[%c0_9, %c0_10, %c0_11, %c0_12] : memref<1x18x18x128xbf16, #tpu.memory_space<vmem>>, vector<1x1x18x128xbf16>
    tpu.vector_store %arg8[%c0_9, %c0_10, %c0_11, %c0_12], %13 {strides = array<i32>} : memref<1x18x18x128xbf16, #tpu.memory_space<vmem>>, vector<1x1x18x128xbf16>,
    %c0_13 = arith.constant 0 : index
    %c17 = arith.constant 17 : index
    %c0_14 = arith.constant 0 : index
    %c0_15 = arith.constant 0 : index
    %16 = vector.load %arg8[%c0_13, %c17, %c0_14, %c0_15] : memref<1x18x18x128xbf16, #tpu.memory_space<vmem>>, vector<1x1x18x128xbf16>
    tpu.vector_store %arg8[%c0_13, %c17, %c0_14, %c0_15], %13 {strides = array<i32>} : memref<1x18x18x128xbf16, #tpu.memory_space<vmem>>, vector<1x1x18x128xbf16>,
    %c0_16 = arith.constant 0 : index
    %c0_17 = arith.constant 0 : index
    %c0_18 = arith.constant 0 : index
    %c0_19 = arith.constant 0 : index
    %17 = vector.load %arg8[%c0_16, %c0_17, %c0_18, %c0_19] : memref<1x18x18x128xbf16, #tpu.memory_space<vmem>>, vector<1x18x1x128xbf16>
    tpu.vector_store %arg8[%c0_16, %c0_17, %c0_18, %c0_19], %14 {strides = array<i32>} : memref<1x18x18x128xbf16, #tpu.memory_space<vmem>>, vector<1x18x1x128xbf16>,
    %c0_20 = arith.constant 0 : index
    %c0_21 = arith.constant 0 : index
    %c17_22 = arith.constant 17 : index
    %c0_23 = arith.constant 0 : index
    %18 = vector.load %arg8[%c0_20, %c0_21, %c17_22, %c0_23] : memref<1x18x18x128xbf16, #tpu.memory_space<vmem>>, vector<1x18x1x128xbf16>
    tpu.vector_store %arg8[%c0_20, %c0_21, %c17_22, %c0_23], %14 {strides = array<i32>} : memref<1x18x18x128xbf16, #tpu.memory_space<vmem>>, vector<1x18x1x128xbf16>,
    %c0_24 = arith.constant 0 : index
    %c1 = arith.constant 1 : index
    %c1_25 = arith.constant 1 : index
    %c0_26 = arith.constant 0 : index
    %19 = vector.load %arg8[%c0_24, %c1, %c1_25, %c0_26] : memref<1x18x18x128xbf16, #tpu.memory_space<vmem>>, vector<1x16x16x128xbf16>
    tpu.vector_store %arg8[%c0_24, %c1, %c1_25, %c0_26], %12 {strides = array<i32>} : memref<1x18x18x128xbf16, #tpu.memory_space<vmem>>, vector<1x16x16x128xbf16>,
    %c0_27 = arith.constant 0 : index
    %c0_28 = arith.constant 0 : index
    %c0_29 = arith.constant 0 : index
    %c0_30 = arith.constant 0 : index
    %20 = vector.load %arg8[%c0_27, %c0_28, %c0_29, %c0_30] : memref<1x18x18x128xbf16, #tpu.memory_space<vmem>>, vector<1x16x16x128xbf16>
    %21 = vector.shape_cast %20 : vector<1x16x16x128xbf16> to vector<256x128xbf16>
    %c0_31 = arith.constant 0 : index
    %c0_32 = arith.constant 0 : index
    %c1_33 = arith.constant 1 : index
    %c0_34 = arith.constant 0 : index
    %22 = vector.load %arg8[%c0_31, %c0_32, %c1_33, %c0_34] : memref<1x18x18x128xbf16, #tpu.memory_space<vmem>>, vector<1x16x16x128xbf16>
    %23 = vector.shape_cast %22 : vector<1x16x16x128xbf16> to vector<256x128xbf16>
    %c0_35 = arith.constant 0 : index
    %c0_36 = arith.constant 0 : index
    %c2 = arith.constant 2 : index
    %c0_37 = arith.constant 0 : index
    %24 = vector.load %arg8[%c0_35, %c0_36, %c2, %c0_37] : memref<1x18x18x128xbf16, #tpu.memory_space<vmem>>, vector<1x16x16x128xbf16>
    %25 = vector.shape_cast %24 : vector<1x16x16x128xbf16> to vector<256x128xbf16>
    %26 = tpu.concatenate %21, %23, %25 in 1 : vector<256x128xbf16>, vector<256x128xbf16>, vector<256x128xbf16> -> vector<256x384xbf16>
    %c0_38 = arith.constant 0 : index
    %c0_39 = arith.constant 0 : index
    %27 = vector.load %arg4[%c0_38, %c0_39] : memref<1152x128xbf16, #tpu.memory_space<vmem>>, vector<384x128xbf16>
    %cst_40 = arith.constant dense<0.000000e+00> : vector<256x128xf32>
    %28 = tpu.matmul %26, %27, %cst_40 {dimension_numbers = #tpu.dot_dimension_numbers<[1], [0], [0], [1], [0, 0, 1, 1], [], []>} : vector<256x384xbf16>, vector<384x128xbf16>, vector<256x128xf32> -> vector<256x128xf32>
    %c0_41 = arith.constant 0 : index
    %c1_42 = arith.constant 1 : index
    %c0_43 = arith.constant 0 : index
    %c0_44 = arith.constant 0 : index
    %29 = vector.load %arg8[%c0_41, %c1_42, %c0_43, %c0_44] : memref<1x18x18x128xbf16, #tpu.memory_space<vmem>>, vector<1x16x16x128xbf16>
    %30 = vector.shape_cast %29 : vector<1x16x16x128xbf16> to vector<256x128xbf16>
    %c0_45 = arith.constant 0 : index
    %c1_46 = arith.constant 1 : index
    %c1_47 = arith.constant 1 : index
    %c0_48 = arith.constant 0 : index
    %31 = vector.load %arg8[%c0_45, %c1_46, %c1_47, %c0_48] : memref<1x18x18x128xbf16, #tpu.memory_space<vmem>>, vector<1x16x16x128xbf16>
    %32 = vector.shape_cast %31 : vector<1x16x16x128xbf16> to vector<256x128xbf16>
    %c0_49 = arith.constant 0 : index
    %c1_50 = arith.constant 1 : index
    %c2_51 = arith.constant 2 : index
    %c0_52 = arith.constant 0 : index
    %33 = vector.load %arg8[%c0_49, %c1_50, %c2_51, %c0_52] : memref<1x18x18x128xbf16, #tpu.memory_space<vmem>>, vector<1x16x16x128xbf16>
    %34 = vector.shape_cast %33 : vector<1x16x16x128xbf16> to vector<256x128xbf16>
    %35 = tpu.concatenate %30, %32, %34 in 1 : vector<256x128xbf16>, vector<256x128xbf16>, vector<256x128xbf16> -> vector<256x384xbf16>
    %c384 = arith.constant 384 : index
    %c0_53 = arith.constant 0 : index
    %36 = vector.load %arg4[%c384, %c0_53] : memref<1152x128xbf16, #tpu.memory_space<vmem>>, vector<384x128xbf16>
    %cst_54 = arith.constant dense<0.000000e+00> : vector<256x128xf32>
    %37 = tpu.matmul %35, %36, %cst_54 {dimension_numbers = #tpu.dot_dimension_numbers<[1], [0], [0], [1], [0, 0, 1, 1], [], []>} : vector<256x384xbf16>, vector<384x128xbf16>, vector<256x128xf32> -> vector<256x128xf32>
    %38 = arith.addf %28, %37 : vector<256x128xf32>
    %c0_55 = arith.constant 0 : index
    %c2_56 = arith.constant 2 : index
    %c0_57 = arith.constant 0 : index
    %c0_58 = arith.constant 0 : index
    %39 = vector.load %arg8[%c0_55, %c2_56, %c0_57, %c0_58] : memref<1x18x18x128xbf16, #tpu.memory_space<vmem>>, vector<1x16x16x128xbf16>
    %40 = vector.shape_cast %39 : vector<1x16x16x128xbf16> to vector<256x128xbf16>
    %c0_59 = arith.constant 0 : index
    %c2_60 = arith.constant 2 : index
    %c1_61 = arith.constant 1 : index
    %c0_62 = arith.constant 0 : index
    %41 = vector.load %arg8[%c0_59, %c2_60, %c1_61, %c0_62] : memref<1x18x18x128xbf16, #tpu.memory_space<vmem>>, vector<1x16x16x128xbf16>
    %42 = vector.shape_cast %41 : vector<1x16x16x128xbf16> to vector<256x128xbf16>
    %c0_63 = arith.constant 0 : index
    %c2_64 = arith.constant 2 : index
    %c2_65 = arith.constant 2 : index
    %c0_66 = arith.constant 0 : index
    %43 = vector.load %arg8[%c0_63, %c2_64, %c2_65, %c0_66] : memref<1x18x18x128xbf16, #tpu.memory_space<vmem>>, vector<1x16x16x128xbf16>
    %44 = vector.shape_cast %43 : vector<1x16x16x128xbf16> to vector<256x128xbf16>
    %45 = tpu.concatenate %40, %42, %44 in 1 : vector<256x128xbf16>, vector<256x128xbf16>, vector<256x128xbf16> -> vector<256x384xbf16>
    %c768 = arith.constant 768 : index
    %c0_67 = arith.constant 0 : index
    %46 = vector.load %arg4[%c768, %c0_67] : memref<1152x128xbf16, #tpu.memory_space<vmem>>, vector<384x128xbf16>
    %cst_68 = arith.constant dense<0.000000e+00> : vector<256x128xf32>
    %47 = tpu.matmul %45, %46, %cst_68 {dimension_numbers = #tpu.dot_dimension_numbers<[1], [0], [0], [1], [0, 0, 1, 1], [], []>} : vector<256x384xbf16>, vector<384x128xbf16>, vector<256x128xf32> -> vector<256x128xf32>
    %48 = arith.addf %38, %47 : vector<256x128xf32>
    %c0_69 = arith.constant 0 : index
    %c0_70 = arith.constant 0 : index
    %49 = vector.load %arg5[%c0_69, %c0_70] : memref<1x128xf32, #tpu.memory_space<vmem>>, vector<1x128xf32>
    %50 = vector.broadcast %49 : vector<1x128xf32> to vector<256x128xf32>
    %51 = arith.addf %48, %50 : vector<256x128xf32>
    %cst_71 = arith.constant dense<0.000000e+00> : vector<128xf32>
    %52 = vector.multi_reduction <add>, %51, %cst_71 [0] : vector<256x128xf32> to vector<128xf32>
    %53 = vector.shape_cast %52 : vector<128xf32> to vector<1x128xf32>
    %54 = vector.shape_cast %53 : vector<1x128xf32> to vector<1x1x128xf32>
    %c0_72 = arith.constant 0 : index
    %c0_73 = arith.constant 0 : index
    %c0_74 = arith.constant 0 : index
    %55 = vector.load %arg7[%c0_72, %c0_73, %c0_74] : memref<1x2x128xf32, #tpu.memory_space<vmem>>, vector<1x1x128xf32>
    tpu.vector_store %arg7[%c0_72, %c0_73, %c0_74], %54 {strides = array<i32>} : memref<1x2x128xf32, #tpu.memory_space<vmem>>, vector<1x1x128xf32>,
    %56 = arith.mulf %51, %51 : vector<256x128xf32>
    %cst_75 = arith.constant dense<0.000000e+00> : vector<128xf32>
    %57 = vector.multi_reduction <add>, %56, %cst_75 [0] : vector<256x128xf32> to vector<128xf32>
    %58 = vector.shape_cast %57 : vector<128xf32> to vector<1x128xf32>
    %59 = vector.shape_cast %58 : vector<1x128xf32> to vector<1x1x128xf32>
    %c0_76 = arith.constant 0 : index
    %c1_77 = arith.constant 1 : index
    %c0_78 = arith.constant 0 : index
    %60 = vector.load %arg7[%c0_76, %c1_77, %c0_78] : memref<1x2x128xf32, #tpu.memory_space<vmem>>, vector<1x1x128xf32>
    tpu.vector_store %arg7[%c0_76, %c1_77, %c0_78], %59 {strides = array<i32>} : memref<1x2x128xf32, #tpu.memory_space<vmem>>, vector<1x1x128xf32>,
    %61 = vector.shape_cast %51 : vector<256x128xf32> to vector<1x16x16x128xf32>
    %62 = arith.truncf %61 : vector<1x16x16x128xf32> to vector<1x16x16x128xbf16>
    %c0_79 = arith.constant 0 : index
    %c0_80 = arith.constant 0 : index
    %c0_81 = arith.constant 0 : index
    %c0_82 = arith.constant 0 : index
    %63 = vector.load %arg6[%c0_79, %c0_80, %c0_81, %c0_82] : memref<1x16x16x128xbf16, #tpu.memory_space<vmem>>, vector<1x16x16x128xbf16>
    tpu.vector_store %arg6[%c0_79, %c0_80, %c0_81, %c0_82], %62 {strides = array<i32>} : memref<1x16x16x128xbf16, #tpu.memory_space<vmem>>, vector<1x16x16x128xbf16>,
    return
  }
  func.func @transform_0(%arg0: i32) -> (i32, i32, i32, i32) {
    %c0_i32 = arith.constant 0 : i32
    %c0_i32_0 = arith.constant 0 : i32
    %c0_i32_1 = arith.constant 0 : i32
    %c0_i32_2 = arith.constant 0 : i32
    return %arg0, %c0_i32, %c0_i32_0, %c0_i32_1 : i32, i32, i32, i32
  }
  func.func @transform_1(%arg0: i32) -> (i32, i32) {
    %c0_i32 = arith.constant 0 : i32
    %c0_i32_0 = arith.constant 0 : i32
    %c0_i32_1 = arith.constant 0 : i32
    return %c0_i32, %c0_i32_0 : i32, i32
  }
  func.func @transform_2(%arg0: i32) -> (i32, i32) {
    %c0_i32 = arith.constant 0 : i32
    %c0_i32_0 = arith.constant 0 : i32
    %c0_i32_1 = arith.constant 0 : i32
    return %c0_i32, %c0_i32_0 : i32, i32
  }
  func.func @transform_3(%arg0: i32) -> (i32, i32) {
    %c0_i32 = arith.constant 0 : i32
    %c0_i32_0 = arith.constant 0 : i32
    %c0_i32_1 = arith.constant 0 : i32
    return %c0_i32, %c0_i32_0 : i32, i32
  }
  func.func @transform_4(%arg0: i32) -> (i32, i32) {
    %c0_i32 = arith.constant 0 : i32
    %c0_i32_0 = arith.constant 0 : i32
    %c0_i32_1 = arith.constant 0 : i32
    return %c0_i32, %c0_i32_0 : i32, i32
  }
  func.func @transform_5(%arg0: i32) -> (i32, i32, i32, i32) {
    %c0_i32 = arith.constant 0 : i32
    %c0_i32_0 = arith.constant 0 : i32
    %c0_i32_1 = arith.constant 0 : i32
    %c0_i32_2 = arith.constant 0 : i32
    return %arg0, %c0_i32, %c0_i32_0, %c0_i32_1 : i32, i32, i32, i32
  }
  func.func @transform_6(%arg0: i32) -> (i32, i32, i32) {
    %c0_i32 = arith.constant 0 : i32
    %c0_i32_0 = arith.constant 0 : i32
    %c0_i32_1 = arith.constant 0 : i32
    return %arg0, %c0_i32, %c0_i32_0 : i32, i32, i32
  }
}

</mosaic_0001>

<llo_original>
// kernel: residual_block_nchw.5
$region0: #{residual_block_nchw.5}
  #allocation0 [shape = 'u32[]', space=smem, size = 0x4, offset = 0x4, fixed_abs, tag = 'smem constant byte address 0x4 - core index']
  #allocation1 [shape = 'u32[144,128]{1,0:T(1,128)}', space=vmem, size = 0x12000, scoped, tag = 'internal scratch']
  %s0 = inlined_call_operand.vmem [shape: bf16[512,128], index: 0, kind: input, shape index: {}]
  %s1 = inlined_call_operand.vmem [shape: f32[512,128], index: 1, kind: input, shape index: {}]
  %s2 = inlined_call_operand.vmem [shape: f32[1,128], index: 2, kind: input, shape index: {}]
  %s3 = inlined_call_operand.vmem [shape: f32[1,128], index: 3, kind: input, shape index: {}]
  %s4 = inlined_call_operand.vmem [shape: f32[512,128], index: 4, kind: output, shape index: {}]
  %s5 = sld [smem:[#allocation0]]
  $region26: #{residual_block_nchw.5} parent=0
    _
  %s7 = ssub.s32 1, %s5
  %s8 = scalar_select 0, %s7, %s5
  // Predicated region
  $region2: #{residual_block_nchw.5} parent=0 // pred_check
    _
  $region3: #{residual_block_nchw.5} parent=0 // pred_check_branch
    %10 = sbr.rel (0) target = $region5
  $region4: #{residual_block_nchw.5} parent=0 // pred_region
    _
  $region5: #{residual_block_nchw.5} parent=0 // pred_fallthru
    _
  // Predicated region
  $region6: #{residual_block_nchw.5} parent=0 // pred_check
    _
  $region7: #{residual_block_nchw.5} parent=0 // pred_check_branch
    %12 = sbr.rel (0) target = $region9
  $region8: #{residual_block_nchw.5} parent=0 // pred_region
    _
  $region9: #{residual_block_nchw.5} parent=0 // pred_fallthru
    _
  // Predicated region
  $region10: #{residual_block_nchw.5} parent=0 // pred_check
    _
  $region11: #{residual_block_nchw.5} parent=0 // pred_check_branch
    %14 = sbr.rel (0) target = $region13
  $region12: #{residual_block_nchw.5} parent=0 // pred_region
    _
  $region13: #{residual_block_nchw.5} parent=0 // pred_fallthru
    _
  // Predicated region
  $region14: #{residual_block_nchw.5} parent=0 // pred_check
    _
  $region15: #{residual_block_nchw.5} parent=0 // pred_check_branch
    %16 = sbr.rel (0) target = $region17
  $region16: #{residual_block_nchw.5} parent=0 // pred_region
    _
  $region17: #{residual_block_nchw.5} parent=0 // pred_fallthru
    _
  %v17 = vld [vmem:[%s0] sm:$0xf]
  %v18 = vld [vmem:[%s0 + $0x4] sm:$0xf]
  %v19 = vld [vmem:[%s0 + $0x8] sm:$0xf]
  %v20 = vld [vmem:[%s0 + $0xc] sm:$0xf]
  %v21 = vld [vmem:[%s0 + $0x10] sm:$0xf]
  %v22 = vld [vmem:[%s0 + $0x14] sm:$0xf]
  %v23 = vld [vmem:[%s0 + $0x18] sm:$0xf]
  %v24 = vld [vmem:[%s0 + $0x1c] sm:$0xf]
  %v25 = vld [vmem:[%s0 + $0x20] sm:$0xf]
  %v26 = vld [vmem:[%s0 + $0x24] sm:$0xf]
  %v27 = vld [vmem:[%s0 + $0x28] sm:$0xf]
  %v28 = vld [vmem:[%s0 + $0x2c] sm:$0xf]
  %v29 = vld [vmem:[%s0 + $0x30] sm:$0xf]
  %v30 = vld [vmem:[%s0 + $0x34] sm:$0xf]
  %v31 = vld [vmem:[%s0 + $0x38] sm:$0xf]
  %v32 = vld [vmem:[%s0 + $0x3c] sm:$0xf]
  %v33 = vld [vmem:[%s0 + $0x40] sm:$0xf]
  %v34 = vld [vmem:[%s0 + $0x44] sm:$0xf]
  %v35 = vld [vmem:[%s0 + $0x48] sm:$0xf]
  %v36 = vld [vmem:[%s0 + $0x4c] sm:$0xf]
  %v37 = vld [vmem:[%s0 + $0x50] sm:$0xf]
  %v38 = vld [vmem:[%s0 + $0x54] sm:$0xf]
  %v39 = vld [vmem:[%s0 + $0x58] sm:$0xf]
  %v40 = vld [vmem:[%s0 + $0x5c] sm:$0xf]
  %v41 = vld [vmem:[%s0 + $0x60] sm:$0xf]
  %v42 = vld [vmem:[%s0 + $0x64] sm:$0xf]
  %v43 = vld [vmem:[%s0 + $0x68] sm:$0xf]
  %v44 = vld [vmem:[%s0 + $0x6c] sm:$0xf]
  %v45 = vld [vmem:[%s0 + $0x70] sm:$0xf]
  %v46 = vld [vmem:[%s0 + $0x74] sm:$0xf]
  %v47 = vld [vmem:[%s0 + $0x78] sm:$0xf]
  %v48 = vld [vmem:[%s0 + $0x7c] sm:$0xf]
  %v49 = vld [vmem:[%s0 + $0x80] sm:$0xf]
  %v50 = vld [vmem:[%s0 + $0x84] sm:$0xf]
  %v51 = vld [vmem:[%s0 + $0x88] sm:$0xf]
  %v52 = vld [vmem:[%s0 + $0x8c] sm:$0xf]
  %v53 = vld [vmem:[%s0 + $0x90] sm:$0xf]
  %v54 = vld [vmem:[%s0 + $0x94] sm:$0xf]
  %v55 = vld [vmem:[%s0 + $0x98] sm:$0xf]
  %v56 = vld [vmem:[%s0 + $0x9c] sm:$0xf]
  %v57 = vld [vmem:[%s0 + $0xa0] sm:$0xf]
  %v58 = vld [vmem:[%s0 + $0xa4] sm:$0xf]
  %v59 = vld [vmem:[%s0 + $0xa8] sm:$0xf]
  %v60 = vld [vmem:[%s0 + $0xac] sm:$0xf]
  %v61 = vld [vmem:[%s0 + $0xb0] sm:$0xf]
  %v62 = vld [vmem:[%s0 + $0xb4] sm:$0xf]
  %v63 = vld [vmem:[%s0 + $0xb8] sm:$0xf]
  %v64 = vld [vmem:[%s0 + $0xbc] sm:$0xf]
  %v65 = vld [vmem:[%s0 + $0xc0] sm:$0xf]
  %v66 = vld [vmem:[%s0 + $0xc4] sm:$0xf]
  %v67 = vld [vmem:[%s0 + $0xc8] sm:$0xf]
  %v68 = vld [vmem:[%s0 + $0xcc] sm:$0xf]
  %v69 = vld [vmem:[%s0 + $0xd0] sm:$0xf]
  %v70 = vld [vmem:[%s0 + $0xd4] sm:$0xf]
  %v71 = vld [vmem:[%s0 + $0xd8] sm:$0xf]
  %v72 = vld [vmem:[%s0 + $0xdc] sm:$0xf]
  %v73 = vld [vmem:[%s0 + $0xe0] sm:$0xf]
  %v74 = vld [vmem:[%s0 + $0xe4] sm:$0xf]
  %v75 = vld [vmem:[%s0 + $0xe8] sm:$0xf]
  %v76 = vld [vmem:[%s0 + $0xec] sm:$0xf]
  %v77 = vld [vmem:[%s0 + $0xf0] sm:$0xf]
  %v78 = vld [vmem:[%s0 + $0xf4] sm:$0xf]
  %v79 = vld [vmem:[%s0 + $0xf8] sm:$0xf]
  %v80 = vld [vmem:[%s0 + $0xfc] sm:$0xf]
  %v81 = vunpack.c.l.bf16 %v17
  %v82 = vunpack.c.l.bf16 %v18
  %v83 = vunpack.c.l.bf16 %v19
  %v84 = vunpack.c.l.bf16 %v20
  %v85 = vunpack.c.l.bf16 %v21
  %v86 = vunpack.c.l.bf16 %v22
  %v87 = vunpack.c.l.bf16 %v23
  %v88 = vunpack.c.l.bf16 %v24
  %v89 = vunpack.c.l.bf16 %v25
  %v90 = vunpack.c.l.bf16 %v26
  %v91 = vunpack.c.l.bf16 %v27
  %v92 = vunpack.c.l.bf16 %v28
  %v93 = vunpack.c.l.bf16 %v29
  %v94 = vunpack.c.l.bf16 %v30
  %v95 = vunpack.c.l.bf16 %v31
  %v96 = vunpack.c.l.bf16 %v32
  %v97 = vunpack.c.l.bf16 %v33
  %v98 = vunpack.c.l.bf16 %v34
  %v99 = vunpack.c.l.bf16 %v35
  %v100 = vunpack.c.l.bf16 %v36
  %v101 = vunpack.c.l.bf16 %v37
  %v102 = vunpack.c.l.bf16 %v38
  %v103 = vunpack.c.l.bf16 %v39
  %v104 = vunpack.c.l.bf16 %v40
  %v105 = vunpack.c.l.bf16 %v41
  %v106 = vunpack.c.l.bf16 %v42
  %v107 = vunpack.c.l.bf16 %v43
  %v108 = vunpack.c.l.bf16 %v44
  %v109 = vunpack.c.l.bf16 %v45
  %v110 = vunpack.c.l.bf16 %v46
  %v111 = vunpack.c.l.bf16 %v47
  %v112 = vunpack.c.l.bf16 %v48
  %v113 = vunpack.c.l.bf16 %v49
  %v114 = vunpack.c.l.bf16 %v50
  %v115 = vunpack.c.l.bf16 %v51
  %v116 = vunpack.c.l.bf16 %v52
  %v117 = vunpack.c.l.bf16 %v53
  %v118 = vunpack.c.l.bf16 %v54
  %v119 = vunpack.c.l.bf16 %v55
  %v120 = vunpack.c.l.bf16 %v56
  %v121 = vunpack.c.l.bf16 %v57
  %v122 = vunpack.c.l.bf16 %v58
  %v123 = vunpack.c.l.bf16 %v59
  %v124 = vunpack.c.l.bf16 %v60
  %v125 = vunpack.c.l.bf16 %v61
  %v126 = vunpack.c.l.bf16 %v62
  %v127 = vunpack.c.l.bf16 %v63
  %v128 = vunpack.c.l.bf16 %v64
  %v129 = vunpack.c.l.bf16 %v65
  %v130 = vunpack.c.l.bf16 %v66
  %v131 = vunpack.c.l.bf16 %v67
  %v132 = vunpack.c.l.bf16 %v68
  %v133 = vunpack.c.l.bf16 %v69
  %v134 = vunpack.c.l.bf16 %v70
  %v135 = vunpack.c.l.bf16 %v71
  %v136 = vunpack.c.l.bf16 %v72
  %v137 = vunpack.c.l.bf16 %v73
  %v138 = vunpack.c.l.bf16 %v74
  %v139 = vunpack.c.l.bf16 %v75
  %v140 = vunpack.c.l.bf16 %v76
  %v141 = vunpack.c.l.bf16 %v77
  %v142 = vunpack.c.l.bf16 %v78
  %v143 = vunpack.c.l.bf16 %v79
  %v144 = vunpack.c.l.bf16 %v80
  %v145 = vld [vmem:[%s2] sm:$0x1]
  %v147 = vlaneseq
  %v148 = vshrl.u32 %v147, 7
  %v149 = vsub.s32 0, %v148
  %v150 = vrot.slane %v145, %v149
  %v152 = vmul.f32 %v81, %v150
  %v153 = vmul.f32 %v82, %v150
  %v154 = vmul.f32 %v83, %v150
  %v155 = vmul.f32 %v84, %v150
  %v156 = vmul.f32 %v85, %v150
  %v157 = vmul.f32 %v86, %v150
  %v158 = vmul.f32 %v87, %v150
  %v159 = vmul.f32 %v88, %v150
  %v160 = vmul.f32 %v89, %v150
  %v161 = vmul.f32 %v90, %v150
  %v162 = vmul.f32 %v91, %v150
  %v163 = vmul.f32 %v92, %v150
  %v164 = vmul.f32 %v93, %v150
  %v165 = vmul.f32 %v94, %v150
  %v166 = vmul.f32 %v95, %v150
  %v167 = vmul.f32 %v96, %v150
  %v168 = vmul.f32 %v97, %v150
  %v169 = vmul.f32 %v98, %v150
  %v170 = vmul.f32 %v99, %v150
  %v171 = vmul.f32 %v100, %v150
  %v172 = vmul.f32 %v101, %v150
  %v173 = vmul.f32 %v102, %v150
  %v174 = vmul.f32 %v103, %v150
  %v175 = vmul.f32 %v104, %v150
  %v176 = vmul.f32 %v105, %v150
  %v177 = vmul.f32 %v106, %v150
  %v178 = vmul.f32 %v107, %v150
  %v179 = vmul.f32 %v108, %v150
  %v180 = vmul.f32 %v109, %v150
  %v181 = vmul.f32 %v110, %v150
  %v182 = vmul.f32 %v111, %v150
  %v183 = vmul.f32 %v112, %v150
  %v184 = vmul.f32 %v113, %v150
  %v185 = vmul.f32 %v114, %v150
  %v186 = vmul.f32 %v115, %v150
  %v187 = vmul.f32 %v116, %v150
  %v188 = vmul.f32 %v117, %v150
  %v189 = vmul.f32 %v118, %v150
  %v190 = vmul.f32 %v119, %v150
  %v191 = vmul.f32 %v120, %v150
  %v192 = vmul.f32 %v121, %v150
  %v193 = vmul.f32 %v122, %v150
  %v194 = vmul.f32 %v123, %v150
  %v195 = vmul.f32 %v124, %v150
  %v196 = vmul.f32 %v125, %v150
  %v197 = vmul.f32 %v126, %v150
  %v198 = vmul.f32 %v127, %v150
  %v199 = vmul.f32 %v128, %v150
  %v200 = vmul.f32 %v129, %v150
  %v201 = vmul.f32 %v130, %v150
  %v202 = vmul.f32 %v131, %v150
  %v203 = vmul.f32 %v132, %v150
  %v204 = vmul.f32 %v133, %v150
  %v205 = vmul.f32 %v134, %v150
  %v206 = vmul.f32 %v135, %v150
  %v207 = vmul.f32 %v136, %v150
  %v208 = vmul.f32 %v137, %v150
  %v209 = vmul.f32 %v138, %v150
  %v210 = vmul.f32 %v139, %v150
  %v211 = vmul.f32 %v140, %v150
  %v212 = vmul.f32 %v141, %v150
  %v213 = vmul.f32 %v142, %v150
  %v214 = vmul.f32 %v143, %v150
  %v215 = vmul.f32 %v144, %v150
  %v216 = vld [vmem:[%s3] sm:$0x1]
  %v218 = vlaneseq
  %v219 = vshrl.u32 %v218, 7
  %v220 = vsub.s32 0, %v219
  %v221 = vrot.slane %v216, %v220
  %v223 = vadd.f32 %v152, %v221
  %v224 = vadd.f32 %v153, %v221
  %v225 = vadd.f32 %v154, %v221
  %v226 = vadd.f32 %v155, %v221
  %v227 = vadd.f32 %v156, %v221
  %v228 = vadd.f32 %v157, %v221
  %v229 = vadd.f32 %v158, %v221
  %v230 = vadd.f32 %v159, %v221
  %v231 = vadd.f32 %v160, %v221
  %v232 = vadd.f32 %v161, %v221
  %v233 = vadd.f32 %v162, %v221
  %v234 = vadd.f32 %v163, %v221
  %v235 = vadd.f32 %v164, %v221
  %v236 = vadd.f32 %v165, %v221
  %v237 = vadd.f32 %v166, %v221
  %v238 = vadd.f32 %v167, %v221
  %v239 = vadd.f32 %v168, %v221
  %v240 = vadd.f32 %v169, %v221
  %v241 = vadd.f32 %v170, %v221
  %v242 = vadd.f32 %v171, %v221
  %v243 = vadd.f32 %v172, %v221
  %v244 = vadd.f32 %v173, %v221
  %v245 = vadd.f32 %v174, %v221
  %v246 = vadd.f32 %v175, %v221
  %v247 = vadd.f32 %v176, %v221
  %v248 = vadd.f32 %v177, %v221
  %v249 = vadd.f32 %v178, %v221
  %v250 = vadd.f32 %v179, %v221
  %v251 = vadd.f32 %v180, %v221
  %v252 = vadd.f32 %v181, %v221
  %v253 = vadd.f32 %v182, %v221
  %v254 = vadd.f32 %v183, %v221
  %v255 = vadd.f32 %v184, %v221
  %v256 = vadd.f32 %v185, %v221
  %v257 = vadd.f32 %v186, %v221
  %v258 = vadd.f32 %v187, %v221
  %v259 = vadd.f32 %v188, %v221
  %v260 = vadd.f32 %v189, %v221
  %v261 = vadd.f32 %v190, %v221
  %v262 = vadd.f32 %v191, %v221
  %v263 = vadd.f32 %v192, %v221
  %v264 = vadd.f32 %v193, %v221
  %v265 = vadd.f32 %v194, %v221
  %v266 = vadd.f32 %v195, %v221
  %v267 = vadd.f32 %v196, %v221
  %v268 = vadd.f32 %v197, %v221
  %v269 = vadd.f32 %v198, %v221
  %v270 = vadd.f32 %v199, %v221
  %v271 = vadd.f32 %v200, %v221
  %v272 = vadd.f32 %v201, %v221
  %v273 = vadd.f32 %v202, %v221
  %v274 = vadd.f32 %v203, %v221
  %v275 = vadd.f32 %v204, %v221
  %v276 = vadd.f32 %v205, %v221
  %v277 = vadd.f32 %v206, %v221
  %v278 = vadd.f32 %v207, %v221
  %v279 = vadd.f32 %v208, %v221
  %v280 = vadd.f32 %v209, %v221
  %v281 = vadd.f32 %v210, %v221
  %v282 = vadd.f32 %v211, %v221
  %v283 = vadd.f32 %v212, %v221
  %v284 = vadd.f32 %v213, %v221
  %v285 = vadd.f32 %v214, %v221
  %v286 = vadd.f32 %v215, %v221
  %v287 = vld [vmem:[%s1] sm:$0xff]
  %v288 = vld [vmem:[%s1 + $0x8] sm:$0xff]
  %v289 = vld [vmem:[%s1 + $0x10] sm:$0xff]
  %v290 = vld [vmem:[%s1 + $0x18] sm:$0xff]
  %v291 = vld [vmem:[%s1 + $0x20] sm:$0xff]
  %v292 = vld [vmem:[%s1 + $0x28] sm:$0xff]
  %v293 = vld [vmem:[%s1 + $0x30] sm:$0xff]
  %v294 = vld [vmem:[%s1 + $0x38] sm:$0xff]
  %v295 = vld [vmem:[%s1 + $0x40] sm:$0xff]
  %v296 = vld [vmem:[%s1 + $0x48] sm:$0xff]
  %v297 = vld [vmem:[%s1 + $0x50] sm:$0xff]
  %v298 = vld [vmem:[%s1 + $0x58] sm:$0xff]
  %v299 = vld [vmem:[%s1 + $0x60] sm:$0xff]
  %v300 = vld [vmem:[%s1 + $0x68] sm:$0xff]
  %v301 = vld [vmem:[%s1 + $0x70] sm:$0xff]
  %v302 = vld [vmem:[%s1 + $0x78] sm:$0xff]
  %v303 = vld [vmem:[%s1 + $0x80] sm:$0xff]
  %v304 = vld [vmem:[%s1 + $0x88] sm:$0xff]
  %v305 = vld [vmem:[%s1 + $0x90] sm:$0xff]
  %v306 = vld [vmem:[%s1 + $0x98] sm:$0xff]
  %v307 = vld [vmem:[%s1 + $0xa0] sm:$0xff]
  %v308 = vld [vmem:[%s1 + $0xa8] sm:$0xff]
  %v309 = vld [vmem:[%s1 + $0xb0] sm:$0xff]
  %v310 = vld [vmem:[%s1 + $0xb8] sm:$0xff]
  %v311 = vld [vmem:[%s1 + $0xc0] sm:$0xff]
  %v312 = vld [vmem:[%s1 + $0xc8] sm:$0xff]
  %v313 = vld [vmem:[%s1 + $0xd0] sm:$0xff]
  %v314 = vld [vmem:[%s1 + $0xd8] sm:$0xff]
  %v315 = vld [vmem:[%s1 + $0xe0] sm:$0xff]
  %v316 = vld [vmem:[%s1 + $0xe8] sm:$0xff]
  %v317 = vld [vmem:[%s1 + $0xf0] sm:$0xff]
  %v318 = vld [vmem:[%s1 + $0xf8] sm:$0xff]
  %v319 = vld [vmem:[%s1 + $0x100] sm:$0xff]
  %v320 = vld [vmem:[%s1 + $0x108] sm:$0xff]
  %v321 = vld [vmem:[%s1 + $0x110] sm:$0xff]
  %v322 = vld [vmem:[%s1 + $0x118] sm:$0xff]
  %v323 = vld [vmem:[%s1 + $0x120] sm:$0xff]
  %v324 = vld [vmem:[%s1 + $0x128] sm:$0xff]
  %v325 = vld [vmem:[%s1 + $0x130] sm:$0xff]
  %v326 = vld [vmem:[%s1 + $0x138] sm:$0xff]
  %v327 = vld [vmem:[%s1 + $0x140] sm:$0xff]
  %v328 = vld [vmem:[%s1 + $0x148] sm:$0xff]
  %v329 = vld [vmem:[%s1 + $0x150] sm:$0xff]
  %v330 = vld [vmem:[%s1 + $0x158] sm:$0xff]
  %v331 = vld [vmem:[%s1 + $0x160] sm:$0xff]
  %v332 = vld [vmem:[%s1 + $0x168] sm:$0xff]
  %v333 = vld [vmem:[%s1 + $0x170] sm:$0xff]
  %v334 = vld [vmem:[%s1 + $0x178] sm:$0xff]
  %v335 = vld [vmem:[%s1 + $0x180] sm:$0xff]
  %v336 = vld [vmem:[%s1 + $0x188] sm:$0xff]
  %v337 = vld [vmem:[%s1 + $0x190] sm:$0xff]
  %v338 = vld [vmem:[%s1 + $0x198] sm:$0xff]
  %v339 = vld [vmem:[%s1 + $0x1a0] sm:$0xff]
  %v340 = vld [vmem:[%s1 + $0x1a8] sm:$0xff]
  %v341 = vld [vmem:[%s1 + $0x1b0] sm:$0xff]
  %v342 = vld [vmem:[%s1 + $0x1b8] sm:$0xff]
  %v343 = vld [vmem:[%s1 + $0x1c0] sm:$0xff]
  %v344 = vld [vmem:[%s1 + $0x1c8] sm:$0xff]
  %v345 = vld [vmem:[%s1 + $0x1d0] sm:$0xff]
  %v346 = vld [vmem:[%s1 + $0x1d8] sm:$0xff]
  %v347 = vld [vmem:[%s1 + $0x1e0] sm:$0xff]
  %v348 = vld [vmem:[%s1 + $0x1e8] sm:$0xff]
  %v349 = vld [vmem:[%s1 + $0x1f0] sm:$0xff]
  %v350 = vld [vmem:[%s1 + $0x1f8] sm:$0xff]
  %v351 = vadd.f32 %v223, %v287
  %v352 = vadd.f32 %v224, %v288
  %v353 = vadd.f32 %v225, %v289
  %v354 = vadd.f32 %v226, %v290
  %v355 = vadd.f32 %v227, %v291
  %v356 = vadd.f32 %v228, %v292
  %v357 = vadd.f32 %v229, %v293
  %v358 = vadd.f32 %v230, %v294
  %v359 = vadd.f32 %v231, %v295
  %v360 = vadd.f32 %v232, %v296
  %v361 = vadd.f32 %v233, %v297
  %v362 = vadd.f32 %v234, %v298
  %v363 = vadd.f32 %v235, %v299
  %v364 = vadd.f32 %v236, %v300
  %v365 = vadd.f32 %v237, %v301
  %v366 = vadd.f32 %v238, %v302
  %v367 = vadd.f32 %v239, %v303
  %v368 = vadd.f32 %v240, %v304
  %v369 = vadd.f32 %v241, %v305
  %v370 = vadd.f32 %v242, %v306
  %v371 = vadd.f32 %v243, %v307
  %v372 = vadd.f32 %v244, %v308
  %v373 = vadd.f32 %v245, %v309
  %v374 = vadd.f32 %v246, %v310
  %v375 = vadd.f32 %v247, %v311
  %v376 = vadd.f32 %v248, %v312
  %v377 = vadd.f32 %v249, %v313
  %v378 = vadd.f32 %v250, %v314
  %v379 = vadd.f32 %v251, %v315
  %v380 = vadd.f32 %v252, %v316
  %v381 = vadd.f32 %v253, %v317
  %v382 = vadd.f32 %v254, %v318
  %v383 = vadd.f32 %v255, %v319
  %v384 = vadd.f32 %v256, %v320
  %v385 = vadd.f32 %v257, %v321
  %v386 = vadd.f32 %v258, %v322
  %v387 = vadd.f32 %v259, %v323
  %v388 = vadd.f32 %v260, %v324
  %v389 = vadd.f32 %v261, %v325
  %v390 = vadd.f32 %v262, %v326
  %v391 = vadd.f32 %v263, %v327
  %v392 = vadd.f32 %v264, %v328
  %v393 = vadd.f32 %v265, %v329
  %v394 = vadd.f32 %v266, %v330
  %v395 = vadd.f32 %v267, %v331
  %v396 = vadd.f32 %v268, %v332
  %v397 = vadd.f32 %v269, %v333
  %v398 = vadd.f32 %v270, %v334
  %v399 = vadd.f32 %v271, %v335
  %v400 = vadd.f32 %v272, %v336
  %v401 = vadd.f32 %v273, %v337
  %v402 = vadd.f32 %v274, %v338
  %v403 = vadd.f32 %v275, %v339
  %v404 = vadd.f32 %v276, %v340
  %v405 = vadd.f32 %v277, %v341
  %v406 = vadd.f32 %v278, %v342
  %v407 = vadd.f32 %v279, %v343
  %v408 = vadd.f32 %v280, %v344
  %v409 = vadd.f32 %v281, %v345
  %v410 = vadd.f32 %v282, %v346
  %v411 = vadd.f32 %v283, %v347
  %v412 = vadd.f32 %v284, %v348
  %v413 = vadd.f32 %v285, %v349
  %v414 = vadd.f32 %v286, %v350
  %v415 = vmax.f32 %v351, 0.0
  %v416 = vmax.f32 %v352, 0.0
  %v417 = vmax.f32 %v353, 0.0
  %v418 = vmax.f32 %v354, 0.0
  %v419 = vmax.f32 %v355, 0.0
  %v420 = vmax.f32 %v356, 0.0
  %v421 = vmax.f32 %v357, 0.0
  %v422 = vmax.f32 %v358, 0.0
  %v423 = vmax.f32 %v359, 0.0
  %v424 = vmax.f32 %v360, 0.0
  %v425 = vmax.f32 %v361, 0.0
  %v426 = vmax.f32 %v362, 0.0
  %v427 = vmax.f32 %v363, 0.0
  %v428 = vmax.f32 %v364, 0.0
  %v429 = vmax.f32 %v365, 0.0
  %v430 = vmax.f32 %v366, 0.0
  %v431 = vmax.f32 %v367, 0.0
  %v432 = vmax.f32 %v368, 0.0
  %v433 = vmax.f32 %v369, 0.0
  %v434 = vmax.f32 %v370, 0.0
  %v435 = vmax.f32 %v371, 0.0
  %v436 = vmax.f32 %v372, 0.0
  %v437 = vmax.f32 %v373, 0.0
  %v438 = vmax.f32 %v374, 0.0
  %v439 = vmax.f32 %v375, 0.0
  %v440 = vmax.f32 %v376, 0.0
  %v441 = vmax.f32 %v377, 0.0
  %v442 = vmax.f32 %v378, 0.0
  %v443 = vmax.f32 %v379, 0.0
  %v444 = vmax.f32 %v380, 0.0
  %v445 = vmax.f32 %v381, 0.0
  %v446 = vmax.f32 %v382, 0.0
  %v447 = vmax.f32 %v383, 0.0
  %v448 = vmax.f32 %v384, 0.0
  %v449 = vmax.f32 %v385, 0.0
  %v450 = vmax.f32 %v386, 0.0
  %v451 = vmax.f32 %v387, 0.0
  %v452 = vmax.f32 %v388, 0.0
  %v453 = vmax.f32 %v389, 0.0
  %v454 = vmax.f32 %v390, 0.0
  %v455 = vmax.f32 %v391, 0.0
  %v456 = vmax.f32 %v392, 0.0
  %v457 = vmax.f32 %v393, 0.0
  %v458 = vmax.f32 %v394, 0.0
  %v459 = vmax.f32 %v395, 0.0
  %v460 = vmax.f32 %v396, 0.0
  %v461 = vmax.f32 %v397, 0.0
  %v462 = vmax.f32 %v398, 0.0
  %v463 = vmax.f32 %v399, 0.0
  %v464 = vmax.f32 %v400, 0.0
  %v465 = vmax.f32 %v401, 0.0
  %v466 = vmax.f32 %v402, 0.0
  %v467 = vmax.f32 %v403, 0.0
  %v468 = vmax.f32 %v404, 0.0
  %v469 = vmax.f32 %v405, 0.0
  %v470 = vmax.f32 %v406, 0.0
  %v471 = vmax.f32 %v407, 0.0
  %v472 = vmax.f32 %v408, 0.0
  %v473 = vmax.f32 %v409, 0.0
  %v474 = vmax.f32 %v410, 0.0
  %v475 = vmax.f32 %v411, 0.0
  %v476 = vmax.f32 %v412, 0.0
  %v477 = vmax.f32 %v413, 0.0
  %v478 = vmax.f32 %v414, 0.0
  %479 = vst [vmem:[%s4] sm:$0xff] %v415
  %480 = vst [vmem:[%s4 + $0x8] sm:$0xff] %v416
  %481 = vst [vmem:[%s4 + $0x10] sm:$0xff] %v417
  %482 = vst [vmem:[%s4 + $0x18] sm:$0xff] %v418
  %483 = vst [vmem:[%s4 + $0x20] sm:$0xff] %v419
  %484 = vst [vmem:[%s4 + $0x28] sm:$0xff] %v420
  %485 = vst [vmem:[%s4 + $0x30] sm:$0xff] %v421
  %486 = vst [vmem:[%s4 + $0x38] sm:$0xff] %v422
  %487 = vst [vmem:[%s4 + $0x40] sm:$0xff] %v423
  %488 = vst [vmem:[%s4 + $0x48] sm:$0xff] %v424
  %489 = vst [vmem:[%s4 + $0x50] sm:$0xff] %v425
  %490 = vst [vmem:[%s4 + $0x58] sm:$0xff] %v426
  %491 = vst [vmem:[%s4 + $0x60] sm:$0xff] %v427
  %492 = vst [vmem:[%s4 + $0x68] sm:$0xff] %v428
  %493 = vst [vmem:[%s4 + $0x70] sm:$0xff] %v429
  %494 = vst [vmem:[%s4 + $0x78] sm:$0xff] %v430
  %495 = vst [vmem:[%s4 + $0x80] sm:$0xff] %v431
  %496 = vst [vmem:[%s4 + $0x88] sm:$0xff] %v432
  %497 = vst [vmem:[%s4 + $0x90] sm:$0xff] %v433
  %498 = vst [vmem:[%s4 + $0x98] sm:$0xff] %v434
  %499 = vst [vmem:[%s4 + $0xa0] sm:$0xff] %v435
  %500 = vst [vmem:[%s4 + $0xa8] sm:$0xff] %v436
  %501 = vst [vmem:[%s4 + $0xb0] sm:$0xff] %v437
  %502 = vst [vmem:[%s4 + $0xb8] sm:$0xff] %v438
  %503 = vst [vmem:[%s4 + $0xc0] sm:$0xff] %v439
  %504 = vst [vmem:[%s4 + $0xc8] sm:$0xff] %v440
  %505 = vst [vmem:[%s4 + $0xd0] sm:$0xff] %v441
  %506 = vst [vmem:[%s4 + $0xd8] sm:$0xff] %v442
  %507 = vst [vmem:[%s4 + $0xe0] sm:$0xff] %v443
  %508 = vst [vmem:[%s4 + $0xe8] sm:$0xff] %v444
  %509 = vst [vmem:[%s4 + $0xf0] sm:$0xff] %v445
  %510 = vst [vmem:[%s4 + $0xf8] sm:$0xff] %v446
  %511 = vst [vmem:[%s4 + $0x100] sm:$0xff] %v447
  %512 = vst [vmem:[%s4 + $0x108] sm:$0xff] %v448
  %513 = vst [vmem:[%s4 + $0x110] sm:$0xff] %v449
  %514 = vst [vmem:[%s4 + $0x118] sm:$0xff] %v450
  %515 = vst [vmem:[%s4 + $0x120] sm:$0xff] %v451
  %516 = vst [vmem:[%s4 + $0x128] sm:$0xff] %v452
  %517 = vst [vmem:[%s4 + $0x130] sm:$0xff] %v453
  %518 = vst [vmem:[%s4 + $0x138] sm:$0xff] %v454
  %519 = vst [vmem:[%s4 + $0x140] sm:$0xff] %v455
  %520 = vst [vmem:[%s4 + $0x148] sm:$0xff] %v456
  %521 = vst [vmem:[%s4 + $0x150] sm:$0xff] %v457
  %522 = vst [vmem:[%s4 + $0x158] sm:$0xff] %v458
  %523 = vst [vmem:[%s4 + $0x160] sm:$0xff] %v459
  %524 = vst [vmem:[%s4 + $0x168] sm:$0xff] %v460
  %525 = vst [vmem:[%s4 + $0x170] sm:$0xff] %v461
  %526 = vst [vmem:[%s4 + $0x178] sm:$0xff] %v462
  %527 = vst [vmem:[%s4 + $0x180] sm:$0xff] %v463
  %528 = vst [vmem:[%s4 + $0x188] sm:$0xff] %v464
  %529 = vst [vmem:[%s4 + $0x190] sm:$0xff] %v465
  %530 = vst [vmem:[%s4 + $0x198] sm:$0xff] %v466
  %531 = vst [vmem:[%s4 + $0x1a0] sm:$0xff] %v467
  %532 = vst [vmem:[%s4 + $0x1a8] sm:$0xff] %v468
  %533 = vst [vmem:[%s4 + $0x1b0] sm:$0xff] %v469
  %534 = vst [vmem:[%s4 + $0x1b8] sm:$0xff] %v470
  %535 = vst [vmem:[%s4 + $0x1c0] sm:$0xff] %v471
  %536 = vst [vmem:[%s4 + $0x1c8] sm:$0xff] %v472
  %537 = vst [vmem:[%s4 + $0x1d0] sm:$0xff] %v473
  %538 = vst [vmem:[%s4 + $0x1d8] sm:$0xff] %v474
  %539 = vst [vmem:[%s4 + $0x1e0] sm:$0xff] %v475
  %540 = vst [vmem:[%s4 + $0x1e8] sm:$0xff] %v476
  %541 = vst [vmem:[%s4 + $0x1f0] sm:$0xff] %v477
  %542 = vst [vmem:[%s4 + $0x1f8] sm:$0xff] %v478
  // Predicated region
  $region18: #{residual_block_nchw.5} parent=0 // pred_check
    _
  $region19: #{residual_block_nchw.5} parent=0 // pred_check_branch
    %544 = sbr.rel (0) target = $region21
  $region20: #{residual_block_nchw.5} parent=0 // pred_region
    _
  $region21: #{residual_block_nchw.5} parent=0 // pred_fallthru
    _
  // Predicated region
  $region22: #{residual_block_nchw.5} parent=0 // pred_check
    _
  $region23: #{residual_block_nchw.5} parent=0 // pred_check_branch
    %546 = sbr.rel (0) target = $region25
  $region24: #{residual_block_nchw.5} parent=0 // pred_region
    _
  $region25: #{residual_block_nchw.5} parent=0 // pred_fallthru
    _

// kernel: residual_block_nchw.3
$region0: #{residual_block_nchw.3}
  #allocation0 [shape = 'u32[]', space=smem, size = 0x4, offset = 0x4, fixed_abs, tag = 'smem constant byte address 0x4 - core index']
  #allocation1 [shape = 'u32[144,128]{1,0:T(1,128)}', space=vmem, size = 0x12000, scoped, tag = 'internal scratch']
  #allocation2 [shape = 'bf16[1,18,18,128]{3,2,1,0:T(8,128)(2,1)}', space=vmem, size = 0x1b000, scoped, tag = 'scratch operand']
  %s0 = inlined_call_operand.vmem [shape: f32[2,16,16,128], index: 0, kind: input, shape index: {}]
  %s1 = inlined_call_operand.vmem [shape: bf16[1152,128], index: 1, kind: input, shape index: {}]
  %s2 = inlined_call_operand.vmem [shape: f32[1,128], index: 2, kind: input, shape index: {}]
  %s3 = inlined_call_operand.vmem [shape: bf16[2,16,16,128], index: 3, kind: output, shape index: {0}]
  %s4 = inlined_call_operand.vmem [shape: f32[2,2,128], index: 4, kind: output, shape index: {1}]
  %5 = xla_tuple %s3, %s4
  %s6 = sld [smem:[#allocation0]]
  $region53: #{residual_block_nchw.3} parent=0
    _
  %s8 = ssub.s32 1, %s6
  %s9 = scalar_select 0, %s8, %s6
  loop: start=0, step=1, limit=4
  $region2: #{residual_block_nchw.3} parent=0 // loop_pre_header
    _
  $region3: #{residual_block_nchw.3} parent=0 // loop_header
    %s11 = sphi 0, %s15
    %p12 = scmp.ge.s32.totalorder %s11, 4
    %s21 = sphi 0, %s23
    %s24 = sphi 0, %s21
    %s25 = sphi 0, %s24
    %s41 = sphi 0, %s25
    %s45 = sphi 0, %s45
    %s47 = sphi 0, %s45
    %s48 = sphi 0, %s47
    %s62 = sphi 0, %s48
    %s66 = sphi 0, %s66
    %s68 = sphi 0, %s66
    %s69 = sphi 0, %s68
    %s83 = sphi 0, %s69
    %s89 = sphi 0, %s91
    %s92 = sphi 0, %s89
    %s93 = sphi 0, %s92
    %s109 = sphi 0, %s93
    %s115 = sphi 0, %s117
    %s118 = sphi 0, %s115
    %s119 = sphi 0, %s118
    %s135 = sphi 0, %s119
  $region4: #{residual_block_nchw.3} parent=0 // loop_header_branch
    %14 = sbr.rel (%p12) target = $region8
  $region5: #{residual_block_nchw.3} parent=0 // loop_body
    %s16 = ssub.s32 %s11, 1
    %s17 = ssub.s32 %s11, 2
    %s18 = sadd.s32 %s11, 1
    %s19 = ssub.s32 %s11, %s18
    %p20 = scmp.eq.s32.totalorder %s19, 0
    %s22 = sadd.s32 %s21, 1
    %s23 = scalar_select %p20, %s21, %s22
    %p26 = pneg %p20
    %p27 = scmp.eq.s32.totalorder %s11, 1
    %p28 = por %p26, %p27
    %p29 = scmp.ne.s32.totalorder %s21, %s24
    %p30 = scmp.eq.s32.totalorder %s11, 0
    %p31 = por %p29, %p30
    %p32 = scmp.ne.s32.totalorder %s21, %s24
    %p33 = scmp.eq.s32.totalorder %s16, 1
    %p34 = por %p32, %p33
    %p35 = scmp.ne.s32.totalorder %s24, %s25
    %p36 = scmp.eq.s32.totalorder %s16, 0
    %p37 = por %p35, %p36
    %p38 = scmp.ne.s32.totalorder %s24, %s25
    %p39 = scmp.eq.s32.totalorder %s17, 1
    %p40 = por %p38, %p39
    %p42 = scmp.ne.s32.totalorder %s25, %s41
    %p43 = scmp.eq.s32.totalorder %s17, 0
    %p44 = por %p42, %p43
    %s46 = sadd.s32 %s45, 1
    %p49 = scmp.eq.s32.totalorder %s11, 1
    %p50 = scmp.ne.s32.totalorder %s45, %s47
    %p51 = scmp.eq.s32.totalorder %s11, 0
    %p52 = por %p50, %p51
    %p53 = scmp.ne.s32.totalorder %s45, %s47
    %p54 = scmp.eq.s32.totalorder %s16, 1
    %p55 = por %p53, %p54
    %p56 = scmp.ne.s32.totalorder %s47, %s48
    %p57 = scmp.eq.s32.totalorder %s16, 0
    %p58 = por %p56, %p57
    %p59 = scmp.ne.s32.totalorder %s47, %s48
    %p60 = scmp.eq.s32.totalorder %s17, 1
    %p61 = por %p59, %p60
    %p63 = scmp.ne.s32.totalorder %s48, %s62
    %p64 = scmp.eq.s32.totalorder %s17, 0
    %p65 = por %p63, %p64
    %s67 = sadd.s32 %s66, 1
    %p70 = scmp.eq.s32.totalorder %s11, 1
    %p71 = scmp.ne.s32.totalorder %s66, %s68
    %p72 = scmp.eq.s32.totalorder %s11, 0
    %p73 = por %p71, %p72
    %p74 = scmp.ne.s32.totalorder %s66, %s68
    %p75 = scmp.eq.s32.totalorder %s16, 1
    %p76 = por %p74, %p75
    %p77 = scmp.ne.s32.totalorder %s68, %s69
    %p78 = scmp.eq.s32.totalorder %s16, 0
    %p79 = por %p77, %p78
    %p80 = scmp.ne.s32.totalorder %s68, %s69
    %p81 = scmp.eq.s32.totalorder %s17, 1
    %p82 = por %p80, %p81
    %p84 = scmp.ne.s32.totalorder %s69, %s83
    %p85 = scmp.eq.s32.totalorder %s17, 0
    %p86 = por %p84, %p85
    %s87 = ssub.s32 %s11, %s18
    %p88 = scmp.eq.s32.totalorder %s87, 0
    %s90 = sadd.s32 %s89, 1
    %s91 = scalar_select %p88, %s89, %s90
    %p94 = pneg %p88
    %p95 = scmp.eq.s32.totalorder %s11, 1
    %p96 = por %p94, %p95
    %p97 = scmp.ne.s32.totalorder %s89, %s92
    %p98 = scmp.eq.s32.totalorder %s11, 0
    %p99 = por %p97, %p98
    %p100 = scmp.ne.s32.totalorder %s89, %s92
    %p101 = scmp.eq.s32.totalorder %s16, 1
    %p102 = por %p100, %p101
    %p103 = scmp.ne.s32.totalorder %s92, %s93
    %p104 = scmp.eq.s32.totalorder %s16, 0
    %p105 = por %p103, %p104
    %p106 = scmp.ne.s32.totalorder %s92, %s93
    %p107 = scmp.eq.s32.totalorder %s17, 1
    %p108 = por %p106, %p107
    %p110 = scmp.ne.s32.totalorder %s93, %s109
    %p111 = scmp.eq.s32.totalorder %s17, 0
    %p112 = por %p110, %p111
    %s113 = ssub.s32 %s11, %s18
    %p114 = scmp.eq.s32.totalorder %s113, 0
    %s116 = sadd.s32 %s115, 1
    %s117 = scalar_select %p114, %s115, %s116
    %p120 = pneg %p114
    %p121 = scmp.eq.s32.totalorder %s11, 1
    %p122 = por %p120, %p121
    %p123 = scmp.ne.s32.totalorder %s115, %s118
    %p124 = scmp.eq.s32.totalorder %s11, 0
    %p125 = por %p123, %p124
    %p126 = scmp.ne.s32.totalorder %s115, %s118
    %p127 = scmp.eq.s32.totalorder %s16, 1
    %p128 = por %p126, %p127
    %p129 = scmp.ne.s32.totalorder %s118, %s119
    %p130 = scmp.eq.s32.totalorder %s16, 0
    %p131 = por %p129, %p130
    %p132 = scmp.ne.s32.totalorder %s118, %s119
    %p133 = scmp.eq.s32.totalorder %s17, 1
    %p134 = por %p132, %p133
    %p136 = scmp.ne.s32.totalorder %s119, %s135
    %p137 = scmp.eq.s32.totalorder %s17, 0
    %p138 = por %p136, %p137
    %p139 = scmp.le.s32.totalorder 1, %s11
    %p140 = scmp.lt.s32.totalorder %s11, 3
    %p141 = pnand %p139, %p140
    %p142 = pneg %p141
    // Predicated region
    $region9: #{residual_block_nchw.3} parent=5 // pred_check
      _
    $region10: #{residual_block_nchw.3} parent=5 // pred_check_branch
      %144 = sbr.rel (%p141) target = $region12
    $region11: #{residual_block_nchw.3} parent=5 // pred_region
      %s145 = ssub.s32 %s11, 1
      // Predicated region
      $region13: #{residual_block_nchw.3} parent=11 // pred_check
        %p146 = pneg %p58
      $region14: #{residual_block_nchw.3} parent=11 // pred_check_branch
        %148 = sbr.rel (%p146) target = $region16
      $region15: #{residual_block_nchw.3} parent=11 // pred_region
        _
      $region16: #{residual_block_nchw.3} parent=11 // pred_fallthru
        _
      // Predicated region
      $region17: #{residual_block_nchw.3} parent=11 // pred_check
        %p149 = pneg %p79
      $region18: #{residual_block_nchw.3} parent=11 // pred_check_branch
        %151 = sbr.rel (%p149) target = $region20
      $region19: #{residual_block_nchw.3} parent=11 // pred_region
        _
      $region20: #{residual_block_nchw.3} parent=11 // pred_fallthru
        _
    $region12: #{residual_block_nchw.3} parent=5 // pred_fallthru
      _
    %p152 = scmp.lt.s32.totalorder %s11, 2
    // Predicated region
    $region21: #{residual_block_nchw.3} parent=5 // pred_check
      %p153 = pneg %p152
    $region22: #{residual_block_nchw.3} parent=5 // pred_check_branch
      %155 = sbr.rel (%p153) target = $region24
    $region23: #{residual_block_nchw.3} parent=5 // pred_region
      // Predicated region
      $region25: #{residual_block_nchw.3} parent=23 // pred_check
        %p156 = pneg %p31
      $region26: #{residual_block_nchw.3} parent=23 // pred_check_branch
        %158 = sbr.rel (%p156) target = $region28
      $region27: #{residual_block_nchw.3} parent=23 // pred_region
        %p159 = scmp.lt.s32.totalorder %s11, 1
        %s160 = scalar_select %p159, %s11, 1
        %s161 = smul.addr %s160, 32
        %s162 = smul.addr %s161, 8
        %s163 = scalar_lea.vmem %s0, %s162
      $region28: #{residual_block_nchw.3} parent=23 // pred_fallthru
        _
    $region24: #{residual_block_nchw.3} parent=5 // pred_fallthru
      _
    %p164 = scmp.le.s32.totalorder 1, %s11
    %p165 = scmp.lt.s32.totalorder %s11, 3
    %p166 = pnand %p164, %p165
    %p167 = pneg %p166
    // Predicated region
    $region29: #{residual_block_nchw.3} parent=5 // pred_check
      _
    $region30: #{residual_block_nchw.3} parent=5 // pred_check_branch
      %169 = sbr.rel (%p166) target = $region32
    $region31: #{residual_block_nchw.3} parent=5 // pred_region
      %s170 = ssub.s32 %s11, 1
      %p171 = scmp.lt.s32.totalorder %s16, 1
      %s172 = scalar_select %p171, %s16, 1
      %s173 = smul.addr %s172, 32
      %s174 = smul.addr %s173, 8
      %s175 = scalar_lea.vmem %s0, %s174
      %p176 = pneg %p37
      %p177 = pneg %p34
      %p178 = pneg %p58
      %p179 = pneg %p55
      %p180 = pneg %p79
      %p181 = pneg %p76
      %p182 = pneg %p105
      %p183 = pneg %p102
      %p184 = scmp.lt.s32.totalorder %s16, 1
      %s185 = scalar_select %p184, %s16, 1
      %s186 = smul.addr %s185, 32
      %s187 = smul.addr %s186, 4
      %s188 = scalar_lea.vmem %s3, %s187
      %p189 = pneg %p131
      %p190 = pneg %p128
      %p191 = scmp.lt.s32.totalorder %s16, 1
      %s192 = scalar_select %p191, %s16, 1
      %s193 = smul.addr %s192, 2
      %s194 = scalar_lea.vmem %s4, %s193
      %p195 = scmp.lt.s32.totalorder %s16, 1
      %s196 = scalar_select %p195, %s16, 1
      %s197 = smul.addr %s196, 32
      %s198 = smul.addr %s197, 8
      %s199 = scalar_lea.vmem %s0, %s198
      %p200 = scmp.lt.s32.totalorder %s16, 1
      %s201 = scalar_select %p200, %s16, 1
      %s202 = smul.addr %s201, 32
      %s203 = smul.addr %s202, 4
      %s204 = scalar_lea.vmem %s3, %s203
      %p205 = scmp.lt.s32.totalorder %s16, 1
      %s206 = scalar_select %p205, %s16, 1
      %s207 = smul.addr %s206, 2
      %s208 = scalar_lea.vmem %s4, %s207
      %v210 = vld [vmem:[%s199] sm:$0xff]
      %v211 = vld [vmem:[%s199 + $0x8] sm:$0xff]
      %v212 = vld [vmem:[%s199 + $0x10] sm:$0xff]
      %v213 = vld [vmem:[%s199 + $0x18] sm:$0xff]
      %v214 = vld [vmem:[%s199 + $0x20] sm:$0xff]
      %v215 = vld [vmem:[%s199 + $0x28] sm:$0xff]
      %v216 = vld [vmem:[%s199 + $0x30] sm:$0xff]
      %v217 = vld [vmem:[%s199 + $0x38] sm:$0xff]
      %v218 = vld [vmem:[%s199 + $0x40] sm:$0xff]
      %v219 = vld [vmem:[%s199 + $0x48] sm:$0xff]
      %v220 = vld [vmem:[%s199 + $0x50] sm:$0xff]
      %v221 = vld [vmem:[%s199 + $0x58] sm:$0xff]
      %v222 = vld [vmem:[%s199 + $0x60] sm:$0xff]
      %v223 = vld [vmem:[%s199 + $0x68] sm:$0xff]
      %v224 = vld [vmem:[%s199 + $0x70] sm:$0xff]
      %v225 = vld [vmem:[%s199 + $0x78] sm:$0xff]
      %v226 = vld [vmem:[%s199 + $0x80] sm:$0xff]
      %v227 = vld [vmem:[%s199 + $0x88] sm:$0xff]
      %v228 = vld [vmem:[%s199 + $0x90] sm:$0xff]
      %v229 = vld [vmem:[%s199 + $0x98] sm:$0xff]
      %v230 = vld [vmem:[%s199 + $0xa0] sm:$0xff]
      %v231 = vld [vmem:[%s199 + $0xa8] sm:$0xff]
      %v232 = vld [vmem:[%s199 + $0xb0] sm:$0xff]
      %v233 = vld [vmem:[%s199 + $0xb8] sm:$0xff]
      %v234 = vld [vmem:[%s199 + $0xc0] sm:$0xff]
      %v235 = vld [vmem:[%s199 + $0xc8] sm:$0xff]
      %v236 = vld [vmem:[%s199 + $0xd0] sm:$0xff]
      %v237 = vld [vmem:[%s199 + $0xd8] sm:$0xff]
      %v238 = vld [vmem:[%s199 + $0xe0] sm:$0xff]
      %v239 = vld [vmem:[%s199 + $0xe8] sm:$0xff]
      %v240 = vld [vmem:[%s199 + $0xf0] sm:$0xff]
      %v241 = vld [vmem:[%s199 + $0xf8] sm:$0xff]
      %v242 = vpack.c.bf16 %v211, %v210
      %v243 = vpack.c.bf16 %v213, %v212
      %v244 = vpack.c.bf16 %v215, %v214
      %v245 = vpack.c.bf16 %v217, %v216
      %v246 = vpack.c.bf16 %v219, %v218
      %v247 = vpack.c.bf16 %v221, %v220
      %v248 = vpack.c.bf16 %v223, %v222
      %v249 = vpack.c.bf16 %v225, %v224
      %v250 = vpack.c.bf16 %v227, %v226
      %v251 = vpack.c.bf16 %v229, %v228
      %v252 = vpack.c.bf16 %v231, %v230
      %v253 = vpack.c.bf16 %v233, %v232
      %v254 = vpack.c.bf16 %v235, %v234
      %v255 = vpack.c.bf16 %v237, %v236
      %v256 = vpack.c.bf16 %v239, %v238
      %v257 = vpack.c.bf16 %v241, %v240
      %258 = vst [vmem:[#allocation2] sm:$0xf] 0
      %259 = vst [vmem:[#allocation2 + $0x4] sm:$0xf] 0
      %260 = vst [vmem:[#allocation2 + $0x8] sm:$0x1] 0
      %s261 = scalar_lea.vmem [#allocation2], 204
      %262 = vst [vmem:[%s261] sm:$0xf] 0
      %263 = vst [vmem:[%s261 + $0x4] sm:$0xf] 0
      %264 = vst [vmem:[%s261 + $0x8] sm:$0x1] 0
      %vm265 = vcmask 1040384
      %vm266 = vsmask.f32 256
      %vm267 = vmand %vm265, %vm266
      %v268 = vld [vmem:[#allocation2] sm:$0x1]
      %v269 = vsel %vm267, 0, %v268
      %270 = vst [vmem:[#allocation2] sm:$0x1] %v269
      %v271 = vld [vmem:[#allocation2 + $0xc] sm:$0x1]
      %v272 = vsel %vm267, 0, %v271
      %273 = vst [vmem:[#allocation2 + $0xc] sm:$0x1] %v272
      %v274 = vld [vmem:[#allocation2 + $0x18] sm:$0x1]
      %v275 = vsel %vm267, 0, %v274
      %276 = vst [vmem:[#allocation2 + $0x18] sm:$0x1] %v275
      %v277 = vld [vmem:[#allocation2 + $0x24] sm:$0x1]
      %v278 = vsel %vm267, 0, %v277
      %279 = vst [vmem:[#allocation2 + $0x24] sm:$0x1] %v278
      %v280 = vld [vmem:[#allocation2 + $0x30] sm:$0x1]
      %v281 = vsel %vm267, 0, %v280
      %282 = vst [vmem:[#allocation2 + $0x30] sm:$0x1] %v281
      %v283 = vld [vmem:[#allocation2 + $0x3c] sm:$0x1]
      %v284 = vsel %vm267, 0, %v283
      %285 = vst [vmem:[#allocation2 + $0x3c] sm:$0x1] %v284
      %v286 = vld [vmem:[#allocation2 + $0x48] sm:$0x1]
      %v287 = vsel %vm267, 0, %v286
      %288 = vst [vmem:[#allocation2 + $0x48] sm:$0x1] %v287
      %v289 = vld [vmem:[#allocation2 + $0x54] sm:$0x1]
      %v290 = vsel %vm267, 0, %v289
      %291 = vst [vmem:[#allocation2 + $0x54] sm:$0x1] %v290
      %v292 = vld [vmem:[#allocation2 + $0x60] sm:$0x1]
      %v293 = vsel %vm267, 0, %v292
      %294 = vst [vmem:[#allocation2 + $0x60] sm:$0x1] %v293
      %v295 = vld [vmem:[#allocation2 + $0x6c] sm:$0x1]
      %v296 = vsel %vm267, 0, %v295
      %297 = vst [vmem:[#allocation2 + $0x6c] sm:$0x1] %v296
      %v298 = vld [vmem:[#allocation2 + $0x78] sm:$0x1]
      %v299 = vsel %vm267, 0, %v298
      %300 = vst [vmem:[#allocation2 + $0x78] sm:$0x1] %v299
      %v301 = vld [vmem:[#allocation2 + $0x84] sm:$0x1]
      %v302 = vsel %vm267, 0, %v301
      %303 = vst [vmem:[#allocation2 + $0x84] sm:$0x1] %v302
      %v304 = vld [vmem:[#allocation2 + $0x90] sm:$0x1]
      %v305 = vsel %vm267, 0, %v304
      %306 = vst [vmem:[#allocation2 + $0x90] sm:$0x1] %v305
      %v307 = vld [vmem:[#allocation2 + $0x9c] sm:$0x1]
      %v308 = vsel %vm267, 0, %v307
      %309 = vst [vmem:[#allocation2 + $0x9c] sm:$0x1] %v308
      %v310 = vld [vmem:[#allocation2 + $0xa8] sm:$0x1]
      %v311 = vsel %vm267, 0, %v310
      %312 = vst [vmem:[#allocation2 + $0xa8] sm:$0x1] %v311
      %v313 = vld [vmem:[#allocation2 + $0xb4] sm:$0x1]
      %v314 = vsel %vm267, 0, %v313
      %315 = vst [vmem:[#allocation2 + $0xb4] sm:$0x1] %v314
      %v316 = vld [vmem:[#allocation2 + $0xc0] sm:$0x1]
      %v317 = vsel %vm267, 0, %v316
      %318 = vst [vmem:[#allocation2 + $0xc0] sm:$0x1] %v317
      %v319 = vld [vmem:[#allocation2 + $0xcc] sm:$0x1]
      %v320 = vsel %vm267, 0, %v319
      %321 = vst [vmem:[#allocation2 + $0xcc] sm:$0x1] %v320
      %vm322 = vsmask.f32 7938
      %vm323 = vmand %vm265, %vm322
      %v324 = vld [vmem:[#allocation2 + $0x8] sm:$0x1]
      %v325 = vsel %vm323, 0, %v324
      %326 = vst [vmem:[#allocation2 + $0x8] sm:$0x1] %v325
      %v327 = vld [vmem:[#allocation2 + $0x14] sm:$0x1]
      %v328 = vsel %vm323, 0, %v327
      %329 = vst [vmem:[#allocation2 + $0x14] sm:$0x1] %v328
      %v330 = vld [vmem:[#allocation2 + $0x20] sm:$0x1]
      %v331 = vsel %vm323, 0, %v330
      %332 = vst [vmem:[#allocation2 + $0x20] sm:$0x1] %v331
      %v333 = vld [vmem:[#allocation2 + $0x2c] sm:$0x1]
      %v334 = vsel %vm323, 0, %v333
      %335 = vst [vmem:[#allocation2 + $0x2c] sm:$0x1] %v334
      %v336 = vld [vmem:[#allocation2 + $0x38] sm:$0x1]
      %v337 = vsel %vm323, 0, %v336
      %338 = vst [vmem:[#allocation2 + $0x38] sm:$0x1] %v337
      %v339 = vld [vmem:[#allocation2 + $0x44] sm:$0x1]
      %v340 = vsel %vm323, 0, %v339
      %341 = vst [vmem:[#allocation2 + $0x44] sm:$0x1] %v340
      %v342 = vld [vmem:[#allocation2 + $0x50] sm:$0x1]
      %v343 = vsel %vm323, 0, %v342
      %344 = vst [vmem:[#allocation2 + $0x50] sm:$0x1] %v343
      %v345 = vld [vmem:[#allocation2 + $0x5c] sm:$0x1]
      %v346 = vsel %vm323, 0, %v345
      %347 = vst [vmem:[#allocation2 + $0x5c] sm:$0x1] %v346
      %v348 = vld [vmem:[#allocation2 + $0x68] sm:$0x1]
      %v349 = vsel %vm323, 0, %v348
      %350 = vst [vmem:[#allocation2 + $0x68] sm:$0x1] %v349
      %v351 = vld [vmem:[#allocation2 + $0x74] sm:$0x1]
      %v352 = vsel %vm323, 0, %v351
      %353 = vst [vmem:[#allocation2 + $0x74] sm:$0x1] %v352
      %v354 = vld [vmem:[#allocation2 + $0x80] sm:$0x1]
      %v355 = vsel %vm323, 0, %v354
      %356 = vst [vmem:[#allocation2 + $0x80] sm:$0x1] %v355
      %v357 = vld [vmem:[#allocation2 + $0x8c] sm:$0x1]
      %v358 = vsel %vm323, 0, %v357
      %359 = vst [vmem:[#allocation2 + $0x8c] sm:$0x1] %v358
      %v360 = vld [vmem:[#allocation2 + $0x98] sm:$0x1]
      %v361 = vsel %vm323, 0, %v360
      %362 = vst [vmem:[#allocation2 + $0x98] sm:$0x1] %v361
      %v363 = vld [vmem:[#allocation2 + $0xa4] sm:$0x1]
      %v364 = vsel %vm323, 0, %v363
      %365 = vst [vmem:[#allocation2 + $0xa4] sm:$0x1] %v364
      %v366 = vld [vmem:[#allocation2 + $0xb0] sm:$0x1]
      %v367 = vsel %vm323, 0, %v366
      %368 = vst [vmem:[#allocation2 + $0xb0] sm:$0x1] %v367
      %v369 = vld [vmem:[#allocation2 + $0xbc] sm:$0x1]
      %v370 = vsel %vm323, 0, %v369
      %371 = vst [vmem:[#allocation2 + $0xbc] sm:$0x1] %v370
      %v372 = vld [vmem:[#allocation2 + $0xc8] sm:$0x1]
      %v373 = vsel %vm323, 0, %v372
      %374 = vst [vmem:[#allocation2 + $0xc8] sm:$0x1] %v373
      %v375 = vld [vmem:[#allocation2 + $0xd4] sm:$0x1]
      %v376 = vsel %vm323, 0, %v375
      %377 = vst [vmem:[#allocation2 + $0xd4] sm:$0x1] %v376
      %v394 = vunpack.c.l.b16 %v242
      %v395 = vunpack.c.h.b16 %v242
      %v396 = vunpack.c.l.b16 %v243
      %v397 = vunpack.c.h.b16 %v243
      %v398 = vunpack.c.l.b16 %v244
      %v399 = vunpack.c.h.b16 %v244
      %v400 = vunpack.c.l.b16 %v245
      %v401 = vunpack.c.h.b16 %v245
      %v402 = vunpack.c.l.b16 %v246
      %v403 = vunpack.c.h.b16 %v246
      %v404 = vunpack.c.l.b16 %v247
      %v405 = vunpack.c.h.b16 %v247
      %v406 = vunpack.c.l.b16 %v248
      %v407 = vunpack.c.h.b16 %v248
      %v408 = vunpack.c.l.b16 %v249
      %v409 = vunpack.c.h.b16 %v249
      %v410 = vunpack.c.l.b16 %v250
      %v411 = vunpack.c.h.b16 %v250
      %v412 = vunpack.c.l.b16 %v251
      %v413 = vunpack.c.h.b16 %v251
      %v414 = vunpack.c.l.b16 %v252
      %v415 = vunpack.c.h.b16 %v252
      %v416 = vunpack.c.l.b16 %v253
      %v417 = vunpack.c.h.b16 %v253
      %v418 = vunpack.c.l.b16 %v254
      %v419 = vunpack.c.h.b16 %v254
      %v420 = vunpack.c.l.b16 %v255
      %v421 = vunpack.c.h.b16 %v255
      %v422 = vunpack.c.l.b16 %v256
      %v423 = vunpack.c.h.b16 %v256
      %v424 = vunpack.c.l.b16 %v257
      %v425 = vunpack.c.h.b16 %v257
      %v426 = vpack.c.b16 %v394, %v394
      %v427 = vpack.c.b16 %v395, %v395
      %v428 = vpack.c.b16 %v396, %v396
      %v429 = vpack.c.b16 %v397, %v397
      %v430 = vpack.c.b16 %v398, %v398
      %v431 = vpack.c.b16 %v399, %v399
      %v432 = vpack.c.b16 %v400, %v400
      %v433 = vpack.c.b16 %v401, %v401
      %v434 = vpack.c.b16 %v402, %v402
      %v435 = vpack.c.b16 %v403, %v403
      %v436 = vpack.c.b16 %v404, %v404
      %v437 = vpack.c.b16 %v405, %v405
      %v438 = vpack.c.b16 %v406, %v406
      %v439 = vpack.c.b16 %v407, %v407
      %v440 = vpack.c.b16 %v408, %v408
      %v441 = vpack.c.b16 %v409, %v409
      %v442 = vpack.c.b16 %v410, %v410
      %v443 = vpack.c.b16 %v411, %v411
      %v444 = vpack.c.b16 %v412, %v412
      %v445 = vpack.c.b16 %v413, %v413
      %v446 = vpack.c.b16 %v414, %v414
      %v447 = vpack.c.b16 %v415, %v415
      %v448 = vpack.c.b16 %v416, %v416
      %v449 = vpack.c.b16 %v417, %v417
      %v450 = vpack.c.b16 %v418, %v418
      %v451 = vpack.c.b16 %v419, %v419
      %v452 = vpack.c.b16 %v420, %v420
      %v453 = vpack.c.b16 %v421, %v421
      %v454 = vpack.c.b16 %v422, %v422
      %v455 = vpack.c.b16 %v423, %v423
      %v456 = vpack.c.b16 %v424, %v424
      %v457 = vpack.c.b16 %v425, %v425
      %vm458 = vsmask.f32 4368
      %vm459 = vmor %vm266, %vm458
      %v461 = vshrl.u32 %v426, 16
      %v463 = vrot.slane %v461, 7
      %v464 = vshll.u32 %v426, 16
      %v466 = vor.u32 %v463, %v464
      %v467 = vrot.slane %v463, 4
      %v469 = vshrl.u32 %v427, 16
      %v471 = vrot.slane %v469, 7
      %v472 = vshll.u32 %v427, 16
      %v474 = vor.u32 %v471, %v472
      %v475 = vsel %vm459, %v467, %v474
      %v476 = vrot.slane %v471, 4
      %v478 = vshrl.u32 %v428, 16
      %v480 = vrot.slane %v478, 7
      %v481 = vshll.u32 %v428, 16
      %v483 = vor.u32 %v480, %v481
      %v484 = vrot.slane %v480, 4
      %v486 = vshrl.u32 %v429, 16
      %v488 = vrot.slane %v486, 7
      %v489 = vshll.u32 %v429, 16
      %v491 = vor.u32 %v488, %v489
      %v492 = vsel %vm459, %v484, %v491
      %v493 = vrot.slane %v488, 4
      %v495 = vshrl.u32 %v430, 16
      %v497 = vrot.slane %v495, 7
      %v498 = vshll.u32 %v430, 16
      %v500 = vor.u32 %v497, %v498
      %v501 = vrot.slane %v497, 4
      %v503 = vshrl.u32 %v431, 16
      %v505 = vrot.slane %v503, 7
      %v506 = vshll.u32 %v431, 16
      %v508 = vor.u32 %v505, %v506
      %v509 = vsel %vm459, %v501, %v508
      %v510 = vrot.slane %v505, 4
      %v512 = vshrl.u32 %v432, 16
      %v514 = vrot.slane %v512, 7
      %v515 = vshll.u32 %v432, 16
      %v517 = vor.u32 %v514, %v515
      %v518 = vrot.slane %v514, 4
      %v520 = vshrl.u32 %v433, 16
      %v522 = vrot.slane %v520, 7
      %v523 = vshll.u32 %v433, 16
      %v525 = vor.u32 %v522, %v523
      %v526 = vsel %vm459, %v518, %v525
      %v527 = vrot.slane %v522, 4
      %v529 = vshrl.u32 %v434, 16
      %v531 = vrot.slane %v529, 7
      %v532 = vshll.u32 %v434, 16
      %v534 = vor.u32 %v531, %v532
      %v535 = vrot.slane %v531, 4
      %v537 = vshrl.u32 %v435, 16
      %v539 = vrot.slane %v537, 7
      %v540 = vshll.u32 %v435, 16
      %v542 = vor.u32 %v539, %v540
      %v543 = vsel %vm459, %v535, %v542
      %v544 = vrot.slane %v539, 4
      %v546 = vshrl.u32 %v436, 16
      %v548 = vrot.slane %v546, 7
      %v549 = vshll.u32 %v436, 16
      %v551 = vor.u32 %v548, %v549
      %v552 = vrot.slane %v548, 4
      %v554 = vshrl.u32 %v437, 16
      %v556 = vrot.slane %v554, 7
      %v557 = vshll.u32 %v437, 16
      %v559 = vor.u32 %v556, %v557
      %v560 = vsel %vm459, %v552, %v559
      %v561 = vrot.slane %v556, 4
      %v563 = vshrl.u32 %v438, 16
      %v565 = vrot.slane %v563, 7
      %v566 = vshll.u32 %v438, 16
      %v568 = vor.u32 %v565, %v566
      %v569 = vrot.slane %v565, 4
      %v571 = vshrl.u32 %v439, 16
      %v573 = vrot.slane %v571, 7
      %v574 = vshll.u32 %v439, 16
      %v576 = vor.u32 %v573, %v574
      %v577 = vsel %vm459, %v569, %v576
      %v578 = vrot.slane %v573, 4
      %v580 = vshrl.u32 %v440, 16
      %v582 = vrot.slane %v580, 7
      %v583 = vshll.u32 %v440, 16
      %v585 = vor.u32 %v582, %v583
      %v586 = vrot.slane %v582, 4
      %v588 = vshrl.u32 %v441, 16
      %v590 = vrot.slane %v588, 7
      %v591 = vshll.u32 %v441, 16
      %v593 = vor.u32 %v590, %v591
      %v594 = vsel %vm459, %v586, %v593
      %v595 = vrot.slane %v590, 4
      %v597 = vshrl.u32 %v442, 16
      %v599 = vrot.slane %v597, 7
      %v600 = vshll.u32 %v442, 16
      %v602 = vor.u32 %v599, %v600
      %v603 = vrot.slane %v599, 4
      %v605 = vshrl.u32 %v443, 16
      %v607 = vrot.slane %v605, 7
      %v608 = vshll.u32 %v443, 16
      %v610 = vor.u32 %v607, %v608
      %v611 = vsel %vm459, %v603, %v610
      %v612 = vrot.slane %v607, 4
      %v614 = vshrl.u32 %v444, 16
      %v616 = vrot.slane %v614, 7
      %v617 = vshll.u32 %v444, 16
      %v619 = vor.u32 %v616, %v617
      %v620 = vrot.slane %v616, 4
      %v622 = vshrl.u32 %v445, 16
      %v624 = vrot.slane %v622, 7
      %v625 = vshll.u32 %v445, 16
      %v627 = vor.u32 %v624, %v625
      %v628 = vsel %vm459, %v620, %v627
      %v629 = vrot.slane %v624, 4
      %v631 = vshrl.u32 %v446, 16
      %v633 = vrot.slane %v631, 7
      %v634 = vshll.u32 %v446, 16
      %v636 = vor.u32 %v633, %v634
      %v637 = vrot.slane %v633, 4
      %v639 = vshrl.u32 %v447, 16
      %v641 = vrot.slane %v639, 7
      %v642 = vshll.u32 %v447, 16
      %v644 = vor.u32 %v641, %v642
      %v645 = vsel %vm459, %v637, %v644
      %v646 = vrot.slane %v641, 4
      %v648 = vshrl.u32 %v448, 16
      %v650 = vrot.slane %v648, 7
      %v651 = vshll.u32 %v448, 16
      %v653 = vor.u32 %v650, %v651
      %v654 = vrot.slane %v650, 4
      %v656 = vshrl.u32 %v449, 16
      %v658 = vrot.slane %v656, 7
      %v659 = vshll.u32 %v449, 16
      %v661 = vor.u32 %v658, %v659
      %v662 = vsel %vm459, %v654, %v661
      %v663 = vrot.slane %v658, 4
      %v665 = vshrl.u32 %v450, 16
      %v667 = vrot.slane %v665, 7
      %v668 = vshll.u32 %v450, 16
      %v670 = vor.u32 %v667, %v668
      %v671 = vrot.slane %v667, 4
      %v673 = vshrl.u32 %v451, 16
      %v675 = vrot.slane %v673, 7
      %v676 = vshll.u32 %v451, 16
      %v678 = vor.u32 %v675, %v676
      %v679 = vsel %vm459, %v671, %v678
      %v680 = vrot.slane %v675, 4
      %v682 = vshrl.u32 %v452, 16
      %v684 = vrot.slane %v682, 7
      %v685 = vshll.u32 %v452, 16
      %v687 = vor.u32 %v684, %v685
      %v688 = vrot.slane %v684, 4
      %v690 = vshrl.u32 %v453, 16
      %v692 = vrot.slane %v690, 7
      %v693 = vshll.u32 %v453, 16
      %v695 = vor.u32 %v692, %v693
      %v696 = vsel %vm459, %v688, %v695
      %v697 = vrot.slane %v692, 4
      %v699 = vshrl.u32 %v454, 16
      %v701 = vrot.slane %v699, 7
      %v702 = vshll.u32 %v454, 16
      %v704 = vor.u32 %v701, %v702
      %v705 = vrot.slane %v701, 4
      %v707 = vshrl.u32 %v455, 16
      %v709 = vrot.slane %v707, 7
      %v710 = vshll.u32 %v455, 16
      %v712 = vor.u32 %v709, %v710
      %v713 = vsel %vm459, %v705, %v712
      %v714 = vrot.slane %v709, 4
      %v716 = vshrl.u32 %v456, 16
      %v718 = vrot.slane %v716, 7
      %v719 = vshll.u32 %v456, 16
      %v721 = vor.u32 %v718, %v719
      %v722 = vrot.slane %v718, 4
      %v724 = vshrl.u32 %v457, 16
      %v726 = vrot.slane %v724, 7
      %v727 = vshll.u32 %v457, 16
      %v729 = vor.u32 %v726, %v727
      %v730 = vsel %vm459, %v722, %v729
      %v731 = vrot.slane %v726, 4
      %s780 = scalar_lea.vmem [#allocation2], 12
      %vm781 = vcmask 1043456
      %vm782 = vmand %vm781, %vm322
      %v783 = vld [vmem:[%s780] sm:$0xf]
      %v784 = vsel %vm782, %v466, %v783
      %785 = vst [vmem:[%s780] sm:$0xf] %v784
      %786 = vst [vmem:[%s780 + $0x4] sm:$0xf] %v475
      %v787 = vld [vmem:[%s780 + $0x8] sm:$0x1]
      %v788 = vsel %vm267, %v476, %v787
      %789 = vst [vmem:[%s780 + $0x8] sm:$0x1] %v788
      %v790 = vld [vmem:[%s780 + $0xc] sm:$0xf]
      %v791 = vsel %vm782, %v483, %v790
      %792 = vst [vmem:[%s780 + $0xc] sm:$0xf] %v791
      %793 = vst [vmem:[%s780 + $0x10] sm:$0xf] %v492
      %v794 = vld [vmem:[%s780 + $0x14] sm:$0x1]
      %v795 = vsel %vm267, %v493, %v794
      %796 = vst [vmem:[%s780 + $0x14] sm:$0x1] %v795
      %v797 = vld [vmem:[%s780 + $0x18] sm:$0xf]
      %v798 = vsel %vm782, %v500, %v797
      %799 = vst [vmem:[%s780 + $0x18] sm:$0xf] %v798
      %800 = vst [vmem:[%s780 + $0x1c] sm:$0xf] %v509
      %v801 = vld [vmem:[%s780 + $0x20] sm:$0x1]
      %v802 = vsel %vm267, %v510, %v801
      %803 = vst [vmem:[%s780 + $0x20] sm:$0x1] %v802
      %v804 = vld [vmem:[%s780 + $0x24] sm:$0xf]
      %v805 = vsel %vm782, %v517, %v804
      %806 = vst [vmem:[%s780 + $0x24] sm:$0xf] %v805
      %807 = vst [vmem:[%s780 + $0x28] sm:$0xf] %v526
      %v808 = vld [vmem:[%s780 + $0x2c] sm:$0x1]
      %v809 = vsel %vm267, %v527, %v808
      %810 = vst [vmem:[%s780 + $0x2c] sm:$0x1] %v809
      %v811 = vld [vmem:[%s780 + $0x30] sm:$0xf]
      %v812 = vsel %vm782, %v534, %v811
      %813 = vst [vmem:[%s780 + $0x30] sm:$0xf] %v812
      %814 = vst [vmem:[%s780 + $0x34] sm:$0xf] %v543
      %v815 = vld [vmem:[%s780 + $0x38] sm:$0x1]
      %v816 = vsel %vm267, %v544, %v815
      %817 = vst [vmem:[%s780 + $0x38] sm:$0x1] %v816
      %v818 = vld [vmem:[%s780 + $0x3c] sm:$0xf]
      %v819 = vsel %vm782, %v551, %v818
      %820 = vst [vmem:[%s780 + $0x3c] sm:$0xf] %v819
      %821 = vst [vmem:[%s780 + $0x40] sm:$0xf] %v560
      %v822 = vld [vmem:[%s780 + $0x44] sm:$0x1]
      %v823 = vsel %vm267, %v561, %v822
      %824 = vst [vmem:[%s780 + $0x44] sm:$0x1] %v823
      %v825 = vld [vmem:[%s780 + $0x48] sm:$0xf]
      %v826 = vsel %vm782, %v568, %v825
      %827 = vst [vmem:[%s780 + $0x48] sm:$0xf] %v826
      %828 = vst [vmem:[%s780 + $0x4c] sm:$0xf] %v577
      %v829 = vld [vmem:[%s780 + $0x50] sm:$0x1]
      %v830 = vsel %vm267, %v578, %v829
      %831 = vst [vmem:[%s780 + $0x50] sm:$0x1] %v830
      %v832 = vld [vmem:[%s780 + $0x54] sm:$0xf]
      %v833 = vsel %vm782, %v585, %v832
      %834 = vst [vmem:[%s780 + $0x54] sm:$0xf] %v833
      %835 = vst [vmem:[%s780 + $0x58] sm:$0xf] %v594
      %v836 = vld [vmem:[%s780 + $0x5c] sm:$0x1]
      %v837 = vsel %vm267, %v595, %v836
      %838 = vst [vmem:[%s780 + $0x5c] sm:$0x1] %v837
      %v839 = vld [vmem:[%s780 + $0x60] sm:$0xf]
      %v840 = vsel %vm782, %v602, %v839
      %841 = vst [vmem:[%s780 + $0x60] sm:$0xf] %v840
      %842 = vst [vmem:[%s780 + $0x64] sm:$0xf] %v611
      %v843 = vld [vmem:[%s780 + $0x68] sm:$0x1]
      %v844 = vsel %vm267, %v612, %v843
      %845 = vst [vmem:[%s780 + $0x68] sm:$0x1] %v844
      %v846 = vld [vmem:[%s780 + $0x6c] sm:$0xf]
      %v847 = vsel %vm782, %v619, %v846
      %848 = vst [vmem:[%s780 + $0x6c] sm:$0xf] %v847
      %849 = vst [vmem:[%s780 + $0x70] sm:$0xf] %v628
      %v850 = vld [vmem:[%s780 + $0x74] sm:$0x1]
      %v851 = vsel %vm267, %v629, %v850
      %852 = vst [vmem:[%s780 + $0x74] sm:$0x1] %v851
      %v853 = vld [vmem:[%s780 + $0x78] sm:$0xf]
      %v854 = vsel %vm782, %v636, %v853
      %855 = vst [vmem:[%s780 + $0x78] sm:$0xf] %v854
      %856 = vst [vmem:[%s780 + $0x7c] sm:$0xf] %v645
      %v857 = vld [vmem:[%s780 + $0x80] sm:$0x1]
      %v858 = vsel %vm267, %v646, %v857
      %859 = vst [vmem:[%s780 + $0x80] sm:$0x1] %v858
      %v860 = vld [vmem:[%s780 + $0x84] sm:$0xf]
      %v861 = vsel %vm782, %v653, %v860
      %862 = vst [vmem:[%s780 + $0x84] sm:$0xf] %v861
      %863 = vst [vmem:[%s780 + $0x88] sm:$0xf] %v662
      %v864 = vld [vmem:[%s780 + $0x8c] sm:$0x1]
      %v865 = vsel %vm267, %v663, %v864
      %866 = vst [vmem:[%s780 + $0x8c] sm:$0x1] %v865
      %v867 = vld [vmem:[%s780 + $0x90] sm:$0xf]
      %v868 = vsel %vm782, %v670, %v867
      %869 = vst [vmem:[%s780 + $0x90] sm:$0xf] %v868
      %870 = vst [vmem:[%s780 + $0x94] sm:$0xf] %v679
      %v871 = vld [vmem:[%s780 + $0x98] sm:$0x1]
      %v872 = vsel %vm267, %v680, %v871
      %873 = vst [vmem:[%s780 + $0x98] sm:$0x1] %v872
      %v874 = vld [vmem:[%s780 + $0x9c] sm:$0xf]
      %v875 = vsel %vm782, %v687, %v874
      %876 = vst [vmem:[%s780 + $0x9c] sm:$0xf] %v875
      %877 = vst [vmem:[%s780 + $0xa0] sm:$0xf] %v696
      %v878 = vld [vmem:[%s780 + $0xa4] sm:$0x1]
      %v879 = vsel %vm267, %v697, %v878
      %880 = vst [vmem:[%s780 + $0xa4] sm:$0x1] %v879
      %v881 = vld [vmem:[%s780 + $0xa8] sm:$0xf]
      %v882 = vsel %vm782, %v704, %v881
      %883 = vst [vmem:[%s780 + $0xa8] sm:$0xf] %v882
      %884 = vst [vmem:[%s780 + $0xac] sm:$0xf] %v713
      %v885 = vld [vmem:[%s780 + $0xb0] sm:$0x1]
      %v886 = vsel %vm267, %v714, %v885
      %887 = vst [vmem:[%s780 + $0xb0] sm:$0x1] %v886
      %v888 = vld [vmem:[%s780 + $0xb4] sm:$0xf]
      %v889 = vsel %vm782, %v721, %v888
      %890 = vst [vmem:[%s780 + $0xb4] sm:$0xf] %v889
      %891 = vst [vmem:[%s780 + $0xb8] sm:$0xf] %v730
      %v892 = vld [vmem:[%s780 + $0xbc] sm:$0x1]
      %v893 = vsel %vm267, %v731, %v892
      %894 = vst [vmem:[%s780 + $0xbc] sm:$0x1] %v893
      %v895 = vld [vmem:[#allocation2] sm:$0xf]
      %v896 = vld [vmem:[#allocation2 + $0x4] sm:$0xf]
      %v897 = vld [vmem:[#allocation2 + $0xc] sm:$0xf]
      %v898 = vld [vmem:[#allocation2 + $0x10] sm:$0xf]
      %v899 = vld [vmem:[#allocation2 + $0x18] sm:$0xf]
      %v900 = vld [vmem:[#allocation2 + $0x1c] sm:$0xf]
      %v901 = vld [vmem:[#allocation2 + $0x24] sm:$0xf]
      %v902 = vld [vmem:[#allocation2 + $0x28] sm:$0xf]
      %v903 = vld [vmem:[#allocation2 + $0x30] sm:$0xf]
      %v904 = vld [vmem:[#allocation2 + $0x34] sm:$0xf]
      %v905 = vld [vmem:[#allocation2 + $0x3c] sm:$0xf]
      %v906 = vld [vmem:[#allocation2 + $0x40] sm:$0xf]
      %v907 = vld [vmem:[#allocation2 + $0x48] sm:$0xf]
      %v908 = vld [vmem:[#allocation2 + $0x4c] sm:$0xf]
      %v909 = vld [vmem:[#allocation2 + $0x54] sm:$0xf]
      %v910 = vld [vmem:[#allocation2 + $0x58] sm:$0xf]
      %v911 = vld [vmem:[#allocation2 + $0x60] sm:$0xf]
      %v912 = vld [vmem:[#allocation2 + $0x64] sm:$0xf]
      %v913 = vld [vmem:[#allocation2 + $0x6c] sm:$0xf]
      %v914 = vld [vmem:[#allocation2 + $0x70] sm:$0xf]
      %v915 = vld [vmem:[#allocation2 + $0x78] sm:$0xf]
      %v916 = vld [vmem:[#allocation2 + $0x7c] sm:$0xf]
      %v917 = vld [vmem:[#allocation2 + $0x84] sm:$0xf]
      %v918 = vld [vmem:[#allocation2 + $0x88] sm:$0xf]
      %v919 = vld [vmem:[#allocation2 + $0x90] sm:$0xf]
      %v920 = vld [vmem:[#allocation2 + $0x94] sm:$0xf]
      %v921 = vld [vmem:[#allocation2 + $0x9c] sm:$0xf]
      %v922 = vld [vmem:[#allocation2 + $0xa0] sm:$0xf]
      %v923 = vld [vmem:[#allocation2 + $0xa8] sm:$0xf]
      %v924 = vld [vmem:[#allocation2 + $0xac] sm:$0xf]
      %v925 = vld [vmem:[#allocation2 + $0xb4] sm:$0xf]
      %v926 = vld [vmem:[#allocation2 + $0xb8] sm:$0xf]
      %v927 = vld [vmem:[#allocation2 + $0x8] sm:$0x1]
      %v928 = vld [vmem:[#allocation2 + $0x14] sm:$0x1]
      %v929 = vld [vmem:[#allocation2 + $0x20] sm:$0x1]
      %v930 = vld [vmem:[#allocation2 + $0x2c] sm:$0x1]
      %v931 = vld [vmem:[#allocation2 + $0x38] sm:$0x1]
      %v932 = vld [vmem:[#allocation2 + $0x44] sm:$0x1]
      %v933 = vld [vmem:[#allocation2 + $0x50] sm:$0x1]
      %v934 = vld [vmem:[#allocation2 + $0x5c] sm:$0x1]
      %v935 = vld [vmem:[#allocation2 + $0x68] sm:$0x1]
      %v936 = vld [vmem:[#allocation2 + $0x74] sm:$0x1]
      %v937 = vld [vmem:[#allocation2 + $0x80] sm:$0x1]
      %v938 = vld [vmem:[#allocation2 + $0x8c] sm:$0x1]
      %v939 = vld [vmem:[#allocation2 + $0x98] sm:$0x1]
      %v940 = vld [vmem:[#allocation2 + $0xa4] sm:$0x1]
      %v941 = vld [vmem:[#allocation2 + $0xb0] sm:$0x1]
      %v942 = vld [vmem:[#allocation2 + $0xbc] sm:$0x1]
      %vm943 = vsmask.f32 3328
      %vm944 = vsmask.f32 7440
      %vm945 = vmor %vm943, %vm944
      %v947 = vshrl.u32 %v895, 16
      %v949 = vrot.slane %v947, 4
      %v950 = vshll.u32 %v895, 16
      %v952 = vrot.slane %v950, 5
      %v953 = vor.u32 %v949, %v952
      %v954 = vrot.slane %v953, 4
      %v956 = vshll.u32 %v896, 16
      %v958 = vrot.slane %v956, 5
      %v959 = vsel %vm945, %v954, %v958
      %v960 = vshrl.u32 %v896, 16
      %v962 = vrot.slane %v960, 4
      %v963 = vor.u32 %v962, %v958
      %v964 = vrot.slane %v963, 4
      %v966 = vshll.u32 %v927, 16
      %v968 = vrot.slane %v966, 5
      %v969 = vsel %vm945, %v964, %v968
      %v971 = vshrl.u32 %v897, 16
      %v973 = vrot.slane %v971, 4
      %v974 = vshll.u32 %v897, 16
      %v976 = vrot.slane %v974, 5
      %v977 = vor.u32 %v973, %v976
      %v978 = vrot.slane %v977, 4
      %v980 = vshll.u32 %v898, 16
      %v982 = vrot.slane %v980, 5
      %v983 = vsel %vm945, %v978, %v982
      %v984 = vshrl.u32 %v898, 16
      %v986 = vrot.slane %v984, 4
      %v987 = vor.u32 %v986, %v982
      %v988 = vrot.slane %v987, 4
      %v990 = vshll.u32 %v928, 16
      %v992 = vrot.slane %v990, 5
      %v993 = vsel %vm945, %v988, %v992
      %v995 = vshrl.u32 %v899, 16
      %v997 = vrot.slane %v995, 4
      %v998 = vshll.u32 %v899, 16
      %v1000 = vrot.slane %v998, 5
      %v1001 = vor.u32 %v997, %v1000
      %v1002 = vrot.slane %v1001, 4
      %v1004 = vshll.u32 %v900, 16
      %v1006 = vrot.slane %v1004, 5
      %v1007 = vsel %vm945, %v1002, %v1006
      %v1008 = vshrl.u32 %v900, 16
      %v1010 = vrot.slane %v1008, 4
      %v1011 = vor.u32 %v1010, %v1006
      %v1012 = vrot.slane %v1011, 4
      %v1014 = vshll.u32 %v929, 16
      %v1016 = vrot.slane %v1014, 5
      %v1017 = vsel %vm945, %v1012, %v1016
      %v1019 = vshrl.u32 %v901, 16
      %v1021 = vrot.slane %v1019, 4
      %v1022 = vshll.u32 %v901, 16
      %v1024 = vrot.slane %v1022, 5
      %v1025 = vor.u32 %v1021, %v1024
      %v1026 = vrot.slane %v1025, 4
      %v1028 = vshll.u32 %v902, 16
      %v1030 = vrot.slane %v1028, 5
      %v1031 = vsel %vm945, %v1026, %v1030
      %v1032 = vshrl.u32 %v902, 16
      %v1034 = vrot.slane %v1032, 4
      %v1035 = vor.u32 %v1034, %v1030
      %v1036 = vrot.slane %v1035, 4
      %v1038 = vshll.u32 %v930, 16
      %v1040 = vrot.slane %v1038, 5
      %v1041 = vsel %vm945, %v1036, %v1040
      %v1043 = vshrl.u32 %v903, 16
      %v1045 = vrot.slane %v1043, 4
      %v1046 = vshll.u32 %v903, 16
      %v1048 = vrot.slane %v1046, 5
      %v1049 = vor.u32 %v1045, %v1048
      %v1050 = vrot.slane %v1049, 4
      %v1052 = vshll.u32 %v904, 16
      %v1054 = vrot.slane %v1052, 5
      %v1055 = vsel %vm945, %v1050, %v1054
      %v1056 = vshrl.u32 %v904, 16
      %v1058 = vrot.slane %v1056, 4
      %v1059 = vor.u32 %v1058, %v1054
      %v1060 = vrot.slane %v1059, 4
      %v1062 = vshll.u32 %v931, 16
      %v1064 = vrot.slane %v1062, 5
      %v1065 = vsel %vm945, %v1060, %v1064
      %v1067 = vshrl.u32 %v905, 16
      %v1069 = vrot.slane %v1067, 4
      %v1070 = vshll.u32 %v905, 16
      %v1072 = vrot.slane %v1070, 5
      %v1073 = vor.u32 %v1069, %v1072
      %v1074 = vrot.slane %v1073, 4
      %v1076 = vshll.u32 %v906, 16
      %v1078 = vrot.slane %v1076, 5
      %v1079 = vsel %vm945, %v1074, %v1078
      %v1080 = vshrl.u32 %v906, 16
      %v1082 = vrot.slane %v1080, 4
      %v1083 = vor.u32 %v1082, %v1078
      %v1084 = vrot.slane %v1083, 4
      %v1086 = vshll.u32 %v932, 16
      %v1088 = vrot.slane %v1086, 5
      %v1089 = vsel %vm945, %v1084, %v1088
      %v1091 = vshrl.u32 %v907, 16
      %v1093 = vrot.slane %v1091, 4
      %v1094 = vshll.u32 %v907, 16
      %v1096 = vrot.slane %v1094, 5
      %v1097 = vor.u32 %v1093, %v1096
      %v1098 = vrot.slane %v1097, 4
      %v1100 = vshll.u32 %v908, 16
      %v1102 = vrot.slane %v1100, 5
      %v1103 = vsel %vm945, %v1098, %v1102
      %v1104 = vshrl.u32 %v908, 16
      %v1106 = vrot.slane %v1104, 4
      %v1107 = vor.u32 %v1106, %v1102
      %v1108 = vrot.slane %v1107, 4
      %v1110 = vshll.u32 %v933, 16
      %v1112 = vrot.slane %v1110, 5
      %v1113 = vsel %vm945, %v1108, %v1112
      %v1115 = vshrl.u32 %v909, 16
      %v1117 = vrot.slane %v1115, 4
      %v1118 = vshll.u32 %v909, 16
      %v1120 = vrot.slane %v1118, 5
      %v1121 = vor.u32 %v1117, %v1120
      %v1122 = vrot.slane %v1121, 4
      %v1124 = vshll.u32 %v910, 16
      %v1126 = vrot.slane %v1124, 5
      %v1127 = vsel %vm945, %v1122, %v1126
      %v1128 = vshrl.u32 %v910, 16
      %v1130 = vrot.slane %v1128, 4
      %v1131 = vor.u32 %v1130, %v1126
      %v1132 = vrot.slane %v1131, 4
      %v1134 = vshll.u32 %v934, 16
      %v1136 = vrot.slane %v1134, 5
      %v1137 = vsel %vm945, %v1132, %v1136
      %v1139 = vshrl.u32 %v911, 16
      %v1141 = vrot.slane %v1139, 4
      %v1142 = vshll.u32 %v911, 16
      %v1144 = vrot.slane %v1142, 5
      %v1145 = vor.u32 %v1141, %v1144
      %v1146 = vrot.slane %v1145, 4
      %v1148 = vshll.u32 %v912, 16
      %v1150 = vrot.slane %v1148, 5
      %v1151 = vsel %vm945, %v1146, %v1150
      %v1152 = vshrl.u32 %v912, 16
      %v1154 = vrot.slane %v1152, 4
      %v1155 = vor.u32 %v1154, %v1150
      %v1156 = vrot.slane %v1155, 4
      %v1158 = vshll.u32 %v935, 16
      %v1160 = vrot.slane %v1158, 5
      %v1161 = vsel %vm945, %v1156, %v1160
      %v1163 = vshrl.u32 %v913, 16
      %v1165 = vrot.slane %v1163, 4
      %v1166 = vshll.u32 %v913, 16
      %v1168 = vrot.slane %v1166, 5
      %v1169 = vor.u32 %v1165, %v1168
      %v1170 = vrot.slane %v1169, 4
      %v1172 = vshll.u32 %v914, 16
      %v1174 = vrot.slane %v1172, 5
      %v1175 = vsel %vm945, %v1170, %v1174
      %v1176 = vshrl.u32 %v914, 16
      %v1178 = vrot.slane %v1176, 4
      %v1179 = vor.u32 %v1178, %v1174
      %v1180 = vrot.slane %v1179, 4
      %v1182 = vshll.u32 %v936, 16
      %v1184 = vrot.slane %v1182, 5
      %v1185 = vsel %vm945, %v1180, %v1184
      %v1187 = vshrl.u32 %v915, 16
      %v1189 = vrot.slane %v1187, 4
      %v1190 = vshll.u32 %v915, 16
      %v1192 = vrot.slane %v1190, 5
      %v1193 = vor.u32 %v1189, %v1192
      %v1194 = vrot.slane %v1193, 4
      %v1196 = vshll.u32 %v916, 16
      %v1198 = vrot.slane %v1196, 5
      %v1199 = vsel %vm945, %v1194, %v1198
      %v1200 = vshrl.u32 %v916, 16
      %v1202 = vrot.slane %v1200, 4
      %v1203 = vor.u32 %v1202, %v1198
      %v1204 = vrot.slane %v1203, 4
      %v1206 = vshll.u32 %v937, 16
      %v1208 = vrot.slane %v1206, 5
      %v1209 = vsel %vm945, %v1204, %v1208
      %v1211 = vshrl.u32 %v917, 16
      %v1213 = vrot.slane %v1211, 4
      %v1214 = vshll.u32 %v917, 16
      %v1216 = vrot.slane %v1214, 5
      %v1217 = vor.u32 %v1213, %v1216
      %v1218 = vrot.slane %v1217, 4
      %v1220 = vshll.u32 %v918, 16
      %v1222 = vrot.slane %v1220, 5
      %v1223 = vsel %vm945, %v1218, %v1222
      %v1224 = vshrl.u32 %v918, 16
      %v1226 = vrot.slane %v1224, 4
      %v1227 = vor.u32 %v1226, %v1222
      %v1228 = vrot.slane %v1227, 4
      %v1230 = vshll.u32 %v938, 16
      %v1232 = vrot.slane %v1230, 5
      %v1233 = vsel %vm945, %v1228, %v1232
      %v1235 = vshrl.u32 %v919, 16
      %v1237 = vrot.slane %v1235, 4
      %v1238 = vshll.u32 %v919, 16
      %v1240 = vrot.slane %v1238, 5
      %v1241 = vor.u32 %v1237, %v1240
      %v1242 = vrot.slane %v1241, 4
      %v1244 = vshll.u32 %v920, 16
      %v1246 = vrot.slane %v1244, 5
      %v1247 = vsel %vm945, %v1242, %v1246
      %v1248 = vshrl.u32 %v920, 16
      %v1250 = vrot.slane %v1248, 4
      %v1251 = vor.u32 %v1250, %v1246
      %v1252 = vrot.slane %v1251, 4
      %v1254 = vshll.u32 %v939, 16
      %v1256 = vrot.slane %v1254, 5
      %v1257 = vsel %vm945, %v1252, %v1256
      %v1259 = vshrl.u32 %v921, 16
      %v1261 = vrot.slane %v1259, 4
      %v1262 = vshll.u32 %v921, 16
      %v1264 = vrot.slane %v1262, 5
      %v1265 = vor.u32 %v1261, %v1264
      %v1266 = vrot.slane %v1265, 4
      %v1268 = vshll.u32 %v922, 16
      %v1270 = vrot.slane %v1268, 5
      %v1271 = vsel %vm945, %v1266, %v1270
      %v1272 = vshrl.u32 %v922, 16
      %v1274 = vrot.slane %v1272, 4
      %v1275 = vor.u32 %v1274, %v1270
      %v1276 = vrot.slane %v1275, 4
      %v1278 = vshll.u32 %v940, 16
      %v1280 = vrot.slane %v1278, 5
      %v1281 = vsel %vm945, %v1276, %v1280
      %v1283 = vshrl.u32 %v923, 16
      %v1285 = vrot.slane %v1283, 4
      %v1286 = vshll.u32 %v923, 16
      %v1288 = vrot.slane %v1286, 5
      %v1289 = vor.u32 %v1285, %v1288
      %v1290 = vrot.slane %v1289, 4
      %v1292 = vshll.u32 %v924, 16
      %v1294 = vrot.slane %v1292, 5
      %v1295 = vsel %vm945, %v1290, %v1294
      %v1296 = vshrl.u32 %v924, 16
      %v1298 = vrot.slane %v1296, 4
      %v1299 = vor.u32 %v1298, %v1294
      %v1300 = vrot.slane %v1299, 4
      %v1302 = vshll.u32 %v941, 16
      %v1304 = vrot.slane %v1302, 5
      %v1305 = vsel %vm945, %v1300, %v1304
      %v1307 = vshrl.u32 %v925, 16
      %v1309 = vrot.slane %v1307, 4
      %v1310 = vshll.u32 %v925, 16
      %v1312 = vrot.slane %v1310, 5
      %v1313 = vor.u32 %v1309, %v1312
      %v1314 = vrot.slane %v1313, 4
      %v1316 = vshll.u32 %v926, 16
      %v1318 = vrot.slane %v1316, 5
      %v1319 = vsel %vm945, %v1314, %v1318
      %v1320 = vshrl.u32 %v926, 16
      %v1322 = vrot.slane %v1320, 4
      %v1323 = vor.u32 %v1322, %v1318
      %v1324 = vrot.slane %v1323, 4
      %v1326 = vshll.u32 %v942, 16
      %v1328 = vrot.slane %v1326, 5
      %v1329 = vsel %vm945, %v1324, %v1328
      %v1330 = vld [vmem:[#allocation2] sm:$0xe]
      %v1331 = vld [vmem:[#allocation2 + $0xc] sm:$0xe]
      %v1332 = vld [vmem:[#allocation2 + $0x18] sm:$0xe]
      %v1333 = vld [vmem:[#allocation2 + $0x24] sm:$0xe]
      %v1334 = vld [vmem:[#allocation2 + $0x30] sm:$0xe]
      %v1335 = vld [vmem:[#allocation2 + $0x3c] sm:$0xe]
      %v1336 = vld [vmem:[#allocation2 + $0x48] sm:$0xe]
      %v1337 = vld [vmem:[#allocation2 + $0x54] sm:$0xe]
      %v1338 = vld [vmem:[#allocation2 + $0x60] sm:$0xe]
      %v1339 = vld [vmem:[#allocation2 + $0x6c] sm:$0xe]
      %v1340 = vld [vmem:[#allocation2 + $0x78] sm:$0xe]
      %v1341 = vld [vmem:[#allocation2 + $0x84] sm:$0xe]
      %v1342 = vld [vmem:[#allocation2 + $0x90] sm:$0xe]
      %v1343 = vld [vmem:[#allocation2 + $0x9c] sm:$0xe]
      %v1344 = vld [vmem:[#allocation2 + $0xa8] sm:$0xe]
      %v1345 = vld [vmem:[#allocation2 + $0xb4] sm:$0xe]
      %vm1394 = vcmask 1042432
      %vm1395 = vcmask 1046532
      %vm1396 = vmor %vm1394, %vm1395
      %v1397 = vrot.slane %v1330, 5
      %v1398 = vrot.slane %v1397, 4
      %v1399 = vrot.slane %v896, 5
      %v1400 = vsel %vm1396, %v1398, %v1399
      %v1401 = vrot.slane %v1399, 4
      %v1402 = vrot.slane %v927, 5
      %v1403 = vsel %vm1396, %v1401, %v1402
      %v1404 = vrot.slane %v1331, 5
      %v1405 = vrot.slane %v1404, 4
      %v1406 = vrot.slane %v898, 5
      %v1407 = vsel %vm1396, %v1405, %v1406
      %v1408 = vrot.slane %v1406, 4
      %v1409 = vrot.slane %v928, 5
      %v1410 = vsel %vm1396, %v1408, %v1409
      %v1411 = vrot.slane %v1332, 5
      %v1412 = vrot.slane %v1411, 4
      %v1413 = vrot.slane %v900, 5
      %v1414 = vsel %vm1396, %v1412, %v1413
      %v1415 = vrot.slane %v1413, 4
      %v1416 = vrot.slane %v929, 5
      %v1417 = vsel %vm1396, %v1415, %v1416
      %v1418 = vrot.slane %v1333, 5
      %v1419 = vrot.slane %v1418, 4
      %v1420 = vrot.slane %v902, 5
      %v1421 = vsel %vm1396, %v1419, %v1420
      %v1422 = vrot.slane %v1420, 4
      %v1423 = vrot.slane %v930, 5
      %v1424 = vsel %vm1396, %v1422, %v1423
      %v1425 = vrot.slane %v1334, 5
      %v1426 = vrot.slane %v1425, 4
      %v1427 = vrot.slane %v904, 5
      %v1428 = vsel %vm1396, %v1426, %v1427
      %v1429 = vrot.slane %v1427, 4
      %v1430 = vrot.slane %v931, 5
      %v1431 = vsel %vm1396, %v1429, %v1430
      %v1432 = vrot.slane %v1335, 5
      %v1433 = vrot.slane %v1432, 4
      %v1434 = vrot.slane %v906, 5
      %v1435 = vsel %vm1396, %v1433, %v1434
      %v1436 = vrot.slane %v1434, 4
      %v1437 = vrot.slane %v932, 5
      %v1438 = vsel %vm1396, %v1436, %v1437
      %v1439 = vrot.slane %v1336, 5
      %v1440 = vrot.slane %v1439, 4
      %v1441 = vrot.slane %v908, 5
      %v1442 = vsel %vm1396, %v1440, %v1441
      %v1443 = vrot.slane %v1441, 4
      %v1444 = vrot.slane %v933, 5
      %v1445 = vsel %vm1396, %v1443, %v1444
      %v1446 = vrot.slane %v1337, 5
      %v1447 = vrot.slane %v1446, 4
      %v1448 = vrot.slane %v910, 5
      %v1449 = vsel %vm1396, %v1447, %v1448
      %v1450 = vrot.slane %v1448, 4
      %v1451 = vrot.slane %v934, 5
      %v1452 = vsel %vm1396, %v1450, %v1451
      %v1453 = vrot.slane %v1338, 5
      %v1454 = vrot.slane %v1453, 4
      %v1455 = vrot.slane %v912, 5
      %v1456 = vsel %vm1396, %v1454, %v1455
      %v1457 = vrot.slane %v1455, 4
      %v1458 = vrot.slane %v935, 5
      %v1459 = vsel %vm1396, %v1457, %v1458
      %v1460 = vrot.slane %v1339, 5
      %v1461 = vrot.slane %v1460, 4
      %v1462 = vrot.slane %v914, 5
      %v1463 = vsel %vm1396, %v1461, %v1462
      %v1464 = vrot.slane %v1462, 4
      %v1465 = vrot.slane %v936, 5
      %v1466 = vsel %vm1396, %v1464, %v1465
      %v1467 = vrot.slane %v1340, 5
      %v1468 = vrot.slane %v1467, 4
      %v1469 = vrot.slane %v916, 5
      %v1470 = vsel %vm1396, %v1468, %v1469
      %v1471 = vrot.slane %v1469, 4
      %v1472 = vrot.slane %v937, 5
      %v1473 = vsel %vm1396, %v1471, %v1472
      %v1474 = vrot.slane %v1341, 5
      %v1475 = vrot.slane %v1474, 4
      %v1476 = vrot.slane %v918, 5
      %v1477 = vsel %vm1396, %v1475, %v1476
      %v1478 = vrot.slane %v1476, 4
      %v1479 = vrot.slane %v938, 5
      %v1480 = vsel %vm1396, %v1478, %v1479
      %v1481 = vrot.slane %v1342, 5
      %v1482 = vrot.slane %v1481, 4
      %v1483 = vrot.slane %v920, 5
      %v1484 = vsel %vm1396, %v1482, %v1483
      %v1485 = vrot.slane %v1483, 4
      %v1486 = vrot.slane %v939, 5
      %v1487 = vsel %vm1396, %v1485, %v1486
      %v1488 = vrot.slane %v1343, 5
      %v1489 = vrot.slane %v1488, 4
      %v1490 = vrot.slane %v922, 5
      %v1491 = vsel %vm1396, %v1489, %v1490
      %v1492 = vrot.slane %v1490, 4
      %v1493 = vrot.slane %v940, 5
      %v1494 = vsel %vm1396, %v1492, %v1493
      %v1495 = vrot.slane %v1344, 5
      %v1496 = vrot.slane %v1495, 4
      %v1497 = vrot.slane %v924, 5
      %v1498 = vsel %vm1396, %v1496, %v1497
      %v1499 = vrot.slane %v1497, 4
      %v1500 = vrot.slane %v941, 5
      %v1501 = vsel %vm1396, %v1499, %v1500
      %v1502 = vrot.slane %v1345, 5
      %v1503 = vrot.slane %v1502, 4
      %v1504 = vrot.slane %v926, 5
      %v1505 = vsel %vm1396, %v1503, %v1504
      %v1506 = vrot.slane %v1504, 4
      %v1507 = vrot.slane %v942, 5
      %v1508 = vsel %vm1396, %v1506, %v1507
      %v1525 = vunpack.c.l.b16 %v895
      %v1526 = vunpack.c.l.b16 %v896
      %v1527 = vunpack.c.l.b16 %v897
      %v1528 = vunpack.c.l.b16 %v898
      %v1529 = vunpack.c.l.b16 %v899
      %v1530 = vunpack.c.l.b16 %v900
      %v1531 = vunpack.c.l.b16 %v901
      %v1532 = vunpack.c.l.b16 %v902
      %v1533 = vunpack.c.l.b16 %v903
      %v1534 = vunpack.c.l.b16 %v904
      %v1535 = vunpack.c.l.b16 %v905
      %v1536 = vunpack.c.l.b16 %v906
      %v1537 = vunpack.c.l.b16 %v907
      %v1538 = vunpack.c.l.b16 %v908
      %v1539 = vunpack.c.l.b16 %v909
      %v1540 = vunpack.c.l.b16 %v910
      %v1541 = vunpack.c.l.b16 %v911
      %v1542 = vunpack.c.l.b16 %v912
      %v1543 = vunpack.c.l.b16 %v913
      %v1544 = vunpack.c.l.b16 %v914
      %v1545 = vunpack.c.l.b16 %v915
      %v1546 = vunpack.c.l.b16 %v916
      %v1547 = vunpack.c.l.b16 %v917
      %v1548 = vunpack.c.l.b16 %v918
      %v1549 = vunpack.c.l.b16 %v919
      %v1550 = vunpack.c.l.b16 %v920
      %v1551 = vunpack.c.l.b16 %v921
      %v1552 = vunpack.c.l.b16 %v922
      %v1553 = vunpack.c.l.b16 %v923
      %v1554 = vunpack.c.l.b16 %v924
      %v1555 = vunpack.c.l.b16 %v925
      %v1556 = vunpack.c.l.b16 %v926
      %v1557 = vpack.c.b16 %v1526, %v1525
      %v1558 = vpack.c.b16 %v1528, %v1527
      %v1559 = vpack.c.b16 %v1530, %v1529
      %v1560 = vpack.c.b16 %v1532, %v1531
      %v1561 = vpack.c.b16 %v1534, %v1533
      %v1562 = vpack.c.b16 %v1536, %v1535
      %v1563 = vpack.c.b16 %v1538, %v1537
      %v1564 = vpack.c.b16 %v1540, %v1539
      %v1565 = vpack.c.b16 %v1542, %v1541
      %v1566 = vpack.c.b16 %v1544, %v1543
      %v1567 = vpack.c.b16 %v1546, %v1545
      %v1568 = vpack.c.b16 %v1548, %v1547
      %v1569 = vpack.c.b16 %v1550, %v1549
      %v1570 = vpack.c.b16 %v1552, %v1551
      %v1571 = vpack.c.b16 %v1554, %v1553
      %v1572 = vpack.c.b16 %v1556, %v1555
      %v1589 = vunpack.c.l.b16 %v959
      %v1590 = vunpack.c.l.b16 %v969
      %v1591 = vunpack.c.l.b16 %v983
      %v1592 = vunpack.c.l.b16 %v993
      %v1593 = vunpack.c.l.b16 %v1007
      %v1594 = vunpack.c.l.b16 %v1017
      %v1595 = vunpack.c.l.b16 %v1031
      %v1596 = vunpack.c.l.b16 %v1041
      %v1597 = vunpack.c.l.b16 %v1055
      %v1598 = vunpack.c.l.b16 %v1065
      %v1599 = vunpack.c.l.b16 %v1079
      %v1600 = vunpack.c.l.b16 %v1089
      %v1601 = vunpack.c.l.b16 %v1103
      %v1602 = vunpack.c.l.b16 %v1113
      %v1603 = vunpack.c.l.b16 %v1127
      %v1604 = vunpack.c.l.b16 %v1137
      %v1605 = vunpack.c.l.b16 %v1151
      %v1606 = vunpack.c.l.b16 %v1161
      %v1607 = vunpack.c.l.b16 %v1175
      %v1608 = vunpack.c.l.b16 %v1185
      %v1609 = vunpack.c.l.b16 %v1199
      %v1610 = vunpack.c.l.b16 %v1209
      %v1611 = vunpack.c.l.b16 %v1223
      %v1612 = vunpack.c.l.b16 %v1233
      %v1613 = vunpack.c.l.b16 %v1247
      %v1614 = vunpack.c.l.b16 %v1257
      %v1615 = vunpack.c.l.b16 %v1271
      %v1616 = vunpack.c.l.b16 %v1281
      %v1617 = vunpack.c.l.b16 %v1295
      %v1618 = vunpack.c.l.b16 %v1305
      %v1619 = vunpack.c.l.b16 %v1319
      %v1620 = vunpack.c.l.b16 %v1329
      %v1621 = vpack.c.b16 %v1590, %v1589
      %v1622 = vpack.c.b16 %v1592, %v1591
      %v1623 = vpack.c.b16 %v1594, %v1593
      %v1624 = vpack.c.b16 %v1596, %v1595
      %v1625 = vpack.c.b16 %v1598, %v1597
      %v1626 = vpack.c.b16 %v1600, %v1599
      %v1627 = vpack.c.b16 %v1602, %v1601
      %v1628 = vpack.c.b16 %v1604, %v1603
      %v1629 = vpack.c.b16 %v1606, %v1605
      %v1630 = vpack.c.b16 %v1608, %v1607
      %v1631 = vpack.c.b16 %v1610, %v1609
      %v1632 = vpack.c.b16 %v1612, %v1611
      %v1633 = vpack.c.b16 %v1614, %v1613
      %v1634 = vpack.c.b16 %v1616, %v1615
      %v1635 = vpack.c.b16 %v1618, %v1617
      %v1636 = vpack.c.b16 %v1620, %v1619
      %v1653 = vunpack.c.l.b16 %v1400
      %v1654 = vunpack.c.l.b16 %v1403
      %v1655 = vunpack.c.l.b16 %v1407
      %v1656 = vunpack.c.l.b16 %v1410
      %v1657 = vunpack.c.l.b16 %v1414
      %v1658 = vunpack.c.l.b16 %v1417
      %v1659 = vunpack.c.l.b16 %v1421
      %v1660 = vunpack.c.l.b16 %v1424
      %v1661 = vunpack.c.l.b16 %v1428
      %v1662 = vunpack.c.l.b16 %v1431
      %v1663 = vunpack.c.l.b16 %v1435
      %v1664 = vunpack.c.l.b16 %v1438
      %v1665 = vunpack.c.l.b16 %v1442
      %v1666 = vunpack.c.l.b16 %v1445
      %v1667 = vunpack.c.l.b16 %v1449
      %v1668 = vunpack.c.l.b16 %v1452
      %v1669 = vunpack.c.l.b16 %v1456
      %v1670 = vunpack.c.l.b16 %v1459
      %v1671 = vunpack.c.l.b16 %v1463
      %v1672 = vunpack.c.l.b16 %v1466
      %v1673 = vunpack.c.l.b16 %v1470
      %v1674 = vunpack.c.l.b16 %v1473
      %v1675 = vunpack.c.l.b16 %v1477
      %v1676 = vunpack.c.l.b16 %v1480
      %v1677 = vunpack.c.l.b16 %v1484
      %v1678 = vunpack.c.l.b16 %v1487
      %v1679 = vunpack.c.l.b16 %v1491
      %v1680 = vunpack.c.l.b16 %v1494
      %v1681 = vunpack.c.l.b16 %v1498
      %v1682 = vunpack.c.l.b16 %v1501
      %v1683 = vunpack.c.l.b16 %v1505
      %v1684 = vunpack.c.l.b16 %v1508
      %v1685 = vpack.c.b16 %v1654, %v1653
      %v1686 = vpack.c.b16 %v1656, %v1655
      %v1687 = vpack.c.b16 %v1658, %v1657
      %v1688 = vpack.c.b16 %v1660, %v1659
      %v1689 = vpack.c.b16 %v1662, %v1661
      %v1690 = vpack.c.b16 %v1664, %v1663
      %v1691 = vpack.c.b16 %v1666, %v1665
      %v1692 = vpack.c.b16 %v1668, %v1667
      %v1693 = vpack.c.b16 %v1670, %v1669
      %v1694 = vpack.c.b16 %v1672, %v1671
      %v1695 = vpack.c.b16 %v1674, %v1673
      %v1696 = vpack.c.b16 %v1676, %v1675
      %v1697 = vpack.c.b16 %v1678, %v1677
      %v1698 = vpack.c.b16 %v1680, %v1679
      %v1699 = vpack.c.b16 %v1682, %v1681
      %v1700 = vpack.c.b16 %v1684, %v1683
      %v1717 = vld [vmem:[%s1] sm:$0xf]
      %v1718 = vld [vmem:[%s1 + $0x4] sm:$0xf]
      %v1719 = vld [vmem:[%s1 + $0x8] sm:$0xf]
      %v1720 = vld [vmem:[%s1 + $0xc] sm:$0xf]
      %v1721 = vld [vmem:[%s1 + $0x10] sm:$0xf]
      %v1722 = vld [vmem:[%s1 + $0x14] sm:$0xf]
      %v1723 = vld [vmem:[%s1 + $0x18] sm:$0xf]
      %v1724 = vld [vmem:[%s1 + $0x1c] sm:$0xf]
      %v1725 = vld [vmem:[%s1 + $0x20] sm:$0xf]
      %v1726 = vld [vmem:[%s1 + $0x24] sm:$0xf]
      %v1727 = vld [vmem:[%s1 + $0x28] sm:$0xf]
      %v1728 = vld [vmem:[%s1 + $0x2c] sm:$0xf]
      %v1729 = vld [vmem:[%s1 + $0x30] sm:$0xf]
      %v1730 = vld [vmem:[%s1 + $0x34] sm:$0xf]
      %v1731 = vld [vmem:[%s1 + $0x38] sm:$0xf]
      %v1732 = vld [vmem:[%s1 + $0x3c] sm:$0xf]
      %v1733 = vld [vmem:[%s1 + $0x40] sm:$0xf]
      %v1734 = vld [vmem:[%s1 + $0x44] sm:$0xf]
      %v1735 = vld [vmem:[%s1 + $0x48] sm:$0xf]
      %v1736 = vld [vmem:[%s1 + $0x4c] sm:$0xf]
      %v1737 = vld [vmem:[%s1 + $0x50] sm:$0xf]
      %v1738 = vld [vmem:[%s1 + $0x54] sm:$0xf]
      %v1739 = vld [vmem:[%s1 + $0x58] sm:$0xf]
      %v1740 = vld [vmem:[%s1 + $0x5c] sm:$0xf]
      %v1741 = vld [vmem:[%s1 + $0x60] sm:$0xf]
      %v1742 = vld [vmem:[%s1 + $0x64] sm:$0xf]
      %v1743 = vld [vmem:[%s1 + $0x68] sm:$0xf]
      %v1744 = vld [vmem:[%s1 + $0x6c] sm:$0xf]
      %v1745 = vld [vmem:[%s1 + $0x70] sm:$0xf]
      %v1746 = vld [vmem:[%s1 + $0x74] sm:$0xf]
      %v1747 = vld [vmem:[%s1 + $0x78] sm:$0xf]
      %v1748 = vld [vmem:[%s1 + $0x7c] sm:$0xf]
      %v1749 = vld [vmem:[%s1 + $0x80] sm:$0xf]
      %v1750 = vld [vmem:[%s1 + $0x84] sm:$0xf]
      %v1751 = vld [vmem:[%s1 + $0x88] sm:$0xf]
      %v1752 = vld [vmem:[%s1 + $0x8c] sm:$0xf]
      %v1753 = vld [vmem:[%s1 + $0x90] sm:$0xf]
      %v1754 = vld [vmem:[%s1 + $0x94] sm:$0xf]
      %v1755 = vld [vmem:[%s1 + $0x98] sm:$0xf]
      %v1756 = vld [vmem:[%s1 + $0x9c] sm:$0xf]
      %v1757 = vld [vmem:[%s1 + $0xa0] sm:$0xf]
      %v1758 = vld [vmem:[%s1 + $0xa4] sm:$0xf]
      %v1759 = vld [vmem:[%s1 + $0xa8] sm:$0xf]
      %v1760 = vld [vmem:[%s1 + $0xac] sm:$0xf]
      %v1761 = vld [vmem:[%s1 + $0xb0] sm:$0xf]
      %v1762 = vld [vmem:[%s1 + $0xb4] sm:$0xf]
      %v1763 = vld [vmem:[%s1 + $0xb8] sm:$0xf]
      %v1764 = vld [vmem:[%s1 + $0xbc] sm:$0xf]
      %v1765 = vld [vmem:[%s780] sm:$0xf]
      %v1766 = vld [vmem:[%s780 + $0x4] sm:$0xf]
      %v1767 = vld [vmem:[%s780 + $0xc] sm:$0xf]
      %v1768 = vld [vmem:[%s780 + $0x10] sm:$0xf]
      %v1769 = vld [vmem:[%s780 + $0x18] sm:$0xf]
      %v1770 = vld [vmem:[%s780 + $0x1c] sm:$0xf]
      %v1771 = vld [vmem:[%s780 + $0x24] sm:$0xf]
      %v1772 = vld [vmem:[%s780 + $0x28] sm:$0xf]
      %v1773 = vld [vmem:[%s780 + $0x30] sm:$0xf]
      %v1774 = vld [vmem:[%s780 + $0x34] sm:$0xf]
      %v1775 = vld [vmem:[%s780 + $0x3c] sm:$0xf]
      %v1776 = vld [vmem:[%s780 + $0x40] sm:$0xf]
      %v1777 = vld [vmem:[%s780 + $0x48] sm:$0xf]
      %v1778 = vld [vmem:[%s780 + $0x4c] sm:$0xf]
      %v1779 = vld [vmem:[%s780 + $0x54] sm:$0xf]
      %v1780 = vld [vmem:[%s780 + $0x58] sm:$0xf]
      %v1781 = vld [vmem:[%s780 + $0x60] sm:$0xf]
      %v1782 = vld [vmem:[%s780 + $0x64] sm:$0xf]
      %v1783 = vld [vmem:[%s780 + $0x6c] sm:$0xf]
      %v1784 = vld [vmem:[%s780 + $0x70] sm:$0xf]
      %v1785 = vld [vmem:[%s780 + $0x78] sm:$0xf]
      %v1786 = vld [vmem:[%s780 + $0x7c] sm:$0xf]
      %v1787 = vld [vmem:[%s780 + $0x84] sm:$0xf]
      %v1788 = vld [vmem:[%s780 + $0x88] sm:$0xf]
      %v1789 = vld [vmem:[%s780 + $0x90] sm:$0xf]
      %v1790 = vld [vmem:[%s780 + $0x94] sm:$0xf]
      %v1791 = vld [vmem:[%s780 + $0x9c] sm:$0xf]
      %v1792 = vld [vmem:[%s780 + $0xa0] sm:$0xf]
      %v1793 = vld [vmem:[%s780 + $0xa8] sm:$0xf]
      %v1794 = vld [vmem:[%s780 + $0xac] sm:$0xf]
      %v1795 = vld [vmem:[%s780 + $0xb4] sm:$0xf]
      %v1796 = vld [vmem:[%s780 + $0xb8] sm:$0xf]
      %v1797 = vld [vmem:[%s780 + $0x8] sm:$0x1]
      %v1798 = vld [vmem:[%s780 + $0x14] sm:$0x1]
      %v1799 = vld [vmem:[%s780 + $0x20] sm:$0x1]
      %v1800 = vld [vmem:[%s780 + $0x2c] sm:$0x1]
      %v1801 = vld [vmem:[%s780 + $0x38] sm:$0x1]
      %v1802 = vld [vmem:[%s780 + $0x44] sm:$0x1]
      %v1803 = vld [vmem:[%s780 + $0x50] sm:$0x1]
      %v1804 = vld [vmem:[%s780 + $0x5c] sm:$0x1]
      %v1805 = vld [vmem:[%s780 + $0x68] sm:$0x1]
      %v1806 = vld [vmem:[%s780 + $0x74] sm:$0x1]
      %v1807 = vld [vmem:[%s780 + $0x80] sm:$0x1]
      %v1808 = vld [vmem:[%s780 + $0x8c] sm:$0x1]
      %v1809 = vld [vmem:[%s780 + $0x98] sm:$0x1]
      %v1810 = vld [vmem:[%s780 + $0xa4] sm:$0x1]
      %v1811 = vld [vmem:[%s780 + $0xb0] sm:$0x1]
      %v1812 = vld [vmem:[%s780 + $0xbc] sm:$0x1]
      %v1814 = vshrl.u32 %v1765, 16
      %v1816 = vrot.slane %v1814, 4
      %v1817 = vshll.u32 %v1765, 16
      %v1819 = vrot.slane %v1817, 5
      %v1820 = vor.u32 %v1816, %v1819
      %v1821 = vrot.slane %v1820, 4
      %v1823 = vshll.u32 %v1766, 16
      %v1825 = vrot.slane %v1823, 5
      %v1826 = vsel %vm945, %v1821, %v1825
      %v1827 = vshrl.u32 %v1766, 16
      %v1829 = vrot.slane %v1827, 4
      %v1830 = vor.u32 %v1829, %v1825
      %v1831 = vrot.slane %v1830, 4
      %v1833 = vshll.u32 %v1797, 16
      %v1835 = vrot.slane %v1833, 5
      %v1836 = vsel %vm945, %v1831, %v1835
      %v1838 = vshrl.u32 %v1767, 16
      %v1840 = vrot.slane %v1838, 4
      %v1841 = vshll.u32 %v1767, 16
      %v1843 = vrot.slane %v1841, 5
      %v1844 = vor.u32 %v1840, %v1843
      %v1845 = vrot.slane %v1844, 4
      %v1847 = vshll.u32 %v1768, 16
      %v1849 = vrot.slane %v1847, 5
      %v1850 = vsel %vm945, %v1845, %v1849
      %v1851 = vshrl.u32 %v1768, 16
      %v1853 = vrot.slane %v1851, 4
      %v1854 = vor.u32 %v1853, %v1849
      %v1855 = vrot.slane %v1854, 4
      %v1857 = vshll.u32 %v1798, 16
      %v1859 = vrot.slane %v1857, 5
      %v1860 = vsel %vm945, %v1855, %v1859
      %v1862 = vshrl.u32 %v1769, 16
      %v1864 = vrot.slane %v1862, 4
      %v1865 = vshll.u32 %v1769, 16
      %v1867 = vrot.slane %v1865, 5
      %v1868 = vor.u32 %v1864, %v1867
      %v1869 = vrot.slane %v1868, 4
      %v1871 = vshll.u32 %v1770, 16
      %v1873 = vrot.slane %v1871, 5
      %v1874 = vsel %vm945, %v1869, %v1873
      %v1875 = vshrl.u32 %v1770, 16
      %v1877 = vrot.slane %v1875, 4
      %v1878 = vor.u32 %v1877, %v1873
      %v1879 = vrot.slane %v1878, 4
      %v1881 = vshll.u32 %v1799, 16
      %v1883 = vrot.slane %v1881, 5
      %v1884 = vsel %vm945, %v1879, %v1883
      %v1886 = vshrl.u32 %v1771, 16
      %v1888 = vrot.slane %v1886, 4
      %v1889 = vshll.u32 %v1771, 16
      %v1891 = vrot.slane %v1889, 5
      %v1892 = vor.u32 %v1888, %v1891
      %v1893 = vrot.slane %v1892, 4
      %v1895 = vshll.u32 %v1772, 16
      %v1897 = vrot.slane %v1895, 5
      %v1898 = vsel %vm945, %v1893, %v1897
      %v1899 = vshrl.u32 %v1772, 16
      %v1901 = vrot.slane %v1899, 4
      %v1902 = vor.u32 %v1901, %v1897
      %v1903 = vrot.slane %v1902, 4
      %v1905 = vshll.u32 %v1800, 16
      %v1907 = vrot.slane %v1905, 5
      %v1908 = vsel %vm945, %v1903, %v1907
      %v1910 = vshrl.u32 %v1773, 16
      %v1912 = vrot.slane %v1910, 4
      %v1913 = vshll.u32 %v1773, 16
      %v1915 = vrot.slane %v1913, 5
      %v1916 = vor.u32 %v1912, %v1915
      %v1917 = vrot.slane %v1916, 4
      %v1919 = vshll.u32 %v1774, 16
      %v1921 = vrot.slane %v1919, 5
      %v1922 = vsel %vm945, %v1917, %v1921
      %v1923 = vshrl.u32 %v1774, 16
      %v1925 = vrot.slane %v1923, 4
      %v1926 = vor.u32 %v1925, %v1921
      %v1927 = vrot.slane %v1926, 4
      %v1929 = vshll.u32 %v1801, 16
      %v1931 = vrot.slane %v1929, 5
      %v1932 = vsel %vm945, %v1927, %v1931
      %v1934 = vshrl.u32 %v1775, 16
      %v1936 = vrot.slane %v1934, 4
      %v1937 = vshll.u32 %v1775, 16
      %v1939 = vrot.slane %v1937, 5
      %v1940 = vor.u32 %v1936, %v1939
      %v1941 = vrot.slane %v1940, 4
      %v1943 = vshll.u32 %v1776, 16
      %v1945 = vrot.slane %v1943, 5
      %v1946 = vsel %vm945, %v1941, %v1945
      %v1947 = vshrl.u32 %v1776, 16
      %v1949 = vrot.slane %v1947, 4
      %v1950 = vor.u32 %v1949, %v1945
      %v1951 = vrot.slane %v1950, 4
      %v1953 = vshll.u32 %v1802, 16
      %v1955 = vrot.slane %v1953, 5
      %v1956 = vsel %vm945, %v1951, %v1955
      %v1958 = vshrl.u32 %v1777, 16
      %v1960 = vrot.slane %v1958, 4
      %v1961 = vshll.u32 %v1777, 16
      %v1963 = vrot.slane %v1961, 5
      %v1964 = vor.u32 %v1960, %v1963
      %v1965 = vrot.slane %v1964, 4
      %v1967 = vshll.u32 %v1778, 16
      %v1969 = vrot.slane %v1967, 5
      %v1970 = vsel %vm945, %v1965, %v1969
      %v1971 = vshrl.u32 %v1778, 16
      %v1973 = vrot.slane %v1971, 4
      %v1974 = vor.u32 %v1973, %v1969
      %v1975 = vrot.slane %v1974, 4
      %v1977 = vshll.u32 %v1803, 16
      %v1979 = vrot.slane %v1977, 5
      %v1980 = vsel %vm945, %v1975, %v1979
      %v1982 = vshrl.u32 %v1779, 16
      %v1984 = vrot.slane %v1982, 4
      %v1985 = vshll.u32 %v1779, 16
      %v1987 = vrot.slane %v1985, 5
      %v1988 = vor.u32 %v1984, %v1987
      %v1989 = vrot.slane %v1988, 4
      %v1991 = vshll.u32 %v1780, 16
      %v1993 = vrot.slane %v1991, 5
      %v1994 = vsel %vm945, %v1989, %v1993
      %v1995 = vshrl.u32 %v1780, 16
      %v1997 = vrot.slane %v1995, 4
      %v1998 = vor.u32 %v1997, %v1993
      %v1999 = vrot.slane %v1998, 4
      %v2001 = vshll.u32 %v1804, 16
      %v2003 = vrot.slane %v2001, 5
      %v2004 = vsel %vm945, %v1999, %v2003
      %v2006 = vshrl.u32 %v1781, 16
      %v2008 = vrot.slane %v2006, 4
      %v2009 = vshll.u32 %v1781, 16
      %v2011 = vrot.slane %v2009, 5
      %v2012 = vor.u32 %v2008, %v2011
      %v2013 = vrot.slane %v2012, 4
      %v2015 = vshll.u32 %v1782, 16
      %v2017 = vrot.slane %v2015, 5
      %v2018 = vsel %vm945, %v2013, %v2017
      %v2019 = vshrl.u32 %v1782, 16
      %v2021 = vrot.slane %v2019, 4
      %v2022 = vor.u32 %v2021, %v2017
      %v2023 = vrot.slane %v2022, 4
      %v2025 = vshll.u32 %v1805, 16
      %v2027 = vrot.slane %v2025, 5
      %v2028 = vsel %vm945, %v2023, %v2027
      %v2030 = vshrl.u32 %v1783, 16
      %v2032 = vrot.slane %v2030, 4
      %v2033 = vshll.u32 %v1783, 16
      %v2035 = vrot.slane %v2033, 5
      %v2036 = vor.u32 %v2032, %v2035
      %v2037 = vrot.slane %v2036, 4
      %v2039 = vshll.u32 %v1784, 16
      %v2041 = vrot.slane %v2039, 5
      %v2042 = vsel %vm945, %v2037, %v2041
      %v2043 = vshrl.u32 %v1784, 16
      %v2045 = vrot.slane %v2043, 4
      %v2046 = vor.u32 %v2045, %v2041
      %v2047 = vrot.slane %v2046, 4
      %v2049 = vshll.u32 %v1806, 16
      %v2051 = vrot.slane %v2049, 5
      %v2052 = vsel %vm945, %v2047, %v2051
      %v2054 = vshrl.u32 %v1785, 16
      %v2056 = vrot.slane %v2054, 4
      %v2057 = vshll.u32 %v1785, 16
      %v2059 = vrot.slane %v2057, 5
      %v2060 = vor.u32 %v2056, %v2059
      %v2061 = vrot.slane %v2060, 4
      %v2063 = vshll.u32 %v1786, 16
      %v2065 = vrot.slane %v2063, 5
      %v2066 = vsel %vm945, %v2061, %v2065
      %v2067 = vshrl.u32 %v1786, 16
      %v2069 = vrot.slane %v2067, 4
      %v2070 = vor.u32 %v2069, %v2065
      %v2071 = vrot.slane %v2070, 4
      %v2073 = vshll.u32 %v1807, 16
      %v2075 = vrot.slane %v2073, 5
      %v2076 = vsel %vm945, %v2071, %v2075
      %v2078 = vshrl.u32 %v1787, 16
      %v2080 = vrot.slane %v2078, 4
      %v2081 = vshll.u32 %v1787, 16
      %v2083 = vrot.slane %v2081, 5
      %v2084 = vor.u32 %v2080, %v2083
      %v2085 = vrot.slane %v2084, 4
      %v2087 = vshll.u32 %v1788, 16
      %v2089 = vrot.slane %v2087, 5
      %v2090 = vsel %vm945, %v2085, %v2089
      %v2091 = vshrl.u32 %v1788, 16
      %v2093 = vrot.slane %v2091, 4
      %v2094 = vor.u32 %v2093, %v2089
      %v2095 = vrot.slane %v2094, 4
      %v2097 = vshll.u32 %v1808, 16
      %v2099 = vrot.slane %v2097, 5
      %v2100 = vsel %vm945, %v2095, %v2099
      %v2102 = vshrl.u32 %v1789, 16
      %v2104 = vrot.slane %v2102, 4
      %v2105 = vshll.u32 %v1789, 16
      %v2107 = vrot.slane %v2105, 5
      %v2108 = vor.u32 %v2104, %v2107
      %v2109 = vrot.slane %v2108, 4
      %v2111 = vshll.u32 %v1790, 16
      %v2113 = vrot.slane %v2111, 5
      %v2114 = vsel %vm945, %v2109, %v2113
      %v2115 = vshrl.u32 %v1790, 16
      %v2117 = vrot.slane %v2115, 4
      %v2118 = vor.u32 %v2117, %v2113
      %v2119 = vrot.slane %v2118, 4
      %v2121 = vshll.u32 %v1809, 16
      %v2123 = vrot.slane %v2121, 5
      %v2124 = vsel %vm945, %v2119, %v2123
      %v2126 = vshrl.u32 %v1791, 16
      %v2128 = vrot.slane %v2126, 4
      %v2129 = vshll.u32 %v1791, 16
      %v2131 = vrot.slane %v2129, 5
      %v2132 = vor.u32 %v2128, %v2131
      %v2133 = vrot.slane %v2132, 4
      %v2135 = vshll.u32 %v1792, 16
      %v2137 = vrot.slane %v2135, 5
      %v2138 = vsel %vm945, %v2133, %v2137
      %v2139 = vshrl.u32 %v1792, 16
      %v2141 = vrot.slane %v2139, 4
      %v2142 = vor.u32 %v2141, %v2137
      %v2143 = vrot.slane %v2142, 4
      %v2145 = vshll.u32 %v1810, 16
      %v2147 = vrot.slane %v2145, 5
      %v2148 = vsel %vm945, %v2143, %v2147
      %v2150 = vshrl.u32 %v1793, 16
      %v2152 = vrot.slane %v2150, 4
      %v2153 = vshll.u32 %v1793, 16
      %v2155 = vrot.slane %v2153, 5
      %v2156 = vor.u32 %v2152, %v2155
      %v2157 = vrot.slane %v2156, 4
      %v2159 = vshll.u32 %v1794, 16
      %v2161 = vrot.slane %v2159, 5
      %v2162 = vsel %vm945, %v2157, %v2161
      %v2163 = vshrl.u32 %v1794, 16
      %v2165 = vrot.slane %v2163, 4
      %v2166 = vor.u32 %v2165, %v2161
      %v2167 = vrot.slane %v2166, 4
      %v2169 = vshll.u32 %v1811, 16
      %v2171 = vrot.slane %v2169, 5
      %v2172 = vsel %vm945, %v2167, %v2171
      %v2174 = vshrl.u32 %v1795, 16
      %v2176 = vrot.slane %v2174, 4
      %v2177 = vshll.u32 %v1795, 16
      %v2179 = vrot.slane %v2177, 5
      %v2180 = vor.u32 %v2176, %v2179
      %v2181 = vrot.slane %v2180, 4
      %v2183 = vshll.u32 %v1796, 16
      %v2185 = vrot.slane %v2183, 5
      %v2186 = vsel %vm945, %v2181, %v2185
      %v2187 = vshrl.u32 %v1796, 16
      %v2189 = vrot.slane %v2187, 4
      %v2190 = vor.u32 %v2189, %v2185
      %v2191 = vrot.slane %v2190, 4
      %v2193 = vshll.u32 %v1812, 16
      %v2195 = vrot.slane %v2193, 5
      %v2196 = vsel %vm945, %v2191, %v2195
      %v2197 = vld [vmem:[%s780] sm:$0xe]
      %v2198 = vld [vmem:[%s780 + $0xc] sm:$0xe]
      %v2199 = vld [vmem:[%s780 + $0x18] sm:$0xe]
      %v2200 = vld [vmem:[%s780 + $0x24] sm:$0xe]
      %v2201 = vld [vmem:[%s780 + $0x30] sm:$0xe]
      %v2202 = vld [vmem:[%s780 + $0x3c] sm:$0xe]
      %v2203 = vld [vmem:[%s780 + $0x48] sm:$0xe]
      %v2204 = vld [vmem:[%s780 + $0x54] sm:$0xe]
      %v2205 = vld [vmem:[%s780 + $0x60] sm:$0xe]
      %v2206 = vld [vmem:[%s780 + $0x6c] sm:$0xe]
      %v2207 = vld [vmem:[%s780 + $0x78] sm:$0xe]
      %v2208 = vld [vmem:[%s780 + $0x84] sm:$0xe]
      %v2209 = vld [vmem:[%s780 + $0x90] sm:$0xe]
      %v2210 = vld [vmem:[%s780 + $0x9c] sm:$0xe]
      %v2211 = vld [vmem:[%s780 + $0xa8] sm:$0xe]
      %v2212 = vld [vmem:[%s780 + $0xb4] sm:$0xe]
      %v2261 = vrot.slane %v2197, 5
      %v2262 = vrot.slane %v2261, 4
      %v2263 = vrot.slane %v1766, 5
      %v2264 = vsel %vm1396, %v2262, %v2263
      %v2265 = vrot.slane %v2263, 4
      %v2266 = vrot.slane %v1797, 5
      %v2267 = vsel %vm1396, %v2265, %v2266
      %v2268 = vrot.slane %v2198, 5
      %v2269 = vrot.slane %v2268, 4
      %v2270 = vrot.slane %v1768, 5
      %v2271 = vsel %vm1396, %v2269, %v2270
      %v2272 = vrot.slane %v2270, 4
      %v2273 = vrot.slane %v1798, 5
      %v2274 = vsel %vm1396, %v2272, %v2273
      %v2275 = vrot.slane %v2199, 5
      %v2276 = vrot.slane %v2275, 4
      %v2277 = vrot.slane %v1770, 5
      %v2278 = vsel %vm1396, %v2276, %v2277
      %v2279 = vrot.slane %v2277, 4
      %v2280 = vrot.slane %v1799, 5
      %v2281 = vsel %vm1396, %v2279, %v2280
      %v2282 = vrot.slane %v2200, 5
      %v2283 = vrot.slane %v2282, 4
      %v2284 = vrot.slane %v1772, 5
      %v2285 = vsel %vm1396, %v2283, %v2284
      %v2286 = vrot.slane %v2284, 4
      %v2287 = vrot.slane %v1800, 5
      %v2288 = vsel %vm1396, %v2286, %v2287
      %v2289 = vrot.slane %v2201, 5
      %v2290 = vrot.slane %v2289, 4
      %v2291 = vrot.slane %v1774, 5
      %v2292 = vsel %vm1396, %v2290, %v2291
      %v2293 = vrot.slane %v2291, 4
      %v2294 = vrot.slane %v1801, 5
      %v2295 = vsel %vm1396, %v2293, %v2294
      %v2296 = vrot.slane %v2202, 5
      %v2297 = vrot.slane %v2296, 4
      %v2298 = vrot.slane %v1776, 5
      %v2299 = vsel %vm1396, %v2297, %v2298
      %v2300 = vrot.slane %v2298, 4
      %v2301 = vrot.slane %v1802, 5
      %v2302 = vsel %vm1396, %v2300, %v2301
      %v2303 = vrot.slane %v2203, 5
      %v2304 = vrot.slane %v2303, 4
      %v2305 = vrot.slane %v1778, 5
      %v2306 = vsel %vm1396, %v2304, %v2305
      %v2307 = vrot.slane %v2305, 4
      %v2308 = vrot.slane %v1803, 5
      %v2309 = vsel %vm1396, %v2307, %v2308
      %v2310 = vrot.slane %v2204, 5
      %v2311 = vrot.slane %v2310, 4
      %v2312 = vrot.slane %v1780, 5
      %v2313 = vsel %vm1396, %v2311, %v2312
      %v2314 = vrot.slane %v2312, 4
      %v2315 = vrot.slane %v1804, 5
      %v2316 = vsel %vm1396, %v2314, %v2315
      %v2317 = vrot.slane %v2205, 5
      %v2318 = vrot.slane %v2317, 4
      %v2319 = vrot.slane %v1782, 5
      %v2320 = vsel %vm1396, %v2318, %v2319
      %v2321 = vrot.slane %v2319, 4
      %v2322 = vrot.slane %v1805, 5
      %v2323 = vsel %vm1396, %v2321, %v2322
      %v2324 = vrot.slane %v2206, 5
      %v2325 = vrot.slane %v2324, 4
      %v2326 = vrot.slane %v1784, 5
      %v2327 = vsel %vm1396, %v2325, %v2326
      %v2328 = vrot.slane %v2326, 4
      %v2329 = vrot.slane %v1806, 5
      %v2330 = vsel %vm1396, %v2328, %v2329
      %v2331 = vrot.slane %v2207, 5
      %v2332 = vrot.slane %v2331, 4
      %v2333 = vrot.slane %v1786, 5
      %v2334 = vsel %vm1396, %v2332, %v2333
      %v2335 = vrot.slane %v2333, 4
      %v2336 = vrot.slane %v1807, 5
      %v2337 = vsel %vm1396, %v2335, %v2336
      %v2338 = vrot.slane %v2208, 5
      %v2339 = vrot.slane %v2338, 4
      %v2340 = vrot.slane %v1788, 5
      %v2341 = vsel %vm1396, %v2339, %v2340
      %v2342 = vrot.slane %v2340, 4
      %v2343 = vrot.slane %v1808, 5
      %v2344 = vsel %vm1396, %v2342, %v2343
      %v2345 = vrot.slane %v2209, 5
      %v2346 = vrot.slane %v2345, 4
      %v2347 = vrot.slane %v1790, 5
      %v2348 = vsel %vm1396, %v2346, %v2347
      %v2349 = vrot.slane %v2347, 4
      %v2350 = vrot.slane %v1809, 5
      %v2351 = vsel %vm1396, %v2349, %v2350
      %v2352 = vrot.slane %v2210, 5
      %v2353 = vrot.slane %v2352, 4
      %v2354 = vrot.slane %v1792, 5
      %v2355 = vsel %vm1396, %v2353, %v2354
      %v2356 = vrot.slane %v2354, 4
      %v2357 = vrot.slane %v1810, 5
      %v2358 = vsel %vm1396, %v2356, %v2357
      %v2359 = vrot.slane %v2211, 5
      %v2360 = vrot.slane %v2359, 4
      %v2361 = vrot.slane %v1794, 5
      %v2362 = vsel %vm1396, %v2360, %v2361
      %v2363 = vrot.slane %v2361, 4
      %v2364 = vrot.slane %v1811, 5
      %v2365 = vsel %vm1396, %v2363, %v2364
      %v2366 = vrot.slane %v2212, 5
      %v2367 = vrot.slane %v2366, 4
      %v2368 = vrot.slane %v1796, 5
      %v2369 = vsel %vm1396, %v2367, %v2368
      %v2370 = vrot.slane %v2368, 4
      %v2371 = vrot.slane %v1812, 5
      %v2372 = vsel %vm1396, %v2370, %v2371
      %v2389 = vunpack.c.l.b16 %v1765
      %v2390 = vunpack.c.l.b16 %v1766
      %v2391 = vunpack.c.l.b16 %v1767
      %v2392 = vunpack.c.l.b16 %v1768
      %v2393 = vunpack.c.l.b16 %v1769
      %v2394 = vunpack.c.l.b16 %v1770
      %v2395 = vunpack.c.l.b16 %v1771
      %v2396 = vunpack.c.l.b16 %v1772
      %v2397 = vunpack.c.l.b16 %v1773
      %v2398 = vunpack.c.l.b16 %v1774
      %v2399 = vunpack.c.l.b16 %v1775
      %v2400 = vunpack.c.l.b16 %v1776
      %v2401 = vunpack.c.l.b16 %v1777
      %v2402 = vunpack.c.l.b16 %v1778
      %v2403 = vunpack.c.l.b16 %v1779
      %v2404 = vunpack.c.l.b16 %v1780
      %v2405 = vunpack.c.l.b16 %v1781
      %v2406 = vunpack.c.l.b16 %v1782
      %v2407 = vunpack.c.l.b16 %v1783
      %v2408 = vunpack.c.l.b16 %v1784
      %v2409 = vunpack.c.l.b16 %v1785
      %v2410 = vunpack.c.l.b16 %v1786
      %v2411 = vunpack.c.l.b16 %v1787
      %v2412 = vunpack.c.l.b16 %v1788
      %v2413 = vunpack.c.l.b16 %v1789
      %v2414 = vunpack.c.l.b16 %v1790
      %v2415 = vunpack.c.l.b16 %v1791
      %v2416 = vunpack.c.l.b16 %v1792
      %v2417 = vunpack.c.l.b16 %v1793
      %v2418 = vunpack.c.l.b16 %v1794
      %v2419 = vunpack.c.l.b16 %v1795
      %v2420 = vunpack.c.l.b16 %v1796
      %v2421 = vpack.c.b16 %v2390, %v2389
      %v2422 = vpack.c.b16 %v2392, %v2391
      %v2423 = vpack.c.b16 %v2394, %v2393
      %v2424 = vpack.c.b16 %v2396, %v2395
      %v2425 = vpack.c.b16 %v2398, %v2397
      %v2426 = vpack.c.b16 %v2400, %v2399
      %v2427 = vpack.c.b16 %v2402, %v2401
      %v2428 = vpack.c.b16 %v2404, %v2403
      %v2429 = vpack.c.b16 %v2406, %v2405
      %v2430 = vpack.c.b16 %v2408, %v2407
      %v2431 = vpack.c.b16 %v2410, %v2409
      %v2432 = vpack.c.b16 %v2412, %v2411
      %v2433 = vpack.c.b16 %v2414, %v2413
      %v2434 = vpack.c.b16 %v2416, %v2415
      %v2435 = vpack.c.b16 %v2418, %v2417
      %v2436 = vpack.c.b16 %v2420, %v2419
      %v2453 = vunpack.c.l.b16 %v1826
      %v2454 = vunpack.c.l.b16 %v1836
      %v2455 = vunpack.c.l.b16 %v1850
      %v2456 = vunpack.c.l.b16 %v1860
      %v2457 = vunpack.c.l.b16 %v1874
      %v2458 = vunpack.c.l.b16 %v1884
      %v2459 = vunpack.c.l.b16 %v1898
      %v2460 = vunpack.c.l.b16 %v1908
      %v2461 = vunpack.c.l.b16 %v1922
      %v2462 = vunpack.c.l.b16 %v1932
      %v2463 = vunpack.c.l.b16 %v1946
      %v2464 = vunpack.c.l.b16 %v1956
      %v2465 = vunpack.c.l.b16 %v1970
      %v2466 = vunpack.c.l.b16 %v1980
      %v2467 = vunpack.c.l.b16 %v1994
      %v2468 = vunpack.c.l.b16 %v2004
      %v2469 = vunpack.c.l.b16 %v2018
      %v2470 = vunpack.c.l.b16 %v2028
      %v2471 = vunpack.c.l.b16 %v2042
      %v2472 = vunpack.c.l.b16 %v2052
      %v2473 = vunpack.c.l.b16 %v2066
      %v2474 = vunpack.c.l.b16 %v2076
      %v2475 = vunpack.c.l.b16 %v2090
      %v2476 = vunpack.c.l.b16 %v2100
      %v2477 = vunpack.c.l.b16 %v2114
      %v2478 = vunpack.c.l.b16 %v2124
      %v2479 = vunpack.c.l.b16 %v2138
      %v2480 = vunpack.c.l.b16 %v2148
      %v2481 = vunpack.c.l.b16 %v2162
      %v2482 = vunpack.c.l.b16 %v2172
      %v2483 = vunpack.c.l.b16 %v2186
      %v2484 = vunpack.c.l.b16 %v2196
      %v2485 = vpack.c.b16 %v2454, %v2453
      %v2486 = vpack.c.b16 %v2456, %v2455
      %v2487 = vpack.c.b16 %v2458, %v2457
      %v2488 = vpack.c.b16 %v2460, %v2459
      %v2489 = vpack.c.b16 %v2462, %v2461
      %v2490 = vpack.c.b16 %v2464, %v2463
      %v2491 = vpack.c.b16 %v2466, %v2465
      %v2492 = vpack.c.b16 %v2468, %v2467
      %v2493 = vpack.c.b16 %v2470, %v2469
      %v2494 = vpack.c.b16 %v2472, %v2471
      %v2495 = vpack.c.b16 %v2474, %v2473
      %v2496 = vpack.c.b16 %v2476, %v2475
      %v2497 = vpack.c.b16 %v2478, %v2477
      %v2498 = vpack.c.b16 %v2480, %v2479
      %v2499 = vpack.c.b16 %v2482, %v2481
      %v2500 = vpack.c.b16 %v2484, %v2483
      %v2517 = vunpack.c.l.b16 %v2264
      %v2518 = vunpack.c.l.b16 %v2267
      %v2519 = vunpack.c.l.b16 %v2271
      %v2520 = vunpack.c.l.b16 %v2274
      %v2521 = vunpack.c.l.b16 %v2278
      %v2522 = vunpack.c.l.b16 %v2281
      %v2523 = vunpack.c.l.b16 %v2285
      %v2524 = vunpack.c.l.b16 %v2288
      %v2525 = vunpack.c.l.b16 %v2292
      %v2526 = vunpack.c.l.b16 %v2295
      %v2527 = vunpack.c.l.b16 %v2299
      %v2528 = vunpack.c.l.b16 %v2302
      %v2529 = vunpack.c.l.b16 %v2306
      %v2530 = vunpack.c.l.b16 %v2309
      %v2531 = vunpack.c.l.b16 %v2313
      %v2532 = vunpack.c.l.b16 %v2316
      %v2533 = vunpack.c.l.b16 %v2320
      %v2534 = vunpack.c.l.b16 %v2323
      %v2535 = vunpack.c.l.b16 %v2327
      %v2536 = vunpack.c.l.b16 %v2330
      %v2537 = vunpack.c.l.b16 %v2334
      %v2538 = vunpack.c.l.b16 %v2337
      %v2539 = vunpack.c.l.b16 %v2341
      %v2540 = vunpack.c.l.b16 %v2344
      %v2541 = vunpack.c.l.b16 %v2348
      %v2542 = vunpack.c.l.b16 %v2351
      %v2543 = vunpack.c.l.b16 %v2355
      %v2544 = vunpack.c.l.b16 %v2358
      %v2545 = vunpack.c.l.b16 %v2362
      %v2546 = vunpack.c.l.b16 %v2365
      %v2547 = vunpack.c.l.b16 %v2369
      %v2548 = vunpack.c.l.b16 %v2372
      %v2549 = vpack.c.b16 %v2518, %v2517
      %v2550 = vpack.c.b16 %v2520, %v2519
      %v2551 = vpack.c.b16 %v2522, %v2521
      %v2552 = vpack.c.b16 %v2524, %v2523
      %v2553 = vpack.c.b16 %v2526, %v2525
      %v2554 = vpack.c.b16 %v2528, %v2527
      %v2555 = vpack.c.b16 %v2530, %v2529
      %v2556 = vpack.c.b16 %v2532, %v2531
      %v2557 = vpack.c.b16 %v2534, %v2533
      %v2558 = vpack.c.b16 %v2536, %v2535
      %v2559 = vpack.c.b16 %v2538, %v2537
      %v2560 = vpack.c.b16 %v2540, %v2539
      %v2561 = vpack.c.b16 %v2542, %v2541
      %v2562 = vpack.c.b16 %v2544, %v2543
      %v2563 = vpack.c.b16 %v2546, %v2545
      %v2564 = vpack.c.b16 %v2548, %v2547
      %v2581 = vld [vmem:[%s1 + $0xc0] sm:$0xf]
      %v2582 = vld [vmem:[%s1 + $0xc4] sm:$0xf]
      %v2583 = vld [vmem:[%s1 + $0xc8] sm:$0xf]
      %v2584 = vld [vmem:[%s1 + $0xcc] sm:$0xf]
      %v2585 = vld [vmem:[%s1 + $0xd0] sm:$0xf]
      %v2586 = vld [vmem:[%s1 + $0xd4] sm:$0xf]
      %v2587 = vld [vmem:[%s1 + $0xd8] sm:$0xf]
      %v2588 = vld [vmem:[%s1 + $0xdc] sm:$0xf]
      %v2589 = vld [vmem:[%s1 + $0xe0] sm:$0xf]
      %v2590 = vld [vmem:[%s1 + $0xe4] sm:$0xf]
      %v2591 = vld [vmem:[%s1 + $0xe8] sm:$0xf]
      %v2592 = vld [vmem:[%s1 + $0xec] sm:$0xf]
      %v2593 = vld [vmem:[%s1 + $0xf0] sm:$0xf]
      %v2594 = vld [vmem:[%s1 + $0xf4] sm:$0xf]
      %v2595 = vld [vmem:[%s1 + $0xf8] sm:$0xf]
      %v2596 = vld [vmem:[%s1 + $0xfc] sm:$0xf]
      %v2597 = vld [vmem:[%s1 + $0x100] sm:$0xf]
      %v2598 = vld [vmem:[%s1 + $0x104] sm:$0xf]
      %v2599 = vld [vmem:[%s1 + $0x108] sm:$0xf]
      %v2600 = vld [vmem:[%s1 + $0x10c] sm:$0xf]
      %v2601 = vld [vmem:[%s1 + $0x110] sm:$0xf]
      %v2602 = vld [vmem:[%s1 + $0x114] sm:$0xf]
      %v2603 = vld [vmem:[%s1 + $0x118] sm:$0xf]
      %v2604 = vld [vmem:[%s1 + $0x11c] sm:$0xf]
      %v2605 = vld [vmem:[%s1 + $0x120] sm:$0xf]
      %v2606 = vld [vmem:[%s1 + $0x124] sm:$0xf]
      %v2607 = vld [vmem:[%s1 + $0x128] sm:$0xf]
      %v2608 = vld [vmem:[%s1 + $0x12c] sm:$0xf]
      %v2609 = vld [vmem:[%s1 + $0x130] sm:$0xf]
      %v2610 = vld [vmem:[%s1 + $0x134] sm:$0xf]
      %v2611 = vld [vmem:[%s1 + $0x138] sm:$0xf]
      %v2612 = vld [vmem:[%s1 + $0x13c] sm:$0xf]
      %v2613 = vld [vmem:[%s1 + $0x140] sm:$0xf]
      %v2614 = vld [vmem:[%s1 + $0x144] sm:$0xf]
      %v2615 = vld [vmem:[%s1 + $0x148] sm:$0xf]
      %v2616 = vld [vmem:[%s1 + $0x14c] sm:$0xf]
      %v2617 = vld [vmem:[%s1 + $0x150] sm:$0xf]
      %v2618 = vld [vmem:[%s1 + $0x154] sm:$0xf]
      %v2619 = vld [vmem:[%s1 + $0x158] sm:$0xf]
      %v2620 = vld [vmem:[%s1 + $0x15c] sm:$0xf]
      %v2621 = vld [vmem:[%s1 + $0x160] sm:$0xf]
      %v2622 = vld [vmem:[%s1 + $0x164] sm:$0xf]
      %v2623 = vld [vmem:[%s1 + $0x168] sm:$0xf]
      %v2624 = vld [vmem:[%s1 + $0x16c] sm:$0xf]
      %v2625 = vld [vmem:[%s1 + $0x170] sm:$0xf]
      %v2626 = vld [vmem:[%s1 + $0x174] sm:$0xf]
      %v2627 = vld [vmem:[%s1 + $0x178] sm:$0xf]
      %v2628 = vld [vmem:[%s1 + $0x17c] sm:$0xf]
      %v2677 = vunpack.c.l.b16 %v2581
      %v2678 = vunpack.c.l.b16 %v2582
      %v2679 = vunpack.c.l.b16 %v2583
      %v2680 = vunpack.c.l.b16 %v2584
      %v2681 = vunpack.c.l.b16 %v2585
      %v2682 = vunpack.c.l.b16 %v2586
      %v2683 = vunpack.c.l.b16 %v2587
      %v2684 = vunpack.c.l.b16 %v2588
      %v2685 = vunpack.c.l.b16 %v2589
      %v2686 = vunpack.c.l.b16 %v2590
      %v2687 = vunpack.c.l.b16 %v2591
      %v2688 = vunpack.c.l.b16 %v2592
      %v2689 = vunpack.c.l.b16 %v2593
      %v2690 = vunpack.c.l.b16 %v2594
      %v2691 = vunpack.c.l.b16 %v2595
      %v2692 = vunpack.c.l.b16 %v2596
      %v2693 = vunpack.c.l.b16 %v2597
      %v2694 = vunpack.c.l.b16 %v2598
      %v2695 = vunpack.c.l.b16 %v2599
      %v2696 = vunpack.c.l.b16 %v2600
      %v2697 = vunpack.c.l.b16 %v2601
      %v2698 = vunpack.c.l.b16 %v2602
      %v2699 = vunpack.c.l.b16 %v2603
      %v2700 = vunpack.c.l.b16 %v2604
      %v2701 = vunpack.c.l.b16 %v2605
      %v2702 = vunpack.c.l.b16 %v2606
      %v2703 = vunpack.c.l.b16 %v2607
      %v2704 = vunpack.c.l.b16 %v2608
      %v2705 = vunpack.c.l.b16 %v2609
      %v2706 = vunpack.c.l.b16 %v2610
      %v2707 = vunpack.c.l.b16 %v2611
      %v2708 = vunpack.c.l.b16 %v2612
      %v2709 = vunpack.c.l.b16 %v2613
      %v2710 = vunpack.c.l.b16 %v2614
      %v2711 = vunpack.c.l.b16 %v2615
      %v2712 = vunpack.c.l.b16 %v2616
      %v2713 = vunpack.c.l.b16 %v2617
      %v2714 = vunpack.c.l.b16 %v2618
      %v2715 = vunpack.c.l.b16 %v2619
      %v2716 = vunpack.c.l.b16 %v2620
      %v2717 = vunpack.c.l.b16 %v2621
      %v2718 = vunpack.c.l.b16 %v2622
      %v2719 = vunpack.c.l.b16 %v2623
      %v2720 = vunpack.c.l.b16 %v2624
      %v2721 = vunpack.c.l.b16 %v2625
      %v2722 = vunpack.c.l.b16 %v2626
      %v2723 = vunpack.c.l.b16 %v2627
      %v2724 = vunpack.c.l.b16 %v2628
      %v2725 = vpack.c.b16 %v2678, %v2677
      %v2726 = vpack.c.b16 %v2680, %v2679
      %v2727 = vpack.c.b16 %v2682, %v2681
      %v2728 = vpack.c.b16 %v2684, %v2683
      %v2729 = vpack.c.b16 %v2686, %v2685
      %v2730 = vpack.c.b16 %v2688, %v2687
      %v2731 = vpack.c.b16 %v2690, %v2689
      %v2732 = vpack.c.b16 %v2692, %v2691
      %v2733 = vpack.c.b16 %v2694, %v2693
      %v2734 = vpack.c.b16 %v2696, %v2695
      %v2735 = vpack.c.b16 %v2698, %v2697
      %v2736 = vpack.c.b16 %v2700, %v2699
      %v2737 = vpack.c.b16 %v2702, %v2701
      %v2738 = vpack.c.b16 %v2704, %v2703
      %v2739 = vpack.c.b16 %v2706, %v2705
      %v2740 = vpack.c.b16 %v2708, %v2707
      %v2741 = vpack.c.b16 %v2710, %v2709
      %v2742 = vpack.c.b16 %v2712, %v2711
      %v2743 = vpack.c.b16 %v2714, %v2713
      %v2744 = vpack.c.b16 %v2716, %v2715
      %v2745 = vpack.c.b16 %v2718, %v2717
      %v2746 = vpack.c.b16 %v2720, %v2719
      %v2747 = vpack.c.b16 %v2722, %v2721
      %v2748 = vpack.c.b16 %v2724, %v2723
      %2773 = vmatprep.subr.bf16.mxu0 0
      %2774 = vmatpush1.bf16.msra.mxu0 %v2725
      %2775 = vmatprep.subr.bf16.mxu0 0
      %2776 = vmatpush1.bf16.msra.mxu0 %v2726
      %2777 = vmatprep.subr.bf16.mxu0 0
      %2778 = vmatpush1.bf16.msra.mxu0 %v2727
      %2779 = vmatprep.subr.bf16.mxu0 0
      %2780 = vmatpush1.bf16.msra.mxu0 %v2728
      %2781 = vmatprep.subr.bf16.mxu0 0
      %2782 = vmatpush1.bf16.msra.mxu0 %v2729
      %2783 = vmatprep.subr.bf16.mxu0 0
      %2784 = vmatpush1.bf16.msra.mxu0 %v2730
      %2785 = vmatprep.subr.bf16.mxu0 0
      %2786 = vmatpush1.bf16.msra.mxu0 %v2731
      %2787 = vmatprep.subr.bf16.mxu0 0
      %2788 = vmatpush1.bf16.msra.mxu0 %v2732
      %2789 = vmatprep.subr.bf16.mxu0 0
      %2790 = vmatpush1.bf16.msra.mxu0 %v2733
      %2791 = vmatprep.subr.bf16.mxu0 0
      %2792 = vmatpush1.bf16.msra.mxu0 %v2734
      %2793 = vmatprep.subr.bf16.mxu0 0
      %2794 = vmatpush1.bf16.msra.mxu0 %v2735
      %2795 = vmatprep.subr.bf16.mxu0 0
      %2796 = vmatpush1.bf16.msra.mxu0 %v2736
      %2797 = vmatprep.subr.bf16.mxu0 0
      %2798 = vmatpush1.bf16.msra.mxu0 %v2737
      %2799 = vmatprep.subr.bf16.mxu0 0
      %2800 = vmatpush1.bf16.msra.mxu0 %v2738
      %2801 = vmatprep.subr.bf16.mxu0 0
      %2802 = vmatpush1.bf16.msra.mxu0 %v2739
      %2803 = vmatprep.subr.bf16.mxu0 0
      %2804 = vmatpush1.bf16.msra.mxu0 %v2740
      %2805 = vmatprep.mubr.bf16.mxu0 %v2485
      %2806 = vmatmul.mubr.bf16.gmra.mrb[0].mxu0 %v2421
      %v2807 = vpop.f32.mrb[0].mxu0
      %v2808 = vadd.f32 0.0, %v2807
      %v2809 = vpop.f32.mrb[0].mxu0
      %v2810 = vpop.f32.mrb[0].mxu0
      %v2811 = vadd.f32 0.0, %v2810
      %v2812 = vpop.f32.mrb[0].mxu0
      %2813 = vmatprep.mubr.bf16.mxu0 %v2486
      %2814 = vmatmul.mubr.bf16.gmra.mrb[0].mxu0 %v2422
      %v2815 = vpop.f32.mrb[0].mxu0
      %v2816 = vadd.f32 0.0, %v2815
      %v2817 = vpop.f32.mrb[0].mxu0
      %v2818 = vpop.f32.mrb[0].mxu0
      %v2819 = vadd.f32 0.0, %v2818
      %v2820 = vpop.f32.mrb[0].mxu0
      %2821 = vmatprep.mubr.bf16.mxu0 %v2487
      %2822 = vmatmul.mubr.bf16.gmra.mrb[0].mxu0 %v2423
      %v2823 = vpop.f32.mrb[0].mxu0
      %v2824 = vadd.f32 0.0, %v2823
      %v2825 = vpop.f32.mrb[0].mxu0
      %v2826 = vpop.f32.mrb[0].mxu0
      %v2827 = vadd.f32 0.0, %v2826
      %v2828 = vpop.f32.mrb[0].mxu0
      %2829 = vmatprep.mubr.bf16.mxu0 %v2488
      %2830 = vmatmul.mubr.bf16.gmra.mrb[0].mxu0 %v2424
      %v2831 = vpop.f32.mrb[0].mxu0
      %v2832 = vadd.f32 0.0, %v2831
      %v2833 = vpop.f32.mrb[0].mxu0
      %v2834 = vpop.f32.mrb[0].mxu0
      %v2835 = vadd.f32 0.0, %v2834
      %v2836 = vpop.f32.mrb[0].mxu0
      %2837 = vmatprep.mubr.bf16.mxu0 %v2489
      %2838 = vmatmul.mubr.bf16.gmra.mrb[0].mxu0 %v2425
      %v2839 = vpop.f32.mrb[0].mxu0
      %v2840 = vadd.f32 0.0, %v2839
      %v2841 = vpop.f32.mrb[0].mxu0
      %v2842 = vpop.f32.mrb[0].mxu0
      %v2843 = vadd.f32 0.0, %v2842
      %v2844 = vpop.f32.mrb[0].mxu0
      %2845 = vmatprep.mubr.bf16.mxu0 %v2490
      %2846 = vmatmul.mubr.bf16.gmra.mrb[0].mxu0 %v2426
      %v2847 = vpop.f32.mrb[0].mxu0
      %v2848 = vadd.f32 0.0, %v2847
      %v2849 = vpop.f32.mrb[0].mxu0
      %v2850 = vpop.f32.mrb[0].mxu0
      %v2851 = vadd.f32 0.0, %v2850
      %v2852 = vpop.f32.mrb[0].mxu0
      %2853 = vmatprep.mubr.bf16.mxu0 %v2491
      %2854 = vmatmul.mubr.bf16.gmra.mrb[0].mxu0 %v2427
      %v2855 = vpop.f32.mrb[0].mxu0
      %v2856 = vadd.f32 0.0, %v2855
      %v2857 = vpop.f32.mrb[0].mxu0
      %v2858 = vpop.f32.mrb[0].mxu0
      %v2859 = vadd.f32 0.0, %v2858
      %v2860 = vpop.f32.mrb[0].mxu0
      %2861 = vmatprep.mubr.bf16.mxu0 %v2492
      %2862 = vmatmul.mubr.bf16.gmra.mrb[0].mxu0 %v2428
      %v2863 = vpop.f32.mrb[0].mxu0
      %v2864 = vadd.f32 0.0, %v2863
      %v2865 = vpop.f32.mrb[0].mxu0
      %v2866 = vpop.f32.mrb[0].mxu0
      %v2867 = vadd.f32 0.0, %v2866
      %v2868 = vpop.f32.mrb[0].mxu0
      %2869 = vmatprep.mubr.bf16.mxu0 %v2493
      %2870 = vmatmul.mubr.bf16.gmra.mrb[0].mxu0 %v2429
      %v2871 = vpop.f32.mrb[0].mxu0
      %v2872 = vadd.f32 0.0, %v2871
      %v2873 = vpop.f32.mrb[0].mxu0
      %v2874 = vpop.f32.mrb[0].mxu0
      %v2875 = vadd.f32 0.0, %v2874
      %v2876 = vpop.f32.mrb[0].mxu0
      %2877 = vmatprep.mubr.bf16.mxu0 %v2494
      %2878 = vmatmul.mubr.bf16.gmra.mrb[0].mxu0 %v2430
      %v2879 = vpop.f32.mrb[0].mxu0
      %v2880 = vadd.f32 0.0, %v2879
      %v2881 = vpop.f32.mrb[0].mxu0
      %v2882 = vpop.f32.mrb[0].mxu0
      %v2883 = vadd.f32 0.0, %v2882
      %v2884 = vpop.f32.mrb[0].mxu0
      %2885 = vmatprep.mubr.bf16.mxu0 %v2495
      %2886 = vmatmul.mubr.bf16.gmra.mrb[0].mxu0 %v2431
      %v2887 = vpop.f32.mrb[0].mxu0
      %v2888 = vadd.f32 0.0, %v2887
      %v2889 = vpop.f32.mrb[0].mxu0
      %v2890 = vpop.f32.mrb[0].mxu0
      %v2891 = vadd.f32 0.0, %v2890
      %v2892 = vpop.f32.mrb[0].mxu0
      %2893 = vmatprep.mubr.bf16.mxu0 %v2496
      %2894 = vmatmul.mubr.bf16.gmra.mrb[0].mxu0 %v2432
      %v2895 = vpop.f32.mrb[0].mxu0
      %v2896 = vadd.f32 0.0, %v2895
      %v2897 = vpop.f32.mrb[0].mxu0
      %v2898 = vpop.f32.mrb[0].mxu0
      %v2899 = vadd.f32 0.0, %v2898
      %v2900 = vpop.f32.mrb[0].mxu0
      %2901 = vmatprep.mubr.bf16.mxu0 %v2497
      %2902 = vmatmul.mubr.bf16.gmra.mrb[0].mxu0 %v2433
      %v2903 = vpop.f32.mrb[0].mxu0
      %v2904 = vadd.f32 0.0, %v2903
      %v2905 = vpop.f32.mrb[0].mxu0
      %v2906 = vpop.f32.mrb[0].mxu0
      %v2907 = vadd.f32 0.0, %v2906
      %v2908 = vpop.f32.mrb[0].mxu0
      %2909 = vmatprep.mubr.bf16.mxu0 %v2498
      %2910 = vmatmul.mubr.bf16.gmra.mrb[0].mxu0 %v2434
      %v2911 = vpop.f32.mrb[0].mxu0
      %v2912 = vadd.f32 0.0, %v2911
      %v2913 = vpop.f32.mrb[0].mxu0
      %v2914 = vpop.f32.mrb[0].mxu0
      %v2915 = vadd.f32 0.0, %v2914
      %v2916 = vpop.f32.mrb[0].mxu0
      %2917 = vmatprep.mubr.bf16.mxu0 %v2499
      %2918 = vmatmul.mubr.bf16.gmra.mrb[0].mxu0 %v2435
      %v2919 = vpop.f32.mrb[0].mxu0
      %v2920 = vadd.f32 0.0, %v2919
      %v2921 = vpop.f32.mrb[0].mxu0
      %v2922 = vpop.f32.mrb[0].mxu0
      %v2923 = vadd.f32 0.0, %v2922
      %v2924 = vpop.f32.mrb[0].mxu0
      %2925 = vmatprep.mubr.bf16.mxu0 %v2500
      %2926 = vmatmul.mubr.bf16.gmra.mrb[0].mxu0 %v2436
      %v2927 = vpop.f32.mrb[0].mxu0
      %v2928 = vadd.f32 0.0, %v2927
      %v2929 = vpop.f32.mrb[0].mxu0
      %v2930 = vpop.f32.mrb[0].mxu0
      %v2931 = vadd.f32 0.0, %v2930
      %v2932 = vpop.f32.mrb[0].mxu0
      %2933 = vdwg.mxu0
      %2934 = vmatprep.subr.bf16.mxu0 0
      %2935 = vmatpush1.bf16.msra.mxu0 %v2741
      %2936 = vmatprep.subr.bf16.mxu0 0
      %2937 = vmatpush1.bf16.msra.mxu0 %v2742
      %2938 = vmatprep.subr.bf16.mxu0 0
      %2939 = vmatpush1.bf16.msra.mxu0 %v2743
      %2940 = vmatprep.subr.bf16.mxu0 0
      %2941 = vmatpush1.bf16.msra.mxu0 %v2744
      %2942 = vmatprep.subr.bf16.mxu0 0
      %2943 = vmatpush1.bf16.msra.mxu0 %v2745
      %2944 = vmatprep.subr.bf16.mxu0 0
      %2945 = vmatpush1.bf16.msra.mxu0 %v2746
      %2946 = vmatprep.subr.bf16.mxu0 0
      %2947 = vmatpush1.bf16.msra.mxu0 %v2747
      %2948 = vmatprep.subr.bf16.mxu0 0
      %2949 = vmatpush1.bf16.msra.mxu0 %v2748
      %2950 = vmatprep.subr.bf16.mxu0 0
      %2951 = vmatpush1.bf16.msra.mxu0 0
      %2952 = vmatprep.subr.bf16.mxu0 0
      %2953 = vmatpush1.bf16.msra.mxu0 0
      %2954 = vmatprep.subr.bf16.mxu0 0
      %2955 = vmatpush1.bf16.msra.mxu0 0
      %2956 = vmatprep.subr.bf16.mxu0 0
      %2957 = vmatpush1.bf16.msra.mxu0 0
      %2958 = vmatprep.subr.bf16.mxu0 0
      %2959 = vmatpush1.bf16.msra.mxu0 0
      %2960 = vmatprep.subr.bf16.mxu0 0
      %2961 = vmatpush1.bf16.msra.mxu0 0
      %2962 = vmatprep.subr.bf16.mxu0 0
      %2963 = vmatpush1.bf16.msra.mxu0 0
      %2964 = vmatprep.subr.bf16.mxu0 0
      %2965 = vmatpush1.bf16.msra.mxu0 0
      %2966 = vmatprep.mubr.bf16.mxu0 0
      %2967 = vmatmul.mubr.bf16.gmra.mrb[0].mxu0 %v2549
      %v2968 = vpop.f32.mrb[0].mxu0
      %v2969 = vadd.f32 %v2808, %v2968
      %v2970 = vpop.f32.mrb[0].mxu0
      %v2971 = vpop.f32.mrb[0].mxu0
      %v2972 = vadd.f32 %v2811, %v2971
      %v2973 = vpop.f32.mrb[0].mxu0
      %2974 = vmatprep.mubr.bf16.mxu0 0
      %2975 = vmatmul.mubr.bf16.gmra.mrb[0].mxu0 %v2550
      %v2976 = vpop.f32.mrb[0].mxu0
      %v2977 = vadd.f32 %v2816, %v2976
      %v2978 = vpop.f32.mrb[0].mxu0
      %v2979 = vpop.f32.mrb[0].mxu0
      %v2980 = vadd.f32 %v2819, %v2979
      %v2981 = vpop.f32.mrb[0].mxu0
      %2982 = vmatprep.mubr.bf16.mxu0 0
      %2983 = vmatmul.mubr.bf16.gmra.mrb[0].mxu0 %v2551
      %v2984 = vpop.f32.mrb[0].mxu0
      %v2985 = vadd.f32 %v2824, %v2984
      %v2986 = vpop.f32.mrb[0].mxu0
      %v2987 = vpop.f32.mrb[0].mxu0
      %v2988 = vadd.f32 %v2827, %v2987
      %v2989 = vpop.f32.mrb[0].mxu0
      %2990 = vmatprep.mubr.bf16.mxu0 0
      %2991 = vmatmul.mubr.bf16.gmra.mrb[0].mxu0 %v2552
      %v2992 = vpop.f32.mrb[0].mxu0
      %v2993 = vadd.f32 %v2832, %v2992
      %v2994 = vpop.f32.mrb[0].mxu0
      %v2995 = vpop.f32.mrb[0].mxu0
      %v2996 = vadd.f32 %v2835, %v2995
      %v2997 = vpop.f32.mrb[0].mxu0
      %2998 = vmatprep.mubr.bf16.mxu0 0
      %2999 = vmatmul.mubr.bf16.gmra.mrb[0].mxu0 %v2553
      %v3000 = vpop.f32.mrb[0].mxu0
      %v3001 = vadd.f32 %v2840, %v3000
      %v3002 = vpop.f32.mrb[0].mxu0
      %v3003 = vpop.f32.mrb[0].mxu0
      %v3004 = vadd.f32 %v2843, %v3003
      %v3005 = vpop.f32.mrb[0].mxu0
      %3006 = vmatprep.mubr.bf16.mxu0 0
      %3007 = vmatmul.mubr.bf16.gmra.mrb[0].mxu0 %v2554
      %v3008 = vpop.f32.mrb[0].mxu0
      %v3009 = vadd.f32 %v2848, %v3008
      %v3010 = vpop.f32.mrb[0].mxu0
      %v3011 = vpop.f32.mrb[0].mxu0
      %v3012 = vadd.f32 %v2851, %v3011
      %v3013 = vpop.f32.mrb[0].mxu0
      %3014 = vmatprep.mubr.bf16.mxu0 0
      %3015 = vmatmul.mubr.bf16.gmra.mrb[0].mxu0 %v2555
      %v3016 = vpop.f32.mrb[0].mxu0
      %v3017 = vadd.f32 %v2856, %v3016
      %v3018 = vpop.f32.mrb[0].mxu0
      %v3019 = vpop.f32.mrb[0].mxu0
      %v3020 = vadd.f32 %v2859, %v3019
      %v3021 = vpop.f32.mrb[0].mxu0
      %3022 = vmatprep.mubr.bf16.mxu0 0
      %3023 = vmatmul.mubr.bf16.gmra.mrb[0].mxu0 %v2556
      %v3024 = vpop.f32.mrb[0].mxu0
      %v3025 = vadd.f32 %v2864, %v3024
      %v3026 = vpop.f32.mrb[0].mxu0
      %v3027 = vpop.f32.mrb[0].mxu0
      %v3028 = vadd.f32 %v2867, %v3027
      %v3029 = vpop.f32.mrb[0].mxu0
      %3030 = vmatprep.mubr.bf16.mxu0 0
      %3031 = vmatmul.mubr.bf16.gmra.mrb[0].mxu0 %v2557
      %v3032 = vpop.f32.mrb[0].mxu0
      %v3033 = vadd.f32 %v2872, %v3032
      %v3034 = vpop.f32.mrb[0].mxu0
      %v3035 = vpop.f32.mrb[0].mxu0
      %v3036 = vadd.f32 %v2875, %v3035
      %v3037 = vpop.f32.mrb[0].mxu0
      %3038 = vmatprep.mubr.bf16.mxu0 0
      %3039 = vmatmul.mubr.bf16.gmra.mrb[0].mxu0 %v2558
      %v3040 = vpop.f32.mrb[0].mxu0
      %v3041 = vadd.f32 %v2880, %v3040
      %v3042 = vpop.f32.mrb[0].mxu0
      %v3043 = vpop.f32.mrb[0].mxu0
      %v3044 = vadd.f32 %v2883, %v3043
      %v3045 = vpop.f32.mrb[0].mxu0
      %3046 = vmatprep.mubr.bf16.mxu0 0
      %3047 = vmatmul.mubr.bf16.gmra.mrb[0].mxu0 %v2559
      %v3048 = vpop.f32.mrb[0].mxu0
      %v3049 = vadd.f32 %v2888, %v3048
      %v3050 = vpop.f32.mrb[0].mxu0
      %v3051 = vpop.f32.mrb[0].mxu0
      %v3052 = vadd.f32 %v2891, %v3051
      %v3053 = vpop.f32.mrb[0].mxu0
      %3054 = vmatprep.mubr.bf16.mxu0 0
      %3055 = vmatmul.mubr.bf16.gmra.mrb[0].mxu0 %v2560
      %v3056 = vpop.f32.mrb[0].mxu0
      %v3057 = vadd.f32 %v2896, %v3056
      %v3058 = vpop.f32.mrb[0].mxu0
      %v3059 = vpop.f32.mrb[0].mxu0
      %v3060 = vadd.f32 %v2899, %v3059
      %v3061 = vpop.f32.mrb[0].mxu0
      %3062 = vmatprep.mubr.bf16.mxu0 0
      %3063 = vmatmul.mubr.bf16.gmra.mrb[0].mxu0 %v2561
      %v3064 = vpop.f32.mrb[0].mxu0
      %v3065 = vadd.f32 %v2904, %v3064
      %v3066 = vpop.f32.mrb[0].mxu0
      %v3067 = vpop.f32.mrb[0].mxu0
      %v3068 = vadd.f32 %v2907, %v3067
      %v3069 = vpop.f32.mrb[0].mxu0
      %3070 = vmatprep.mubr.bf16.mxu0 0
      %3071 = vmatmul.mubr.bf16.gmra.mrb[0].mxu0 %v2562
      %v3072 = vpop.f32.mrb[0].mxu0
      %v3073 = vadd.f32 %v2912, %v3072
      %v3074 = vpop.f32.mrb[0].mxu0
      %v3075 = vpop.f32.mrb[0].mxu0
      %v3076 = vadd.f32 %v2915, %v3075
      %v3077 = vpop.f32.mrb[0].mxu0
      %3078 = vmatprep.mubr.bf16.mxu0 0
      %3079 = vmatmul.mubr.bf16.gmra.mrb[0].mxu0 %v2563
      %v3080 = vpop.f32.mrb[0].mxu0
      %v3081 = vadd.f32 %v2920, %v3080
      %v3082 = vpop.f32.mrb[0].mxu0
      %v3083 = vpop.f32.mrb[0].mxu0
      %v3084 = vadd.f32 %v2923, %v3083
      %v3085 = vpop.f32.mrb[0].mxu0
      %3086 = vmatprep.mubr.bf16.mxu0 0
      %3087 = vmatmul.mubr.bf16.gmra.mrb[0].mxu0 %v2564
      %v3088 = vpop.f32.mrb[0].mxu0
      %v3089 = vadd.f32 %v2928, %v3088
      %v3090 = vpop.f32.mrb[0].mxu0
      %v3091 = vpop.f32.mrb[0].mxu0
      %v3092 = vadd.f32 %v2931, %v3091
      %v3093 = vpop.f32.mrb[0].mxu0
      %3094 = vdwg.mxu0
      %v3143 = vunpack.c.l.b16 %v1717
      %v3144 = vunpack.c.l.b16 %v1718
      %v3145 = vunpack.c.l.b16 %v1719
      %v3146 = vunpack.c.l.b16 %v1720
      %v3147 = vunpack.c.l.b16 %v1721
      %v3148 = vunpack.c.l.b16 %v1722
      %v3149 = vunpack.c.l.b16 %v1723
      %v3150 = vunpack.c.l.b16 %v1724
      %v3151 = vunpack.c.l.b16 %v1725
      %v3152 = vunpack.c.l.b16 %v1726
      %v3153 = vunpack.c.l.b16 %v1727
      %v3154 = vunpack.c.l.b16 %v1728
      %v3155 = vunpack.c.l.b16 %v1729
      %v3156 = vunpack.c.l.b16 %v1730
      %v3157 = vunpack.c.l.b16 %v1731
      %v3158 = vunpack.c.l.b16 %v1732
      %v3159 = vunpack.c.l.b16 %v1733
      %v3160 = vunpack.c.l.b16 %v1734
      %v3161 = vunpack.c.l.b16 %v1735
      %v3162 = vunpack.c.l.b16 %v1736
      %v3163 = vunpack.c.l.b16 %v1737
      %v3164 = vunpack.c.l.b16 %v1738
      %v3165 = vunpack.c.l.b16 %v1739
      %v3166 = vunpack.c.l.b16 %v1740
      %v3167 = vunpack.c.l.b16 %v1741
      %v3168 = vunpack.c.l.b16 %v1742
      %v3169 = vunpack.c.l.b16 %v1743
      %v3170 = vunpack.c.l.b16 %v1744
      %v3171 = vunpack.c.l.b16 %v1745
      %v3172 = vunpack.c.l.b16 %v1746
      %v3173 = vunpack.c.l.b16 %v1747
      %v3174 = vunpack.c.l.b16 %v1748
      %v3175 = vunpack.c.l.b16 %v1749
      %v3176 = vunpack.c.l.b16 %v1750
      %v3177 = vunpack.c.l.b16 %v1751
      %v3178 = vunpack.c.l.b16 %v1752
      %v3179 = vunpack.c.l.b16 %v1753
      %v3180 = vunpack.c.l.b16 %v1754
      %v3181 = vunpack.c.l.b16 %v1755
      %v3182 = vunpack.c.l.b16 %v1756
      %v3183 = vunpack.c.l.b16 %v1757
      %v3184 = vunpack.c.l.b16 %v1758
      %v3185 = vunpack.c.l.b16 %v1759
      %v3186 = vunpack.c.l.b16 %v1760
      %v3187 = vunpack.c.l.b16 %v1761
      %v3188 = vunpack.c.l.b16 %v1762
      %v3189 = vunpack.c.l.b16 %v1763
      %v3190 = vunpack.c.l.b16 %v1764
      %v3191 = vpack.c.b16 %v3144, %v3143
      %v3192 = vpack.c.b16 %v3146, %v3145
      %v3193 = vpack.c.b16 %v3148, %v3147
      %v3194 = vpack.c.b16 %v3150, %v3149
      %v3195 = vpack.c.b16 %v3152, %v3151
      %v3196 = vpack.c.b16 %v3154, %v3153
      %v3197 = vpack.c.b16 %v3156, %v3155
      %v3198 = vpack.c.b16 %v3158, %v3157
      %v3199 = vpack.c.b16 %v3160, %v3159
      %v3200 = vpack.c.b16 %v3162, %v3161
      %v3201 = vpack.c.b16 %v3164, %v3163
      %v3202 = vpack.c.b16 %v3166, %v3165
      %v3203 = vpack.c.b16 %v3168, %v3167
      %v3204 = vpack.c.b16 %v3170, %v3169
      %v3205 = vpack.c.b16 %v3172, %v3171
      %v3206 = vpack.c.b16 %v3174, %v3173
      %v3207 = vpack.c.b16 %v3176, %v3175
      %v3208 = vpack.c.b16 %v3178, %v3177
      %v3209 = vpack.c.b16 %v3180, %v3179
      %v3210 = vpack.c.b16 %v3182, %v3181
      %v3211 = vpack.c.b16 %v3184, %v3183
      %v3212 = vpack.c.b16 %v3186, %v3185
      %v3213 = vpack.c.b16 %v3188, %v3187
      %v3214 = vpack.c.b16 %v3190, %v3189
      %3239 = vmatprep.subr.bf16.mxu0 0
      %3240 = vmatpush1.bf16.msra.mxu0 %v3191
      %3241 = vmatprep.subr.bf16.mxu0 0
      %3242 = vmatpush1.bf16.msra.mxu0 %v3192
      %3243 = vmatprep.subr.bf16.mxu0 0
      %3244 = vmatpush1.bf16.msra.mxu0 %v3193
      %3245 = vmatprep.subr.bf16.mxu0 0
      %3246 = vmatpush1.bf16.msra.mxu0 %v3194
      %3247 = vmatprep.subr.bf16.mxu0 0
      %3248 = vmatpush1.bf16.msra.mxu0 %v3195
      %3249 = vmatprep.subr.bf16.mxu0 0
      %3250 = vmatpush1.bf16.msra.mxu0 %v3196
      %3251 = vmatprep.subr.bf16.mxu0 0
      %3252 = vmatpush1.bf16.msra.mxu0 %v3197
      %3253 = vmatprep.subr.bf16.mxu0 0
      %3254 = vmatpush1.bf16.msra.mxu0 %v3198
      %3255 = vmatprep.subr.bf16.mxu0 0
      %3256 = vmatpush1.bf16.msra.mxu0 %v3199
      %3257 = vmatprep.subr.bf16.mxu0 0
      %3258 = vmatpush1.bf16.msra.mxu0 %v3200
      %3259 = vmatprep.subr.bf16.mxu0 0
      %3260 = vmatpush1.bf16.msra.mxu0 %v3201
      %3261 = vmatprep.subr.bf16.mxu0 0
      %3262 = vmatpush1.bf16.msra.mxu0 %v3202
      %3263 = vmatprep.subr.bf16.mxu0 0
      %3264 = vmatpush1.bf16.msra.mxu0 %v3203
      %3265 = vmatprep.subr.bf16.mxu0 0
      %3266 = vmatpush1.bf16.msra.mxu0 %v3204
      %3267 = vmatprep.subr.bf16.mxu0 0
      %3268 = vmatpush1.bf16.msra.mxu0 %v3205
      %3269 = vmatprep.subr.bf16.mxu0 0
      %3270 = vmatpush1.bf16.msra.mxu0 %v3206
      %3271 = vmatprep.mubr.bf16.mxu0 %v1621
      %3272 = vmatmul.mubr.bf16.gmra.mrb[0].mxu0 %v1557
      %v3273 = vpop.f32.mrb[0].mxu0
      %v3274 = vadd.f32 %v2969, %v3273
      %v3275 = vpop.f32.mrb[0].mxu0
      %v3276 = vpop.f32.mrb[0].mxu0
      %v3277 = vadd.f32 %v2972, %v3276
      %v3278 = vpop.f32.mrb[0].mxu0
      %3279 = vmatprep.mubr.bf16.mxu0 %v1622
      %3280 = vmatmul.mubr.bf16.gmra.mrb[0].mxu0 %v1558
      %v3281 = vpop.f32.mrb[0].mxu0
      %v3282 = vadd.f32 %v2977, %v3281
      %v3283 = vpop.f32.mrb[0].mxu0
      %v3284 = vpop.f32.mrb[0].mxu0
      %v3285 = vadd.f32 %v2980, %v3284
      %v3286 = vpop.f32.mrb[0].mxu0
      %3287 = vmatprep.mubr.bf16.mxu0 %v1623
      %3288 = vmatmul.mubr.bf16.gmra.mrb[0].mxu0 %v1559
      %v3289 = vpop.f32.mrb[0].mxu0
      %v3290 = vadd.f32 %v2985, %v3289
      %v3291 = vpop.f32.mrb[0].mxu0
      %v3292 = vpop.f32.mrb[0].mxu0
      %v3293 = vadd.f32 %v2988, %v3292
      %v3294 = vpop.f32.mrb[0].mxu0
      %3295 = vmatprep.mubr.bf16.mxu0 %v1624
      %3296 = vmatmul.mubr.bf16.gmra.mrb[0].mxu0 %v1560
      %v3297 = vpop.f32.mrb[0].mxu0
      %v3298 = vadd.f32 %v2993, %v3297
      %v3299 = vpop.f32.mrb[0].mxu0
      %v3300 = vpop.f32.mrb[0].mxu0
      %v3301 = vadd.f32 %v2996, %v3300
      %v3302 = vpop.f32.mrb[0].mxu0
      %3303 = vmatprep.mubr.bf16.mxu0 %v1625
      %3304 = vmatmul.mubr.bf16.gmra.mrb[0].mxu0 %v1561
      %v3305 = vpop.f32.mrb[0].mxu0
      %v3306 = vadd.f32 %v3001, %v3305
      %v3307 = vpop.f32.mrb[0].mxu0
      %v3308 = vpop.f32.mrb[0].mxu0
      %v3309 = vadd.f32 %v3004, %v3308
      %v3310 = vpop.f32.mrb[0].mxu0
      %3311 = vmatprep.mubr.bf16.mxu0 %v1626
      %3312 = vmatmul.mubr.bf16.gmra.mrb[0].mxu0 %v1562
      %v3313 = vpop.f32.mrb[0].mxu0
      %v3314 = vadd.f32 %v3009, %v3313
      %v3315 = vpop.f32.mrb[0].mxu0
      %v3316 = vpop.f32.mrb[0].mxu0
      %v3317 = vadd.f32 %v3012, %v3316
      %v3318 = vpop.f32.mrb[0].mxu0
      %3319 = vmatprep.mubr.bf16.mxu0 %v1627
      %3320 = vmatmul.mubr.bf16.gmra.mrb[0].mxu0 %v1563
      %v3321 = vpop.f32.mrb[0].mxu0
      %v3322 = vadd.f32 %v3017, %v3321
      %v3323 = vpop.f32.mrb[0].mxu0
      %v3324 = vpop.f32.mrb[0].mxu0
      %v3325 = vadd.f32 %v3020, %v3324
      %v3326 = vpop.f32.mrb[0].mxu0
      %3327 = vmatprep.mubr.bf16.mxu0 %v1628
      %3328 = vmatmul.mubr.bf16.gmra.mrb[0].mxu0 %v1564
      %v3329 = vpop.f32.mrb[0].mxu0
      %v3330 = vadd.f32 %v3025, %v3329
      %v3331 = vpop.f32.mrb[0].mxu0
      %v3332 = vpop.f32.mrb[0].mxu0
      %v3333 = vadd.f32 %v3028, %v3332
      %v3334 = vpop.f32.mrb[0].mxu0
      %3335 = vmatprep.mubr.bf16.mxu0 %v1629
      %3336 = vmatmul.mubr.bf16.gmra.mrb[0].mxu0 %v1565
      %v3337 = vpop.f32.mrb[0].mxu0
      %v3338 = vadd.f32 %v3033, %v3337
      %v3339 = vpop.f32.mrb[0].mxu0
      %v3340 = vpop.f32.mrb[0].mxu0
      %v3341 = vadd.f32 %v3036, %v3340
      %v3342 = vpop.f32.mrb[0].mxu0
      %3343 = vmatprep.mubr.bf16.mxu0 %v1630
      %3344 = vmatmul.mubr.bf16.gmra.mrb[0].mxu0 %v1566
      %v3345 = vpop.f32.mrb[0].mxu0
      %v3346 = vadd.f32 %v3041, %v3345
      %v3347 = vpop.f32.mrb[0].mxu0
      %v3348 = vpop.f32.mrb[0].mxu0
      %v3349 = vadd.f32 %v3044, %v3348
      %v3350 = vpop.f32.mrb[0].mxu0
      %3351 = vmatprep.mubr.bf16.mxu0 %v1631
      %3352 = vmatmul.mubr.bf16.gmra.mrb[0].mxu0 %v1567
      %v3353 = vpop.f32.mrb[0].mxu0
      %v3354 = vadd.f32 %v3049, %v3353
      %v3355 = vpop.f32.mrb[0].mxu0
      %v3356 = vpop.f32.mrb[0].mxu0
      %v3357 = vadd.f32 %v3052, %v3356
      %v3358 = vpop.f32.mrb[0].mxu0
      %3359 = vmatprep.mubr.bf16.mxu0 %v1632
      %3360 = vmatmul.mubr.bf16.gmra.mrb[0].mxu0 %v1568
      %v3361 = vpop.f32.mrb[0].mxu0
      %v3362 = vadd.f32 %v3057, %v3361
      %v3363 = vpop.f32.mrb[0].mxu0
      %v3364 = vpop.f32.mrb[0].mxu0
      %v3365 = vadd.f32 %v3060, %v3364
      %v3366 = vpop.f32.mrb[0].mxu0
      %3367 = vmatprep.mubr.bf16.mxu0 %v1633
      %3368 = vmatmul.mubr.bf16.gmra.mrb[0].mxu0 %v1569
      %v3369 = vpop.f32.mrb[0].mxu0
      %v3370 = vadd.f32 %v3065, %v3369
      %v3371 = vpop.f32.mrb[0].mxu0
      %v3372 = vpop.f32.mrb[0].mxu0
      %v3373 = vadd.f32 %v3068, %v3372
      %v3374 = vpop.f32.mrb[0].mxu0
      %3375 = vmatprep.mubr.bf16.mxu0 %v1634
      %3376 = vmatmul.mubr.bf16.gmra.mrb[0].mxu0 %v1570
      %v3377 = vpop.f32.mrb[0].mxu0
      %v3378 = vadd.f32 %v3073, %v3377
      %v3379 = vpop.f32.mrb[0].mxu0
      %v3380 = vpop.f32.mrb[0].mxu0
      %v3381 = vadd.f32 %v3076, %v3380
      %v3382 = vpop.f32.mrb[0].mxu0
      %3383 = vmatprep.mubr.bf16.mxu0 %v1635
      %3384 = vmatmul.mubr.bf16.gmra.mrb[0].mxu0 %v1571
      %v3385 = vpop.f32.mrb[0].mxu0
      %v3386 = vadd.f32 %v3081, %v3385
      %v3387 = vpop.f32.mrb[0].mxu0
      %v3388 = vpop.f32.mrb[0].mxu0
      %v3389 = vadd.f32 %v3084, %v3388
      %v3390 = vpop.f32.mrb[0].mxu0
      %3391 = vmatprep.mubr.bf16.mxu0 %v1636
      %3392 = vmatmul.mubr.bf16.gmra.mrb[0].mxu0 %v1572
      %v3393 = vpop.f32.mrb[0].mxu0
      %v3394 = vadd.f32 %v3089, %v3393
      %v3395 = vpop.f32.mrb[0].mxu0
      %v3396 = vpop.f32.mrb[0].mxu0
      %v3397 = vadd.f32 %v3092, %v3396
      %v3398 = vpop.f32.mrb[0].mxu0
      %3399 = vdwg.mxu0
      %3400 = vmatprep.subr.bf16.mxu0 0
      %3401 = vmatpush1.bf16.msra.mxu0 %v3207
      %3402 = vmatprep.subr.bf16.mxu0 0
      %3403 = vmatpush1.bf16.msra.mxu0 %v3208
      %3404 = vmatprep.subr.bf16.mxu0 0
      %3405 = vmatpush1.bf16.msra.mxu0 %v3209
      %3406 = vmatprep.subr.bf16.mxu0 0
      %3407 = vmatpush1.bf16.msra.mxu0 %v3210
      %3408 = vmatprep.subr.bf16.mxu0 0
      %3409 = vmatpush1.bf16.msra.mxu0 %v3211
      %3410 = vmatprep.subr.bf16.mxu0 0
      %3411 = vmatpush1.bf16.msra.mxu0 %v3212
      %3412 = vmatprep.subr.bf16.mxu0 0
      %3413 = vmatpush1.bf16.msra.mxu0 %v3213
      %3414 = vmatprep.subr.bf16.mxu0 0
      %3415 = vmatpush1.bf16.msra.mxu0 %v3214
      %3416 = vmatprep.subr.bf16.mxu0 0
      %3417 = vmatpush1.bf16.msra.mxu0 0
      %3418 = vmatprep.subr.bf16.mxu0 0
      %3419 = vmatpush1.bf16.msra.mxu0 0
      %3420 = vmatprep.subr.bf16.mxu0 0
      %3421 = vmatpush1.bf16.msra.mxu0 0
      %3422 = vmatprep.subr.bf16.mxu0 0
      %3423 = vmatpush1.bf16.msra.mxu0 0
      %3424 = vmatprep.subr.bf16.mxu0 0
      %3425 = vmatpush1.bf16.msra.mxu0 0
      %3426 = vmatprep.subr.bf16.mxu0 0
      %3427 = vmatpush1.bf16.msra.mxu0 0
      %3428 = vmatprep.subr.bf16.mxu0 0
      %3429 = vmatpush1.bf16.msra.mxu0 0
      %3430 = vmatprep.subr.bf16.mxu0 0
      %3431 = vmatpush1.bf16.msra.mxu0 0
      %3432 = vmatprep.mubr.bf16.mxu0 0
      %3433 = vmatmul.mubr.bf16.gmra.mrb[0].mxu0 %v1685
      %v3434 = vpop.f32.mrb[0].mxu0
      %v3435 = vadd.f32 %v3274, %v3434
      %v3436 = vpop.f32.mrb[0].mxu0
      %v3437 = vpop.f32.mrb[0].mxu0
      %v3438 = vadd.f32 %v3277, %v3437
      %v3439 = vpop.f32.mrb[0].mxu0
      %3440 = vmatprep.mubr.bf16.mxu0 0
      %3441 = vmatmul.mubr.bf16.gmra.mrb[0].mxu0 %v1686
      %v3442 = vpop.f32.mrb[0].mxu0
      %v3443 = vadd.f32 %v3282, %v3442
      %v3444 = vpop.f32.mrb[0].mxu0
      %v3445 = vpop.f32.mrb[0].mxu0
      %v3446 = vadd.f32 %v3285, %v3445
      %v3447 = vpop.f32.mrb[0].mxu0
      %3448 = vmatprep.mubr.bf16.mxu0 0
      %3449 = vmatmul.mubr.bf16.gmra.mrb[0].mxu0 %v1687
      %v3450 = vpop.f32.mrb[0].mxu0
      %v3451 = vadd.f32 %v3290, %v3450
      %v3452 = vpop.f32.mrb[0].mxu0
      %v3453 = vpop.f32.mrb[0].mxu0
      %v3454 = vadd.f32 %v3293, %v3453
      %v3455 = vpop.f32.mrb[0].mxu0
      %3456 = vmatprep.mubr.bf16.mxu0 0
      %3457 = vmatmul.mubr.bf16.gmra.mrb[0].mxu0 %v1688
      %v3458 = vpop.f32.mrb[0].mxu0
      %v3459 = vadd.f32 %v3298, %v3458
      %v3460 = vpop.f32.mrb[0].mxu0
      %v3461 = vpop.f32.mrb[0].mxu0
      %v3462 = vadd.f32 %v3301, %v3461
      %v3463 = vpop.f32.mrb[0].mxu0
      %3464 = vmatprep.mubr.bf16.mxu0 0
      %3465 = vmatmul.mubr.bf16.gmra.mrb[0].mxu0 %v1689
      %v3466 = vpop.f32.mrb[0].mxu0
      %v3467 = vadd.f32 %v3306, %v3466
      %v3468 = vpop.f32.mrb[0].mxu0
      %v3469 = vpop.f32.mrb[0].mxu0
      %v3470 = vadd.f32 %v3309, %v3469
      %v3471 = vpop.f32.mrb[0].mxu0
      %3472 = vmatprep.mubr.bf16.mxu0 0
      %3473 = vmatmul.mubr.bf16.gmra.mrb[0].mxu0 %v1690
      %v3474 = vpop.f32.mrb[0].mxu0
      %v3475 = vadd.f32 %v3314, %v3474
      %v3476 = vpop.f32.mrb[0].mxu0
      %v3477 = vpop.f32.mrb[0].mxu0
      %v3478 = vadd.f32 %v3317, %v3477
      %v3479 = vpop.f32.mrb[0].mxu0
      %3480 = vmatprep.mubr.bf16.mxu0 0
      %3481 = vmatmul.mubr.bf16.gmra.mrb[0].mxu0 %v1691
      %v3482 = vpop.f32.mrb[0].mxu0
      %v3483 = vadd.f32 %v3322, %v3482
      %v3484 = vpop.f32.mrb[0].mxu0
      %v3485 = vpop.f32.mrb[0].mxu0
      %v3486 = vadd.f32 %v3325, %v3485
      %v3487 = vpop.f32.mrb[0].mxu0
      %3488 = vmatprep.mubr.bf16.mxu0 0
      %3489 = vmatmul.mubr.bf16.gmra.mrb[0].mxu0 %v1692
      %v3490 = vpop.f32.mrb[0].mxu0
      %v3491 = vadd.f32 %v3330, %v3490
      %v3492 = vpop.f32.mrb[0].mxu0
      %v3493 = vpop.f32.mrb[0].mxu0
      %v3494 = vadd.f32 %v3333, %v3493
      %v3495 = vpop.f32.mrb[0].mxu0
      %3496 = vmatprep.mubr.bf16.mxu0 0
      %3497 = vmatmul.mubr.bf16.gmra.mrb[0].mxu0 %v1693
      %v3498 = vpop.f32.mrb[0].mxu0
      %v3499 = vadd.f32 %v3338, %v3498
      %v3500 = vpop.f32.mrb[0].mxu0
      %v3501 = vpop.f32.mrb[0].mxu0
      %v3502 = vadd.f32 %v3341, %v3501
      %v3503 = vpop.f32.mrb[0].mxu0
      %3504 = vmatprep.mubr.bf16.mxu0 0
      %3505 = vmatmul.mubr.bf16.gmra.mrb[0].mxu0 %v1694
      %v3506 = vpop.f32.mrb[0].mxu0
      %v3507 = vadd.f32 %v3346, %v3506
      %v3508 = vpop.f32.mrb[0].mxu0
      %v3509 = vpop.f32.mrb[0].mxu0
      %v3510 = vadd.f32 %v3349, %v3509
      %v3511 = vpop.f32.mrb[0].mxu0
      %3512 = vmatprep.mubr.bf16.mxu0 0
      %3513 = vmatmul.mubr.bf16.gmra.mrb[0].mxu0 %v1695
      %v3514 = vpop.f32.mrb[0].mxu0
      %v3515 = vadd.f32 %v3354, %v3514
      %v3516 = vpop.f32.mrb[0].mxu0
      %v3517 = vpop.f32.mrb[0].mxu0
      %v3518 = vadd.f32 %v3357, %v3517
      %v3519 = vpop.f32.mrb[0].mxu0
      %3520 = vmatprep.mubr.bf16.mxu0 0
      %3521 = vmatmul.mubr.bf16.gmra.mrb[0].mxu0 %v1696
      %v3522 = vpop.f32.mrb[0].mxu0
      %v3523 = vadd.f32 %v3362, %v3522
      %v3524 = vpop.f32.mrb[0].mxu0
      %v3525 = vpop.f32.mrb[0].mxu0
      %v3526 = vadd.f32 %v3365, %v3525
      %v3527 = vpop.f32.mrb[0].mxu0
      %3528 = vmatprep.mubr.bf16.mxu0 0
      %3529 = vmatmul.mubr.bf16.gmra.mrb[0].mxu0 %v1697
      %v3530 = vpop.f32.mrb[0].mxu0
      %v3531 = vadd.f32 %v3370, %v3530
      %v3532 = vpop.f32.mrb[0].mxu0
      %v3533 = vpop.f32.mrb[0].mxu0
      %v3534 = vadd.f32 %v3373, %v3533
      %v3535 = vpop.f32.mrb[0].mxu0
      %3536 = vmatprep.mubr.bf16.mxu0 0
      %3537 = vmatmul.mubr.bf16.gmra.mrb[0].mxu0 %v1698
      %v3538 = vpop.f32.mrb[0].mxu0
      %v3539 = vadd.f32 %v3378, %v3538
      %v3540 = vpop.f32.mrb[0].mxu0
      %v3541 = vpop.f32.mrb[0].mxu0
      %v3542 = vadd.f32 %v3381, %v3541
      %v3543 = vpop.f32.mrb[0].mxu0
      %3544 = vmatprep.mubr.bf16.mxu0 0
      %3545 = vmatmul.mubr.bf16.gmra.mrb[0].mxu0 %v1699
      %v3546 = vpop.f32.mrb[0].mxu0
      %v3547 = vadd.f32 %v3386, %v3546
      %v3548 = vpop.f32.mrb[0].mxu0
      %v3549 = vpop.f32.mrb[0].mxu0
      %v3550 = vadd.f32 %v3389, %v3549
      %v3551 = vpop.f32.mrb[0].mxu0
      %3552 = vmatprep.mubr.bf16.mxu0 0
      %3553 = vmatmul.mubr.bf16.gmra.mrb[0].mxu0 %v1700
      %v3554 = vpop.f32.mrb[0].mxu0
      %v3555 = vadd.f32 %v3394, %v3554
      %v3556 = vpop.f32.mrb[0].mxu0
      %v3557 = vpop.f32.mrb[0].mxu0
      %v3558 = vadd.f32 %v3397, %v3557
      %v3559 = vpop.f32.mrb[0].mxu0
      %3560 = vdwg.mxu0
      %s3561 = scalar_lea.vmem [#allocation2], 24
      %v3562 = vld [vmem:[%s3561] sm:$0xf]
      %v3563 = vld [vmem:[%s3561 + $0x4] sm:$0xf]
      %v3564 = vld [vmem:[%s3561 + $0xc] sm:$0xf]
      %v3565 = vld [vmem:[%s3561 + $0x10] sm:$0xf]
      %v3566 = vld [vmem:[%s3561 + $0x18] sm:$0xf]
      %v3567 = vld [vmem:[%s3561 + $0x1c] sm:$0xf]
      %v3568 = vld [vmem:[%s3561 + $0x24] sm:$0xf]
      %v3569 = vld [vmem:[%s3561 + $0x28] sm:$0xf]
      %v3570 = vld [vmem:[%s3561 + $0x30] sm:$0xf]
      %v3571 = vld [vmem:[%s3561 + $0x34] sm:$0xf]
      %v3572 = vld [vmem:[%s3561 + $0x3c] sm:$0xf]
      %v3573 = vld [vmem:[%s3561 + $0x40] sm:$0xf]
      %v3574 = vld [vmem:[%s3561 + $0x48] sm:$0xf]
      %v3575 = vld [vmem:[%s3561 + $0x4c] sm:$0xf]
      %v3576 = vld [vmem:[%s3561 + $0x54] sm:$0xf]
      %v3577 = vld [vmem:[%s3561 + $0x58] sm:$0xf]
      %v3578 = vld [vmem:[%s3561 + $0x60] sm:$0xf]
      %v3579 = vld [vmem:[%s3561 + $0x64] sm:$0xf]
      %v3580 = vld [vmem:[%s3561 + $0x6c] sm:$0xf]
      %v3581 = vld [vmem:[%s3561 + $0x70] sm:$0xf]
      %v3582 = vld [vmem:[%s3561 + $0x78] sm:$0xf]
      %v3583 = vld [vmem:[%s3561 + $0x7c] sm:$0xf]
      %v3584 = vld [vmem:[%s3561 + $0x84] sm:$0xf]
      %v3585 = vld [vmem:[%s3561 + $0x88] sm:$0xf]
      %v3586 = vld [vmem:[%s3561 + $0x90] sm:$0xf]
      %v3587 = vld [vmem:[%s3561 + $0x94] sm:$0xf]
      %v3588 = vld [vmem:[%s3561 + $0x9c] sm:$0xf]
      %v3589 = vld [vmem:[%s3561 + $0xa0] sm:$0xf]
      %v3590 = vld [vmem:[%s3561 + $0xa8] sm:$0xf]
      %v3591 = vld [vmem:[%s3561 + $0xac] sm:$0xf]
      %v3592 = vld [vmem:[%s3561 + $0xb4] sm:$0xf]
      %v3593 = vld [vmem:[%s3561 + $0xb8] sm:$0xf]
      %v3594 = vld [vmem:[%s3561 + $0x8] sm:$0x1]
      %v3595 = vld [vmem:[%s3561 + $0x14] sm:$0x1]
      %v3596 = vld [vmem:[%s3561 + $0x20] sm:$0x1]
      %v3597 = vld [vmem:[%s3561 + $0x2c] sm:$0x1]
      %v3598 = vld [vmem:[%s3561 + $0x38] sm:$0x1]
      %v3599 = vld [vmem:[%s3561 + $0x44] sm:$0x1]
      %v3600 = vld [vmem:[%s3561 + $0x50] sm:$0x1]
      %v3601 = vld [vmem:[%s3561 + $0x5c] sm:$0x1]
      %v3602 = vld [vmem:[%s3561 + $0x68] sm:$0x1]
      %v3603 = vld [vmem:[%s3561 + $0x74] sm:$0x1]
      %v3604 = vld [vmem:[%s3561 + $0x80] sm:$0x1]
      %v3605 = vld [vmem:[%s3561 + $0x8c] sm:$0x1]
      %v3606 = vld [vmem:[%s3561 + $0x98] sm:$0x1]
      %v3607 = vld [vmem:[%s3561 + $0xa4] sm:$0x1]
      %v3608 = vld [vmem:[%s3561 + $0xb0] sm:$0x1]
      %v3609 = vld [vmem:[%s3561 + $0xbc] sm:$0x1]
      %v3611 = vshrl.u32 %v3562, 16
      %v3613 = vrot.slane %v3611, 4
      %v3614 = vshll.u32 %v3562, 16
      %v3616 = vrot.slane %v3614, 5
      %v3617 = vor.u32 %v3613, %v3616
      %v3618 = vrot.slane %v3617, 4
      %v3620 = vshll.u32 %v3563, 16
      %v3622 = vrot.slane %v3620, 5
      %v3623 = vsel %vm945, %v3618, %v3622
      %v3624 = vshrl.u32 %v3563, 16
      %v3626 = vrot.slane %v3624, 4
      %v3627 = vor.u32 %v3626, %v3622
      %v3628 = vrot.slane %v3627, 4
      %v3630 = vshll.u32 %v3594, 16
      %v3632 = vrot.slane %v3630, 5
      %v3633 = vsel %vm945, %v3628, %v3632
      %v3635 = vshrl.u32 %v3564, 16
      %v3637 = vrot.slane %v3635, 4
      %v3638 = vshll.u32 %v3564, 16
      %v3640 = vrot.slane %v3638, 5
      %v3641 = vor.u32 %v3637, %v3640
      %v3642 = vrot.slane %v3641, 4
      %v3644 = vshll.u32 %v3565, 16
      %v3646 = vrot.slane %v3644, 5
      %v3647 = vsel %vm945, %v3642, %v3646
      %v3648 = vshrl.u32 %v3565, 16
      %v3650 = vrot.slane %v3648, 4
      %v3651 = vor.u32 %v3650, %v3646
      %v3652 = vrot.slane %v3651, 4
      %v3654 = vshll.u32 %v3595, 16
      %v3656 = vrot.slane %v3654, 5
      %v3657 = vsel %vm945, %v3652, %v3656
      %v3659 = vshrl.u32 %v3566, 16
      %v3661 = vrot.slane %v3659, 4
      %v3662 = vshll.u32 %v3566, 16
      %v3664 = vrot.slane %v3662, 5
      %v3665 = vor.u32 %v3661, %v3664
      %v3666 = vrot.slane %v3665, 4
      %v3668 = vshll.u32 %v3567, 16
      %v3670 = vrot.slane %v3668, 5
      %v3671 = vsel %vm945, %v3666, %v3670
      %v3672 = vshrl.u32 %v3567, 16
      %v3674 = vrot.slane %v3672, 4
      %v3675 = vor.u32 %v3674, %v3670
      %v3676 = vrot.slane %v3675, 4
      %v3678 = vshll.u32 %v3596, 16
      %v3680 = vrot.slane %v3678, 5
      %v3681 = vsel %vm945, %v3676, %v3680
      %v3683 = vshrl.u32 %v3568, 16
      %v3685 = vrot.slane %v3683, 4
      %v3686 = vshll.u32 %v3568, 16
      %v3688 = vrot.slane %v3686, 5
      %v3689 = vor.u32 %v3685, %v3688
      %v3690 = vrot.slane %v3689, 4
      %v3692 = vshll.u32 %v3569, 16
      %v3694 = vrot.slane %v3692, 5
      %v3695 = vsel %vm945, %v3690, %v3694
      %v3696 = vshrl.u32 %v3569, 16
      %v3698 = vrot.slane %v3696, 4
      %v3699 = vor.u32 %v3698, %v3694
      %v3700 = vrot.slane %v3699, 4
      %v3702 = vshll.u32 %v3597, 16
      %v3704 = vrot.slane %v3702, 5
      %v3705 = vsel %vm945, %v3700, %v3704
      %v3707 = vshrl.u32 %v3570, 16
      %v3709 = vrot.slane %v3707, 4
      %v3710 = vshll.u32 %v3570, 16
      %v3712 = vrot.slane %v3710, 5
      %v3713 = vor.u32 %v3709, %v3712
      %v3714 = vrot.slane %v3713, 4
      %v3716 = vshll.u32 %v3571, 16
      %v3718 = vrot.slane %v3716, 5
      %v3719 = vsel %vm945, %v3714, %v3718
      %v3720 = vshrl.u32 %v3571, 16
      %v3722 = vrot.slane %v3720, 4
      %v3723 = vor.u32 %v3722, %v3718
      %v3724 = vrot.slane %v3723, 4
      %v3726 = vshll.u32 %v3598, 16
      %v3728 = vrot.slane %v3726, 5
      %v3729 = vsel %vm945, %v3724, %v3728
      %v3731 = vshrl.u32 %v3572, 16
      %v3733 = vrot.slane %v3731, 4
      %v3734 = vshll.u32 %v3572, 16
      %v3736 = vrot.slane %v3734, 5
      %v3737 = vor.u32 %v3733, %v3736
      %v3738 = vrot.slane %v3737, 4
      %v3740 = vshll.u32 %v3573, 16
      %v3742 = vrot.slane %v3740, 5
      %v3743 = vsel %vm945, %v3738, %v3742
      %v3744 = vshrl.u32 %v3573, 16
      %v3746 = vrot.slane %v3744, 4
      %v3747 = vor.u32 %v3746, %v3742
      %v3748 = vrot.slane %v3747, 4
      %v3750 = vshll.u32 %v3599, 16
      %v3752 = vrot.slane %v3750, 5
      %v3753 = vsel %vm945, %v3748, %v3752
      %v3755 = vshrl.u32 %v3574, 16
      %v3757 = vrot.slane %v3755, 4
      %v3758 = vshll.u32 %v3574, 16
      %v3760 = vrot.slane %v3758, 5
      %v3761 = vor.u32 %v3757, %v3760
      %v3762 = vrot.slane %v3761, 4
      %v3764 = vshll.u32 %v3575, 16
      %v3766 = vrot.slane %v3764, 5
      %v3767 = vsel %vm945, %v3762, %v3766
      %v3768 = vshrl.u32 %v3575, 16
      %v3770 = vrot.slane %v3768, 4
      %v3771 = vor.u32 %v3770, %v3766
      %v3772 = vrot.slane %v3771, 4
      %v3774 = vshll.u32 %v3600, 16
      %v3776 = vrot.slane %v3774, 5
      %v3777 = vsel %vm945, %v3772, %v3776
      %v3779 = vshrl.u32 %v3576, 16
      %v3781 = vrot.slane %v3779, 4
      %v3782 = vshll.u32 %v3576, 16
      %v3784 = vrot.slane %v3782, 5
      %v3785 = vor.u32 %v3781, %v3784
      %v3786 = vrot.slane %v3785, 4
      %v3788 = vshll.u32 %v3577, 16
      %v3790 = vrot.slane %v3788, 5
      %v3791 = vsel %vm945, %v3786, %v3790
      %v3792 = vshrl.u32 %v3577, 16
      %v3794 = vrot.slane %v3792, 4
      %v3795 = vor.u32 %v3794, %v3790
      %v3796 = vrot.slane %v3795, 4
      %v3798 = vshll.u32 %v3601, 16
      %v3800 = vrot.slane %v3798, 5
      %v3801 = vsel %vm945, %v3796, %v3800
      %v3803 = vshrl.u32 %v3578, 16
      %v3805 = vrot.slane %v3803, 4
      %v3806 = vshll.u32 %v3578, 16
      %v3808 = vrot.slane %v3806, 5
      %v3809 = vor.u32 %v3805, %v3808
      %v3810 = vrot.slane %v3809, 4
      %v3812 = vshll.u32 %v3579, 16
      %v3814 = vrot.slane %v3812, 5
      %v3815 = vsel %vm945, %v3810, %v3814
      %v3816 = vshrl.u32 %v3579, 16
      %v3818 = vrot.slane %v3816, 4
      %v3819 = vor.u32 %v3818, %v3814
      %v3820 = vrot.slane %v3819, 4
      %v3822 = vshll.u32 %v3602, 16
      %v3824 = vrot.slane %v3822, 5
      %v3825 = vsel %vm945, %v3820, %v3824
      %v3827 = vshrl.u32 %v3580, 16
      %v3829 = vrot.slane %v3827, 4
      %v3830 = vshll.u32 %v3580, 16
      %v3832 = vrot.slane %v3830, 5
      %v3833 = vor.u32 %v3829, %v3832
      %v3834 = vrot.slane %v3833, 4
      %v3836 = vshll.u32 %v3581, 16
      %v3838 = vrot.slane %v3836, 5
      %v3839 = vsel %vm945, %v3834, %v3838
      %v3840 = vshrl.u32 %v3581, 16
      %v3842 = vrot.slane %v3840, 4
      %v3843 = vor.u32 %v3842, %v3838
      %v3844 = vrot.slane %v3843, 4
      %v3846 = vshll.u32 %v3603, 16
      %v3848 = vrot.slane %v3846, 5
      %v3849 = vsel %vm945, %v3844, %v3848
      %v3851 = vshrl.u32 %v3582, 16
      %v3853 = vrot.slane %v3851, 4
      %v3854 = vshll.u32 %v3582, 16
      %v3856 = vrot.slane %v3854, 5
      %v3857 = vor.u32 %v3853, %v3856
      %v3858 = vrot.slane %v3857, 4
      %v3860 = vshll.u32 %v3583, 16
      %v3862 = vrot.slane %v3860, 5
      %v3863 = vsel %vm945, %v3858, %v3862
      %v3864 = vshrl.u32 %v3583, 16
      %v3866 = vrot.slane %v3864, 4
      %v3867 = vor.u32 %v3866, %v3862
      %v3868 = vrot.slane %v3867, 4
      %v3870 = vshll.u32 %v3604, 16
      %v3872 = vrot.slane %v3870, 5
      %v3873 = vsel %vm945, %v3868, %v3872
      %v3875 = vshrl.u32 %v3584, 16
      %v3877 = vrot.slane %v3875, 4
      %v3878 = vshll.u32 %v3584, 16
      %v3880 = vrot.slane %v3878, 5
      %v3881 = vor.u32 %v3877, %v3880
      %v3882 = vrot.slane %v3881, 4
      %v3884 = vshll.u32 %v3585, 16
      %v3886 = vrot.slane %v3884, 5
      %v3887 = vsel %vm945, %v3882, %v3886
      %v3888 = vshrl.u32 %v3585, 16
      %v3890 = vrot.slane %v3888, 4
      %v3891 = vor.u32 %v3890, %v3886
      %v3892 = vrot.slane %v3891, 4
      %v3894 = vshll.u32 %v3605, 16
      %v3896 = vrot.slane %v3894, 5
      %v3897 = vsel %vm945, %v3892, %v3896
      %v3899 = vshrl.u32 %v3586, 16
      %v3901 = vrot.slane %v3899, 4
      %v3902 = vshll.u32 %v3586, 16
      %v3904 = vrot.slane %v3902, 5
      %v3905 = vor.u32 %v3901, %v3904
      %v3906 = vrot.slane %v3905, 4
      %v3908 = vshll.u32 %v3587, 16
      %v3910 = vrot.slane %v3908, 5
      %v3911 = vsel %vm945, %v3906, %v3910
      %v3912 = vshrl.u32 %v3587, 16
      %v3914 = vrot.slane %v3912, 4
      %v3915 = vor.u32 %v3914, %v3910
      %v3916 = vrot.slane %v3915, 4
      %v3918 = vshll.u32 %v3606, 16
      %v3920 = vrot.slane %v3918, 5
      %v3921 = vsel %vm945, %v3916, %v3920
      %v3923 = vshrl.u32 %v3588, 16
      %v3925 = vrot.slane %v3923, 4
      %v3926 = vshll.u32 %v3588, 16
      %v3928 = vrot.slane %v3926, 5
      %v3929 = vor.u32 %v3925, %v3928
      %v3930 = vrot.slane %v3929, 4
      %v3932 = vshll.u32 %v3589, 16
      %v3934 = vrot.slane %v3932, 5
      %v3935 = vsel %vm945, %v3930, %v3934
      %v3936 = vshrl.u32 %v3589, 16
      %v3938 = vrot.slane %v3936, 4
      %v3939 = vor.u32 %v3938, %v3934
      %v3940 = vrot.slane %v3939, 4
      %v3942 = vshll.u32 %v3607, 16
      %v3944 = vrot.slane %v3942, 5
      %v3945 = vsel %vm945, %v3940, %v3944
      %v3947 = vshrl.u32 %v3590, 16
      %v3949 = vrot.slane %v3947, 4
      %v3950 = vshll.u32 %v3590, 16
      %v3952 = vrot.slane %v3950, 5
      %v3953 = vor.u32 %v3949, %v3952
      %v3954 = vrot.slane %v3953, 4
      %v3956 = vshll.u32 %v3591, 16
      %v3958 = vrot.slane %v3956, 5
      %v3959 = vsel %vm945, %v3954, %v3958
      %v3960 = vshrl.u32 %v3591, 16
      %v3962 = vrot.slane %v3960, 4
      %v3963 = vor.u32 %v3962, %v3958
      %v3964 = vrot.slane %v3963, 4
      %v3966 = vshll.u32 %v3608, 16
      %v3968 = vrot.slane %v3966, 5
      %v3969 = vsel %vm945, %v3964, %v3968
      %v3971 = vshrl.u32 %v3592, 16
      %v3973 = vrot.slane %v3971, 4
      %v3974 = vshll.u32 %v3592, 16
      %v3976 = vrot.slane %v3974, 5
      %v3977 = vor.u32 %v3973, %v3976
      %v3978 = vrot.slane %v3977, 4
      %v3980 = vshll.u32 %v3593, 16
      %v3982 = vrot.slane %v3980, 5
      %v3983 = vsel %vm945, %v3978, %v3982
      %v3984 = vshrl.u32 %v3593, 16
      %v3986 = vrot.slane %v3984, 4
      %v3987 = vor.u32 %v3986, %v3982
      %v3988 = vrot.slane %v3987, 4
      %v3990 = vshll.u32 %v3609, 16
      %v3992 = vrot.slane %v3990, 5
      %v3993 = vsel %vm945, %v3988, %v3992
      %v3994 = vld [vmem:[%s3561] sm:$0xe]
      %v3995 = vld [vmem:[%s3561 + $0xc] sm:$0xe]
      %v3996 = vld [vmem:[%s3561 + $0x18] sm:$0xe]
      %v3997 = vld [vmem:[%s3561 + $0x24] sm:$0xe]
      %v3998 = vld [vmem:[%s3561 + $0x30] sm:$0xe]
      %v3999 = vld [vmem:[%s3561 + $0x3c] sm:$0xe]
      %v4000 = vld [vmem:[%s3561 + $0x48] sm:$0xe]
      %v4001 = vld [vmem:[%s3561 + $0x54] sm:$0xe]
      %v4002 = vld [vmem:[%s3561 + $0x60] sm:$0xe]
      %v4003 = vld [vmem:[%s3561 + $0x6c] sm:$0xe]
      %v4004 = vld [vmem:[%s3561 + $0x78] sm:$0xe]
      %v4005 = vld [vmem:[%s3561 + $0x84] sm:$0xe]
      %v4006 = vld [vmem:[%s3561 + $0x90] sm:$0xe]
      %v4007 = vld [vmem:[%s3561 + $0x9c] sm:$0xe]
      %v4008 = vld [vmem:[%s3561 + $0xa8] sm:$0xe]
      %v4009 = vld [vmem:[%s3561 + $0xb4] sm:$0xe]
      %v4058 = vrot.slane %v3994, 5
      %v4059 = vrot.slane %v4058, 4
      %v4060 = vrot.slane %v3563, 5
      %v4061 = vsel %vm1396, %v4059, %v4060
      %v4062 = vrot.slane %v4060, 4
      %v4063 = vrot.slane %v3594, 5
      %v4064 = vsel %vm1396, %v4062, %v4063
      %v4065 = vrot.slane %v3995, 5
      %v4066 = vrot.slane %v4065, 4
      %v4067 = vrot.slane %v3565, 5
      %v4068 = vsel %vm1396, %v4066, %v4067
      %v4069 = vrot.slane %v4067, 4
      %v4070 = vrot.slane %v3595, 5
      %v4071 = vsel %vm1396, %v4069, %v4070
      %v4072 = vrot.slane %v3996, 5
      %v4073 = vrot.slane %v4072, 4
      %v4074 = vrot.slane %v3567, 5
      %v4075 = vsel %vm1396, %v4073, %v4074
      %v4076 = vrot.slane %v4074, 4
      %v4077 = vrot.slane %v3596, 5
      %v4078 = vsel %vm1396, %v4076, %v4077
      %v4079 = vrot.slane %v3997, 5
      %v4080 = vrot.slane %v4079, 4
      %v4081 = vrot.slane %v3569, 5
      %v4082 = vsel %vm1396, %v4080, %v4081
      %v4083 = vrot.slane %v4081, 4
      %v4084 = vrot.slane %v3597, 5
      %v4085 = vsel %vm1396, %v4083, %v4084
      %v4086 = vrot.slane %v3998, 5
      %v4087 = vrot.slane %v4086, 4
      %v4088 = vrot.slane %v3571, 5
      %v4089 = vsel %vm1396, %v4087, %v4088
      %v4090 = vrot.slane %v4088, 4
      %v4091 = vrot.slane %v3598, 5
      %v4092 = vsel %vm1396, %v4090, %v4091
      %v4093 = vrot.slane %v3999, 5
      %v4094 = vrot.slane %v4093, 4
      %v4095 = vrot.slane %v3573, 5
      %v4096 = vsel %vm1396, %v4094, %v4095
      %v4097 = vrot.slane %v4095, 4
      %v4098 = vrot.slane %v3599, 5
      %v4099 = vsel %vm1396, %v4097, %v4098
      %v4100 = vrot.slane %v4000, 5
      %v4101 = vrot.slane %v4100, 4
      %v4102 = vrot.slane %v3575, 5
      %v4103 = vsel %vm1396, %v4101, %v4102
      %v4104 = vrot.slane %v4102, 4
      %v4105 = vrot.slane %v3600, 5
      %v4106 = vsel %vm1396, %v4104, %v4105
      %v4107 = vrot.slane %v4001, 5
      %v4108 = vrot.slane %v4107, 4
      %v4109 = vrot.slane %v3577, 5
      %v4110 = vsel %vm1396, %v4108, %v4109
      %v4111 = vrot.slane %v4109, 4
      %v4112 = vrot.slane %v3601, 5
      %v4113 = vsel %vm1396, %v4111, %v4112
      %v4114 = vrot.slane %v4002, 5
      %v4115 = vrot.slane %v4114, 4
      %v4116 = vrot.slane %v3579, 5
      %v4117 = vsel %vm1396, %v4115, %v4116
      %v4118 = vrot.slane %v4116, 4
      %v4119 = vrot.slane %v3602, 5
      %v4120 = vsel %vm1396, %v4118, %v4119
      %v4121 = vrot.slane %v4003, 5
      %v4122 = vrot.slane %v4121, 4
      %v4123 = vrot.slane %v3581, 5
      %v4124 = vsel %vm1396, %v4122, %v4123
      %v4125 = vrot.slane %v4123, 4
      %v4126 = vrot.slane %v3603, 5
      %v4127 = vsel %vm1396, %v4125, %v4126
      %v4128 = vrot.slane %v4004, 5
      %v4129 = vrot.slane %v4128, 4
      %v4130 = vrot.slane %v3583, 5
      %v4131 = vsel %vm1396, %v4129, %v4130
      %v4132 = vrot.slane %v4130, 4
      %v4133 = vrot.slane %v3604, 5
      %v4134 = vsel %vm1396, %v4132, %v4133
      %v4135 = vrot.slane %v4005, 5
      %v4136 = vrot.slane %v4135, 4
      %v4137 = vrot.slane %v3585, 5
      %v4138 = vsel %vm1396, %v4136, %v4137
      %v4139 = vrot.slane %v4137, 4
      %v4140 = vrot.slane %v3605, 5
      %v4141 = vsel %vm1396, %v4139, %v4140
      %v4142 = vrot.slane %v4006, 5
      %v4143 = vrot.slane %v4142, 4
      %v4144 = vrot.slane %v3587, 5
      %v4145 = vsel %vm1396, %v4143, %v4144
      %v4146 = vrot.slane %v4144, 4
      %v4147 = vrot.slane %v3606, 5
      %v4148 = vsel %vm1396, %v4146, %v4147
      %v4149 = vrot.slane %v4007, 5
      %v4150 = vrot.slane %v4149, 4
      %v4151 = vrot.slane %v3589, 5
      %v4152 = vsel %vm1396, %v4150, %v4151
      %v4153 = vrot.slane %v4151, 4
      %v4154 = vrot.slane %v3607, 5
      %v4155 = vsel %vm1396, %v4153, %v4154
      %v4156 = vrot.slane %v4008, 5
      %v4157 = vrot.slane %v4156, 4
      %v4158 = vrot.slane %v3591, 5
      %v4159 = vsel %vm1396, %v4157, %v4158
      %v4160 = vrot.slane %v4158, 4
      %v4161 = vrot.slane %v3608, 5
      %v4162 = vsel %vm1396, %v4160, %v4161
      %v4163 = vrot.slane %v4009, 5
      %v4164 = vrot.slane %v4163, 4
      %v4165 = vrot.slane %v3593, 5
      %v4166 = vsel %vm1396, %v4164, %v4165
      %v4167 = vrot.slane %v4165, 4
      %v4168 = vrot.slane %v3609, 5
      %v4169 = vsel %vm1396, %v4167, %v4168
      %v4186 = vunpack.c.l.b16 %v3562
      %v4187 = vunpack.c.l.b16 %v3563
      %v4188 = vunpack.c.l.b16 %v3564
      %v4189 = vunpack.c.l.b16 %v3565
      %v4190 = vunpack.c.l.b16 %v3566
      %v4191 = vunpack.c.l.b16 %v3567
      %v4192 = vunpack.c.l.b16 %v3568
      %v4193 = vunpack.c.l.b16 %v3569
      %v4194 = vunpack.c.l.b16 %v3570
      %v4195 = vunpack.c.l.b16 %v3571
      %v4196 = vunpack.c.l.b16 %v3572
      %v4197 = vunpack.c.l.b16 %v3573
      %v4198 = vunpack.c.l.b16 %v3574
      %v4199 = vunpack.c.l.b16 %v3575
      %v4200 = vunpack.c.l.b16 %v3576
      %v4201 = vunpack.c.l.b16 %v3577
      %v4202 = vunpack.c.l.b16 %v3578
      %v4203 = vunpack.c.l.b16 %v3579
      %v4204 = vunpack.c.l.b16 %v3580
      %v4205 = vunpack.c.l.b16 %v3581
      %v4206 = vunpack.c.l.b16 %v3582
      %v4207 = vunpack.c.l.b16 %v3583
      %v4208 = vunpack.c.l.b16 %v3584
      %v4209 = vunpack.c.l.b16 %v3585
      %v4210 = vunpack.c.l.b16 %v3586
      %v4211 = vunpack.c.l.b16 %v3587
      %v4212 = vunpack.c.l.b16 %v3588
      %v4213 = vunpack.c.l.b16 %v3589
      %v4214 = vunpack.c.l.b16 %v3590
      %v4215 = vunpack.c.l.b16 %v3591
      %v4216 = vunpack.c.l.b16 %v3592
      %v4217 = vunpack.c.l.b16 %v3593
      %v4218 = vpack.c.b16 %v4187, %v4186
      %v4219 = vpack.c.b16 %v4189, %v4188
      %v4220 = vpack.c.b16 %v4191, %v4190
      %v4221 = vpack.c.b16 %v4193, %v4192
      %v4222 = vpack.c.b16 %v4195, %v4194
      %v4223 = vpack.c.b16 %v4197, %v4196
      %v4224 = vpack.c.b16 %v4199, %v4198
      %v4225 = vpack.c.b16 %v4201, %v4200
      %v4226 = vpack.c.b16 %v4203, %v4202
      %v4227 = vpack.c.b16 %v4205, %v4204
      %v4228 = vpack.c.b16 %v4207, %v4206
      %v4229 = vpack.c.b16 %v4209, %v4208
      %v4230 = vpack.c.b16 %v4211, %v4210
      %v4231 = vpack.c.b16 %v4213, %v4212
      %v4232 = vpack.c.b16 %v4215, %v4214
      %v4233 = vpack.c.b16 %v4217, %v4216
      %v4250 = vunpack.c.l.b16 %v3623
      %v4251 = vunpack.c.l.b16 %v3633
      %v4252 = vunpack.c.l.b16 %v3647
      %v4253 = vunpack.c.l.b16 %v3657
      %v4254 = vunpack.c.l.b16 %v3671
      %v4255 = vunpack.c.l.b16 %v3681
      %v4256 = vunpack.c.l.b16 %v3695
      %v4257 = vunpack.c.l.b16 %v3705
      %v4258 = vunpack.c.l.b16 %v3719
      %v4259 = vunpack.c.l.b16 %v3729
      %v4260 = vunpack.c.l.b16 %v3743
      %v4261 = vunpack.c.l.b16 %v3753
      %v4262 = vunpack.c.l.b16 %v3767
      %v4263 = vunpack.c.l.b16 %v3777
      %v4264 = vunpack.c.l.b16 %v3791
      %v4265 = vunpack.c.l.b16 %v3801
      %v4266 = vunpack.c.l.b16 %v3815
      %v4267 = vunpack.c.l.b16 %v3825
      %v4268 = vunpack.c.l.b16 %v3839
      %v4269 = vunpack.c.l.b16 %v3849
      %v4270 = vunpack.c.l.b16 %v3863
      %v4271 = vunpack.c.l.b16 %v3873
      %v4272 = vunpack.c.l.b16 %v3887
      %v4273 = vunpack.c.l.b16 %v3897
      %v4274 = vunpack.c.l.b16 %v3911
      %v4275 = vunpack.c.l.b16 %v3921
      %v4276 = vunpack.c.l.b16 %v3935
      %v4277 = vunpack.c.l.b16 %v3945
      %v4278 = vunpack.c.l.b16 %v3959
      %v4279 = vunpack.c.l.b16 %v3969
      %v4280 = vunpack.c.l.b16 %v3983
      %v4281 = vunpack.c.l.b16 %v3993
      %v4282 = vpack.c.b16 %v4251, %v4250
      %v4283 = vpack.c.b16 %v4253, %v4252
      %v4284 = vpack.c.b16 %v4255, %v4254
      %v4285 = vpack.c.b16 %v4257, %v4256
      %v4286 = vpack.c.b16 %v4259, %v4258
      %v4287 = vpack.c.b16 %v4261, %v4260
      %v4288 = vpack.c.b16 %v4263, %v4262
      %v4289 = vpack.c.b16 %v4265, %v4264
      %v4290 = vpack.c.b16 %v4267, %v4266
      %v4291 = vpack.c.b16 %v4269, %v4268
      %v4292 = vpack.c.b16 %v4271, %v4270
      %v4293 = vpack.c.b16 %v4273, %v4272
      %v4294 = vpack.c.b16 %v4275, %v4274
      %v4295 = vpack.c.b16 %v4277, %v4276
      %v4296 = vpack.c.b16 %v4279, %v4278
      %v4297 = vpack.c.b16 %v4281, %v4280
      %v4314 = vunpack.c.l.b16 %v4061
      %v4315 = vunpack.c.l.b16 %v4064
      %v4316 = vunpack.c.l.b16 %v4068
      %v4317 = vunpack.c.l.b16 %v4071
      %v4318 = vunpack.c.l.b16 %v4075
      %v4319 = vunpack.c.l.b16 %v4078
      %v4320 = vunpack.c.l.b16 %v4082
      %v4321 = vunpack.c.l.b16 %v4085
      %v4322 = vunpack.c.l.b16 %v4089
      %v4323 = vunpack.c.l.b16 %v4092
      %v4324 = vunpack.c.l.b16 %v4096
      %v4325 = vunpack.c.l.b16 %v4099
      %v4326 = vunpack.c.l.b16 %v4103
      %v4327 = vunpack.c.l.b16 %v4106
      %v4328 = vunpack.c.l.b16 %v4110
      %v4329 = vunpack.c.l.b16 %v4113
      %v4330 = vunpack.c.l.b16 %v4117
      %v4331 = vunpack.c.l.b16 %v4120
      %v4332 = vunpack.c.l.b16 %v4124
      %v4333 = vunpack.c.l.b16 %v4127
      %v4334 = vunpack.c.l.b16 %v4131
      %v4335 = vunpack.c.l.b16 %v4134
      %v4336 = vunpack.c.l.b16 %v4138
      %v4337 = vunpack.c.l.b16 %v4141
      %v4338 = vunpack.c.l.b16 %v4145
      %v4339 = vunpack.c.l.b16 %v4148
      %v4340 = vunpack.c.l.b16 %v4152
      %v4341 = vunpack.c.l.b16 %v4155
      %v4342 = vunpack.c.l.b16 %v4159
      %v4343 = vunpack.c.l.b16 %v4162
      %v4344 = vunpack.c.l.b16 %v4166
      %v4345 = vunpack.c.l.b16 %v4169
      %v4346 = vpack.c.b16 %v4315, %v4314
      %v4347 = vpack.c.b16 %v4317, %v4316
      %v4348 = vpack.c.b16 %v4319, %v4318
      %v4349 = vpack.c.b16 %v4321, %v4320
      %v4350 = vpack.c.b16 %v4323, %v4322
      %v4351 = vpack.c.b16 %v4325, %v4324
      %v4352 = vpack.c.b16 %v4327, %v4326
      %v4353 = vpack.c.b16 %v4329, %v4328
      %v4354 = vpack.c.b16 %v4331, %v4330
      %v4355 = vpack.c.b16 %v4333, %v4332
      %v4356 = vpack.c.b16 %v4335, %v4334
      %v4357 = vpack.c.b16 %v4337, %v4336
      %v4358 = vpack.c.b16 %v4339, %v4338
      %v4359 = vpack.c.b16 %v4341, %v4340
      %v4360 = vpack.c.b16 %v4343, %v4342
      %v4361 = vpack.c.b16 %v4345, %v4344
      %v4378 = vld [vmem:[%s1 + $0x180] sm:$0xf]
      %v4379 = vld [vmem:[%s1 + $0x184] sm:$0xf]
      %v4380 = vld [vmem:[%s1 + $0x188] sm:$0xf]
      %v4381 = vld [vmem:[%s1 + $0x18c] sm:$0xf]
      %v4382 = vld [vmem:[%s1 + $0x190] sm:$0xf]
      %v4383 = vld [vmem:[%s1 + $0x194] sm:$0xf]
      %v4384 = vld [vmem:[%s1 + $0x198] sm:$0xf]
      %v4385 = vld [vmem:[%s1 + $0x19c] sm:$0xf]
      %v4386 = vld [vmem:[%s1 + $0x1a0] sm:$0xf]
      %v4387 = vld [vmem:[%s1 + $0x1a4] sm:$0xf]
      %v4388 = vld [vmem:[%s1 + $0x1a8] sm:$0xf]
      %v4389 = vld [vmem:[%s1 + $0x1ac] sm:$0xf]
      %v4390 = vld [vmem:[%s1 + $0x1b0] sm:$0xf]
      %v4391 = vld [vmem:[%s1 + $0x1b4] sm:$0xf]
      %v4392 = vld [vmem:[%s1 + $0x1b8] sm:$0xf]
      %v4393 = vld [vmem:[%s1 + $0x1bc] sm:$0xf]
      %v4394 = vld [vmem:[%s1 + $0x1c0] sm:$0xf]
      %v4395 = vld [vmem:[%s1 + $0x1c4] sm:$0xf]
      %v4396 = vld [vmem:[%s1 + $0x1c8] sm:$0xf]
      %v4397 = vld [vmem:[%s1 + $0x1cc] sm:$0xf]
      %v4398 = vld [vmem:[%s1 + $0x1d0] sm:$0xf]
      %v4399 = vld [vmem:[%s1 + $0x1d4] sm:$0xf]
      %v4400 = vld [vmem:[%s1 + $0x1d8] sm:$0xf]
      %v4401 = vld [vmem:[%s1 + $0x1dc] sm:$0xf]
      %v4402 = vld [vmem:[%s1 + $0x1e0] sm:$0xf]
      %v4403 = vld [vmem:[%s1 + $0x1e4] sm:$0xf]
      %v4404 = vld [vmem:[%s1 + $0x1e8] sm:$0xf]
      %v4405 = vld [vmem:[%s1 + $0x1ec] sm:$0xf]
      %v4406 = vld [vmem:[%s1 + $0x1f0] sm:$0xf]
      %v4407 = vld [vmem:[%s1 + $0x1f4] sm:$0xf]
      %v4408 = vld [vmem:[%s1 + $0x1f8] sm:$0xf]
      %v4409 = vld [vmem:[%s1 + $0x1fc] sm:$0xf]
      %v4410 = vld [vmem:[%s1 + $0x200] sm:$0xf]
      %v4411 = vld [vmem:[%s1 + $0x204] sm:$0xf]
      %v4412 = vld [vmem:[%s1 + $0x208] sm:$0xf]
      %v4413 = vld [vmem:[%s1 + $0x20c] sm:$0xf]
      %v4414 = vld [vmem:[%s1 + $0x210] sm:$0xf]
      %v4415 = vld [vmem:[%s1 + $0x214] sm:$0xf]
      %v4416 = vld [vmem:[%s1 + $0x218] sm:$0xf]
      %v4417 = vld [vmem:[%s1 + $0x21c] sm:$0xf]
      %v4418 = vld [vmem:[%s1 + $0x220] sm:$0xf]
      %v4419 = vld [vmem:[%s1 + $0x224] sm:$0xf]
      %v4420 = vld [vmem:[%s1 + $0x228] sm:$0xf]
      %v4421 = vld [vmem:[%s1 + $0x22c] sm:$0xf]
      %v4422 = vld [vmem:[%s1 + $0x230] sm:$0xf]
      %v4423 = vld [vmem:[%s1 + $0x234] sm:$0xf]
      %v4424 = vld [vmem:[%s1 + $0x238] sm:$0xf]
      %v4425 = vld [vmem:[%s1 + $0x23c] sm:$0xf]
      %v4474 = vunpack.c.l.b16 %v4378
      %v4475 = vunpack.c.l.b16 %v4379
      %v4476 = vunpack.c.l.b16 %v4380
      %v4477 = vunpack.c.l.b16 %v4381
      %v4478 = vunpack.c.l.b16 %v4382
      %v4479 = vunpack.c.l.b16 %v4383
      %v4480 = vunpack.c.l.b16 %v4384
      %v4481 = vunpack.c.l.b16 %v4385
      %v4482 = vunpack.c.l.b16 %v4386
      %v4483 = vunpack.c.l.b16 %v4387
      %v4484 = vunpack.c.l.b16 %v4388
      %v4485 = vunpack.c.l.b16 %v4389
      %v4486 = vunpack.c.l.b16 %v4390
      %v4487 = vunpack.c.l.b16 %v4391
      %v4488 = vunpack.c.l.b16 %v4392
      %v4489 = vunpack.c.l.b16 %v4393
      %v4490 = vunpack.c.l.b16 %v4394
      %v4491 = vunpack.c.l.b16 %v4395
      %v4492 = vunpack.c.l.b16 %v4396
      %v4493 = vunpack.c.l.b16 %v4397
      %v4494 = vunpack.c.l.b16 %v4398
      %v4495 = vunpack.c.l.b16 %v4399
      %v4496 = vunpack.c.l.b16 %v4400
      %v4497 = vunpack.c.l.b16 %v4401
      %v4498 = vunpack.c.l.b16 %v4402
      %v4499 = vunpack.c.l.b16 %v4403
      %v4500 = vunpack.c.l.b16 %v4404
      %v4501 = vunpack.c.l.b16 %v4405
      %v4502 = vunpack.c.l.b16 %v4406
      %v4503 = vunpack.c.l.b16 %v4407
      %v4504 = vunpack.c.l.b16 %v4408
      %v4505 = vunpack.c.l.b16 %v4409
      %v4506 = vunpack.c.l.b16 %v4410
      %v4507 = vunpack.c.l.b16 %v4411
      %v4508 = vunpack.c.l.b16 %v4412
      %v4509 = vunpack.c.l.b16 %v4413
      %v4510 = vunpack.c.l.b16 %v4414
      %v4511 = vunpack.c.l.b16 %v4415
      %v4512 = vunpack.c.l.b16 %v4416
      %v4513 = vunpack.c.l.b16 %v4417
      %v4514 = vunpack.c.l.b16 %v4418
      %v4515 = vunpack.c.l.b16 %v4419
      %v4516 = vunpack.c.l.b16 %v4420
      %v4517 = vunpack.c.l.b16 %v4421
      %v4518 = vunpack.c.l.b16 %v4422
      %v4519 = vunpack.c.l.b16 %v4423
      %v4520 = vunpack.c.l.b16 %v4424
      %v4521 = vunpack.c.l.b16 %v4425
      %v4522 = vpack.c.b16 %v4475, %v4474
      %v4523 = vpack.c.b16 %v4477, %v4476
      %v4524 = vpack.c.b16 %v4479, %v4478
      %v4525 = vpack.c.b16 %v4481, %v4480
      %v4526 = vpack.c.b16 %v4483, %v4482
      %v4527 = vpack.c.b16 %v4485, %v4484
      %v4528 = vpack.c.b16 %v4487, %v4486
      %v4529 = vpack.c.b16 %v4489, %v4488
      %v4530 = vpack.c.b16 %v4491, %v4490
      %v4531 = vpack.c.b16 %v4493, %v4492
      %v4532 = vpack.c.b16 %v4495, %v4494
      %v4533 = vpack.c.b16 %v4497, %v4496
      %v4534 = vpack.c.b16 %v4499, %v4498
      %v4535 = vpack.c.b16 %v4501, %v4500
      %v4536 = vpack.c.b16 %v4503, %v4502
      %v4537 = vpack.c.b16 %v4505, %v4504
      %v4538 = vpack.c.b16 %v4507, %v4506
      %v4539 = vpack.c.b16 %v4509, %v4508
      %v4540 = vpack.c.b16 %v4511, %v4510
      %v4541 = vpack.c.b16 %v4513, %v4512
      %v4542 = vpack.c.b16 %v4515, %v4514
      %v4543 = vpack.c.b16 %v4517, %v4516
      %v4544 = vpack.c.b16 %v4519, %v4518
      %v4545 = vpack.c.b16 %v4521, %v4520
      %4570 = vmatprep.subr.bf16.mxu0 0
      %4571 = vmatpush1.bf16.msra.mxu0 %v4522
      %4572 = vmatprep.subr.bf16.mxu0 0
      %4573 = vmatpush1.bf16.msra.mxu0 %v4523
      %4574 = vmatprep.subr.bf16.mxu0 0
      %4575 = vmatpush1.bf16.msra.mxu0 %v4524
      %4576 = vmatprep.subr.bf16.mxu0 0
      %4577 = vmatpush1.bf16.msra.mxu0 %v4525
      %4578 = vmatprep.subr.bf16.mxu0 0
      %4579 = vmatpush1.bf16.msra.mxu0 %v4526
      %4580 = vmatprep.subr.bf16.mxu0 0
      %4581 = vmatpush1.bf16.msra.mxu0 %v4527
      %4582 = vmatprep.subr.bf16.mxu0 0
      %4583 = vmatpush1.bf16.msra.mxu0 %v4528
      %4584 = vmatprep.subr.bf16.mxu0 0
      %4585 = vmatpush1.bf16.msra.mxu0 %v4529
      %4586 = vmatprep.subr.bf16.mxu0 0
      %4587 = vmatpush1.bf16.msra.mxu0 %v4530
      %4588 = vmatprep.subr.bf16.mxu0 0
      %4589 = vmatpush1.bf16.msra.mxu0 %v4531
      %4590 = vmatprep.subr.bf16.mxu0 0
      %4591 = vmatpush1.bf16.msra.mxu0 %v4532
      %4592 = vmatprep.subr.bf16.mxu0 0
      %4593 = vmatpush1.bf16.msra.mxu0 %v4533
      %4594 = vmatprep.subr.bf16.mxu0 0
      %4595 = vmatpush1.bf16.msra.mxu0 %v4534
      %4596 = vmatprep.subr.bf16.mxu0 0
      %4597 = vmatpush1.bf16.msra.mxu0 %v4535
      %4598 = vmatprep.subr.bf16.mxu0 0
      %4599 = vmatpush1.bf16.msra.mxu0 %v4536
      %4600 = vmatprep.subr.bf16.mxu0 0
      %4601 = vmatpush1.bf16.msra.mxu0 %v4537
      %4602 = vmatprep.mubr.bf16.mxu0 %v4282
      %4603 = vmatmul.mubr.bf16.gmra.mrb[0].mxu0 %v4218
      %v4604 = vpop.f32.mrb[0].mxu0
      %v4605 = vadd.f32 0.0, %v4604
      %v4606 = vpop.f32.mrb[0].mxu0
      %v4607 = vpop.f32.mrb[0].mxu0
      %v4608 = vadd.f32 0.0, %v4607
      %v4609 = vpop.f32.mrb[0].mxu0
      %4610 = vmatprep.mubr.bf16.mxu0 %v4283
      %4611 = vmatmul.mubr.bf16.gmra.mrb[0].mxu0 %v4219
      %v4612 = vpop.f32.mrb[0].mxu0
      %v4613 = vadd.f32 0.0, %v4612
      %v4614 = vpop.f32.mrb[0].mxu0
      %v4615 = vpop.f32.mrb[0].mxu0
      %v4616 = vadd.f32 0.0, %v4615
      %v4617 = vpop.f32.mrb[0].mxu0
      %4618 = vmatprep.mubr.bf16.mxu0 %v4284
      %4619 = vmatmul.mubr.bf16.gmra.mrb[0].mxu0 %v4220
      %v4620 = vpop.f32.mrb[0].mxu0
      %v4621 = vadd.f32 0.0, %v4620
      %v4622 = vpop.f32.mrb[0].mxu0
      %v4623 = vpop.f32.mrb[0].mxu0
      %v4624 = vadd.f32 0.0, %v4623
      %v4625 = vpop.f32.mrb[0].mxu0
      %4626 = vmatprep.mubr.bf16.mxu0 %v4285
      %4627 = vmatmul.mubr.bf16.gmra.mrb[0].mxu0 %v4221
      %v4628 = vpop.f32.mrb[0].mxu0
      %v4629 = vadd.f32 0.0, %v4628
      %v4630 = vpop.f32.mrb[0].mxu0
      %v4631 = vpop.f32.mrb[0].mxu0
      %v4632 = vadd.f32 0.0, %v4631
      %v4633 = vpop.f32.mrb[0].mxu0
      %4634 = vmatprep.mubr.bf16.mxu0 %v4286
      %4635 = vmatmul.mubr.bf16.gmra.mrb[0].mxu0 %v4222
      %v4636 = vpop.f32.mrb[0].mxu0
      %v4637 = vadd.f32 0.0, %v4636
      %v4638 = vpop.f32.mrb[0].mxu0
      %v4639 = vpop.f32.mrb[0].mxu0
      %v4640 = vadd.f32 0.0, %v4639
      %v4641 = vpop.f32.mrb[0].mxu0
      %4642 = vmatprep.mubr.bf16.mxu0 %v4287
      %4643 = vmatmul.mubr.bf16.gmra.mrb[0].mxu0 %v4223
      %v4644 = vpop.f32.mrb[0].mxu0
      %v4645 = vadd.f32 0.0, %v4644
      %v4646 = vpop.f32.mrb[0].mxu0
      %v4647 = vpop.f32.mrb[0].mxu0
      %v4648 = vadd.f32 0.0, %v4647
      %v4649 = vpop.f32.mrb[0].mxu0
      %4650 = vmatprep.mubr.bf16.mxu0 %v4288
      %4651 = vmatmul.mubr.bf16.gmra.mrb[0].mxu0 %v4224
      %v4652 = vpop.f32.mrb[0].mxu0
      %v4653 = vadd.f32 0.0, %v4652
      %v4654 = vpop.f32.mrb[0].mxu0
      %v4655 = vpop.f32.mrb[0].mxu0
      %v4656 = vadd.f32 0.0, %v4655
      %v4657 = vpop.f32.mrb[0].mxu0
      %4658 = vmatprep.mubr.bf16.mxu0 %v4289
      %4659 = vmatmul.mubr.bf16.gmra.mrb[0].mxu0 %v4225
      %v4660 = vpop.f32.mrb[0].mxu0
      %v4661 = vadd.f32 0.0, %v4660
      %v4662 = vpop.f32.mrb[0].mxu0
      %v4663 = vpop.f32.mrb[0].mxu0
      %v4664 = vadd.f32 0.0, %v4663
      %v4665 = vpop.f32.mrb[0].mxu0
      %4666 = vmatprep.mubr.bf16.mxu0 %v4290
      %4667 = vmatmul.mubr.bf16.gmra.mrb[0].mxu0 %v4226
      %v4668 = vpop.f32.mrb[0].mxu0
      %v4669 = vadd.f32 0.0, %v4668
      %v4670 = vpop.f32.mrb[0].mxu0
      %v4671 = vpop.f32.mrb[0].mxu0
      %v4672 = vadd.f32 0.0, %v4671
      %v4673 = vpop.f32.mrb[0].mxu0
      %4674 = vmatprep.mubr.bf16.mxu0 %v4291
      %4675 = vmatmul.mubr.bf16.gmra.mrb[0].mxu0 %v4227
      %v4676 = vpop.f32.mrb[0].mxu0
      %v4677 = vadd.f32 0.0, %v4676
      %v4678 = vpop.f32.mrb[0].mxu0
      %v4679 = vpop.f32.mrb[0].mxu0
      %v4680 = vadd.f32 0.0, %v4679
      %v4681 = vpop.f32.mrb[0].mxu0
      %4682 = vmatprep.mubr.bf16.mxu0 %v4292
      %4683 = vmatmul.mubr.bf16.gmra.mrb[0].mxu0 %v4228
      %v4684 = vpop.f32.mrb[0].mxu0
      %v4685 = vadd.f32 0.0, %v4684
      %v4686 = vpop.f32.mrb[0].mxu0
      %v4687 = vpop.f32.mrb[0].mxu0
      %v4688 = vadd.f32 0.0, %v4687
      %v4689 = vpop.f32.mrb[0].mxu0
      %4690 = vmatprep.mubr.bf16.mxu0 %v4293
      %4691 = vmatmul.mubr.bf16.gmra.mrb[0].mxu0 %v4229
      %v4692 = vpop.f32.mrb[0].mxu0
      %v4693 = vadd.f32 0.0, %v4692
      %v4694 = vpop.f32.mrb[0].mxu0
      %v4695 = vpop.f32.mrb[0].mxu0
      %v4696 = vadd.f32 0.0, %v4695
      %v4697 = vpop.f32.mrb[0].mxu0
      %4698 = vmatprep.mubr.bf16.mxu0 %v4294
      %4699 = vmatmul.mubr.bf16.gmra.mrb[0].mxu0 %v4230
      %v4700 = vpop.f32.mrb[0].mxu0
      %v4701 = vadd.f32 0.0, %v4700
      %v4702 = vpop.f32.mrb[0].mxu0
      %v4703 = vpop.f32.mrb[0].mxu0
      %v4704 = vadd.f32 0.0, %v4703
      %v4705 = vpop.f32.mrb[0].mxu0
      %4706 = vmatprep.mubr.bf16.mxu0 %v4295
      %4707 = vmatmul.mubr.bf16.gmra.mrb[0].mxu0 %v4231
      %v4708 = vpop.f32.mrb[0].mxu0
      %v4709 = vadd.f32 0.0, %v4708
      %v4710 = vpop.f32.mrb[0].mxu0
      %v4711 = vpop.f32.mrb[0].mxu0
      %v4712 = vadd.f32 0.0, %v4711
      %v4713 = vpop.f32.mrb[0].mxu0
      %4714 = vmatprep.mubr.bf16.mxu0 %v4296
      %4715 = vmatmul.mubr.bf16.gmra.mrb[0].mxu0 %v4232
      %v4716 = vpop.f32.mrb[0].mxu0
      %v4717 = vadd.f32 0.0, %v4716
      %v4718 = vpop.f32.mrb[0].mxu0
      %v4719 = vpop.f32.mrb[0].mxu0
      %v4720 = vadd.f32 0.0, %v4719
      %v4721 = vpop.f32.mrb[0].mxu0
      %4722 = vmatprep.mubr.bf16.mxu0 %v4297
      %4723 = vmatmul.mubr.bf16.gmra.mrb[0].mxu0 %v4233
      %v4724 = vpop.f32.mrb[0].mxu0
      %v4725 = vadd.f32 0.0, %v4724
      %v4726 = vpop.f32.mrb[0].mxu0
      %v4727 = vpop.f32.mrb[0].mxu0
      %v4728 = vadd.f32 0.0, %v4727
      %v4729 = vpop.f32.mrb[0].mxu0
      %4730 = vdwg.mxu0
      %4731 = vmatprep.subr.bf16.mxu0 0
      %4732 = vmatpush1.bf16.msra.mxu0 %v4538
      %4733 = vmatprep.subr.bf16.mxu0 0
      %4734 = vmatpush1.bf16.msra.mxu0 %v4539
      %4735 = vmatprep.subr.bf16.mxu0 0
      %4736 = vmatpush1.bf16.msra.mxu0 %v4540
      %4737 = vmatprep.subr.bf16.mxu0 0
      %4738 = vmatpush1.bf16.msra.mxu0 %v4541
      %4739 = vmatprep.subr.bf16.mxu0 0
      %4740 = vmatpush1.bf16.msra.mxu0 %v4542
      %4741 = vmatprep.subr.bf16.mxu0 0
      %4742 = vmatpush1.bf16.msra.mxu0 %v4543
      %4743 = vmatprep.subr.bf16.mxu0 0
      %4744 = vmatpush1.bf16.msra.mxu0 %v4544
      %4745 = vmatprep.subr.bf16.mxu0 0
      %4746 = vmatpush1.bf16.msra.mxu0 %v4545
      %4747 = vmatprep.subr.bf16.mxu0 0
      %4748 = vmatpush1.bf16.msra.mxu0 0
      %4749 = vmatprep.subr.bf16.mxu0 0
      %4750 = vmatpush1.bf16.msra.mxu0 0
      %4751 = vmatprep.subr.bf16.mxu0 0
      %4752 = vmatpush1.bf16.msra.mxu0 0
      %4753 = vmatprep.subr.bf16.mxu0 0
      %4754 = vmatpush1.bf16.msra.mxu0 0
      %4755 = vmatprep.subr.bf16.mxu0 0
      %4756 = vmatpush1.bf16.msra.mxu0 0
      %4757 = vmatprep.subr.bf16.mxu0 0
      %4758 = vmatpush1.bf16.msra.mxu0 0
      %4759 = vmatprep.subr.bf16.mxu0 0
      %4760 = vmatpush1.bf16.msra.mxu0 0
      %4761 = vmatprep.subr.bf16.mxu0 0
      %4762 = vmatpush1.bf16.msra.mxu0 0
      %4763 = vmatprep.mubr.bf16.mxu0 0
      %4764 = vmatmul.mubr.bf16.gmra.mrb[0].mxu0 %v4346
      %v4765 = vpop.f32.mrb[0].mxu0
      %v4766 = vadd.f32 %v4605, %v4765
      %v4767 = vpop.f32.mrb[0].mxu0
      %v4768 = vpop.f32.mrb[0].mxu0
      %v4769 = vadd.f32 %v4608, %v4768
      %v4770 = vpop.f32.mrb[0].mxu0
      %4771 = vmatprep.mubr.bf16.mxu0 0
      %4772 = vmatmul.mubr.bf16.gmra.mrb[0].mxu0 %v4347
      %v4773 = vpop.f32.mrb[0].mxu0
      %v4774 = vadd.f32 %v4613, %v4773
      %v4775 = vpop.f32.mrb[0].mxu0
      %v4776 = vpop.f32.mrb[0].mxu0
      %v4777 = vadd.f32 %v4616, %v4776
      %v4778 = vpop.f32.mrb[0].mxu0
      %4779 = vmatprep.mubr.bf16.mxu0 0
      %4780 = vmatmul.mubr.bf16.gmra.mrb[0].mxu0 %v4348
      %v4781 = vpop.f32.mrb[0].mxu0
      %v4782 = vadd.f32 %v4621, %v4781
      %v4783 = vpop.f32.mrb[0].mxu0
      %v4784 = vpop.f32.mrb[0].mxu0
      %v4785 = vadd.f32 %v4624, %v4784
      %v4786 = vpop.f32.mrb[0].mxu0
      %4787 = vmatprep.mubr.bf16.mxu0 0
      %4788 = vmatmul.mubr.bf16.gmra.mrb[0].mxu0 %v4349
      %v4789 = vpop.f32.mrb[0].mxu0
      %v4790 = vadd.f32 %v4629, %v4789
      %v4791 = vpop.f32.mrb[0].mxu0
      %v4792 = vpop.f32.mrb[0].mxu0
      %v4793 = vadd.f32 %v4632, %v4792
      %v4794 = vpop.f32.mrb[0].mxu0
      %4795 = vmatprep.mubr.bf16.mxu0 0
      %4796 = vmatmul.mubr.bf16.gmra.mrb[0].mxu0 %v4350
      %v4797 = vpop.f32.mrb[0].mxu0
      %v4798 = vadd.f32 %v4637, %v4797
      %v4799 = vpop.f32.mrb[0].mxu0
      %v4800 = vpop.f32.mrb[0].mxu0
      %v4801 = vadd.f32 %v4640, %v4800
      %v4802 = vpop.f32.mrb[0].mxu0
      %4803 = vmatprep.mubr.bf16.mxu0 0
      %4804 = vmatmul.mubr.bf16.gmra.mrb[0].mxu0 %v4351
      %v4805 = vpop.f32.mrb[0].mxu0
      %v4806 = vadd.f32 %v4645, %v4805
      %v4807 = vpop.f32.mrb[0].mxu0
      %v4808 = vpop.f32.mrb[0].mxu0
      %v4809 = vadd.f32 %v4648, %v4808
      %v4810 = vpop.f32.mrb[0].mxu0
      %4811 = vmatprep.mubr.bf16.mxu0 0
      %4812 = vmatmul.mubr.bf16.gmra.mrb[0].mxu0 %v4352
      %v4813 = vpop.f32.mrb[0].mxu0
      %v4814 = vadd.f32 %v4653, %v4813
      %v4815 = vpop.f32.mrb[0].mxu0
      %v4816 = vpop.f32.mrb[0].mxu0
      %v4817 = vadd.f32 %v4656, %v4816
      %v4818 = vpop.f32.mrb[0].mxu0
      %4819 = vmatprep.mubr.bf16.mxu0 0
      %4820 = vmatmul.mubr.bf16.gmra.mrb[0].mxu0 %v4353
      %v4821 = vpop.f32.mrb[0].mxu0
      %v4822 = vadd.f32 %v4661, %v4821
      %v4823 = vpop.f32.mrb[0].mxu0
      %v4824 = vpop.f32.mrb[0].mxu0
      %v4825 = vadd.f32 %v4664, %v4824
      %v4826 = vpop.f32.mrb[0].mxu0
      %4827 = vmatprep.mubr.bf16.mxu0 0
      %4828 = vmatmul.mubr.bf16.gmra.mrb[0].mxu0 %v4354
      %v4829 = vpop.f32.mrb[0].mxu0
      %v4830 = vadd.f32 %v4669, %v4829
      %v4831 = vpop.f32.mrb[0].mxu0
      %v4832 = vpop.f32.mrb[0].mxu0
      %v4833 = vadd.f32 %v4672, %v4832
      %v4834 = vpop.f32.mrb[0].mxu0
      %4835 = vmatprep.mubr.bf16.mxu0 0
      %4836 = vmatmul.mubr.bf16.gmra.mrb[0].mxu0 %v4355
      %v4837 = vpop.f32.mrb[0].mxu0
      %v4838 = vadd.f32 %v4677, %v4837
      %v4839 = vpop.f32.mrb[0].mxu0
      %v4840 = vpop.f32.mrb[0].mxu0
      %v4841 = vadd.f32 %v4680, %v4840
      %v4842 = vpop.f32.mrb[0].mxu0
      %4843 = vmatprep.mubr.bf16.mxu0 0
      %4844 = vmatmul.mubr.bf16.gmra.mrb[0].mxu0 %v4356
      %v4845 = vpop.f32.mrb[0].mxu0
      %v4846 = vadd.f32 %v4685, %v4845
      %v4847 = vpop.f32.mrb[0].mxu0
      %v4848 = vpop.f32.mrb[0].mxu0
      %v4849 = vadd.f32 %v4688, %v4848
      %v4850 = vpop.f32.mrb[0].mxu0
      %4851 = vmatprep.mubr.bf16.mxu0 0
      %4852 = vmatmul.mubr.bf16.gmra.mrb[0].mxu0 %v4357
      %v4853 = vpop.f32.mrb[0].mxu0
      %v4854 = vadd.f32 %v4693, %v4853
      %v4855 = vpop.f32.mrb[0].mxu0
      %v4856 = vpop.f32.mrb[0].mxu0
      %v4857 = vadd.f32 %v4696, %v4856
      %v4858 = vpop.f32.mrb[0].mxu0
      %4859 = vmatprep.mubr.bf16.mxu0 0
      %4860 = vmatmul.mubr.bf16.gmra.mrb[0].mxu0 %v4358
      %v4861 = vpop.f32.mrb[0].mxu0
      %v4862 = vadd.f32 %v4701, %v4861
      %v4863 = vpop.f32.mrb[0].mxu0
      %v4864 = vpop.f32.mrb[0].mxu0
      %v4865 = vadd.f32 %v4704, %v4864
      %v4866 = vpop.f32.mrb[0].mxu0
      %4867 = vmatprep.mubr.bf16.mxu0 0
      %4868 = vmatmul.mubr.bf16.gmra.mrb[0].mxu0 %v4359
      %v4869 = vpop.f32.mrb[0].mxu0
      %v4870 = vadd.f32 %v4709, %v4869
      %v4871 = vpop.f32.mrb[0].mxu0
      %v4872 = vpop.f32.mrb[0].mxu0
      %v4873 = vadd.f32 %v4712, %v4872
      %v4874 = vpop.f32.mrb[0].mxu0
      %4875 = vmatprep.mubr.bf16.mxu0 0
      %4876 = vmatmul.mubr.bf16.gmra.mrb[0].mxu0 %v4360
      %v4877 = vpop.f32.mrb[0].mxu0
      %v4878 = vadd.f32 %v4717, %v4877
      %v4879 = vpop.f32.mrb[0].mxu0
      %v4880 = vpop.f32.mrb[0].mxu0
      %v4881 = vadd.f32 %v4720, %v4880
      %v4882 = vpop.f32.mrb[0].mxu0
      %4883 = vmatprep.mubr.bf16.mxu0 0
      %4884 = vmatmul.mubr.bf16.gmra.mrb[0].mxu0 %v4361
      %v4885 = vpop.f32.mrb[0].mxu0
      %v4886 = vadd.f32 %v4725, %v4885
      %v4887 = vpop.f32.mrb[0].mxu0
      %v4888 = vpop.f32.mrb[0].mxu0
      %v4889 = vadd.f32 %v4728, %v4888
      %v4890 = vpop.f32.mrb[0].mxu0
      %4891 = vdwg.mxu0
      %v4892 = vadd.f32 %v3435, %v4766
      %v4893 = vadd.f32 %v3438, %v4769
      %v4894 = vadd.f32 %v3443, %v4774
      %v4895 = vadd.f32 %v3446, %v4777
      %v4896 = vadd.f32 %v3451, %v4782
      %v4897 = vadd.f32 %v3454, %v4785
      %v4898 = vadd.f32 %v3459, %v4790
      %v4899 = vadd.f32 %v3462, %v4793
      %v4900 = vadd.f32 %v3467, %v4798
      %v4901 = vadd.f32 %v3470, %v4801
      %v4902 = vadd.f32 %v3475, %v4806
      %v4903 = vadd.f32 %v3478, %v4809
      %v4904 = vadd.f32 %v3483, %v4814
      %v4905 = vadd.f32 %v3486, %v4817
      %v4906 = vadd.f32 %v3491, %v4822
      %v4907 = vadd.f32 %v3494, %v4825
      %v4908 = vadd.f32 %v3499, %v4830
      %v4909 = vadd.f32 %v3502, %v4833
      %v4910 = vadd.f32 %v3507, %v4838
      %v4911 = vadd.f32 %v3510, %v4841
      %v4912 = vadd.f32 %v3515, %v4846
      %v4913 = vadd.f32 %v3518, %v4849
      %v4914 = vadd.f32 %v3523, %v4854
      %v4915 = vadd.f32 %v3526, %v4857
      %v4916 = vadd.f32 %v3531, %v4862
      %v4917 = vadd.f32 %v3534, %v4865
      %v4918 = vadd.f32 %v3539, %v4870
      %v4919 = vadd.f32 %v3542, %v4873
      %v4920 = vadd.f32 %v3547, %v4878
      %v4921 = vadd.f32 %v3550, %v4881
      %v4922 = vadd.f32 %v3555, %v4886
      %v4923 = vadd.f32 %v3558, %v4889
      %v4924 = vld [vmem:[%s2] sm:$0x1]
      %v4926 = vlaneseq
      %v4927 = vshrl.u32 %v4926, 7
      %v4928 = vsub.s32 0, %v4927
      %v4929 = vrot.slane %v4924, %v4928
      %v4931 = vadd.f32 %v4892, %v4929
      %v4932 = vadd.f32 %v4893, %v4929
      %v4933 = vadd.f32 %v4894, %v4929
      %v4934 = vadd.f32 %v4895, %v4929
      %v4935 = vadd.f32 %v4896, %v4929
      %v4936 = vadd.f32 %v4897, %v4929
      %v4937 = vadd.f32 %v4898, %v4929
      %v4938 = vadd.f32 %v4899, %v4929
      %v4939 = vadd.f32 %v4900, %v4929
      %v4940 = vadd.f32 %v4901, %v4929
      %v4941 = vadd.f32 %v4902, %v4929
      %v4942 = vadd.f32 %v4903, %v4929
      %v4943 = vadd.f32 %v4904, %v4929
      %v4944 = vadd.f32 %v4905, %v4929
      %v4945 = vadd.f32 %v4906, %v4929
      %v4946 = vadd.f32 %v4907, %v4929
      %v4947 = vadd.f32 %v4908, %v4929
      %v4948 = vadd.f32 %v4909, %v4929
      %v4949 = vadd.f32 %v4910, %v4929
      %v4950 = vadd.f32 %v4911, %v4929
      %v4951 = vadd.f32 %v4912, %v4929
      %v4952 = vadd.f32 %v4913, %v4929
      %v4953 = vadd.f32 %v4914, %v4929
      %v4954 = vadd.f32 %v4915, %v4929
      %v4955 = vadd.f32 %v4916, %v4929
      %v4956 = vadd.f32 %v4917, %v4929
      %v4957 = vadd.f32 %v4918, %v4929
      %v4958 = vadd.f32 %v4919, %v4929
      %v4959 = vadd.f32 %v4920, %v4929
      %v4960 = vadd.f32 %v4921, %v4929
      %v4961 = vadd.f32 %v4922, %v4929
      %v4962 = vadd.f32 %v4923, %v4929
      %v4963 = vadd.f32 %v4931, %v4932
      %v4964 = vadd.f32 %v4963, %v4933
      %v4965 = vadd.f32 %v4964, %v4934
      %v4966 = vadd.f32 %v4965, %v4935
      %v4967 = vadd.f32 %v4966, %v4936
      %v4968 = vadd.f32 %v4967, %v4937
      %v4969 = vadd.f32 %v4968, %v4938
      %v4970 = vadd.f32 %v4969, %v4939
      %v4971 = vadd.f32 %v4970, %v4940
      %v4972 = vadd.f32 %v4971, %v4941
      %v4973 = vadd.f32 %v4972, %v4942
      %v4974 = vadd.f32 %v4973, %v4943
      %v4975 = vadd.f32 %v4974, %v4944
      %v4976 = vadd.f32 %v4975, %v4945
      %v4977 = vadd.f32 %v4976, %v4946
      %v4978 = vadd.f32 %v4977, %v4947
      %v4979 = vadd.f32 %v4978, %v4948
      %v4980 = vadd.f32 %v4979, %v4949
      %v4981 = vadd.f32 %v4980, %v4950
      %v4982 = vadd.f32 %v4981, %v4951
      %v4983 = vadd.f32 %v4982, %v4952
      %v4984 = vadd.f32 %v4983, %v4953
      %v4985 = vadd.f32 %v4984, %v4954
      %v4986 = vadd.f32 %v4985, %v4955
      %v4987 = vadd.f32 %v4986, %v4956
      %v4988 = vadd.f32 %v4987, %v4957
      %v4989 = vadd.f32 %v4988, %v4958
      %v4990 = vadd.f32 %v4989, %v4959
      %v4991 = vadd.f32 %v4990, %v4960
      %v4992 = vadd.f32 %v4991, %v4961
      %v4993 = vadd.f32 %v4992, %v4962
      %v4994 = vrot.slane %v4993, 4
      %v4995 = vadd.f32 %v4993, %v4994
      %v4996 = vrot.slane %v4995, 2
      %v4997 = vadd.f32 %v4995, %v4996
      %v4998 = vrot.slane %v4997, 1
      %v4999 = vadd.f32 %v4997, %v4998
      %5000 = vst [vmem:[%s208] sm:$0x1] %v4999
      %v5001 = vmul.f32 %v4931, %v4931
      %v5002 = vmul.f32 %v4932, %v4932
      %v5003 = vmul.f32 %v4933, %v4933
      %v5004 = vmul.f32 %v4934, %v4934
      %v5005 = vmul.f32 %v4935, %v4935
      %v5006 = vmul.f32 %v4936, %v4936
      %v5007 = vmul.f32 %v4937, %v4937
      %v5008 = vmul.f32 %v4938, %v4938
      %v5009 = vmul.f32 %v4939, %v4939
      %v5010 = vmul.f32 %v4940, %v4940
      %v5011 = vmul.f32 %v4941, %v4941
      %v5012 = vmul.f32 %v4942, %v4942
      %v5013 = vmul.f32 %v4943, %v4943
      %v5014 = vmul.f32 %v4944, %v4944
      %v5015 = vmul.f32 %v4945, %v4945
      %v5016 = vmul.f32 %v4946, %v4946
      %v5017 = vmul.f32 %v4947, %v4947
      %v5018 = vmul.f32 %v4948, %v4948
      %v5019 = vmul.f32 %v4949, %v4949
      %v5020 = vmul.f32 %v4950, %v4950
      %v5021 = vmul.f32 %v4951, %v4951
      %v5022 = vmul.f32 %v4952, %v4952
      %v5023 = vmul.f32 %v4953, %v4953
      %v5024 = vmul.f32 %v4954, %v4954
      %v5025 = vmul.f32 %v4955, %v4955
      %v5026 = vmul.f32 %v4956, %v4956
      %v5027 = vmul.f32 %v4957, %v4957
      %v5028 = vmul.f32 %v4958, %v4958
      %v5029 = vmul.f32 %v4959, %v4959
      %v5030 = vmul.f32 %v4960, %v4960
      %v5031 = vmul.f32 %v4961, %v4961
      %v5032 = vmul.f32 %v4962, %v4962
      %v5033 = vadd.f32 %v5001, %v5002
      %v5034 = vadd.f32 %v5033, %v5003
      %v5035 = vadd.f32 %v5034, %v5004
      %v5036 = vadd.f32 %v5035, %v5005
      %v5037 = vadd.f32 %v5036, %v5006
      %v5038 = vadd.f32 %v5037, %v5007
      %v5039 = vadd.f32 %v5038, %v5008
      %v5040 = vadd.f32 %v5039, %v5009
      %v5041 = vadd.f32 %v5040, %v5010
      %v5042 = vadd.f32 %v5041, %v5011
      %v5043 = vadd.f32 %v5042, %v5012
      %v5044 = vadd.f32 %v5043, %v5013
      %v5045 = vadd.f32 %v5044, %v5014
      %v5046 = vadd.f32 %v5045, %v5015
      %v5047 = vadd.f32 %v5046, %v5016
      %v5048 = vadd.f32 %v5047, %v5017
      %v5049 = vadd.f32 %v5048, %v5018
      %v5050 = vadd.f32 %v5049, %v5019
      %v5051 = vadd.f32 %v5050, %v5020
      %v5052 = vadd.f32 %v5051, %v5021
      %v5053 = vadd.f32 %v5052, %v5022
      %v5054 = vadd.f32 %v5053, %v5023
      %v5055 = vadd.f32 %v5054, %v5024
      %v5056 = vadd.f32 %v5055, %v5025
      %v5057 = vadd.f32 %v5056, %v5026
      %v5058 = vadd.f32 %v5057, %v5027
      %v5059 = vadd.f32 %v5058, %v5028
      %v5060 = vadd.f32 %v5059, %v5029
      %v5061 = vadd.f32 %v5060, %v5030
      %v5062 = vadd.f32 %v5061, %v5031
      %v5063 = vadd.f32 %v5062, %v5032
      %v5064 = vrot.slane %v5063, 4
      %v5065 = vadd.f32 %v5063, %v5064
      %v5066 = vrot.slane %v5065, 2
      %v5067 = vadd.f32 %v5065, %v5066
      %v5068 = vrot.slane %v5067, 1
      %v5069 = vadd.f32 %v5067, %v5068
      %5070 = vst [vmem:[%s208 + $0x1] sm:$0x1] %v5069
      %v5071 = vpack.c.bf16 %v4932, %v4931
      %v5072 = vpack.c.bf16 %v4934, %v4933
      %v5073 = vpack.c.bf16 %v4936, %v4935
      %v5074 = vpack.c.bf16 %v4938, %v4937
      %v5075 = vpack.c.bf16 %v4940, %v4939
      %v5076 = vpack.c.bf16 %v4942, %v4941
      %v5077 = vpack.c.bf16 %v4944, %v4943
      %v5078 = vpack.c.bf16 %v4946, %v4945
      %v5079 = vpack.c.bf16 %v4948, %v4947
      %v5080 = vpack.c.bf16 %v4950, %v4949
      %v5081 = vpack.c.bf16 %v4952, %v4951
      %v5082 = vpack.c.bf16 %v4954, %v4953
      %v5083 = vpack.c.bf16 %v4956, %v4955
      %v5084 = vpack.c.bf16 %v4958, %v4957
      %v5085 = vpack.c.bf16 %v4960, %v4959
      %v5086 = vpack.c.bf16 %v4962, %v4961
      %v5103 = vunpack.c.l.b16 %v5071
      %v5104 = vunpack.c.h.b16 %v5071
      %v5105 = vunpack.c.l.b16 %v5072
      %v5106 = vunpack.c.h.b16 %v5072
      %v5107 = vunpack.c.l.b16 %v5073
      %v5108 = vunpack.c.h.b16 %v5073
      %v5109 = vunpack.c.l.b16 %v5074
      %v5110 = vunpack.c.h.b16 %v5074
      %v5111 = vunpack.c.l.b16 %v5075
      %v5112 = vunpack.c.h.b16 %v5075
      %v5113 = vunpack.c.l.b16 %v5076
      %v5114 = vunpack.c.h.b16 %v5076
      %v5115 = vunpack.c.l.b16 %v5077
      %v5116 = vunpack.c.h.b16 %v5077
      %v5117 = vunpack.c.l.b16 %v5078
      %v5118 = vunpack.c.h.b16 %v5078
      %v5119 = vunpack.c.l.b16 %v5079
      %v5120 = vunpack.c.h.b16 %v5079
      %v5121 = vunpack.c.l.b16 %v5080
      %v5122 = vunpack.c.h.b16 %v5080
      %v5123 = vunpack.c.l.b16 %v5081
      %v5124 = vunpack.c.h.b16 %v5081
      %v5125 = vunpack.c.l.b16 %v5082
      %v5126 = vunpack.c.h.b16 %v5082
      %v5127 = vunpack.c.l.b16 %v5083
      %v5128 = vunpack.c.h.b16 %v5083
      %v5129 = vunpack.c.l.b16 %v5084
      %v5130 = vunpack.c.h.b16 %v5084
      %v5131 = vunpack.c.l.b16 %v5085
      %v5132 = vunpack.c.h.b16 %v5085
      %v5133 = vunpack.c.l.b16 %v5086
      %v5134 = vunpack.c.h.b16 %v5086
      %v5135 = vpack.c.b16 %v5103, %v5103
      %v5136 = vpack.c.b16 %v5104, %v5104
      %v5137 = vpack.c.b16 %v5105, %v5105
      %v5138 = vpack.c.b16 %v5106, %v5106
      %v5139 = vpack.c.b16 %v5107, %v5107
      %v5140 = vpack.c.b16 %v5108, %v5108
      %v5141 = vpack.c.b16 %v5109, %v5109
      %v5142 = vpack.c.b16 %v5110, %v5110
      %v5143 = vpack.c.b16 %v5111, %v5111
      %v5144 = vpack.c.b16 %v5112, %v5112
      %v5145 = vpack.c.b16 %v5113, %v5113
      %v5146 = vpack.c.b16 %v5114, %v5114
      %v5147 = vpack.c.b16 %v5115, %v5115
      %v5148 = vpack.c.b16 %v5116, %v5116
      %v5149 = vpack.c.b16 %v5117, %v5117
      %v5150 = vpack.c.b16 %v5118, %v5118
      %v5151 = vpack.c.b16 %v5119, %v5119
      %v5152 = vpack.c.b16 %v5120, %v5120
      %v5153 = vpack.c.b16 %v5121, %v5121
      %v5154 = vpack.c.b16 %v5122, %v5122
      %v5155 = vpack.c.b16 %v5123, %v5123
      %v5156 = vpack.c.b16 %v5124, %v5124
      %v5157 = vpack.c.b16 %v5125, %v5125
      %v5158 = vpack.c.b16 %v5126, %v5126
      %v5159 = vpack.c.b16 %v5127, %v5127
      %v5160 = vpack.c.b16 %v5128, %v5128
      %v5161 = vpack.c.b16 %v5129, %v5129
      %v5162 = vpack.c.b16 %v5130, %v5130
      %v5163 = vpack.c.b16 %v5131, %v5131
      %v5164 = vpack.c.b16 %v5132, %v5132
      %v5165 = vpack.c.b16 %v5133, %v5133
      %v5166 = vpack.c.b16 %v5134, %v5134
      %5199 = vst [vmem:[%s204] sm:$0xf] %v5135
      %5200 = vst [vmem:[%s204 + $0x4] sm:$0xf] %v5136
      %5201 = vst [vmem:[%s204 + $0x8] sm:$0xf] %v5137
      %5202 = vst [vmem:[%s204 + $0xc] sm:$0xf] %v5138
      %5203 = vst [vmem:[%s204 + $0x10] sm:$0xf] %v5139
      %5204 = vst [vmem:[%s204 + $0x14] sm:$0xf] %v5140
      %5205 = vst [vmem:[%s204 + $0x18] sm:$0xf] %v5141
      %5206 = vst [vmem:[%s204 + $0x1c] sm:$0xf] %v5142
      %5207 = vst [vmem:[%s204 + $0x20] sm:$0xf] %v5143
      %5208 = vst [vmem:[%s204 + $0x24] sm:$0xf] %v5144
      %5209 = vst [vmem:[%s204 + $0x28] sm:$0xf] %v5145
      %5210 = vst [vmem:[%s204 + $0x2c] sm:$0xf] %v5146
      %5211 = vst [vmem:[%s204 + $0x30] sm:$0xf] %v5147
      %5212 = vst [vmem:[%s204 + $0x34] sm:$0xf] %v5148
      %5213 = vst [vmem:[%s204 + $0x38] sm:$0xf] %v5149
      %5214 = vst [vmem:[%s204 + $0x3c] sm:$0xf] %v5150
      %5215 = vst [vmem:[%s204 + $0x40] sm:$0xf] %v5151
      %5216 = vst [vmem:[%s204 + $0x44] sm:$0xf] %v5152
      %5217 = vst [vmem:[%s204 + $0x48] sm:$0xf] %v5153
      %5218 = vst [vmem:[%s204 + $0x4c] sm:$0xf] %v5154
      %5219 = vst [vmem:[%s204 + $0x50] sm:$0xf] %v5155
      %5220 = vst [vmem:[%s204 + $0x54] sm:$0xf] %v5156
      %5221 = vst [vmem:[%s204 + $0x58] sm:$0xf] %v5157
      %5222 = vst [vmem:[%s204 + $0x5c] sm:$0xf] %v5158
      %5223 = vst [vmem:[%s204 + $0x60] sm:$0xf] %v5159
      %5224 = vst [vmem:[%s204 + $0x64] sm:$0xf] %v5160
      %5225 = vst [vmem:[%s204 + $0x68] sm:$0xf] %v5161
      %5226 = vst [vmem:[%s204 + $0x6c] sm:$0xf] %v5162
      %5227 = vst [vmem:[%s204 + $0x70] sm:$0xf] %v5163
      %5228 = vst [vmem:[%s204 + $0x74] sm:$0xf] %v5164
      %5229 = vst [vmem:[%s204 + $0x78] sm:$0xf] %v5165
      %5230 = vst [vmem:[%s204 + $0x7c] sm:$0xf] %v5166
      %p5231 = scmp.lt.s32.totalorder %s16, 1
      %s5232 = scalar_select %p5231, %s16, 1
      %s5233 = smul.addr %s5232, 32
      %s5234 = smul.addr %s5233, 4
      %s5235 = scalar_lea.vmem %s3, %s5234
      %p5236 = scmp.lt.s32.totalorder %s16, 1
      %s5237 = scalar_select %p5236, %s16, 1
      %s5238 = smul.addr %s5237, 2
      %s5239 = scalar_lea.vmem %s4, %s5238
      // Predicated region
      $region33: #{residual_block_nchw.3} parent=31 // pred_check
        %p5240 = pneg %p102
      $region34: #{residual_block_nchw.3} parent=31 // pred_check_branch
        %5242 = sbr.rel (%p5240) target = $region36
      $region35: #{residual_block_nchw.3} parent=31 // pred_region
        _
      $region36: #{residual_block_nchw.3} parent=31 // pred_fallthru
        _
      // Predicated region
      $region37: #{residual_block_nchw.3} parent=31 // pred_check
        %p5243 = pneg %p128
      $region38: #{residual_block_nchw.3} parent=31 // pred_check_branch
        %5245 = sbr.rel (%p5243) target = $region40
      $region39: #{residual_block_nchw.3} parent=31 // pred_region
        _
      $region40: #{residual_block_nchw.3} parent=31 // pred_fallthru
        _
    $region32: #{residual_block_nchw.3} parent=5 // pred_fallthru
      _
    %p5246 = scmp.le.s32.totalorder 2, %s11
    // Predicated region
    $region41: #{residual_block_nchw.3} parent=5 // pred_check
      %p5247 = pneg %p5246
    $region42: #{residual_block_nchw.3} parent=5 // pred_check_branch
      %5249 = sbr.rel (%p5247) target = $region44
    $region43: #{residual_block_nchw.3} parent=5 // pred_region
      %s5250 = ssub.s32 %s11, 2
      // Predicated region
      $region45: #{residual_block_nchw.3} parent=43 // pred_check
        %p5251 = pneg %p108
      $region46: #{residual_block_nchw.3} parent=43 // pred_check_branch
        %5253 = sbr.rel (%p5251) target = $region48
      $region47: #{residual_block_nchw.3} parent=43 // pred_region
        %p5254 = scmp.lt.s32.totalorder %s17, 1
        %s5255 = scalar_select %p5254, %s17, 1
        %s5256 = smul.addr %s5255, 32
        %s5257 = smul.addr %s5256, 4
        %s5258 = scalar_lea.vmem %s3, %s5257
      $region48: #{residual_block_nchw.3} parent=43 // pred_fallthru
        _
      // Predicated region
      $region49: #{residual_block_nchw.3} parent=43 // pred_check
        %p5259 = pneg %p134
      $region50: #{residual_block_nchw.3} parent=43 // pred_check_branch
        %5261 = sbr.rel (%p5259) target = $region52
      $region51: #{residual_block_nchw.3} parent=43 // pred_region
        %p5262 = scmp.lt.s32.totalorder %s17, 1
        %s5263 = scalar_select %p5262, %s17, 1
        %s5264 = smul.addr %s5263, 2
        %s5265 = scalar_lea.vmem %s4, %s5264
      $region52: #{residual_block_nchw.3} parent=43 // pred_fallthru
        _
    $region44: #{residual_block_nchw.3} parent=5 // pred_fallthru
      _
  $region6: #{residual_block_nchw.3} parent=0 // loop_footer
    %s15 = sadd.s32 1, %s11
  $region7: #{residual_block_nchw.3} parent=0 // loop_footer_branch
    %10 = sbr.rel target = $region3
  $region8: #{residual_block_nchw.3} parent=0 // loop_exit
    _

// kernel: residual_block_nchw.4
$region0: #{residual_block_nchw.4}
  #allocation0 [shape = 'u32[]', space=smem, size = 0x4, offset = 0x4, fixed_abs, tag = 'smem constant byte address 0x4 - core index']
  #allocation1 [shape = 'u32[144,128]{1,0:T(1,128)}', space=vmem, size = 0x12000, scoped, tag = 'internal scratch']
  #allocation2 [shape = 'bf16[1,18,18,128]{3,2,1,0:T(8,128)(2,1)}', space=vmem, size = 0x1b000, scoped, tag = 'scratch operand']
  %s0 = inlined_call_operand.vmem [shape: bf16[2,16,16,128], index: 0, kind: input, shape index: {}]
  %s1 = inlined_call_operand.vmem [shape: f32[1,128], index: 1, kind: input, shape index: {}]
  %s2 = inlined_call_operand.vmem [shape: f32[1,128], index: 2, kind: input, shape index: {}]
  %s3 = inlined_call_operand.vmem [shape: bf16[1152,128], index: 3, kind: input, shape index: {}]
  %s4 = inlined_call_operand.vmem [shape: f32[1,128], index: 4, kind: input, shape index: {}]
  %s5 = inlined_call_operand.vmem [shape: bf16[2,16,16,128], index: 5, kind: output, shape index: {0}]
  %s6 = inlined_call_operand.vmem [shape: f32[2,2,128], index: 6, kind: output, shape index: {1}]
  %7 = xla_tuple %s5, %s6
  %s8 = sld [smem:[#allocation0]]
  $region61: #{residual_block_nchw.4} parent=0
    _
  %s10 = ssub.s32 1, %s8
  %s11 = scalar_select 0, %s10, %s8
  loop: start=0, step=1, limit=4
  $region2: #{residual_block_nchw.4} parent=0 // loop_pre_header
    _
  $region3: #{residual_block_nchw.4} parent=0 // loop_header
    %s13 = sphi 0, %s17
    %p14 = scmp.ge.s32.totalorder %s13, 4
    %s23 = sphi 0, %s25
    %s26 = sphi 0, %s23
    %s27 = sphi 0, %s26
    %s43 = sphi 0, %s27
    %s47 = sphi 0, %s47
    %s49 = sphi 0, %s47
    %s50 = sphi 0, %s49
    %s64 = sphi 0, %s50
    %s68 = sphi 0, %s68
    %s70 = sphi 0, %s68
    %s71 = sphi 0, %s70
    %s85 = sphi 0, %s71
    %s89 = sphi 0, %s89
    %s91 = sphi 0, %s89
    %s92 = sphi 0, %s91
    %s106 = sphi 0, %s92
    %s110 = sphi 0, %s110
    %s112 = sphi 0, %s110
    %s113 = sphi 0, %s112
    %s127 = sphi 0, %s113
    %s133 = sphi 0, %s135
    %s136 = sphi 0, %s133
    %s137 = sphi 0, %s136
    %s153 = sphi 0, %s137
    %s159 = sphi 0, %s161
    %s162 = sphi 0, %s159
    %s163 = sphi 0, %s162
    %s179 = sphi 0, %s163
  $region4: #{residual_block_nchw.4} parent=0 // loop_header_branch
    %16 = sbr.rel (%p14) target = $region8
  $region5: #{residual_block_nchw.4} parent=0 // loop_body
    %s18 = ssub.s32 %s13, 1
    %s19 = ssub.s32 %s13, 2
    %s20 = sadd.s32 %s13, 1
    %s21 = ssub.s32 %s13, %s20
    %p22 = scmp.eq.s32.totalorder %s21, 0
    %s24 = sadd.s32 %s23, 1
    %s25 = scalar_select %p22, %s23, %s24
    %p28 = pneg %p22
    %p29 = scmp.eq.s32.totalorder %s13, 1
    %p30 = por %p28, %p29
    %p31 = scmp.ne.s32.totalorder %s23, %s26
    %p32 = scmp.eq.s32.totalorder %s13, 0
    %p33 = por %p31, %p32
    %p34 = scmp.ne.s32.totalorder %s23, %s26
    %p35 = scmp.eq.s32.totalorder %s18, 1
    %p36 = por %p34, %p35
    %p37 = scmp.ne.s32.totalorder %s26, %s27
    %p38 = scmp.eq.s32.totalorder %s18, 0
    %p39 = por %p37, %p38
    %p40 = scmp.ne.s32.totalorder %s26, %s27
    %p41 = scmp.eq.s32.totalorder %s19, 1
    %p42 = por %p40, %p41
    %p44 = scmp.ne.s32.totalorder %s27, %s43
    %p45 = scmp.eq.s32.totalorder %s19, 0
    %p46 = por %p44, %p45
    %s48 = sadd.s32 %s47, 1
    %p51 = scmp.eq.s32.totalorder %s13, 1
    %p52 = scmp.ne.s32.totalorder %s47, %s49
    %p53 = scmp.eq.s32.totalorder %s13, 0
    %p54 = por %p52, %p53
    %p55 = scmp.ne.s32.totalorder %s47, %s49
    %p56 = scmp.eq.s32.totalorder %s18, 1
    %p57 = por %p55, %p56
    %p58 = scmp.ne.s32.totalorder %s49, %s50
    %p59 = scmp.eq.s32.totalorder %s18, 0
    %p60 = por %p58, %p59
    %p61 = scmp.ne.s32.totalorder %s49, %s50
    %p62 = scmp.eq.s32.totalorder %s19, 1
    %p63 = por %p61, %p62
    %p65 = scmp.ne.s32.totalorder %s50, %s64
    %p66 = scmp.eq.s32.totalorder %s19, 0
    %p67 = por %p65, %p66
    %s69 = sadd.s32 %s68, 1
    %p72 = scmp.eq.s32.totalorder %s13, 1
    %p73 = scmp.ne.s32.totalorder %s68, %s70
    %p74 = scmp.eq.s32.totalorder %s13, 0
    %p75 = por %p73, %p74
    %p76 = scmp.ne.s32.totalorder %s68, %s70
    %p77 = scmp.eq.s32.totalorder %s18, 1
    %p78 = por %p76, %p77
    %p79 = scmp.ne.s32.totalorder %s70, %s71
    %p80 = scmp.eq.s32.totalorder %s18, 0
    %p81 = por %p79, %p80
    %p82 = scmp.ne.s32.totalorder %s70, %s71
    %p83 = scmp.eq.s32.totalorder %s19, 1
    %p84 = por %p82, %p83
    %p86 = scmp.ne.s32.totalorder %s71, %s85
    %p87 = scmp.eq.s32.totalorder %s19, 0
    %p88 = por %p86, %p87
    %s90 = sadd.s32 %s89, 1
    %p93 = scmp.eq.s32.totalorder %s13, 1
    %p94 = scmp.ne.s32.totalorder %s89, %s91
    %p95 = scmp.eq.s32.totalorder %s13, 0
    %p96 = por %p94, %p95
    %p97 = scmp.ne.s32.totalorder %s89, %s91
    %p98 = scmp.eq.s32.totalorder %s18, 1
    %p99 = por %p97, %p98
    %p100 = scmp.ne.s32.totalorder %s91, %s92
    %p101 = scmp.eq.s32.totalorder %s18, 0
    %p102 = por %p100, %p101
    %p103 = scmp.ne.s32.totalorder %s91, %s92
    %p104 = scmp.eq.s32.totalorder %s19, 1
    %p105 = por %p103, %p104
    %p107 = scmp.ne.s32.totalorder %s92, %s106
    %p108 = scmp.eq.s32.totalorder %s19, 0
    %p109 = por %p107, %p108
    %s111 = sadd.s32 %s110, 1
    %p114 = scmp.eq.s32.totalorder %s13, 1
    %p115 = scmp.ne.s32.totalorder %s110, %s112
    %p116 = scmp.eq.s32.totalorder %s13, 0
    %p117 = por %p115, %p116
    %p118 = scmp.ne.s32.totalorder %s110, %s112
    %p119 = scmp.eq.s32.totalorder %s18, 1
    %p120 = por %p118, %p119
    %p121 = scmp.ne.s32.totalorder %s112, %s113
    %p122 = scmp.eq.s32.totalorder %s18, 0
    %p123 = por %p121, %p122
    %p124 = scmp.ne.s32.totalorder %s112, %s113
    %p125 = scmp.eq.s32.totalorder %s19, 1
    %p126 = por %p124, %p125
    %p128 = scmp.ne.s32.totalorder %s113, %s127
    %p129 = scmp.eq.s32.totalorder %s19, 0
    %p130 = por %p128, %p129
    %s131 = ssub.s32 %s13, %s20
    %p132 = scmp.eq.s32.totalorder %s131, 0
    %s134 = sadd.s32 %s133, 1
    %s135 = scalar_select %p132, %s133, %s134
    %p138 = pneg %p132
    %p139 = scmp.eq.s32.totalorder %s13, 1
    %p140 = por %p138, %p139
    %p141 = scmp.ne.s32.totalorder %s133, %s136
    %p142 = scmp.eq.s32.totalorder %s13, 0
    %p143 = por %p141, %p142
    %p144 = scmp.ne.s32.totalorder %s133, %s136
    %p145 = scmp.eq.s32.totalorder %s18, 1
    %p146 = por %p144, %p145
    %p147 = scmp.ne.s32.totalorder %s136, %s137
    %p148 = scmp.eq.s32.totalorder %s18, 0
    %p149 = por %p147, %p148
    %p150 = scmp.ne.s32.totalorder %s136, %s137
    %p151 = scmp.eq.s32.totalorder %s19, 1
    %p152 = por %p150, %p151
    %p154 = scmp.ne.s32.totalorder %s137, %s153
    %p155 = scmp.eq.s32.totalorder %s19, 0
    %p156 = por %p154, %p155
    %s157 = ssub.s32 %s13, %s20
    %p158 = scmp.eq.s32.totalorder %s157, 0
    %s160 = sadd.s32 %s159, 1
    %s161 = scalar_select %p158, %s159, %s160
    %p164 = pneg %p158
    %p165 = scmp.eq.s32.totalorder %s13, 1
    %p166 = por %p164, %p165
    %p167 = scmp.ne.s32.totalorder %s159, %s162
    %p168 = scmp.eq.s32.totalorder %s13, 0
    %p169 = por %p167, %p168
    %p170 = scmp.ne.s32.totalorder %s159, %s162
    %p171 = scmp.eq.s32.totalorder %s18, 1
    %p172 = por %p170, %p171
    %p173 = scmp.ne.s32.totalorder %s162, %s163
    %p174 = scmp.eq.s32.totalorder %s18, 0
    %p175 = por %p173, %p174
    %p176 = scmp.ne.s32.totalorder %s162, %s163
    %p177 = scmp.eq.s32.totalorder %s19, 1
    %p178 = por %p176, %p177
    %p180 = scmp.ne.s32.totalorder %s163, %s179
    %p181 = scmp.eq.s32.totalorder %s19, 0
    %p182 = por %p180, %p181
    %p183 = scmp.le.s32.totalorder 1, %s13
    %p184 = scmp.lt.s32.totalorder %s13, 3
    %p185 = pnand %p183, %p184
    %p186 = pneg %p185
    // Predicated region
    $region9: #{residual_block_nchw.4} parent=5 // pred_check
      _
    $region10: #{residual_block_nchw.4} parent=5 // pred_check_branch
      %188 = sbr.rel (%p185) target = $region12
    $region11: #{residual_block_nchw.4} parent=5 // pred_region
      %s189 = ssub.s32 %s13, 1
      // Predicated region
      $region13: #{residual_block_nchw.4} parent=11 // pred_check
        %p190 = pneg %p60
      $region14: #{residual_block_nchw.4} parent=11 // pred_check_branch
        %192 = sbr.rel (%p190) target = $region16
      $region15: #{residual_block_nchw.4} parent=11 // pred_region
        _
      $region16: #{residual_block_nchw.4} parent=11 // pred_fallthru
        _
      // Predicated region
      $region17: #{residual_block_nchw.4} parent=11 // pred_check
        %p193 = pneg %p81
      $region18: #{residual_block_nchw.4} parent=11 // pred_check_branch
        %195 = sbr.rel (%p193) target = $region20
      $region19: #{residual_block_nchw.4} parent=11 // pred_region
        _
      $region20: #{residual_block_nchw.4} parent=11 // pred_fallthru
        _
      // Predicated region
      $region21: #{residual_block_nchw.4} parent=11 // pred_check
        %p196 = pneg %p102
      $region22: #{residual_block_nchw.4} parent=11 // pred_check_branch
        %198 = sbr.rel (%p196) target = $region24
      $region23: #{residual_block_nchw.4} parent=11 // pred_region
        _
      $region24: #{residual_block_nchw.4} parent=11 // pred_fallthru
        _
      // Predicated region
      $region25: #{residual_block_nchw.4} parent=11 // pred_check
        %p199 = pneg %p123
      $region26: #{residual_block_nchw.4} parent=11 // pred_check_branch
        %201 = sbr.rel (%p199) target = $region28
      $region27: #{residual_block_nchw.4} parent=11 // pred_region
        _
      $region28: #{residual_block_nchw.4} parent=11 // pred_fallthru
        _
    $region12: #{residual_block_nchw.4} parent=5 // pred_fallthru
      _
    %p202 = scmp.lt.s32.totalorder %s13, 2
    // Predicated region
    $region29: #{residual_block_nchw.4} parent=5 // pred_check
      %p203 = pneg %p202
    $region30: #{residual_block_nchw.4} parent=5 // pred_check_branch
      %205 = sbr.rel (%p203) target = $region32
    $region31: #{residual_block_nchw.4} parent=5 // pred_region
      // Predicated region
      $region33: #{residual_block_nchw.4} parent=31 // pred_check
        %p206 = pneg %p33
      $region34: #{residual_block_nchw.4} parent=31 // pred_check_branch
        %208 = sbr.rel (%p206) target = $region36
      $region35: #{residual_block_nchw.4} parent=31 // pred_region
        %p209 = scmp.lt.s32.totalorder %s13, 1
        %s210 = scalar_select %p209, %s13, 1
        %s211 = smul.addr %s210, 32
        %s212 = smul.addr %s211, 4
        %s213 = scalar_lea.vmem %s0, %s212
      $region36: #{residual_block_nchw.4} parent=31 // pred_fallthru
        _
    $region32: #{residual_block_nchw.4} parent=5 // pred_fallthru
      _
    %p214 = scmp.le.s32.totalorder 1, %s13
    %p215 = scmp.lt.s32.totalorder %s13, 3
    %p216 = pnand %p214, %p215
    %p217 = pneg %p216
    // Predicated region
    $region37: #{residual_block_nchw.4} parent=5 // pred_check
      _
    $region38: #{residual_block_nchw.4} parent=5 // pred_check_branch
      %219 = sbr.rel (%p216) target = $region40
    $region39: #{residual_block_nchw.4} parent=5 // pred_region
      %s220 = ssub.s32 %s13, 1
      %p221 = scmp.lt.s32.totalorder %s18, 1
      %s222 = scalar_select %p221, %s18, 1
      %s223 = smul.addr %s222, 32
      %s224 = smul.addr %s223, 4
      %s225 = scalar_lea.vmem %s0, %s224
      %p226 = pneg %p39
      %p227 = pneg %p36
      %p228 = pneg %p60
      %p229 = pneg %p57
      %p230 = pneg %p81
      %p231 = pneg %p78
      %p232 = pneg %p102
      %p233 = pneg %p99
      %p234 = pneg %p123
      %p235 = pneg %p120
      %p236 = pneg %p149
      %p237 = pneg %p146
      %p238 = scmp.lt.s32.totalorder %s18, 1
      %s239 = scalar_select %p238, %s18, 1
      %s240 = smul.addr %s239, 32
      %s241 = smul.addr %s240, 4
      %s242 = scalar_lea.vmem %s5, %s241
      %p243 = pneg %p175
      %p244 = pneg %p172
      %p245 = scmp.lt.s32.totalorder %s18, 1
      %s246 = scalar_select %p245, %s18, 1
      %s247 = smul.addr %s246, 2
      %s248 = scalar_lea.vmem %s6, %s247
      %p249 = scmp.lt.s32.totalorder %s18, 1
      %s250 = scalar_select %p249, %s18, 1
      %s251 = smul.addr %s250, 32
      %s252 = smul.addr %s251, 4
      %s253 = scalar_lea.vmem %s0, %s252
      %p254 = scmp.lt.s32.totalorder %s18, 1
      %s255 = scalar_select %p254, %s18, 1
      %s256 = smul.addr %s255, 32
      %s257 = smul.addr %s256, 4
      %s258 = scalar_lea.vmem %s5, %s257
      %p259 = scmp.lt.s32.totalorder %s18, 1
      %s260 = scalar_select %p259, %s18, 1
      %s261 = smul.addr %s260, 2
      %s262 = scalar_lea.vmem %s6, %s261
      %v264 = vld [vmem:[%s253] sm:$0xf]
      %v265 = vld [vmem:[%s253 + $0x4] sm:$0xf]
      %v266 = vld [vmem:[%s253 + $0x8] sm:$0xf]
      %v267 = vld [vmem:[%s253 + $0xc] sm:$0xf]
      %v268 = vld [vmem:[%s253 + $0x10] sm:$0xf]
      %v269 = vld [vmem:[%s253 + $0x14] sm:$0xf]
      %v270 = vld [vmem:[%s253 + $0x18] sm:$0xf]
      %v271 = vld [vmem:[%s253 + $0x1c] sm:$0xf]
      %v272 = vld [vmem:[%s253 + $0x20] sm:$0xf]
      %v273 = vld [vmem:[%s253 + $0x24] sm:$0xf]
      %v274 = vld [vmem:[%s253 + $0x28] sm:$0xf]
      %v275 = vld [vmem:[%s253 + $0x2c] sm:$0xf]
      %v276 = vld [vmem:[%s253 + $0x30] sm:$0xf]
      %v277 = vld [vmem:[%s253 + $0x34] sm:$0xf]
      %v278 = vld [vmem:[%s253 + $0x38] sm:$0xf]
      %v279 = vld [vmem:[%s253 + $0x3c] sm:$0xf]
      %v280 = vld [vmem:[%s253 + $0x40] sm:$0xf]
      %v281 = vld [vmem:[%s253 + $0x44] sm:$0xf]
      %v282 = vld [vmem:[%s253 + $0x48] sm:$0xf]
      %v283 = vld [vmem:[%s253 + $0x4c] sm:$0xf]
      %v284 = vld [vmem:[%s253 + $0x50] sm:$0xf]
      %v285 = vld [vmem:[%s253 + $0x54] sm:$0xf]
      %v286 = vld [vmem:[%s253 + $0x58] sm:$0xf]
      %v287 = vld [vmem:[%s253 + $0x5c] sm:$0xf]
      %v288 = vld [vmem:[%s253 + $0x60] sm:$0xf]
      %v289 = vld [vmem:[%s253 + $0x64] sm:$0xf]
      %v290 = vld [vmem:[%s253 + $0x68] sm:$0xf]
      %v291 = vld [vmem:[%s253 + $0x6c] sm:$0xf]
      %v292 = vld [vmem:[%s253 + $0x70] sm:$0xf]
      %v293 = vld [vmem:[%s253 + $0x74] sm:$0xf]
      %v294 = vld [vmem:[%s253 + $0x78] sm:$0xf]
      %v295 = vld [vmem:[%s253 + $0x7c] sm:$0xf]
      %v296 = vunpack.c.l.bf16 %v264
      %v297 = vunpack.c.l.bf16 %v265
      %v298 = vunpack.c.l.bf16 %v266
      %v299 = vunpack.c.l.bf16 %v267
      %v300 = vunpack.c.l.bf16 %v268
      %v301 = vunpack.c.l.bf16 %v269
      %v302 = vunpack.c.l.bf16 %v270
      %v303 = vunpack.c.l.bf16 %v271
      %v304 = vunpack.c.l.bf16 %v272
      %v305 = vunpack.c.l.bf16 %v273
      %v306 = vunpack.c.l.bf16 %v274
      %v307 = vunpack.c.l.bf16 %v275
      %v308 = vunpack.c.l.bf16 %v276
      %v309 = vunpack.c.l.bf16 %v277
      %v310 = vunpack.c.l.bf16 %v278
      %v311 = vunpack.c.l.bf16 %v279
      %v312 = vunpack.c.l.bf16 %v280
      %v313 = vunpack.c.l.bf16 %v281
      %v314 = vunpack.c.l.bf16 %v282
      %v315 = vunpack.c.l.bf16 %v283
      %v316 = vunpack.c.l.bf16 %v284
      %v317 = vunpack.c.l.bf16 %v285
      %v318 = vunpack.c.l.bf16 %v286
      %v319 = vunpack.c.l.bf16 %v287
      %v320 = vunpack.c.l.bf16 %v288
      %v321 = vunpack.c.l.bf16 %v289
      %v322 = vunpack.c.l.bf16 %v290
      %v323 = vunpack.c.l.bf16 %v291
      %v324 = vunpack.c.l.bf16 %v292
      %v325 = vunpack.c.l.bf16 %v293
      %v326 = vunpack.c.l.bf16 %v294
      %v327 = vunpack.c.l.bf16 %v295
      %v328 = vld [vmem:[%s1] sm:$0x1]
      %v330 = vlaneseq
      %v331 = vshrl.u32 %v330, 7
      %v332 = vsub.s32 0, %v331
      %v333 = vrot.slane %v328, %v332
      %v335 = vmul.f32 %v296, %v333
      %v336 = vmul.f32 %v297, %v333
      %v337 = vmul.f32 %v298, %v333
      %v338 = vmul.f32 %v299, %v333
      %v339 = vmul.f32 %v300, %v333
      %v340 = vmul.f32 %v301, %v333
      %v341 = vmul.f32 %v302, %v333
      %v342 = vmul.f32 %v303, %v333
      %v343 = vmul.f32 %v304, %v333
      %v344 = vmul.f32 %v305, %v333
      %v345 = vmul.f32 %v306, %v333
      %v346 = vmul.f32 %v307, %v333
      %v347 = vmul.f32 %v308, %v333
      %v348 = vmul.f32 %v309, %v333
      %v349 = vmul.f32 %v310, %v333
      %v350 = vmul.f32 %v311, %v333
      %v351 = vmul.f32 %v312, %v333
      %v352 = vmul.f32 %v313, %v333
      %v353 = vmul.f32 %v314, %v333
      %v354 = vmul.f32 %v315, %v333
      %v355 = vmul.f32 %v316, %v333
      %v356 = vmul.f32 %v317, %v333
      %v357 = vmul.f32 %v318, %v333
      %v358 = vmul.f32 %v319, %v333
      %v359 = vmul.f32 %v320, %v333
      %v360 = vmul.f32 %v321, %v333
      %v361 = vmul.f32 %v322, %v333
      %v362 = vmul.f32 %v323, %v333
      %v363 = vmul.f32 %v324, %v333
      %v364 = vmul.f32 %v325, %v333
      %v365 = vmul.f32 %v326, %v333
      %v366 = vmul.f32 %v327, %v333
      %v367 = vld [vmem:[%s2] sm:$0x1]
      %v369 = vlaneseq
      %v370 = vshrl.u32 %v369, 7
      %v371 = vsub.s32 0, %v370
      %v372 = vrot.slane %v367, %v371
      %v374 = vadd.f32 %v335, %v372
      %v375 = vadd.f32 %v336, %v372
      %v376 = vadd.f32 %v337, %v372
      %v377 = vadd.f32 %v338, %v372
      %v378 = vadd.f32 %v339, %v372
      %v379 = vadd.f32 %v340, %v372
      %v380 = vadd.f32 %v341, %v372
      %v381 = vadd.f32 %v342, %v372
      %v382 = vadd.f32 %v343, %v372
      %v383 = vadd.f32 %v344, %v372
      %v384 = vadd.f32 %v345, %v372
      %v385 = vadd.f32 %v346, %v372
      %v386 = vadd.f32 %v347, %v372
      %v387 = vadd.f32 %v348, %v372
      %v388 = vadd.f32 %v349, %v372
      %v389 = vadd.f32 %v350, %v372
      %v390 = vadd.f32 %v351, %v372
      %v391 = vadd.f32 %v352, %v372
      %v392 = vadd.f32 %v353, %v372
      %v393 = vadd.f32 %v354, %v372
      %v394 = vadd.f32 %v355, %v372
      %v395 = vadd.f32 %v356, %v372
      %v396 = vadd.f32 %v357, %v372
      %v397 = vadd.f32 %v358, %v372
      %v398 = vadd.f32 %v359, %v372
      %v399 = vadd.f32 %v360, %v372
      %v400 = vadd.f32 %v361, %v372
      %v401 = vadd.f32 %v362, %v372
      %v402 = vadd.f32 %v363, %v372
      %v403 = vadd.f32 %v364, %v372
      %v404 = vadd.f32 %v365, %v372
      %v405 = vadd.f32 %v366, %v372
      %v406 = vmax.f32 %v374, 0.0
      %v407 = vmax.f32 %v375, 0.0
      %v408 = vmax.f32 %v376, 0.0
      %v409 = vmax.f32 %v377, 0.0
      %v410 = vmax.f32 %v378, 0.0
      %v411 = vmax.f32 %v379, 0.0
      %v412 = vmax.f32 %v380, 0.0
      %v413 = vmax.f32 %v381, 0.0
      %v414 = vmax.f32 %v382, 0.0
      %v415 = vmax.f32 %v383, 0.0
      %v416 = vmax.f32 %v384, 0.0
      %v417 = vmax.f32 %v385, 0.0
      %v418 = vmax.f32 %v386, 0.0
      %v419 = vmax.f32 %v387, 0.0
      %v420 = vmax.f32 %v388, 0.0
      %v421 = vmax.f32 %v389, 0.0
      %v422 = vmax.f32 %v390, 0.0
      %v423 = vmax.f32 %v391, 0.0
      %v424 = vmax.f32 %v392, 0.0
      %v425 = vmax.f32 %v393, 0.0
      %v426 = vmax.f32 %v394, 0.0
      %v427 = vmax.f32 %v395, 0.0
      %v428 = vmax.f32 %v396, 0.0
      %v429 = vmax.f32 %v397, 0.0
      %v430 = vmax.f32 %v398, 0.0
      %v431 = vmax.f32 %v399, 0.0
      %v432 = vmax.f32 %v400, 0.0
      %v433 = vmax.f32 %v401, 0.0
      %v434 = vmax.f32 %v402, 0.0
      %v435 = vmax.f32 %v403, 0.0
      %v436 = vmax.f32 %v404, 0.0
      %v437 = vmax.f32 %v405, 0.0
      %v438 = vpack.c.bf16 %v407, %v406
      %v439 = vpack.c.bf16 %v409, %v408
      %v440 = vpack.c.bf16 %v411, %v410
      %v441 = vpack.c.bf16 %v413, %v412
      %v442 = vpack.c.bf16 %v415, %v414
      %v443 = vpack.c.bf16 %v417, %v416
      %v444 = vpack.c.bf16 %v419, %v418
      %v445 = vpack.c.bf16 %v421, %v420
      %v446 = vpack.c.bf16 %v423, %v422
      %v447 = vpack.c.bf16 %v425, %v424
      %v448 = vpack.c.bf16 %v427, %v426
      %v449 = vpack.c.bf16 %v429, %v428
      %v450 = vpack.c.bf16 %v431, %v430
      %v451 = vpack.c.bf16 %v433, %v432
      %v452 = vpack.c.bf16 %v435, %v434
      %v453 = vpack.c.bf16 %v437, %v436
      %454 = vst [vmem:[#allocation2] sm:$0xf] 0
      %455 = vst [vmem:[#allocation2 + $0x4] sm:$0xf] 0
      %456 = vst [vmem:[#allocation2 + $0x8] sm:$0x1] 0
      %s457 = scalar_lea.vmem [#allocation2], 204
      %458 = vst [vmem:[%s457] sm:$0xf] 0
      %459 = vst [vmem:[%s457 + $0x4] sm:$0xf] 0
      %460 = vst [vmem:[%s457 + $0x8] sm:$0x1] 0
      %vm461 = vcmask 1040384
      %vm462 = vsmask.f32 256
      %vm463 = vmand %vm461, %vm462
      %v464 = vld [vmem:[#allocation2] sm:$0x1]
      %v465 = vsel %vm463, 0, %v464
      %466 = vst [vmem:[#allocation2] sm:$0x1] %v465
      %v467 = vld [vmem:[#allocation2 + $0xc] sm:$0x1]
      %v468 = vsel %vm463, 0, %v467
      %469 = vst [vmem:[#allocation2 + $0xc] sm:$0x1] %v468
      %v470 = vld [vmem:[#allocation2 + $0x18] sm:$0x1]
      %v471 = vsel %vm463, 0, %v470
      %472 = vst [vmem:[#allocation2 + $0x18] sm:$0x1] %v471
      %v473 = vld [vmem:[#allocation2 + $0x24] sm:$0x1]
      %v474 = vsel %vm463, 0, %v473
      %475 = vst [vmem:[#allocation2 + $0x24] sm:$0x1] %v474
      %v476 = vld [vmem:[#allocation2 + $0x30] sm:$0x1]
      %v477 = vsel %vm463, 0, %v476
      %478 = vst [vmem:[#allocation2 + $0x30] sm:$0x1] %v477
      %v479 = vld [vmem:[#allocation2 + $0x3c] sm:$0x1]
      %v480 = vsel %vm463, 0, %v479
      %481 = vst [vmem:[#allocation2 + $0x3c] sm:$0x1] %v480
      %v482 = vld [vmem:[#allocation2 + $0x48] sm:$0x1]
      %v483 = vsel %vm463, 0, %v482
      %484 = vst [vmem:[#allocation2 + $0x48] sm:$0x1] %v483
      %v485 = vld [vmem:[#allocation2 + $0x54] sm:$0x1]
      %v486 = vsel %vm463, 0, %v485
      %487 = vst [vmem:[#allocation2 + $0x54] sm:$0x1] %v486
      %v488 = vld [vmem:[#allocation2 + $0x60] sm:$0x1]
      %v489 = vsel %vm463, 0, %v488
      %490 = vst [vmem:[#allocation2 + $0x60] sm:$0x1] %v489
      %v491 = vld [vmem:[#allocation2 + $0x6c] sm:$0x1]
      %v492 = vsel %vm463, 0, %v491
      %493 = vst [vmem:[#allocation2 + $0x6c] sm:$0x1] %v492
      %v494 = vld [vmem:[#allocation2 + $0x78] sm:$0x1]
      %v495 = vsel %vm463, 0, %v494
      %496 = vst [vmem:[#allocation2 + $0x78] sm:$0x1] %v495
      %v497 = vld [vmem:[#allocation2 + $0x84] sm:$0x1]
      %v498 = vsel %vm463, 0, %v497
      %499 = vst [vmem:[#allocation2 + $0x84] sm:$0x1] %v498
      %v500 = vld [vmem:[#allocation2 + $0x90] sm:$0x1]
      %v501 = vsel %vm463, 0, %v500
      %502 = vst [vmem:[#allocation2 + $0x90] sm:$0x1] %v501
      %v503 = vld [vmem:[#allocation2 + $0x9c] sm:$0x1]
      %v504 = vsel %vm463, 0, %v503
      %505 = vst [vmem:[#allocation2 + $0x9c] sm:$0x1] %v504
      %v506 = vld [vmem:[#allocation2 + $0xa8] sm:$0x1]
      %v507 = vsel %vm463, 0, %v506
      %508 = vst [vmem:[#allocation2 + $0xa8] sm:$0x1] %v507
      %v509 = vld [vmem:[#allocation2 + $0xb4] sm:$0x1]
      %v510 = vsel %vm463, 0, %v509
      %511 = vst [vmem:[#allocation2 + $0xb4] sm:$0x1] %v510
      %v512 = vld [vmem:[#allocation2 + $0xc0] sm:$0x1]
      %v513 = vsel %vm463, 0, %v512
      %514 = vst [vmem:[#allocation2 + $0xc0] sm:$0x1] %v513
      %v515 = vld [vmem:[#allocation2 + $0xcc] sm:$0x1]
      %v516 = vsel %vm463, 0, %v515
      %517 = vst [vmem:[#allocation2 + $0xcc] sm:$0x1] %v516
      %vm518 = vsmask.f32 7938
      %vm519 = vmand %vm461, %vm518
      %v520 = vld [vmem:[#allocation2 + $0x8] sm:$0x1]
      %v521 = vsel %vm519, 0, %v520
      %522 = vst [vmem:[#allocation2 + $0x8] sm:$0x1] %v521
      %v523 = vld [vmem:[#allocation2 + $0x14] sm:$0x1]
      %v524 = vsel %vm519, 0, %v523
      %525 = vst [vmem:[#allocation2 + $0x14] sm:$0x1] %v524
      %v526 = vld [vmem:[#allocation2 + $0x20] sm:$0x1]
      %v527 = vsel %vm519, 0, %v526
      %528 = vst [vmem:[#allocation2 + $0x20] sm:$0x1] %v527
      %v529 = vld [vmem:[#allocation2 + $0x2c] sm:$0x1]
      %v530 = vsel %vm519, 0, %v529
      %531 = vst [vmem:[#allocation2 + $0x2c] sm:$0x1] %v530
      %v532 = vld [vmem:[#allocation2 + $0x38] sm:$0x1]
      %v533 = vsel %vm519, 0, %v532
      %534 = vst [vmem:[#allocation2 + $0x38] sm:$0x1] %v533
      %v535 = vld [vmem:[#allocation2 + $0x44] sm:$0x1]
      %v536 = vsel %vm519, 0, %v535
      %537 = vst [vmem:[#allocation2 + $0x44] sm:$0x1] %v536
      %v538 = vld [vmem:[#allocation2 + $0x50] sm:$0x1]
      %v539 = vsel %vm519, 0, %v538
      %540 = vst [vmem:[#allocation2 + $0x50] sm:$0x1] %v539
      %v541 = vld [vmem:[#allocation2 + $0x5c] sm:$0x1]
      %v542 = vsel %vm519, 0, %v541
      %543 = vst [vmem:[#allocation2 + $0x5c] sm:$0x1] %v542
      %v544 = vld [vmem:[#allocation2 + $0x68] sm:$0x1]
      %v545 = vsel %vm519, 0, %v544
      %546 = vst [vmem:[#allocation2 + $0x68] sm:$0x1] %v545
      %v547 = vld [vmem:[#allocation2 + $0x74] sm:$0x1]
      %v548 = vsel %vm519, 0, %v547
      %549 = vst [vmem:[#allocation2 + $0x74] sm:$0x1] %v548
      %v550 = vld [vmem:[#allocation2 + $0x80] sm:$0x1]
      %v551 = vsel %vm519, 0, %v550
      %552 = vst [vmem:[#allocation2 + $0x80] sm:$0x1] %v551
      %v553 = vld [vmem:[#allocation2 + $0x8c] sm:$0x1]
      %v554 = vsel %vm519, 0, %v553
      %555 = vst [vmem:[#allocation2 + $0x8c] sm:$0x1] %v554
      %v556 = vld [vmem:[#allocation2 + $0x98] sm:$0x1]
      %v557 = vsel %vm519, 0, %v556
      %558 = vst [vmem:[#allocation2 + $0x98] sm:$0x1] %v557
      %v559 = vld [vmem:[#allocation2 + $0xa4] sm:$0x1]
      %v560 = vsel %vm519, 0, %v559
      %561 = vst [vmem:[#allocation2 + $0xa4] sm:$0x1] %v560
      %v562 = vld [vmem:[#allocation2 + $0xb0] sm:$0x1]
      %v563 = vsel %vm519, 0, %v562
      %564 = vst [vmem:[#allocation2 + $0xb0] sm:$0x1] %v563
      %v565 = vld [vmem:[#allocation2 + $0xbc] sm:$0x1]
      %v566 = vsel %vm519, 0, %v565
      %567 = vst [vmem:[#allocation2 + $0xbc] sm:$0x1] %v566
      %v568 = vld [vmem:[#allocation2 + $0xc8] sm:$0x1]
      %v569 = vsel %vm519, 0, %v568
      %570 = vst [vmem:[#allocation2 + $0xc8] sm:$0x1] %v569
      %v571 = vld [vmem:[#allocation2 + $0xd4] sm:$0x1]
      %v572 = vsel %vm519, 0, %v571
      %573 = vst [vmem:[#allocation2 + $0xd4] sm:$0x1] %v572
      %v590 = vunpack.c.l.b16 %v438
      %v591 = vunpack.c.h.b16 %v438
      %v592 = vunpack.c.l.b16 %v439
      %v593 = vunpack.c.h.b16 %v439
      %v594 = vunpack.c.l.b16 %v440
      %v595 = vunpack.c.h.b16 %v440
      %v596 = vunpack.c.l.b16 %v441
      %v597 = vunpack.c.h.b16 %v441
      %v598 = vunpack.c.l.b16 %v442
      %v599 = vunpack.c.h.b16 %v442
      %v600 = vunpack.c.l.b16 %v443
      %v601 = vunpack.c.h.b16 %v443
      %v602 = vunpack.c.l.b16 %v444
      %v603 = vunpack.c.h.b16 %v444
      %v604 = vunpack.c.l.b16 %v445
      %v605 = vunpack.c.h.b16 %v445
      %v606 = vunpack.c.l.b16 %v446
      %v607 = vunpack.c.h.b16 %v446
      %v608 = vunpack.c.l.b16 %v447
      %v609 = vunpack.c.h.b16 %v447
      %v610 = vunpack.c.l.b16 %v448
      %v611 = vunpack.c.h.b16 %v448
      %v612 = vunpack.c.l.b16 %v449
      %v613 = vunpack.c.h.b16 %v449
      %v614 = vunpack.c.l.b16 %v450
      %v615 = vunpack.c.h.b16 %v450
      %v616 = vunpack.c.l.b16 %v451
      %v617 = vunpack.c.h.b16 %v451
      %v618 = vunpack.c.l.b16 %v452
      %v619 = vunpack.c.h.b16 %v452
      %v620 = vunpack.c.l.b16 %v453
      %v621 = vunpack.c.h.b16 %v453
      %v622 = vpack.c.b16 %v590, %v590
      %v623 = vpack.c.b16 %v591, %v591
      %v624 = vpack.c.b16 %v592, %v592
      %v625 = vpack.c.b16 %v593, %v593
      %v626 = vpack.c.b16 %v594, %v594
      %v627 = vpack.c.b16 %v595, %v595
      %v628 = vpack.c.b16 %v596, %v596
      %v629 = vpack.c.b16 %v597, %v597
      %v630 = vpack.c.b16 %v598, %v598
      %v631 = vpack.c.b16 %v599, %v599
      %v632 = vpack.c.b16 %v600, %v600
      %v633 = vpack.c.b16 %v601, %v601
      %v634 = vpack.c.b16 %v602, %v602
      %v635 = vpack.c.b16 %v603, %v603
      %v636 = vpack.c.b16 %v604, %v604
      %v637 = vpack.c.b16 %v605, %v605
      %v638 = vpack.c.b16 %v606, %v606
      %v639 = vpack.c.b16 %v607, %v607
      %v640 = vpack.c.b16 %v608, %v608
      %v641 = vpack.c.b16 %v609, %v609
      %v642 = vpack.c.b16 %v610, %v610
      %v643 = vpack.c.b16 %v611, %v611
      %v644 = vpack.c.b16 %v612, %v612
      %v645 = vpack.c.b16 %v613, %v613
      %v646 = vpack.c.b16 %v614, %v614
      %v647 = vpack.c.b16 %v615, %v615
      %v648 = vpack.c.b16 %v616, %v616
      %v649 = vpack.c.b16 %v617, %v617
      %v650 = vpack.c.b16 %v618, %v618
      %v651 = vpack.c.b16 %v619, %v619
      %v652 = vpack.c.b16 %v620, %v620
      %v653 = vpack.c.b16 %v621, %v621
      %vm654 = vsmask.f32 4368
      %vm655 = vmor %vm462, %vm654
      %v657 = vshrl.u32 %v622, 16
      %v659 = vrot.slane %v657, 7
      %v660 = vshll.u32 %v622, 16
      %v662 = vor.u32 %v659, %v660
      %v663 = vrot.slane %v659, 4
      %v665 = vshrl.u32 %v623, 16
      %v667 = vrot.slane %v665, 7
      %v668 = vshll.u32 %v623, 16
      %v670 = vor.u32 %v667, %v668
      %v671 = vsel %vm655, %v663, %v670
      %v672 = vrot.slane %v667, 4
      %v674 = vshrl.u32 %v624, 16
      %v676 = vrot.slane %v674, 7
      %v677 = vshll.u32 %v624, 16
      %v679 = vor.u32 %v676, %v677
      %v680 = vrot.slane %v676, 4
      %v682 = vshrl.u32 %v625, 16
      %v684 = vrot.slane %v682, 7
      %v685 = vshll.u32 %v625, 16
      %v687 = vor.u32 %v684, %v685
      %v688 = vsel %vm655, %v680, %v687
      %v689 = vrot.slane %v684, 4
      %v691 = vshrl.u32 %v626, 16
      %v693 = vrot.slane %v691, 7
      %v694 = vshll.u32 %v626, 16
      %v696 = vor.u32 %v693, %v694
      %v697 = vrot.slane %v693, 4
      %v699 = vshrl.u32 %v627, 16
      %v701 = vrot.slane %v699, 7
      %v702 = vshll.u32 %v627, 16
      %v704 = vor.u32 %v701, %v702
      %v705 = vsel %vm655, %v697, %v704
      %v706 = vrot.slane %v701, 4
      %v708 = vshrl.u32 %v628, 16
      %v710 = vrot.slane %v708, 7
      %v711 = vshll.u32 %v628, 16
      %v713 = vor.u32 %v710, %v711
      %v714 = vrot.slane %v710, 4
      %v716 = vshrl.u32 %v629, 16
      %v718 = vrot.slane %v716, 7
      %v719 = vshll.u32 %v629, 16
      %v721 = vor.u32 %v718, %v719
      %v722 = vsel %vm655, %v714, %v721
      %v723 = vrot.slane %v718, 4
      %v725 = vshrl.u32 %v630, 16
      %v727 = vrot.slane %v725, 7
      %v728 = vshll.u32 %v630, 16
      %v730 = vor.u32 %v727, %v728
      %v731 = vrot.slane %v727, 4
      %v733 = vshrl.u32 %v631, 16
      %v735 = vrot.slane %v733, 7
      %v736 = vshll.u32 %v631, 16
      %v738 = vor.u32 %v735, %v736
      %v739 = vsel %vm655, %v731, %v738
      %v740 = vrot.slane %v735, 4
      %v742 = vshrl.u32 %v632, 16
      %v744 = vrot.slane %v742, 7
      %v745 = vshll.u32 %v632, 16
      %v747 = vor.u32 %v744, %v745
      %v748 = vrot.slane %v744, 4
      %v750 = vshrl.u32 %v633, 16
      %v752 = vrot.slane %v750, 7
      %v753 = vshll.u32 %v633, 16
      %v755 = vor.u32 %v752, %v753
      %v756 = vsel %vm655, %v748, %v755
      %v757 = vrot.slane %v752, 4
      %v759 = vshrl.u32 %v634, 16
      %v761 = vrot.slane %v759, 7
      %v762 = vshll.u32 %v634, 16
      %v764 = vor.u32 %v761, %v762
      %v765 = vrot.slane %v761, 4
      %v767 = vshrl.u32 %v635, 16
      %v769 = vrot.slane %v767, 7
      %v770 = vshll.u32 %v635, 16
      %v772 = vor.u32 %v769, %v770
      %v773 = vsel %vm655, %v765, %v772
      %v774 = vrot.slane %v769, 4
      %v776 = vshrl.u32 %v636, 16
      %v778 = vrot.slane %v776, 7
      %v779 = vshll.u32 %v636, 16
      %v781 = vor.u32 %v778, %v779
      %v782 = vrot.slane %v778, 4
      %v784 = vshrl.u32 %v637, 16
      %v786 = vrot.slane %v784, 7
      %v787 = vshll.u32 %v637, 16
      %v789 = vor.u32 %v786, %v787
      %v790 = vsel %vm655, %v782, %v789
      %v791 = vrot.slane %v786, 4
      %v793 = vshrl.u32 %v638, 16
      %v795 = vrot.slane %v793, 7
      %v796 = vshll.u32 %v638, 16
      %v798 = vor.u32 %v795, %v796
      %v799 = vrot.slane %v795, 4
      %v801 = vshrl.u32 %v639, 16
      %v803 = vrot.slane %v801, 7
      %v804 = vshll.u32 %v639, 16
      %v806 = vor.u32 %v803, %v804
      %v807 = vsel %vm655, %v799, %v806
      %v808 = vrot.slane %v803, 4
      %v810 = vshrl.u32 %v640, 16
      %v812 = vrot.slane %v810, 7
      %v813 = vshll.u32 %v640, 16
      %v815 = vor.u32 %v812, %v813
      %v816 = vrot.slane %v812, 4
      %v818 = vshrl.u32 %v641, 16
      %v820 = vrot.slane %v818, 7
      %v821 = vshll.u32 %v641, 16
      %v823 = vor.u32 %v820, %v821
      %v824 = vsel %vm655, %v816, %v823
      %v825 = vrot.slane %v820, 4
      %v827 = vshrl.u32 %v642, 16
      %v829 = vrot.slane %v827, 7
      %v830 = vshll.u32 %v642, 16
      %v832 = vor.u32 %v829, %v830
      %v833 = vrot.slane %v829, 4
      %v835 = vshrl.u32 %v643, 16
      %v837 = vrot.slane %v835, 7
      %v838 = vshll.u32 %v643, 16
      %v840 = vor.u32 %v837, %v838
      %v841 = vsel %vm655, %v833, %v840
      %v842 = vrot.slane %v837, 4
      %v844 = vshrl.u32 %v644, 16
      %v846 = vrot.slane %v844, 7
      %v847 = vshll.u32 %v644, 16
      %v849 = vor.u32 %v846, %v847
      %v850 = vrot.slane %v846, 4
      %v852 = vshrl.u32 %v645, 16
      %v854 = vrot.slane %v852, 7
      %v855 = vshll.u32 %v645, 16
      %v857 = vor.u32 %v854, %v855
      %v858 = vsel %vm655, %v850, %v857
      %v859 = vrot.slane %v854, 4
      %v861 = vshrl.u32 %v646, 16
      %v863 = vrot.slane %v861, 7
      %v864 = vshll.u32 %v646, 16
      %v866 = vor.u32 %v863, %v864
      %v867 = vrot.slane %v863, 4
      %v869 = vshrl.u32 %v647, 16
      %v871 = vrot.slane %v869, 7
      %v872 = vshll.u32 %v647, 16
      %v874 = vor.u32 %v871, %v872
      %v875 = vsel %vm655, %v867, %v874
      %v876 = vrot.slane %v871, 4
      %v878 = vshrl.u32 %v648, 16
      %v880 = vrot.slane %v878, 7
      %v881 = vshll.u32 %v648, 16
      %v883 = vor.u32 %v880, %v881
      %v884 = vrot.slane %v880, 4
      %v886 = vshrl.u32 %v649, 16
      %v888 = vrot.slane %v886, 7
      %v889 = vshll.u32 %v649, 16
      %v891 = vor.u32 %v888, %v889
      %v892 = vsel %vm655, %v884, %v891
      %v893 = vrot.slane %v888, 4
      %v895 = vshrl.u32 %v650, 16
      %v897 = vrot.slane %v895, 7
      %v898 = vshll.u32 %v650, 16
      %v900 = vor.u32 %v897, %v898
      %v901 = vrot.slane %v897, 4
      %v903 = vshrl.u32 %v651, 16
      %v905 = vrot.slane %v903, 7
      %v906 = vshll.u32 %v651, 16
      %v908 = vor.u32 %v905, %v906
      %v909 = vsel %vm655, %v901, %v908
      %v910 = vrot.slane %v905, 4
      %v912 = vshrl.u32 %v652, 16
      %v914 = vrot.slane %v912, 7
      %v915 = vshll.u32 %v652, 16
      %v917 = vor.u32 %v914, %v915
      %v918 = vrot.slane %v914, 4
      %v920 = vshrl.u32 %v653, 16
      %v922 = vrot.slane %v920, 7
      %v923 = vshll.u32 %v653, 16
      %v925 = vor.u32 %v922, %v923
      %v926 = vsel %vm655, %v918, %v925
      %v927 = vrot.slane %v922, 4
      %s976 = scalar_lea.vmem [#allocation2], 12
      %vm977 = vcmask 1043456
      %vm978 = vmand %vm977, %vm518
      %v979 = vld [vmem:[%s976] sm:$0xf]
      %v980 = vsel %vm978, %v662, %v979
      %981 = vst [vmem:[%s976] sm:$0xf] %v980
      %982 = vst [vmem:[%s976 + $0x4] sm:$0xf] %v671
      %v983 = vld [vmem:[%s976 + $0x8] sm:$0x1]
      %v984 = vsel %vm463, %v672, %v983
      %985 = vst [vmem:[%s976 + $0x8] sm:$0x1] %v984
      %v986 = vld [vmem:[%s976 + $0xc] sm:$0xf]
      %v987 = vsel %vm978, %v679, %v986
      %988 = vst [vmem:[%s976 + $0xc] sm:$0xf] %v987
      %989 = vst [vmem:[%s976 + $0x10] sm:$0xf] %v688
      %v990 = vld [vmem:[%s976 + $0x14] sm:$0x1]
      %v991 = vsel %vm463, %v689, %v990
      %992 = vst [vmem:[%s976 + $0x14] sm:$0x1] %v991
      %v993 = vld [vmem:[%s976 + $0x18] sm:$0xf]
      %v994 = vsel %vm978, %v696, %v993
      %995 = vst [vmem:[%s976 + $0x18] sm:$0xf] %v994
      %996 = vst [vmem:[%s976 + $0x1c] sm:$0xf] %v705
      %v997 = vld [vmem:[%s976 + $0x20] sm:$0x1]
      %v998 = vsel %vm463, %v706, %v997
      %999 = vst [vmem:[%s976 + $0x20] sm:$0x1] %v998
      %v1000 = vld [vmem:[%s976 + $0x24] sm:$0xf]
      %v1001 = vsel %vm978, %v713, %v1000
      %1002 = vst [vmem:[%s976 + $0x24] sm:$0xf] %v1001
      %1003 = vst [vmem:[%s976 + $0x28] sm:$0xf] %v722
      %v1004 = vld [vmem:[%s976 + $0x2c] sm:$0x1]
      %v1005 = vsel %vm463, %v723, %v1004
      %1006 = vst [vmem:[%s976 + $0x2c] sm:$0x1] %v1005
      %v1007 = vld [vmem:[%s976 + $0x30] sm:$0xf]
      %v1008 = vsel %vm978, %v730, %v1007
      %1009 = vst [vmem:[%s976 + $0x30] sm:$0xf] %v1008
      %1010 = vst [vmem:[%s976 + $0x34] sm:$0xf] %v739
      %v1011 = vld [vmem:[%s976 + $0x38] sm:$0x1]
      %v1012 = vsel %vm463, %v740, %v1011
      %1013 = vst [vmem:[%s976 + $0x38] sm:$0x1] %v1012
      %v1014 = vld [vmem:[%s976 + $0x3c] sm:$0xf]
      %v1015 = vsel %vm978, %v747, %v1014
      %1016 = vst [vmem:[%s976 + $0x3c] sm:$0xf] %v1015
      %1017 = vst [vmem:[%s976 + $0x40] sm:$0xf] %v756
      %v1018 = vld [vmem:[%s976 + $0x44] sm:$0x1]
      %v1019 = vsel %vm463, %v757, %v1018
      %1020 = vst [vmem:[%s976 + $0x44] sm:$0x1] %v1019
      %v1021 = vld [vmem:[%s976 + $0x48] sm:$0xf]
      %v1022 = vsel %vm978, %v764, %v1021
      %1023 = vst [vmem:[%s976 + $0x48] sm:$0xf] %v1022
      %1024 = vst [vmem:[%s976 + $0x4c] sm:$0xf] %v773
      %v1025 = vld [vmem:[%s976 + $0x50] sm:$0x1]
      %v1026 = vsel %vm463, %v774, %v1025
      %1027 = vst [vmem:[%s976 + $0x50] sm:$0x1] %v1026
      %v1028 = vld [vmem:[%s976 + $0x54] sm:$0xf]
      %v1029 = vsel %vm978, %v781, %v1028
      %1030 = vst [vmem:[%s976 + $0x54] sm:$0xf] %v1029
      %1031 = vst [vmem:[%s976 + $0x58] sm:$0xf] %v790
      %v1032 = vld [vmem:[%s976 + $0x5c] sm:$0x1]
      %v1033 = vsel %vm463, %v791, %v1032
      %1034 = vst [vmem:[%s976 + $0x5c] sm:$0x1] %v1033
      %v1035 = vld [vmem:[%s976 + $0x60] sm:$0xf]
      %v1036 = vsel %vm978, %v798, %v1035
      %1037 = vst [vmem:[%s976 + $0x60] sm:$0xf] %v1036
      %1038 = vst [vmem:[%s976 + $0x64] sm:$0xf] %v807
      %v1039 = vld [vmem:[%s976 + $0x68] sm:$0x1]
      %v1040 = vsel %vm463, %v808, %v1039
      %1041 = vst [vmem:[%s976 + $0x68] sm:$0x1] %v1040
      %v1042 = vld [vmem:[%s976 + $0x6c] sm:$0xf]
      %v1043 = vsel %vm978, %v815, %v1042
      %1044 = vst [vmem:[%s976 + $0x6c] sm:$0xf] %v1043
      %1045 = vst [vmem:[%s976 + $0x70] sm:$0xf] %v824
      %v1046 = vld [vmem:[%s976 + $0x74] sm:$0x1]
      %v1047 = vsel %vm463, %v825, %v1046
      %1048 = vst [vmem:[%s976 + $0x74] sm:$0x1] %v1047
      %v1049 = vld [vmem:[%s976 + $0x78] sm:$0xf]
      %v1050 = vsel %vm978, %v832, %v1049
      %1051 = vst [vmem:[%s976 + $0x78] sm:$0xf] %v1050
      %1052 = vst [vmem:[%s976 + $0x7c] sm:$0xf] %v841
      %v1053 = vld [vmem:[%s976 + $0x80] sm:$0x1]
      %v1054 = vsel %vm463, %v842, %v1053
      %1055 = vst [vmem:[%s976 + $0x80] sm:$0x1] %v1054
      %v1056 = vld [vmem:[%s976 + $0x84] sm:$0xf]
      %v1057 = vsel %vm978, %v849, %v1056
      %1058 = vst [vmem:[%s976 + $0x84] sm:$0xf] %v1057
      %1059 = vst [vmem:[%s976 + $0x88] sm:$0xf] %v858
      %v1060 = vld [vmem:[%s976 + $0x8c] sm:$0x1]
      %v1061 = vsel %vm463, %v859, %v1060
      %1062 = vst [vmem:[%s976 + $0x8c] sm:$0x1] %v1061
      %v1063 = vld [vmem:[%s976 + $0x90] sm:$0xf]
      %v1064 = vsel %vm978, %v866, %v1063
      %1065 = vst [vmem:[%s976 + $0x90] sm:$0xf] %v1064
      %1066 = vst [vmem:[%s976 + $0x94] sm:$0xf] %v875
      %v1067 = vld [vmem:[%s976 + $0x98] sm:$0x1]
      %v1068 = vsel %vm463, %v876, %v1067
      %1069 = vst [vmem:[%s976 + $0x98] sm:$0x1] %v1068
      %v1070 = vld [vmem:[%s976 + $0x9c] sm:$0xf]
      %v1071 = vsel %vm978, %v883, %v1070
      %1072 = vst [vmem:[%s976 + $0x9c] sm:$0xf] %v1071
      %1073 = vst [vmem:[%s976 + $0xa0] sm:$0xf] %v892
      %v1074 = vld [vmem:[%s976 + $0xa4] sm:$0x1]
      %v1075 = vsel %vm463, %v893, %v1074
      %1076 = vst [vmem:[%s976 + $0xa4] sm:$0x1] %v1075
      %v1077 = vld [vmem:[%s976 + $0xa8] sm:$0xf]
      %v1078 = vsel %vm978, %v900, %v1077
      %1079 = vst [vmem:[%s976 + $0xa8] sm:$0xf] %v1078
      %1080 = vst [vmem:[%s976 + $0xac] sm:$0xf] %v909
      %v1081 = vld [vmem:[%s976 + $0xb0] sm:$0x1]
      %v1082 = vsel %vm463, %v910, %v1081
      %1083 = vst [vmem:[%s976 + $0xb0] sm:$0x1] %v1082
      %v1084 = vld [vmem:[%s976 + $0xb4] sm:$0xf]
      %v1085 = vsel %vm978, %v917, %v1084
      %1086 = vst [vmem:[%s976 + $0xb4] sm:$0xf] %v1085
      %1087 = vst [vmem:[%s976 + $0xb8] sm:$0xf] %v926
      %v1088 = vld [vmem:[%s976 + $0xbc] sm:$0x1]
      %v1089 = vsel %vm463, %v927, %v1088
      %1090 = vst [vmem:[%s976 + $0xbc] sm:$0x1] %v1089
      %v1091 = vld [vmem:[#allocation2] sm:$0xf]
      %v1092 = vld [vmem:[#allocation2 + $0x4] sm:$0xf]
      %v1093 = vld [vmem:[#allocation2 + $0xc] sm:$0xf]
      %v1094 = vld [vmem:[#allocation2 + $0x10] sm:$0xf]
      %v1095 = vld [vmem:[#allocation2 + $0x18] sm:$0xf]
      %v1096 = vld [vmem:[#allocation2 + $0x1c] sm:$0xf]
      %v1097 = vld [vmem:[#allocation2 + $0x24] sm:$0xf]
      %v1098 = vld [vmem:[#allocation2 + $0x28] sm:$0xf]
      %v1099 = vld [vmem:[#allocation2 + $0x30] sm:$0xf]
      %v1100 = vld [vmem:[#allocation2 + $0x34] sm:$0xf]
      %v1101 = vld [vmem:[#allocation2 + $0x3c] sm:$0xf]
      %v1102 = vld [vmem:[#allocation2 + $0x40] sm:$0xf]
      %v1103 = vld [vmem:[#allocation2 + $0x48] sm:$0xf]
      %v1104 = vld [vmem:[#allocation2 + $0x4c] sm:$0xf]
      %v1105 = vld [vmem:[#allocation2 + $0x54] sm:$0xf]
      %v1106 = vld [vmem:[#allocation2 + $0x58] sm:$0xf]
      %v1107 = vld [vmem:[#allocation2 + $0x60] sm:$0xf]
      %v1108 = vld [vmem:[#allocation2 + $0x64] sm:$0xf]
      %v1109 = vld [vmem:[#allocation2 + $0x6c] sm:$0xf]
      %v1110 = vld [vmem:[#allocation2 + $0x70] sm:$0xf]
      %v1111 = vld [vmem:[#allocation2 + $0x78] sm:$0xf]
      %v1112 = vld [vmem:[#allocation2 + $0x7c] sm:$0xf]
      %v1113 = vld [vmem:[#allocation2 + $0x84] sm:$0xf]
      %v1114 = vld [vmem:[#allocation2 + $0x88] sm:$0xf]
      %v1115 = vld [vmem:[#allocation2 + $0x90] sm:$0xf]
      %v1116 = vld [vmem:[#allocation2 + $0x94] sm:$0xf]
      %v1117 = vld [vmem:[#allocation2 + $0x9c] sm:$0xf]
      %v1118 = vld [vmem:[#allocation2 + $0xa0] sm:$0xf]
      %v1119 = vld [vmem:[#allocation2 + $0xa8] sm:$0xf]
      %v1120 = vld [vmem:[#allocation2 + $0xac] sm:$0xf]
      %v1121 = vld [vmem:[#allocation2 + $0xb4] sm:$0xf]
      %v1122 = vld [vmem:[#allocation2 + $0xb8] sm:$0xf]
      %v1123 = vld [vmem:[#allocation2 + $0x8] sm:$0x1]
      %v1124 = vld [vmem:[#allocation2 + $0x14] sm:$0x1]
      %v1125 = vld [vmem:[#allocation2 + $0x20] sm:$0x1]
      %v1126 = vld [vmem:[#allocation2 + $0x2c] sm:$0x1]
      %v1127 = vld [vmem:[#allocation2 + $0x38] sm:$0x1]
      %v1128 = vld [vmem:[#allocation2 + $0x44] sm:$0x1]
      %v1129 = vld [vmem:[#allocation2 + $0x50] sm:$0x1]
      %v1130 = vld [vmem:[#allocation2 + $0x5c] sm:$0x1]
      %v1131 = vld [vmem:[#allocation2 + $0x68] sm:$0x1]
      %v1132 = vld [vmem:[#allocation2 + $0x74] sm:$0x1]
      %v1133 = vld [vmem:[#allocation2 + $0x80] sm:$0x1]
      %v1134 = vld [vmem:[#allocation2 + $0x8c] sm:$0x1]
      %v1135 = vld [vmem:[#allocation2 + $0x98] sm:$0x1]
      %v1136 = vld [vmem:[#allocation2 + $0xa4] sm:$0x1]
      %v1137 = vld [vmem:[#allocation2 + $0xb0] sm:$0x1]
      %v1138 = vld [vmem:[#allocation2 + $0xbc] sm:$0x1]
      %vm1139 = vsmask.f32 3328
      %vm1140 = vsmask.f32 7440
      %vm1141 = vmor %vm1139, %vm1140
      %v1143 = vshrl.u32 %v1091, 16
      %v1145 = vrot.slane %v1143, 4
      %v1146 = vshll.u32 %v1091, 16
      %v1148 = vrot.slane %v1146, 5
      %v1149 = vor.u32 %v1145, %v1148
      %v1150 = vrot.slane %v1149, 4
      %v1152 = vshll.u32 %v1092, 16
      %v1154 = vrot.slane %v1152, 5
      %v1155 = vsel %vm1141, %v1150, %v1154
      %v1156 = vshrl.u32 %v1092, 16
      %v1158 = vrot.slane %v1156, 4
      %v1159 = vor.u32 %v1158, %v1154
      %v1160 = vrot.slane %v1159, 4
      %v1162 = vshll.u32 %v1123, 16
      %v1164 = vrot.slane %v1162, 5
      %v1165 = vsel %vm1141, %v1160, %v1164
      %v1167 = vshrl.u32 %v1093, 16
      %v1169 = vrot.slane %v1167, 4
      %v1170 = vshll.u32 %v1093, 16
      %v1172 = vrot.slane %v1170, 5
      %v1173 = vor.u32 %v1169, %v1172
      %v1174 = vrot.slane %v1173, 4
      %v1176 = vshll.u32 %v1094, 16
      %v1178 = vrot.slane %v1176, 5
      %v1179 = vsel %vm1141, %v1174, %v1178
      %v1180 = vshrl.u32 %v1094, 16
      %v1182 = vrot.slane %v1180, 4
      %v1183 = vor.u32 %v1182, %v1178
      %v1184 = vrot.slane %v1183, 4
      %v1186 = vshll.u32 %v1124, 16
      %v1188 = vrot.slane %v1186, 5
      %v1189 = vsel %vm1141, %v1184, %v1188
      %v1191 = vshrl.u32 %v1095, 16
      %v1193 = vrot.slane %v1191, 4
      %v1194 = vshll.u32 %v1095, 16
      %v1196 = vrot.slane %v1194, 5
      %v1197 = vor.u32 %v1193, %v1196
      %v1198 = vrot.slane %v1197, 4
      %v1200 = vshll.u32 %v1096, 16
      %v1202 = vrot.slane %v1200, 5
      %v1203 = vsel %vm1141, %v1198, %v1202
      %v1204 = vshrl.u32 %v1096, 16
      %v1206 = vrot.slane %v1204, 4
      %v1207 = vor.u32 %v1206, %v1202
      %v1208 = vrot.slane %v1207, 4
      %v1210 = vshll.u32 %v1125, 16
      %v1212 = vrot.slane %v1210, 5
      %v1213 = vsel %vm1141, %v1208, %v1212
      %v1215 = vshrl.u32 %v1097, 16
      %v1217 = vrot.slane %v1215, 4
      %v1218 = vshll.u32 %v1097, 16
      %v1220 = vrot.slane %v1218, 5
      %v1221 = vor.u32 %v1217, %v1220
      %v1222 = vrot.slane %v1221, 4
      %v1224 = vshll.u32 %v1098, 16
      %v1226 = vrot.slane %v1224, 5
      %v1227 = vsel %vm1141, %v1222, %v1226
      %v1228 = vshrl.u32 %v1098, 16
      %v1230 = vrot.slane %v1228, 4
      %v1231 = vor.u32 %v1230, %v1226
      %v1232 = vrot.slane %v1231, 4
      %v1234 = vshll.u32 %v1126, 16
      %v1236 = vrot.slane %v1234, 5
      %v1237 = vsel %vm1141, %v1232, %v1236
      %v1239 = vshrl.u32 %v1099, 16
      %v1241 = vrot.slane %v1239, 4
      %v1242 = vshll.u32 %v1099, 16
      %v1244 = vrot.slane %v1242, 5
      %v1245 = vor.u32 %v1241, %v1244
      %v1246 = vrot.slane %v1245, 4
      %v1248 = vshll.u32 %v1100, 16
      %v1250 = vrot.slane %v1248, 5
      %v1251 = vsel %vm1141, %v1246, %v1250
      %v1252 = vshrl.u32 %v1100, 16
      %v1254 = vrot.slane %v1252, 4
      %v1255 = vor.u32 %v1254, %v1250
      %v1256 = vrot.slane %v1255, 4
      %v1258 = vshll.u32 %v1127, 16
      %v1260 = vrot.slane %v1258, 5
      %v1261 = vsel %vm1141, %v1256, %v1260
      %v1263 = vshrl.u32 %v1101, 16
      %v1265 = vrot.slane %v1263, 4
      %v1266 = vshll.u32 %v1101, 16
      %v1268 = vrot.slane %v1266, 5
      %v1269 = vor.u32 %v1265, %v1268
      %v1270 = vrot.slane %v1269, 4
      %v1272 = vshll.u32 %v1102, 16
      %v1274 = vrot.slane %v1272, 5
      %v1275 = vsel %vm1141, %v1270, %v1274
      %v1276 = vshrl.u32 %v1102, 16
      %v1278 = vrot.slane %v1276, 4
      %v1279 = vor.u32 %v1278, %v1274
      %v1280 = vrot.slane %v1279, 4
      %v1282 = vshll.u32 %v1128, 16
      %v1284 = vrot.slane %v1282, 5
      %v1285 = vsel %vm1141, %v1280, %v1284
      %v1287 = vshrl.u32 %v1103, 16
      %v1289 = vrot.slane %v1287, 4
      %v1290 = vshll.u32 %v1103, 16
      %v1292 = vrot.slane %v1290, 5
      %v1293 = vor.u32 %v1289, %v1292
      %v1294 = vrot.slane %v1293, 4
      %v1296 = vshll.u32 %v1104, 16
      %v1298 = vrot.slane %v1296, 5
      %v1299 = vsel %vm1141, %v1294, %v1298
      %v1300 = vshrl.u32 %v1104, 16
      %v1302 = vrot.slane %v1300, 4
      %v1303 = vor.u32 %v1302, %v1298
      %v1304 = vrot.slane %v1303, 4
      %v1306 = vshll.u32 %v1129, 16
      %v1308 = vrot.slane %v1306, 5
      %v1309 = vsel %vm1141, %v1304, %v1308
      %v1311 = vshrl.u32 %v1105, 16
      %v1313 = vrot.slane %v1311, 4
      %v1314 = vshll.u32 %v1105, 16
      %v1316 = vrot.slane %v1314, 5
      %v1317 = vor.u32 %v1313, %v1316
      %v1318 = vrot.slane %v1317, 4
      %v1320 = vshll.u32 %v1106, 16
      %v1322 = vrot.slane %v1320, 5
      %v1323 = vsel %vm1141, %v1318, %v1322
      %v1324 = vshrl.u32 %v1106, 16
      %v1326 = vrot.slane %v1324, 4
      %v1327 = vor.u32 %v1326, %v1322
      %v1328 = vrot.slane %v1327, 4
      %v1330 = vshll.u32 %v1130, 16
      %v1332 = vrot.slane %v1330, 5
      %v1333 = vsel %vm1141, %v1328, %v1332
      %v1335 = vshrl.u32 %v1107, 16
      %v1337 = vrot.slane %v1335, 4
      %v1338 = vshll.u32 %v1107, 16
      %v1340 = vrot.slane %v1338, 5
      %v1341 = vor.u32 %v1337, %v1340
      %v1342 = vrot.slane %v1341, 4
      %v1344 = vshll.u32 %v1108, 16
      %v1346 = vrot.slane %v1344, 5
      %v1347 = vsel %vm1141, %v1342, %v1346
      %v1348 = vshrl.u32 %v1108, 16
      %v1350 = vrot.slane %v1348, 4
      %v1351 = vor.u32 %v1350, %v1346
      %v1352 = vrot.slane %v1351, 4
      %v1354 = vshll.u32 %v1131, 16
      %v1356 = vrot.slane %v1354, 5
      %v1357 = vsel %vm1141, %v1352, %v1356
      %v1359 = vshrl.u32 %v1109, 16
      %v1361 = vrot.slane %v1359, 4
      %v1362 = vshll.u32 %v1109, 16
      %v1364 = vrot.slane %v1362, 5
      %v1365 = vor.u32 %v1361, %v1364
      %v1366 = vrot.slane %v1365, 4
      %v1368 = vshll.u32 %v1110, 16
      %v1370 = vrot.slane %v1368, 5
      %v1371 = vsel %vm1141, %v1366, %v1370
      %v1372 = vshrl.u32 %v1110, 16
      %v1374 = vrot.slane %v1372, 4
      %v1375 = vor.u32 %v1374, %v1370
      %v1376 = vrot.slane %v1375, 4
      %v1378 = vshll.u32 %v1132, 16
      %v1380 = vrot.slane %v1378, 5
      %v1381 = vsel %vm1141, %v1376, %v1380
      %v1383 = vshrl.u32 %v1111, 16
      %v1385 = vrot.slane %v1383, 4
      %v1386 = vshll.u32 %v1111, 16
      %v1388 = vrot.slane %v1386, 5
      %v1389 = vor.u32 %v1385, %v1388
      %v1390 = vrot.slane %v1389, 4
      %v1392 = vshll.u32 %v1112, 16
      %v1394 = vrot.slane %v1392, 5
      %v1395 = vsel %vm1141, %v1390, %v1394
      %v1396 = vshrl.u32 %v1112, 16
      %v1398 = vrot.slane %v1396, 4
      %v1399 = vor.u32 %v1398, %v1394
      %v1400 = vrot.slane %v1399, 4
      %v1402 = vshll.u32 %v1133, 16
      %v1404 = vrot.slane %v1402, 5
      %v1405 = vsel %vm1141, %v1400, %v1404
      %v1407 = vshrl.u32 %v1113, 16
      %v1409 = vrot.slane %v1407, 4
      %v1410 = vshll.u32 %v1113, 16
      %v1412 = vrot.slane %v1410, 5
      %v1413 = vor.u32 %v1409, %v1412
      %v1414 = vrot.slane %v1413, 4
      %v1416 = vshll.u32 %v1114, 16
      %v1418 = vrot.slane %v1416, 5
      %v1419 = vsel %vm1141, %v1414, %v1418
      %v1420 = vshrl.u32 %v1114, 16
      %v1422 = vrot.slane %v1420, 4
      %v1423 = vor.u32 %v1422, %v1418
      %v1424 = vrot.slane %v1423, 4
      %v1426 = vshll.u32 %v1134, 16
      %v1428 = vrot.slane %v1426, 5
      %v1429 = vsel %vm1141, %v1424, %v1428
      %v1431 = vshrl.u32 %v1115, 16
      %v1433 = vrot.slane %v1431, 4
      %v1434 = vshll.u32 %v1115, 16
      %v1436 = vrot.slane %v1434, 5
      %v1437 = vor.u32 %v1433, %v1436
      %v1438 = vrot.slane %v1437, 4
      %v1440 = vshll.u32 %v1116, 16
      %v1442 = vrot.slane %v1440, 5
      %v1443 = vsel %vm1141, %v1438, %v1442
      %v1444 = vshrl.u32 %v1116, 16
      %v1446 = vrot.slane %v1444, 4
      %v1447 = vor.u32 %v1446, %v1442
      %v1448 = vrot.slane %v1447, 4
      %v1450 = vshll.u32 %v1135, 16
      %v1452 = vrot.slane %v1450, 5
      %v1453 = vsel %vm1141, %v1448, %v1452
      %v1455 = vshrl.u32 %v1117, 16
      %v1457 = vrot.slane %v1455, 4
      %v1458 = vshll.u32 %v1117, 16
      %v1460 = vrot.slane %v1458, 5
      %v1461 = vor.u32 %v1457, %v1460
      %v1462 = vrot.slane %v1461, 4
      %v1464 = vshll.u32 %v1118, 16
      %v1466 = vrot.slane %v1464, 5
      %v1467 = vsel %vm1141, %v1462, %v1466
      %v1468 = vshrl.u32 %v1118, 16
      %v1470 = vrot.slane %v1468, 4
      %v1471 = vor.u32 %v1470, %v1466
      %v1472 = vrot.slane %v1471, 4
      %v1474 = vshll.u32 %v1136, 16
      %v1476 = vrot.slane %v1474, 5
      %v1477 = vsel %vm1141, %v1472, %v1476
      %v1479 = vshrl.u32 %v1119, 16
      %v1481 = vrot.slane %v1479, 4
      %v1482 = vshll.u32 %v1119, 16
      %v1484 = vrot.slane %v1482, 5
      %v1485 = vor.u32 %v1481, %v1484
      %v1486 = vrot.slane %v1485, 4
      %v1488 = vshll.u32 %v1120, 16
      %v1490 = vrot.slane %v1488, 5
      %v1491 = vsel %vm1141, %v1486, %v1490
      %v1492 = vshrl.u32 %v1120, 16
      %v1494 = vrot.slane %v1492, 4
      %v1495 = vor.u32 %v1494, %v1490
      %v1496 = vrot.slane %v1495, 4
      %v1498 = vshll.u32 %v1137, 16
      %v1500 = vrot.slane %v1498, 5
      %v1501 = vsel %vm1141, %v1496, %v1500
      %v1503 = vshrl.u32 %v1121, 16
      %v1505 = vrot.slane %v1503, 4
      %v1506 = vshll.u32 %v1121, 16
      %v1508 = vrot.slane %v1506, 5
      %v1509 = vor.u32 %v1505, %v1508
      %v1510 = vrot.slane %v1509, 4
      %v1512 = vshll.u32 %v1122, 16
      %v1514 = vrot.slane %v1512, 5
      %v1515 = vsel %vm1141, %v1510, %v1514
      %v1516 = vshrl.u32 %v1122, 16
      %v1518 = vrot.slane %v1516, 4
      %v1519 = vor.u32 %v1518, %v1514
      %v1520 = vrot.slane %v1519, 4
      %v1522 = vshll.u32 %v1138, 16
      %v1524 = vrot.slane %v1522, 5
      %v1525 = vsel %vm1141, %v1520, %v1524
      %v1526 = vld [vmem:[#allocation2] sm:$0xe]
      %v1527 = vld [vmem:[#allocation2 + $0xc] sm:$0xe]
      %v1528 = vld [vmem:[#allocation2 + $0x18] sm:$0xe]
      %v1529 = vld [vmem:[#allocation2 + $0x24] sm:$0xe]
      %v1530 = vld [vmem:[#allocation2 + $0x30] sm:$0xe]
      %v1531 = vld [vmem:[#allocation2 + $0x3c] sm:$0xe]
      %v1532 = vld [vmem:[#allocation2 + $0x48] sm:$0xe]
      %v1533 = vld [vmem:[#allocation2 + $0x54] sm:$0xe]
      %v1534 = vld [vmem:[#allocation2 + $0x60] sm:$0xe]
      %v1535 = vld [vmem:[#allocation2 + $0x6c] sm:$0xe]
      %v1536 = vld [vmem:[#allocation2 + $0x78] sm:$0xe]
      %v1537 = vld [vmem:[#allocation2 + $0x84] sm:$0xe]
      %v1538 = vld [vmem:[#allocation2 + $0x90] sm:$0xe]
      %v1539 = vld [vmem:[#allocation2 + $0x9c] sm:$0xe]
      %v1540 = vld [vmem:[#allocation2 + $0xa8] sm:$0xe]
      %v1541 = vld [vmem:[#allocation2 + $0xb4] sm:$0xe]
      %vm1590 = vcmask 1042432
      %vm1591 = vcmask 1046532
      %vm1592 = vmor %vm1590, %vm1591
      %v1593 = vrot.slane %v1526, 5
      %v1594 = vrot.slane %v1593, 4
      %v1595 = vrot.slane %v1092, 5
      %v1596 = vsel %vm1592, %v1594, %v1595
      %v1597 = vrot.slane %v1595, 4
      %v1598 = vrot.slane %v1123, 5
      %v1599 = vsel %vm1592, %v1597, %v1598
      %v1600 = vrot.slane %v1527, 5
      %v1601 = vrot.slane %v1600, 4
      %v1602 = vrot.slane %v1094, 5
      %v1603 = vsel %vm1592, %v1601, %v1602
      %v1604 = vrot.slane %v1602, 4
      %v1605 = vrot.slane %v1124, 5
      %v1606 = vsel %vm1592, %v1604, %v1605
      %v1607 = vrot.slane %v1528, 5
      %v1608 = vrot.slane %v1607, 4
      %v1609 = vrot.slane %v1096, 5
      %v1610 = vsel %vm1592, %v1608, %v1609
      %v1611 = vrot.slane %v1609, 4
      %v1612 = vrot.slane %v1125, 5
      %v1613 = vsel %vm1592, %v1611, %v1612
      %v1614 = vrot.slane %v1529, 5
      %v1615 = vrot.slane %v1614, 4
      %v1616 = vrot.slane %v1098, 5
      %v1617 = vsel %vm1592, %v1615, %v1616
      %v1618 = vrot.slane %v1616, 4
      %v1619 = vrot.slane %v1126, 5
      %v1620 = vsel %vm1592, %v1618, %v1619
      %v1621 = vrot.slane %v1530, 5
      %v1622 = vrot.slane %v1621, 4
      %v1623 = vrot.slane %v1100, 5
      %v1624 = vsel %vm1592, %v1622, %v1623
      %v1625 = vrot.slane %v1623, 4
      %v1626 = vrot.slane %v1127, 5
      %v1627 = vsel %vm1592, %v1625, %v1626
      %v1628 = vrot.slane %v1531, 5
      %v1629 = vrot.slane %v1628, 4
      %v1630 = vrot.slane %v1102, 5
      %v1631 = vsel %vm1592, %v1629, %v1630
      %v1632 = vrot.slane %v1630, 4
      %v1633 = vrot.slane %v1128, 5
      %v1634 = vsel %vm1592, %v1632, %v1633
      %v1635 = vrot.slane %v1532, 5
      %v1636 = vrot.slane %v1635, 4
      %v1637 = vrot.slane %v1104, 5
      %v1638 = vsel %vm1592, %v1636, %v1637
      %v1639 = vrot.slane %v1637, 4
      %v1640 = vrot.slane %v1129, 5
      %v1641 = vsel %vm1592, %v1639, %v1640
      %v1642 = vrot.slane %v1533, 5
      %v1643 = vrot.slane %v1642, 4
      %v1644 = vrot.slane %v1106, 5
      %v1645 = vsel %vm1592, %v1643, %v1644
      %v1646 = vrot.slane %v1644, 4
      %v1647 = vrot.slane %v1130, 5
      %v1648 = vsel %vm1592, %v1646, %v1647
      %v1649 = vrot.slane %v1534, 5
      %v1650 = vrot.slane %v1649, 4
      %v1651 = vrot.slane %v1108, 5
      %v1652 = vsel %vm1592, %v1650, %v1651
      %v1653 = vrot.slane %v1651, 4
      %v1654 = vrot.slane %v1131, 5
      %v1655 = vsel %vm1592, %v1653, %v1654
      %v1656 = vrot.slane %v1535, 5
      %v1657 = vrot.slane %v1656, 4
      %v1658 = vrot.slane %v1110, 5
      %v1659 = vsel %vm1592, %v1657, %v1658
      %v1660 = vrot.slane %v1658, 4
      %v1661 = vrot.slane %v1132, 5
      %v1662 = vsel %vm1592, %v1660, %v1661
      %v1663 = vrot.slane %v1536, 5
      %v1664 = vrot.slane %v1663, 4
      %v1665 = vrot.slane %v1112, 5
      %v1666 = vsel %vm1592, %v1664, %v1665
      %v1667 = vrot.slane %v1665, 4
      %v1668 = vrot.slane %v1133, 5
      %v1669 = vsel %vm1592, %v1667, %v1668
      %v1670 = vrot.slane %v1537, 5
      %v1671 = vrot.slane %v1670, 4
      %v1672 = vrot.slane %v1114, 5
      %v1673 = vsel %vm1592, %v1671, %v1672
      %v1674 = vrot.slane %v1672, 4
      %v1675 = vrot.slane %v1134, 5
      %v1676 = vsel %vm1592, %v1674, %v1675
      %v1677 = vrot.slane %v1538, 5
      %v1678 = vrot.slane %v1677, 4
      %v1679 = vrot.slane %v1116, 5
      %v1680 = vsel %vm1592, %v1678, %v1679
      %v1681 = vrot.slane %v1679, 4
      %v1682 = vrot.slane %v1135, 5
      %v1683 = vsel %vm1592, %v1681, %v1682
      %v1684 = vrot.slane %v1539, 5
      %v1685 = vrot.slane %v1684, 4
      %v1686 = vrot.slane %v1118, 5
      %v1687 = vsel %vm1592, %v1685, %v1686
      %v1688 = vrot.slane %v1686, 4
      %v1689 = vrot.slane %v1136, 5
      %v1690 = vsel %vm1592, %v1688, %v1689
      %v1691 = vrot.slane %v1540, 5
      %v1692 = vrot.slane %v1691, 4
      %v1693 = vrot.slane %v1120, 5
      %v1694 = vsel %vm1592, %v1692, %v1693
      %v1695 = vrot.slane %v1693, 4
      %v1696 = vrot.slane %v1137, 5
      %v1697 = vsel %vm1592, %v1695, %v1696
      %v1698 = vrot.slane %v1541, 5
      %v1699 = vrot.slane %v1698, 4
      %v1700 = vrot.slane %v1122, 5
      %v1701 = vsel %vm1592, %v1699, %v1700
      %v1702 = vrot.slane %v1700, 4
      %v1703 = vrot.slane %v1138, 5
      %v1704 = vsel %vm1592, %v1702, %v1703
      %v1721 = vunpack.c.l.b16 %v1091
      %v1722 = vunpack.c.l.b16 %v1092
      %v1723 = vunpack.c.l.b16 %v1093
      %v1724 = vunpack.c.l.b16 %v1094
      %v1725 = vunpack.c.l.b16 %v1095
      %v1726 = vunpack.c.l.b16 %v1096
      %v1727 = vunpack.c.l.b16 %v1097
      %v1728 = vunpack.c.l.b16 %v1098
      %v1729 = vunpack.c.l.b16 %v1099
      %v1730 = vunpack.c.l.b16 %v1100
      %v1731 = vunpack.c.l.b16 %v1101
      %v1732 = vunpack.c.l.b16 %v1102
      %v1733 = vunpack.c.l.b16 %v1103
      %v1734 = vunpack.c.l.b16 %v1104
      %v1735 = vunpack.c.l.b16 %v1105
      %v1736 = vunpack.c.l.b16 %v1106
      %v1737 = vunpack.c.l.b16 %v1107
      %v1738 = vunpack.c.l.b16 %v1108
      %v1739 = vunpack.c.l.b16 %v1109
      %v1740 = vunpack.c.l.b16 %v1110
      %v1741 = vunpack.c.l.b16 %v1111
      %v1742 = vunpack.c.l.b16 %v1112
      %v1743 = vunpack.c.l.b16 %v1113
      %v1744 = vunpack.c.l.b16 %v1114
      %v1745 = vunpack.c.l.b16 %v1115
      %v1746 = vunpack.c.l.b16 %v1116
      %v1747 = vunpack.c.l.b16 %v1117
      %v1748 = vunpack.c.l.b16 %v1118
      %v1749 = vunpack.c.l.b16 %v1119
      %v1750 = vunpack.c.l.b16 %v1120
      %v1751 = vunpack.c.l.b16 %v1121
      %v1752 = vunpack.c.l.b16 %v1122
      %v1753 = vpack.c.b16 %v1722, %v1721
      %v1754 = vpack.c.b16 %v1724, %v1723
      %v1755 = vpack.c.b16 %v1726, %v1725
      %v1756 = vpack.c.b16 %v1728, %v1727
      %v1757 = vpack.c.b16 %v1730, %v1729
      %v1758 = vpack.c.b16 %v1732, %v1731
      %v1759 = vpack.c.b16 %v1734, %v1733
      %v1760 = vpack.c.b16 %v1736, %v1735
      %v1761 = vpack.c.b16 %v1738, %v1737
      %v1762 = vpack.c.b16 %v1740, %v1739
      %v1763 = vpack.c.b16 %v1742, %v1741
      %v1764 = vpack.c.b16 %v1744, %v1743
      %v1765 = vpack.c.b16 %v1746, %v1745
      %v1766 = vpack.c.b16 %v1748, %v1747
      %v1767 = vpack.c.b16 %v1750, %v1749
      %v1768 = vpack.c.b16 %v1752, %v1751
      %v1785 = vunpack.c.l.b16 %v1155
      %v1786 = vunpack.c.l.b16 %v1165
      %v1787 = vunpack.c.l.b16 %v1179
      %v1788 = vunpack.c.l.b16 %v1189
      %v1789 = vunpack.c.l.b16 %v1203
      %v1790 = vunpack.c.l.b16 %v1213
      %v1791 = vunpack.c.l.b16 %v1227
      %v1792 = vunpack.c.l.b16 %v1237
      %v1793 = vunpack.c.l.b16 %v1251
      %v1794 = vunpack.c.l.b16 %v1261
      %v1795 = vunpack.c.l.b16 %v1275
      %v1796 = vunpack.c.l.b16 %v1285
      %v1797 = vunpack.c.l.b16 %v1299
      %v1798 = vunpack.c.l.b16 %v1309
      %v1799 = vunpack.c.l.b16 %v1323
      %v1800 = vunpack.c.l.b16 %v1333
      %v1801 = vunpack.c.l.b16 %v1347
      %v1802 = vunpack.c.l.b16 %v1357
      %v1803 = vunpack.c.l.b16 %v1371
      %v1804 = vunpack.c.l.b16 %v1381
      %v1805 = vunpack.c.l.b16 %v1395
      %v1806 = vunpack.c.l.b16 %v1405
      %v1807 = vunpack.c.l.b16 %v1419
      %v1808 = vunpack.c.l.b16 %v1429
      %v1809 = vunpack.c.l.b16 %v1443
      %v1810 = vunpack.c.l.b16 %v1453
      %v1811 = vunpack.c.l.b16 %v1467
      %v1812 = vunpack.c.l.b16 %v1477
      %v1813 = vunpack.c.l.b16 %v1491
      %v1814 = vunpack.c.l.b16 %v1501
      %v1815 = vunpack.c.l.b16 %v1515
      %v1816 = vunpack.c.l.b16 %v1525
      %v1817 = vpack.c.b16 %v1786, %v1785
      %v1818 = vpack.c.b16 %v1788, %v1787
      %v1819 = vpack.c.b16 %v1790, %v1789
      %v1820 = vpack.c.b16 %v1792, %v1791
      %v1821 = vpack.c.b16 %v1794, %v1793
      %v1822 = vpack.c.b16 %v1796, %v1795
      %v1823 = vpack.c.b16 %v1798, %v1797
      %v1824 = vpack.c.b16 %v1800, %v1799
      %v1825 = vpack.c.b16 %v1802, %v1801
      %v1826 = vpack.c.b16 %v1804, %v1803
      %v1827 = vpack.c.b16 %v1806, %v1805
      %v1828 = vpack.c.b16 %v1808, %v1807
      %v1829 = vpack.c.b16 %v1810, %v1809
      %v1830 = vpack.c.b16 %v1812, %v1811
      %v1831 = vpack.c.b16 %v1814, %v1813
      %v1832 = vpack.c.b16 %v1816, %v1815
      %v1849 = vunpack.c.l.b16 %v1596
      %v1850 = vunpack.c.l.b16 %v1599
      %v1851 = vunpack.c.l.b16 %v1603
      %v1852 = vunpack.c.l.b16 %v1606
      %v1853 = vunpack.c.l.b16 %v1610
      %v1854 = vunpack.c.l.b16 %v1613
      %v1855 = vunpack.c.l.b16 %v1617
      %v1856 = vunpack.c.l.b16 %v1620
      %v1857 = vunpack.c.l.b16 %v1624
      %v1858 = vunpack.c.l.b16 %v1627
      %v1859 = vunpack.c.l.b16 %v1631
      %v1860 = vunpack.c.l.b16 %v1634
      %v1861 = vunpack.c.l.b16 %v1638
      %v1862 = vunpack.c.l.b16 %v1641
      %v1863 = vunpack.c.l.b16 %v1645
      %v1864 = vunpack.c.l.b16 %v1648
      %v1865 = vunpack.c.l.b16 %v1652
      %v1866 = vunpack.c.l.b16 %v1655
      %v1867 = vunpack.c.l.b16 %v1659
      %v1868 = vunpack.c.l.b16 %v1662
      %v1869 = vunpack.c.l.b16 %v1666
      %v1870 = vunpack.c.l.b16 %v1669
      %v1871 = vunpack.c.l.b16 %v1673
      %v1872 = vunpack.c.l.b16 %v1676
      %v1873 = vunpack.c.l.b16 %v1680
      %v1874 = vunpack.c.l.b16 %v1683
      %v1875 = vunpack.c.l.b16 %v1687
      %v1876 = vunpack.c.l.b16 %v1690
      %v1877 = vunpack.c.l.b16 %v1694
      %v1878 = vunpack.c.l.b16 %v1697
      %v1879 = vunpack.c.l.b16 %v1701
      %v1880 = vunpack.c.l.b16 %v1704
      %v1881 = vpack.c.b16 %v1850, %v1849
      %v1882 = vpack.c.b16 %v1852, %v1851
      %v1883 = vpack.c.b16 %v1854, %v1853
      %v1884 = vpack.c.b16 %v1856, %v1855
      %v1885 = vpack.c.b16 %v1858, %v1857
      %v1886 = vpack.c.b16 %v1860, %v1859
      %v1887 = vpack.c.b16 %v1862, %v1861
      %v1888 = vpack.c.b16 %v1864, %v1863
      %v1889 = vpack.c.b16 %v1866, %v1865
      %v1890 = vpack.c.b16 %v1868, %v1867
      %v1891 = vpack.c.b16 %v1870, %v1869
      %v1892 = vpack.c.b16 %v1872, %v1871
      %v1893 = vpack.c.b16 %v1874, %v1873
      %v1894 = vpack.c.b16 %v1876, %v1875
      %v1895 = vpack.c.b16 %v1878, %v1877
      %v1896 = vpack.c.b16 %v1880, %v1879
      %v1913 = vld [vmem:[%s3] sm:$0xf]
      %v1914 = vld [vmem:[%s3 + $0x4] sm:$0xf]
      %v1915 = vld [vmem:[%s3 + $0x8] sm:$0xf]
      %v1916 = vld [vmem:[%s3 + $0xc] sm:$0xf]
      %v1917 = vld [vmem:[%s3 + $0x10] sm:$0xf]
      %v1918 = vld [vmem:[%s3 + $0x14] sm:$0xf]
      %v1919 = vld [vmem:[%s3 + $0x18] sm:$0xf]
      %v1920 = vld [vmem:[%s3 + $0x1c] sm:$0xf]
      %v1921 = vld [vmem:[%s3 + $0x20] sm:$0xf]
      %v1922 = vld [vmem:[%s3 + $0x24] sm:$0xf]
      %v1923 = vld [vmem:[%s3 + $0x28] sm:$0xf]
      %v1924 = vld [vmem:[%s3 + $0x2c] sm:$0xf]
      %v1925 = vld [vmem:[%s3 + $0x30] sm:$0xf]
      %v1926 = vld [vmem:[%s3 + $0x34] sm:$0xf]
      %v1927 = vld [vmem:[%s3 + $0x38] sm:$0xf]
      %v1928 = vld [vmem:[%s3 + $0x3c] sm:$0xf]
      %v1929 = vld [vmem:[%s3 + $0x40] sm:$0xf]
      %v1930 = vld [vmem:[%s3 + $0x44] sm:$0xf]
      %v1931 = vld [vmem:[%s3 + $0x48] sm:$0xf]
      %v1932 = vld [vmem:[%s3 + $0x4c] sm:$0xf]
      %v1933 = vld [vmem:[%s3 + $0x50] sm:$0xf]
      %v1934 = vld [vmem:[%s3 + $0x54] sm:$0xf]
      %v1935 = vld [vmem:[%s3 + $0x58] sm:$0xf]
      %v1936 = vld [vmem:[%s3 + $0x5c] sm:$0xf]
      %v1937 = vld [vmem:[%s3 + $0x60] sm:$0xf]
      %v1938 = vld [vmem:[%s3 + $0x64] sm:$0xf]
      %v1939 = vld [vmem:[%s3 + $0x68] sm:$0xf]
      %v1940 = vld [vmem:[%s3 + $0x6c] sm:$0xf]
      %v1941 = vld [vmem:[%s3 + $0x70] sm:$0xf]
      %v1942 = vld [vmem:[%s3 + $0x74] sm:$0xf]
      %v1943 = vld [vmem:[%s3 + $0x78] sm:$0xf]
      %v1944 = vld [vmem:[%s3 + $0x7c] sm:$0xf]
      %v1945 = vld [vmem:[%s3 + $0x80] sm:$0xf]
      %v1946 = vld [vmem:[%s3 + $0x84] sm:$0xf]
      %v1947 = vld [vmem:[%s3 + $0x88] sm:$0xf]
      %v1948 = vld [vmem:[%s3 + $0x8c] sm:$0xf]
      %v1949 = vld [vmem:[%s3 + $0x90] sm:$0xf]
      %v1950 = vld [vmem:[%s3 + $0x94] sm:$0xf]
      %v1951 = vld [vmem:[%s3 + $0x98] sm:$0xf]
      %v1952 = vld [vmem:[%s3 + $0x9c] sm:$0xf]
      %v1953 = vld [vmem:[%s3 + $0xa0] sm:$0xf]
      %v1954 = vld [vmem:[%s3 + $0xa4] sm:$0xf]
      %v1955 = vld [vmem:[%s3 + $0xa8] sm:$0xf]
      %v1956 = vld [vmem:[%s3 + $0xac] sm:$0xf]
      %v1957 = vld [vmem:[%s3 + $0xb0] sm:$0xf]
      %v1958 = vld [vmem:[%s3 + $0xb4] sm:$0xf]
      %v1959 = vld [vmem:[%s3 + $0xb8] sm:$0xf]
      %v1960 = vld [vmem:[%s3 + $0xbc] sm:$0xf]
      %v1961 = vld [vmem:[%s976] sm:$0xf]
      %v1962 = vld [vmem:[%s976 + $0x4] sm:$0xf]
      %v1963 = vld [vmem:[%s976 + $0xc] sm:$0xf]
      %v1964 = vld [vmem:[%s976 + $0x10] sm:$0xf]
      %v1965 = vld [vmem:[%s976 + $0x18] sm:$0xf]
      %v1966 = vld [vmem:[%s976 + $0x1c] sm:$0xf]
      %v1967 = vld [vmem:[%s976 + $0x24] sm:$0xf]
      %v1968 = vld [vmem:[%s976 + $0x28] sm:$0xf]
      %v1969 = vld [vmem:[%s976 + $0x30] sm:$0xf]
      %v1970 = vld [vmem:[%s976 + $0x34] sm:$0xf]
      %v1971 = vld [vmem:[%s976 + $0x3c] sm:$0xf]
      %v1972 = vld [vmem:[%s976 + $0x40] sm:$0xf]
      %v1973 = vld [vmem:[%s976 + $0x48] sm:$0xf]
      %v1974 = vld [vmem:[%s976 + $0x4c] sm:$0xf]
      %v1975 = vld [vmem:[%s976 + $0x54] sm:$0xf]
      %v1976 = vld [vmem:[%s976 + $0x58] sm:$0xf]
      %v1977 = vld [vmem:[%s976 + $0x60] sm:$0xf]
      %v1978 = vld [vmem:[%s976 + $0x64] sm:$0xf]
      %v1979 = vld [vmem:[%s976 + $0x6c] sm:$0xf]
      %v1980 = vld [vmem:[%s976 + $0x70] sm:$0xf]
      %v1981 = vld [vmem:[%s976 + $0x78] sm:$0xf]
      %v1982 = vld [vmem:[%s976 + $0x7c] sm:$0xf]
      %v1983 = vld [vmem:[%s976 + $0x84] sm:$0xf]
      %v1984 = vld [vmem:[%s976 + $0x88] sm:$0xf]
      %v1985 = vld [vmem:[%s976 + $0x90] sm:$0xf]
      %v1986 = vld [vmem:[%s976 + $0x94] sm:$0xf]
      %v1987 = vld [vmem:[%s976 + $0x9c] sm:$0xf]
      %v1988 = vld [vmem:[%s976 + $0xa0] sm:$0xf]
      %v1989 = vld [vmem:[%s976 + $0xa8] sm:$0xf]
      %v1990 = vld [vmem:[%s976 + $0xac] sm:$0xf]
      %v1991 = vld [vmem:[%s976 + $0xb4] sm:$0xf]
      %v1992 = vld [vmem:[%s976 + $0xb8] sm:$0xf]
      %v1993 = vld [vmem:[%s976 + $0x8] sm:$0x1]
      %v1994 = vld [vmem:[%s976 + $0x14] sm:$0x1]
      %v1995 = vld [vmem:[%s976 + $0x20] sm:$0x1]
      %v1996 = vld [vmem:[%s976 + $0x2c] sm:$0x1]
      %v1997 = vld [vmem:[%s976 + $0x38] sm:$0x1]
      %v1998 = vld [vmem:[%s976 + $0x44] sm:$0x1]
      %v1999 = vld [vmem:[%s976 + $0x50] sm:$0x1]
      %v2000 = vld [vmem:[%s976 + $0x5c] sm:$0x1]
      %v2001 = vld [vmem:[%s976 + $0x68] sm:$0x1]
      %v2002 = vld [vmem:[%s976 + $0x74] sm:$0x1]
      %v2003 = vld [vmem:[%s976 + $0x80] sm:$0x1]
      %v2004 = vld [vmem:[%s976 + $0x8c] sm:$0x1]
      %v2005 = vld [vmem:[%s976 + $0x98] sm:$0x1]
      %v2006 = vld [vmem:[%s976 + $0xa4] sm:$0x1]
      %v2007 = vld [vmem:[%s976 + $0xb0] sm:$0x1]
      %v2008 = vld [vmem:[%s976 + $0xbc] sm:$0x1]
      %v2010 = vshrl.u32 %v1961, 16
      %v2012 = vrot.slane %v2010, 4
      %v2013 = vshll.u32 %v1961, 16
      %v2015 = vrot.slane %v2013, 5
      %v2016 = vor.u32 %v2012, %v2015
      %v2017 = vrot.slane %v2016, 4
      %v2019 = vshll.u32 %v1962, 16
      %v2021 = vrot.slane %v2019, 5
      %v2022 = vsel %vm1141, %v2017, %v2021
      %v2023 = vshrl.u32 %v1962, 16
      %v2025 = vrot.slane %v2023, 4
      %v2026 = vor.u32 %v2025, %v2021
      %v2027 = vrot.slane %v2026, 4
      %v2029 = vshll.u32 %v1993, 16
      %v2031 = vrot.slane %v2029, 5
      %v2032 = vsel %vm1141, %v2027, %v2031
      %v2034 = vshrl.u32 %v1963, 16
      %v2036 = vrot.slane %v2034, 4
      %v2037 = vshll.u32 %v1963, 16
      %v2039 = vrot.slane %v2037, 5
      %v2040 = vor.u32 %v2036, %v2039
      %v2041 = vrot.slane %v2040, 4
      %v2043 = vshll.u32 %v1964, 16
      %v2045 = vrot.slane %v2043, 5
      %v2046 = vsel %vm1141, %v2041, %v2045
      %v2047 = vshrl.u32 %v1964, 16
      %v2049 = vrot.slane %v2047, 4
      %v2050 = vor.u32 %v2049, %v2045
      %v2051 = vrot.slane %v2050, 4
      %v2053 = vshll.u32 %v1994, 16
      %v2055 = vrot.slane %v2053, 5
      %v2056 = vsel %vm1141, %v2051, %v2055
      %v2058 = vshrl.u32 %v1965, 16
      %v2060 = vrot.slane %v2058, 4
      %v2061 = vshll.u32 %v1965, 16
      %v2063 = vrot.slane %v2061, 5
      %v2064 = vor.u32 %v2060, %v2063
      %v2065 = vrot.slane %v2064, 4
      %v2067 = vshll.u32 %v1966, 16
      %v2069 = vrot.slane %v2067, 5
      %v2070 = vsel %vm1141, %v2065, %v2069
      %v2071 = vshrl.u32 %v1966, 16
      %v2073 = vrot.slane %v2071, 4
      %v2074 = vor.u32 %v2073, %v2069
      %v2075 = vrot.slane %v2074, 4
      %v2077 = vshll.u32 %v1995, 16
      %v2079 = vrot.slane %v2077, 5
      %v2080 = vsel %vm1141, %v2075, %v2079
      %v2082 = vshrl.u32 %v1967, 16
      %v2084 = vrot.slane %v2082, 4
      %v2085 = vshll.u32 %v1967, 16
      %v2087 = vrot.slane %v2085, 5
      %v2088 = vor.u32 %v2084, %v2087
      %v2089 = vrot.slane %v2088, 4
      %v2091 = vshll.u32 %v1968, 16
      %v2093 = vrot.slane %v2091, 5
      %v2094 = vsel %vm1141, %v2089, %v2093
      %v2095 = vshrl.u32 %v1968, 16
      %v2097 = vrot.slane %v2095, 4
      %v2098 = vor.u32 %v2097, %v2093
      %v2099 = vrot.slane %v2098, 4
      %v2101 = vshll.u32 %v1996, 16
      %v2103 = vrot.slane %v2101, 5
      %v2104 = vsel %vm1141, %v2099, %v2103
      %v2106 = vshrl.u32 %v1969, 16
      %v2108 = vrot.slane %v2106, 4
      %v2109 = vshll.u32 %v1969, 16
      %v2111 = vrot.slane %v2109, 5
      %v2112 = vor.u32 %v2108, %v2111
      %v2113 = vrot.slane %v2112, 4
      %v2115 = vshll.u32 %v1970, 16
      %v2117 = vrot.slane %v2115, 5
      %v2118 = vsel %vm1141, %v2113, %v2117
      %v2119 = vshrl.u32 %v1970, 16
      %v2121 = vrot.slane %v2119, 4
      %v2122 = vor.u32 %v2121, %v2117
      %v2123 = vrot.slane %v2122, 4
      %v2125 = vshll.u32 %v1997, 16
      %v2127 = vrot.slane %v2125, 5
      %v2128 = vsel %vm1141, %v2123, %v2127
      %v2130 = vshrl.u32 %v1971, 16
      %v2132 = vrot.slane %v2130, 4
      %v2133 = vshll.u32 %v1971, 16
      %v2135 = vrot.slane %v2133, 5
      %v2136 = vor.u32 %v2132, %v2135
      %v2137 = vrot.slane %v2136, 4
      %v2139 = vshll.u32 %v1972, 16
      %v2141 = vrot.slane %v2139, 5
      %v2142 = vsel %vm1141, %v2137, %v2141
      %v2143 = vshrl.u32 %v1972, 16
      %v2145 = vrot.slane %v2143, 4
      %v2146 = vor.u32 %v2145, %v2141
      %v2147 = vrot.slane %v2146, 4
      %v2149 = vshll.u32 %v1998, 16
      %v2151 = vrot.slane %v2149, 5
      %v2152 = vsel %vm1141, %v2147, %v2151
      %v2154 = vshrl.u32 %v1973, 16
      %v2156 = vrot.slane %v2154, 4
      %v2157 = vshll.u32 %v1973, 16
      %v2159 = vrot.slane %v2157, 5
      %v2160 = vor.u32 %v2156, %v2159
      %v2161 = vrot.slane %v2160, 4
      %v2163 = vshll.u32 %v1974, 16
      %v2165 = vrot.slane %v2163, 5
      %v2166 = vsel %vm1141, %v2161, %v2165
      %v2167 = vshrl.u32 %v1974, 16
      %v2169 = vrot.slane %v2167, 4
      %v2170 = vor.u32 %v2169, %v2165
      %v2171 = vrot.slane %v2170, 4
      %v2173 = vshll.u32 %v1999, 16
      %v2175 = vrot.slane %v2173, 5
      %v2176 = vsel %vm1141, %v2171, %v2175
      %v2178 = vshrl.u32 %v1975, 16
      %v2180 = vrot.slane %v2178, 4
      %v2181 = vshll.u32 %v1975, 16
      %v2183 = vrot.slane %v2181, 5
      %v2184 = vor.u32 %v2180, %v2183
      %v2185 = vrot.slane %v2184, 4
      %v2187 = vshll.u32 %v1976, 16
      %v2189 = vrot.slane %v2187, 5
      %v2190 = vsel %vm1141, %v2185, %v2189
      %v2191 = vshrl.u32 %v1976, 16
      %v2193 = vrot.slane %v2191, 4
      %v2194 = vor.u32 %v2193, %v2189
      %v2195 = vrot.slane %v2194, 4
      %v2197 = vshll.u32 %v2000, 16
      %v2199 = vrot.slane %v2197, 5
      %v2200 = vsel %vm1141, %v2195, %v2199
      %v2202 = vshrl.u32 %v1977, 16
      %v2204 = vrot.slane %v2202, 4
      %v2205 = vshll.u32 %v1977, 16
      %v2207 = vrot.slane %v2205, 5
      %v2208 = vor.u32 %v2204, %v2207
      %v2209 = vrot.slane %v2208, 4
      %v2211 = vshll.u32 %v1978, 16
      %v2213 = vrot.slane %v2211, 5
      %v2214 = vsel %vm1141, %v2209, %v2213
      %v2215 = vshrl.u32 %v1978, 16
      %v2217 = vrot.slane %v2215, 4
      %v2218 = vor.u32 %v2217, %v2213
      %v2219 = vrot.slane %v2218, 4
      %v2221 = vshll.u32 %v2001, 16
      %v2223 = vrot.slane %v2221, 5
      %v2224 = vsel %vm1141, %v2219, %v2223
      %v2226 = vshrl.u32 %v1979, 16
      %v2228 = vrot.slane %v2226, 4
      %v2229 = vshll.u32 %v1979, 16
      %v2231 = vrot.slane %v2229, 5
      %v2232 = vor.u32 %v2228, %v2231
      %v2233 = vrot.slane %v2232, 4
      %v2235 = vshll.u32 %v1980, 16
      %v2237 = vrot.slane %v2235, 5
      %v2238 = vsel %vm1141, %v2233, %v2237
      %v2239 = vshrl.u32 %v1980, 16
      %v2241 = vrot.slane %v2239, 4
      %v2242 = vor.u32 %v2241, %v2237
      %v2243 = vrot.slane %v2242, 4
      %v2245 = vshll.u32 %v2002, 16
      %v2247 = vrot.slane %v2245, 5
      %v2248 = vsel %vm1141, %v2243, %v2247
      %v2250 = vshrl.u32 %v1981, 16
      %v2252 = vrot.slane %v2250, 4
      %v2253 = vshll.u32 %v1981, 16
      %v2255 = vrot.slane %v2253, 5
      %v2256 = vor.u32 %v2252, %v2255
      %v2257 = vrot.slane %v2256, 4
      %v2259 = vshll.u32 %v1982, 16
      %v2261 = vrot.slane %v2259, 5
      %v2262 = vsel %vm1141, %v2257, %v2261
      %v2263 = vshrl.u32 %v1982, 16
      %v2265 = vrot.slane %v2263, 4
      %v2266 = vor.u32 %v2265, %v2261
      %v2267 = vrot.slane %v2266, 4
      %v2269 = vshll.u32 %v2003, 16
      %v2271 = vrot.slane %v2269, 5
      %v2272 = vsel %vm1141, %v2267, %v2271
      %v2274 = vshrl.u32 %v1983, 16
      %v2276 = vrot.slane %v2274, 4
      %v2277 = vshll.u32 %v1983, 16
      %v2279 = vrot.slane %v2277, 5
      %v2280 = vor.u32 %v2276, %v2279
      %v2281 = vrot.slane %v2280, 4
      %v2283 = vshll.u32 %v1984, 16
      %v2285 = vrot.slane %v2283, 5
      %v2286 = vsel %vm1141, %v2281, %v2285
      %v2287 = vshrl.u32 %v1984, 16
      %v2289 = vrot.slane %v2287, 4
      %v2290 = vor.u32 %v2289, %v2285
      %v2291 = vrot.slane %v2290, 4
      %v2293 = vshll.u32 %v2004, 16
      %v2295 = vrot.slane %v2293, 5
      %v2296 = vsel %vm1141, %v2291, %v2295
      %v2298 = vshrl.u32 %v1985, 16
      %v2300 = vrot.slane %v2298, 4
      %v2301 = vshll.u32 %v1985, 16
      %v2303 = vrot.slane %v2301, 5
      %v2304 = vor.u32 %v2300, %v2303
      %v2305 = vrot.slane %v2304, 4
      %v2307 = vshll.u32 %v1986, 16
      %v2309 = vrot.slane %v2307, 5
      %v2310 = vsel %vm1141, %v2305, %v2309
      %v2311 = vshrl.u32 %v1986, 16
      %v2313 = vrot.slane %v2311, 4
      %v2314 = vor.u32 %v2313, %v2309
      %v2315 = vrot.slane %v2314, 4
      %v2317 = vshll.u32 %v2005, 16
      %v2319 = vrot.slane %v2317, 5
      %v2320 = vsel %vm1141, %v2315, %v2319
      %v2322 = vshrl.u32 %v1987, 16
      %v2324 = vrot.slane %v2322, 4
      %v2325 = vshll.u32 %v1987, 16
      %v2327 = vrot.slane %v2325, 5
      %v2328 = vor.u32 %v2324, %v2327
      %v2329 = vrot.slane %v2328, 4
      %v2331 = vshll.u32 %v1988, 16
      %v2333 = vrot.slane %v2331, 5
      %v2334 = vsel %vm1141, %v2329, %v2333
      %v2335 = vshrl.u32 %v1988, 16
      %v2337 = vrot.slane %v2335, 4
      %v2338 = vor.u32 %v2337, %v2333
      %v2339 = vrot.slane %v2338, 4
      %v2341 = vshll.u32 %v2006, 16
      %v2343 = vrot.slane %v2341, 5
      %v2344 = vsel %vm1141, %v2339, %v2343
      %v2346 = vshrl.u32 %v1989, 16
      %v2348 = vrot.slane %v2346, 4
      %v2349 = vshll.u32 %v1989, 16
      %v2351 = vrot.slane %v2349, 5
      %v2352 = vor.u32 %v2348, %v2351
      %v2353 = vrot.slane %v2352, 4
      %v2355 = vshll.u32 %v1990, 16
      %v2357 = vrot.slane %v2355, 5
      %v2358 = vsel %vm1141, %v2353, %v2357
      %v2359 = vshrl.u32 %v1990, 16
      %v2361 = vrot.slane %v2359, 4
      %v2362 = vor.u32 %v2361, %v2357
      %v2363 = vrot.slane %v2362, 4
      %v2365 = vshll.u32 %v2007, 16
      %v2367 = vrot.slane %v2365, 5
      %v2368 = vsel %vm1141, %v2363, %v2367
      %v2370 = vshrl.u32 %v1991, 16
      %v2372 = vrot.slane %v2370, 4
      %v2373 = vshll.u32 %v1991, 16
      %v2375 = vrot.slane %v2373, 5
      %v2376 = vor.u32 %v2372, %v2375
      %v2377 = vrot.slane %v2376, 4
      %v2379 = vshll.u32 %v1992, 16
      %v2381 = vrot.slane %v2379, 5
      %v2382 = vsel %vm1141, %v2377, %v2381
      %v2383 = vshrl.u32 %v1992, 16
      %v2385 = vrot.slane %v2383, 4
      %v2386 = vor.u32 %v2385, %v2381
      %v2387 = vrot.slane %v2386, 4
      %v2389 = vshll.u32 %v2008, 16
      %v2391 = vrot.slane %v2389, 5
      %v2392 = vsel %vm1141, %v2387, %v2391
      %v2393 = vld [vmem:[%s976] sm:$0xe]
      %v2394 = vld [vmem:[%s976 + $0xc] sm:$0xe]
      %v2395 = vld [vmem:[%s976 + $0x18] sm:$0xe]
      %v2396 = vld [vmem:[%s976 + $0x24] sm:$0xe]
      %v2397 = vld [vmem:[%s976 + $0x30] sm:$0xe]
      %v2398 = vld [vmem:[%s976 + $0x3c] sm:$0xe]
      %v2399 = vld [vmem:[%s976 + $0x48] sm:$0xe]
      %v2400 = vld [vmem:[%s976 + $0x54] sm:$0xe]
      %v2401 = vld [vmem:[%s976 + $0x60] sm:$0xe]
      %v2402 = vld [vmem:[%s976 + $0x6c] sm:$0xe]
      %v2403 = vld [vmem:[%s976 + $0x78] sm:$0xe]
      %v2404 = vld [vmem:[%s976 + $0x84] sm:$0xe]
      %v2405 = vld [vmem:[%s976 + $0x90] sm:$0xe]
      %v2406 = vld [vmem:[%s976 + $0x9c] sm:$0xe]
      %v2407 = vld [vmem:[%s976 + $0xa8] sm:$0xe]
      %v2408 = vld [vmem:[%s976 + $0xb4] sm:$0xe]
      %v2457 = vrot.slane %v2393, 5
      %v2458 = vrot.slane %v2457, 4
      %v2459 = vrot.slane %v1962, 5
      %v2460 = vsel %vm1592, %v2458, %v2459
      %v2461 = vrot.slane %v2459, 4
      %v2462 = vrot.slane %v1993, 5
      %v2463 = vsel %vm1592, %v2461, %v2462
      %v2464 = vrot.slane %v2394, 5
      %v2465 = vrot.slane %v2464, 4
      %v2466 = vrot.slane %v1964, 5
      %v2467 = vsel %vm1592, %v2465, %v2466
      %v2468 = vrot.slane %v2466, 4
      %v2469 = vrot.slane %v1994, 5
      %v2470 = vsel %vm1592, %v2468, %v2469
      %v2471 = vrot.slane %v2395, 5
      %v2472 = vrot.slane %v2471, 4
      %v2473 = vrot.slane %v1966, 5
      %v2474 = vsel %vm1592, %v2472, %v2473
      %v2475 = vrot.slane %v2473, 4
      %v2476 = vrot.slane %v1995, 5
      %v2477 = vsel %vm1592, %v2475, %v2476
      %v2478 = vrot.slane %v2396, 5
      %v2479 = vrot.slane %v2478, 4
      %v2480 = vrot.slane %v1968, 5
      %v2481 = vsel %vm1592, %v2479, %v2480
      %v2482 = vrot.slane %v2480, 4
      %v2483 = vrot.slane %v1996, 5
      %v2484 = vsel %vm1592, %v2482, %v2483
      %v2485 = vrot.slane %v2397, 5
      %v2486 = vrot.slane %v2485, 4
      %v2487 = vrot.slane %v1970, 5
      %v2488 = vsel %vm1592, %v2486, %v2487
      %v2489 = vrot.slane %v2487, 4
      %v2490 = vrot.slane %v1997, 5
      %v2491 = vsel %vm1592, %v2489, %v2490
      %v2492 = vrot.slane %v2398, 5
      %v2493 = vrot.slane %v2492, 4
      %v2494 = vrot.slane %v1972, 5
      %v2495 = vsel %vm1592, %v2493, %v2494
      %v2496 = vrot.slane %v2494, 4
      %v2497 = vrot.slane %v1998, 5
      %v2498 = vsel %vm1592, %v2496, %v2497
      %v2499 = vrot.slane %v2399, 5
      %v2500 = vrot.slane %v2499, 4
      %v2501 = vrot.slane %v1974, 5
      %v2502 = vsel %vm1592, %v2500, %v2501
      %v2503 = vrot.slane %v2501, 4
      %v2504 = vrot.slane %v1999, 5
      %v2505 = vsel %vm1592, %v2503, %v2504
      %v2506 = vrot.slane %v2400, 5
      %v2507 = vrot.slane %v2506, 4
      %v2508 = vrot.slane %v1976, 5
      %v2509 = vsel %vm1592, %v2507, %v2508
      %v2510 = vrot.slane %v2508, 4
      %v2511 = vrot.slane %v2000, 5
      %v2512 = vsel %vm1592, %v2510, %v2511
      %v2513 = vrot.slane %v2401, 5
      %v2514 = vrot.slane %v2513, 4
      %v2515 = vrot.slane %v1978, 5
      %v2516 = vsel %vm1592, %v2514, %v2515
      %v2517 = vrot.slane %v2515, 4
      %v2518 = vrot.slane %v2001, 5
      %v2519 = vsel %vm1592, %v2517, %v2518
      %v2520 = vrot.slane %v2402, 5
      %v2521 = vrot.slane %v2520, 4
      %v2522 = vrot.slane %v1980, 5
      %v2523 = vsel %vm1592, %v2521, %v2522
      %v2524 = vrot.slane %v2522, 4
      %v2525 = vrot.slane %v2002, 5
      %v2526 = vsel %vm1592, %v2524, %v2525
      %v2527 = vrot.slane %v2403, 5
      %v2528 = vrot.slane %v2527, 4
      %v2529 = vrot.slane %v1982, 5
      %v2530 = vsel %vm1592, %v2528, %v2529
      %v2531 = vrot.slane %v2529, 4
      %v2532 = vrot.slane %v2003, 5
      %v2533 = vsel %vm1592, %v2531, %v2532
      %v2534 = vrot.slane %v2404, 5
      %v2535 = vrot.slane %v2534, 4
      %v2536 = vrot.slane %v1984, 5
      %v2537 = vsel %vm1592, %v2535, %v2536
      %v2538 = vrot.slane %v2536, 4
      %v2539 = vrot.slane %v2004, 5
      %v2540 = vsel %vm1592, %v2538, %v2539
      %v2541 = vrot.slane %v2405, 5
      %v2542 = vrot.slane %v2541, 4
      %v2543 = vrot.slane %v1986, 5
      %v2544 = vsel %vm1592, %v2542, %v2543
      %v2545 = vrot.slane %v2543, 4
      %v2546 = vrot.slane %v2005, 5
      %v2547 = vsel %vm1592, %v2545, %v2546
      %v2548 = vrot.slane %v2406, 5
      %v2549 = vrot.slane %v2548, 4
      %v2550 = vrot.slane %v1988, 5
      %v2551 = vsel %vm1592, %v2549, %v2550
      %v2552 = vrot.slane %v2550, 4
      %v2553 = vrot.slane %v2006, 5
      %v2554 = vsel %vm1592, %v2552, %v2553
      %v2555 = vrot.slane %v2407, 5
      %v2556 = vrot.slane %v2555, 4
      %v2557 = vrot.slane %v1990, 5
      %v2558 = vsel %vm1592, %v2556, %v2557
      %v2559 = vrot.slane %v2557, 4
      %v2560 = vrot.slane %v2007, 5
      %v2561 = vsel %vm1592, %v2559, %v2560
      %v2562 = vrot.slane %v2408, 5
      %v2563 = vrot.slane %v2562, 4
      %v2564 = vrot.slane %v1992, 5
      %v2565 = vsel %vm1592, %v2563, %v2564
      %v2566 = vrot.slane %v2564, 4
      %v2567 = vrot.slane %v2008, 5
      %v2568 = vsel %vm1592, %v2566, %v2567
      %v2585 = vunpack.c.l.b16 %v1961
      %v2586 = vunpack.c.l.b16 %v1962
      %v2587 = vunpack.c.l.b16 %v1963
      %v2588 = vunpack.c.l.b16 %v1964
      %v2589 = vunpack.c.l.b16 %v1965
      %v2590 = vunpack.c.l.b16 %v1966
      %v2591 = vunpack.c.l.b16 %v1967
      %v2592 = vunpack.c.l.b16 %v1968
      %v2593 = vunpack.c.l.b16 %v1969
      %v2594 = vunpack.c.l.b16 %v1970
      %v2595 = vunpack.c.l.b16 %v1971
      %v2596 = vunpack.c.l.b16 %v1972
      %v2597 = vunpack.c.l.b16 %v1973
      %v2598 = vunpack.c.l.b16 %v1974
      %v2599 = vunpack.c.l.b16 %v1975
      %v2600 = vunpack.c.l.b16 %v1976
      %v2601 = vunpack.c.l.b16 %v1977
      %v2602 = vunpack.c.l.b16 %v1978
      %v2603 = vunpack.c.l.b16 %v1979
      %v2604 = vunpack.c.l.b16 %v1980
      %v2605 = vunpack.c.l.b16 %v1981
      %v2606 = vunpack.c.l.b16 %v1982
      %v2607 = vunpack.c.l.b16 %v1983
      %v2608 = vunpack.c.l.b16 %v1984
      %v2609 = vunpack.c.l.b16 %v1985
      %v2610 = vunpack.c.l.b16 %v1986
      %v2611 = vunpack.c.l.b16 %v1987
      %v2612 = vunpack.c.l.b16 %v1988
      %v2613 = vunpack.c.l.b16 %v1989
      %v2614 = vunpack.c.l.b16 %v1990
      %v2615 = vunpack.c.l.b16 %v1991
      %v2616 = vunpack.c.l.b16 %v1992
      %v2617 = vpack.c.b16 %v2586, %v2585
      %v2618 = vpack.c.b16 %v2588, %v2587
      %v2619 = vpack.c.b16 %v2590, %v2589
      %v2620 = vpack.c.b16 %v2592, %v2591
      %v2621 = vpack.c.b16 %v2594, %v2593
      %v2622 = vpack.c.b16 %v2596, %v2595
      %v2623 = vpack.c.b16 %v2598, %v2597
      %v2624 = vpack.c.b16 %v2600, %v2599
      %v2625 = vpack.c.b16 %v2602, %v2601
      %v2626 = vpack.c.b16 %v2604, %v2603
      %v2627 = vpack.c.b16 %v2606, %v2605
      %v2628 = vpack.c.b16 %v2608, %v2607
      %v2629 = vpack.c.b16 %v2610, %v2609
      %v2630 = vpack.c.b16 %v2612, %v2611
      %v2631 = vpack.c.b16 %v2614, %v2613
      %v2632 = vpack.c.b16 %v2616, %v2615
      %v2649 = vunpack.c.l.b16 %v2022
      %v2650 = vunpack.c.l.b16 %v2032
      %v2651 = vunpack.c.l.b16 %v2046
      %v2652 = vunpack.c.l.b16 %v2056
      %v2653 = vunpack.c.l.b16 %v2070
      %v2654 = vunpack.c.l.b16 %v2080
      %v2655 = vunpack.c.l.b16 %v2094
      %v2656 = vunpack.c.l.b16 %v2104
      %v2657 = vunpack.c.l.b16 %v2118
      %v2658 = vunpack.c.l.b16 %v2128
      %v2659 = vunpack.c.l.b16 %v2142
      %v2660 = vunpack.c.l.b16 %v2152
      %v2661 = vunpack.c.l.b16 %v2166
      %v2662 = vunpack.c.l.b16 %v2176
      %v2663 = vunpack.c.l.b16 %v2190
      %v2664 = vunpack.c.l.b16 %v2200
      %v2665 = vunpack.c.l.b16 %v2214
      %v2666 = vunpack.c.l.b16 %v2224
      %v2667 = vunpack.c.l.b16 %v2238
      %v2668 = vunpack.c.l.b16 %v2248
      %v2669 = vunpack.c.l.b16 %v2262
      %v2670 = vunpack.c.l.b16 %v2272
      %v2671 = vunpack.c.l.b16 %v2286
      %v2672 = vunpack.c.l.b16 %v2296
      %v2673 = vunpack.c.l.b16 %v2310
      %v2674 = vunpack.c.l.b16 %v2320
      %v2675 = vunpack.c.l.b16 %v2334
      %v2676 = vunpack.c.l.b16 %v2344
      %v2677 = vunpack.c.l.b16 %v2358
      %v2678 = vunpack.c.l.b16 %v2368
      %v2679 = vunpack.c.l.b16 %v2382
      %v2680 = vunpack.c.l.b16 %v2392
      %v2681 = vpack.c.b16 %v2650, %v2649
      %v2682 = vpack.c.b16 %v2652, %v2651
      %v2683 = vpack.c.b16 %v2654, %v2653
      %v2684 = vpack.c.b16 %v2656, %v2655
      %v2685 = vpack.c.b16 %v2658, %v2657
      %v2686 = vpack.c.b16 %v2660, %v2659
      %v2687 = vpack.c.b16 %v2662, %v2661
      %v2688 = vpack.c.b16 %v2664, %v2663
      %v2689 = vpack.c.b16 %v2666, %v2665
      %v2690 = vpack.c.b16 %v2668, %v2667
      %v2691 = vpack.c.b16 %v2670, %v2669
      %v2692 = vpack.c.b16 %v2672, %v2671
      %v2693 = vpack.c.b16 %v2674, %v2673
      %v2694 = vpack.c.b16 %v2676, %v2675
      %v2695 = vpack.c.b16 %v2678, %v2677
      %v2696 = vpack.c.b16 %v2680, %v2679
      %v2713 = vunpack.c.l.b16 %v2460
      %v2714 = vunpack.c.l.b16 %v2463
      %v2715 = vunpack.c.l.b16 %v2467
      %v2716 = vunpack.c.l.b16 %v2470
      %v2717 = vunpack.c.l.b16 %v2474
      %v2718 = vunpack.c.l.b16 %v2477
      %v2719 = vunpack.c.l.b16 %v2481
      %v2720 = vunpack.c.l.b16 %v2484
      %v2721 = vunpack.c.l.b16 %v2488
      %v2722 = vunpack.c.l.b16 %v2491
      %v2723 = vunpack.c.l.b16 %v2495
      %v2724 = vunpack.c.l.b16 %v2498
      %v2725 = vunpack.c.l.b16 %v2502
      %v2726 = vunpack.c.l.b16 %v2505
      %v2727 = vunpack.c.l.b16 %v2509
      %v2728 = vunpack.c.l.b16 %v2512
      %v2729 = vunpack.c.l.b16 %v2516
      %v2730 = vunpack.c.l.b16 %v2519
      %v2731 = vunpack.c.l.b16 %v2523
      %v2732 = vunpack.c.l.b16 %v2526
      %v2733 = vunpack.c.l.b16 %v2530
      %v2734 = vunpack.c.l.b16 %v2533
      %v2735 = vunpack.c.l.b16 %v2537
      %v2736 = vunpack.c.l.b16 %v2540
      %v2737 = vunpack.c.l.b16 %v2544
      %v2738 = vunpack.c.l.b16 %v2547
      %v2739 = vunpack.c.l.b16 %v2551
      %v2740 = vunpack.c.l.b16 %v2554
      %v2741 = vunpack.c.l.b16 %v2558
      %v2742 = vunpack.c.l.b16 %v2561
      %v2743 = vunpack.c.l.b16 %v2565
      %v2744 = vunpack.c.l.b16 %v2568
      %v2745 = vpack.c.b16 %v2714, %v2713
      %v2746 = vpack.c.b16 %v2716, %v2715
      %v2747 = vpack.c.b16 %v2718, %v2717
      %v2748 = vpack.c.b16 %v2720, %v2719
      %v2749 = vpack.c.b16 %v2722, %v2721
      %v2750 = vpack.c.b16 %v2724, %v2723
      %v2751 = vpack.c.b16 %v2726, %v2725
      %v2752 = vpack.c.b16 %v2728, %v2727
      %v2753 = vpack.c.b16 %v2730, %v2729
      %v2754 = vpack.c.b16 %v2732, %v2731
      %v2755 = vpack.c.b16 %v2734, %v2733
      %v2756 = vpack.c.b16 %v2736, %v2735
      %v2757 = vpack.c.b16 %v2738, %v2737
      %v2758 = vpack.c.b16 %v2740, %v2739
      %v2759 = vpack.c.b16 %v2742, %v2741
      %v2760 = vpack.c.b16 %v2744, %v2743
      %v2777 = vld [vmem:[%s3 + $0xc0] sm:$0xf]
      %v2778 = vld [vmem:[%s3 + $0xc4] sm:$0xf]
      %v2779 = vld [vmem:[%s3 + $0xc8] sm:$0xf]
      %v2780 = vld [vmem:[%s3 + $0xcc] sm:$0xf]
      %v2781 = vld [vmem:[%s3 + $0xd0] sm:$0xf]
      %v2782 = vld [vmem:[%s3 + $0xd4] sm:$0xf]
      %v2783 = vld [vmem:[%s3 + $0xd8] sm:$0xf]
      %v2784 = vld [vmem:[%s3 + $0xdc] sm:$0xf]
      %v2785 = vld [vmem:[%s3 + $0xe0] sm:$0xf]
      %v2786 = vld [vmem:[%s3 + $0xe4] sm:$0xf]
      %v2787 = vld [vmem:[%s3 + $0xe8] sm:$0xf]
      %v2788 = vld [vmem:[%s3 + $0xec] sm:$0xf]
      %v2789 = vld [vmem:[%s3 + $0xf0] sm:$0xf]
      %v2790 = vld [vmem:[%s3 + $0xf4] sm:$0xf]
      %v2791 = vld [vmem:[%s3 + $0xf8] sm:$0xf]
      %v2792 = vld [vmem:[%s3 + $0xfc] sm:$0xf]
      %v2793 = vld [vmem:[%s3 + $0x100] sm:$0xf]
      %v2794 = vld [vmem:[%s3 + $0x104] sm:$0xf]
      %v2795 = vld [vmem:[%s3 + $0x108] sm:$0xf]
      %v2796 = vld [vmem:[%s3 + $0x10c] sm:$0xf]
      %v2797 = vld [vmem:[%s3 + $0x110] sm:$0xf]
      %v2798 = vld [vmem:[%s3 + $0x114] sm:$0xf]
      %v2799 = vld [vmem:[%s3 + $0x118] sm:$0xf]
      %v2800 = vld [vmem:[%s3 + $0x11c] sm:$0xf]
      %v2801 = vld [vmem:[%s3 + $0x120] sm:$0xf]
      %v2802 = vld [vmem:[%s3 + $0x124] sm:$0xf]
      %v2803 = vld [vmem:[%s3 + $0x128] sm:$0xf]
      %v2804 = vld [vmem:[%s3 + $0x12c] sm:$0xf]
      %v2805 = vld [vmem:[%s3 + $0x130] sm:$0xf]
      %v2806 = vld [vmem:[%s3 + $0x134] sm:$0xf]
      %v2807 = vld [vmem:[%s3 + $0x138] sm:$0xf]
      %v2808 = vld [vmem:[%s3 + $0x13c] sm:$0xf]
      %v2809 = vld [vmem:[%s3 + $0x140] sm:$0xf]
      %v2810 = vld [vmem:[%s3 + $0x144] sm:$0xf]
      %v2811 = vld [vmem:[%s3 + $0x148] sm:$0xf]
      %v2812 = vld [vmem:[%s3 + $0x14c] sm:$0xf]
      %v2813 = vld [vmem:[%s3 + $0x150] sm:$0xf]
      %v2814 = vld [vmem:[%s3 + $0x154] sm:$0xf]
      %v2815 = vld [vmem:[%s3 + $0x158] sm:$0xf]
      %v2816 = vld [vmem:[%s3 + $0x15c] sm:$0xf]
      %v2817 = vld [vmem:[%s3 + $0x160] sm:$0xf]
      %v2818 = vld [vmem:[%s3 + $0x164] sm:$0xf]
      %v2819 = vld [vmem:[%s3 + $0x168] sm:$0xf]
      %v2820 = vld [vmem:[%s3 + $0x16c] sm:$0xf]
      %v2821 = vld [vmem:[%s3 + $0x170] sm:$0xf]
      %v2822 = vld [vmem:[%s3 + $0x174] sm:$0xf]
      %v2823 = vld [vmem:[%s3 + $0x178] sm:$0xf]
      %v2824 = vld [vmem:[%s3 + $0x17c] sm:$0xf]
      %v2873 = vunpack.c.l.b16 %v2777
      %v2874 = vunpack.c.l.b16 %v2778
      %v2875 = vunpack.c.l.b16 %v2779
      %v2876 = vunpack.c.l.b16 %v2780
      %v2877 = vunpack.c.l.b16 %v2781
      %v2878 = vunpack.c.l.b16 %v2782
      %v2879 = vunpack.c.l.b16 %v2783
      %v2880 = vunpack.c.l.b16 %v2784
      %v2881 = vunpack.c.l.b16 %v2785
      %v2882 = vunpack.c.l.b16 %v2786
      %v2883 = vunpack.c.l.b16 %v2787
      %v2884 = vunpack.c.l.b16 %v2788
      %v2885 = vunpack.c.l.b16 %v2789
      %v2886 = vunpack.c.l.b16 %v2790
      %v2887 = vunpack.c.l.b16 %v2791
      %v2888 = vunpack.c.l.b16 %v2792
      %v2889 = vunpack.c.l.b16 %v2793
      %v2890 = vunpack.c.l.b16 %v2794
      %v2891 = vunpack.c.l.b16 %v2795
      %v2892 = vunpack.c.l.b16 %v2796
      %v2893 = vunpack.c.l.b16 %v2797
      %v2894 = vunpack.c.l.b16 %v2798
      %v2895 = vunpack.c.l.b16 %v2799
      %v2896 = vunpack.c.l.b16 %v2800
      %v2897 = vunpack.c.l.b16 %v2801
      %v2898 = vunpack.c.l.b16 %v2802
      %v2899 = vunpack.c.l.b16 %v2803
      %v2900 = vunpack.c.l.b16 %v2804
      %v2901 = vunpack.c.l.b16 %v2805
      %v2902 = vunpack.c.l.b16 %v2806
      %v2903 = vunpack.c.l.b16 %v2807
      %v2904 = vunpack.c.l.b16 %v2808
      %v2905 = vunpack.c.l.b16 %v2809
      %v2906 = vunpack.c.l.b16 %v2810
      %v2907 = vunpack.c.l.b16 %v2811
      %v2908 = vunpack.c.l.b16 %v2812
      %v2909 = vunpack.c.l.b16 %v2813
      %v2910 = vunpack.c.l.b16 %v2814
      %v2911 = vunpack.c.l.b16 %v2815
      %v2912 = vunpack.c.l.b16 %v2816
      %v2913 = vunpack.c.l.b16 %v2817
      %v2914 = vunpack.c.l.b16 %v2818
      %v2915 = vunpack.c.l.b16 %v2819
      %v2916 = vunpack.c.l.b16 %v2820
      %v2917 = vunpack.c.l.b16 %v2821
      %v2918 = vunpack.c.l.b16 %v2822
      %v2919 = vunpack.c.l.b16 %v2823
      %v2920 = vunpack.c.l.b16 %v2824
      %v2921 = vpack.c.b16 %v2874, %v2873
      %v2922 = vpack.c.b16 %v2876, %v2875
      %v2923 = vpack.c.b16 %v2878, %v2877
      %v2924 = vpack.c.b16 %v2880, %v2879
      %v2925 = vpack.c.b16 %v2882, %v2881
      %v2926 = vpack.c.b16 %v2884, %v2883
      %v2927 = vpack.c.b16 %v2886, %v2885
      %v2928 = vpack.c.b16 %v2888, %v2887
      %v2929 = vpack.c.b16 %v2890, %v2889
      %v2930 = vpack.c.b16 %v2892, %v2891
      %v2931 = vpack.c.b16 %v2894, %v2893
      %v2932 = vpack.c.b16 %v2896, %v2895
      %v2933 = vpack.c.b16 %v2898, %v2897
      %v2934 = vpack.c.b16 %v2900, %v2899
      %v2935 = vpack.c.b16 %v2902, %v2901
      %v2936 = vpack.c.b16 %v2904, %v2903
      %v2937 = vpack.c.b16 %v2906, %v2905
      %v2938 = vpack.c.b16 %v2908, %v2907
      %v2939 = vpack.c.b16 %v2910, %v2909
      %v2940 = vpack.c.b16 %v2912, %v2911
      %v2941 = vpack.c.b16 %v2914, %v2913
      %v2942 = vpack.c.b16 %v2916, %v2915
      %v2943 = vpack.c.b16 %v2918, %v2917
      %v2944 = vpack.c.b16 %v2920, %v2919
      %2969 = vmatprep.subr.bf16.mxu0 0
      %2970 = vmatpush1.bf16.msra.mxu0 %v2921
      %2971 = vmatprep.subr.bf16.mxu0 0
      %2972 = vmatpush1.bf16.msra.mxu0 %v2922
      %2973 = vmatprep.subr.bf16.mxu0 0
      %2974 = vmatpush1.bf16.msra.mxu0 %v2923
      %2975 = vmatprep.subr.bf16.mxu0 0
      %2976 = vmatpush1.bf16.msra.mxu0 %v2924
      %2977 = vmatprep.subr.bf16.mxu0 0
      %2978 = vmatpush1.bf16.msra.mxu0 %v2925
      %2979 = vmatprep.subr.bf16.mxu0 0
      %2980 = vmatpush1.bf16.msra.mxu0 %v2926
      %2981 = vmatprep.subr.bf16.mxu0 0
      %2982 = vmatpush1.bf16.msra.mxu0 %v2927
      %2983 = vmatprep.subr.bf16.mxu0 0
      %2984 = vmatpush1.bf16.msra.mxu0 %v2928
      %2985 = vmatprep.subr.bf16.mxu0 0
      %2986 = vmatpush1.bf16.msra.mxu0 %v2929
      %2987 = vmatprep.subr.bf16.mxu0 0
      %2988 = vmatpush1.bf16.msra.mxu0 %v2930
      %2989 = vmatprep.subr.bf16.mxu0 0
      %2990 = vmatpush1.bf16.msra.mxu0 %v2931
      %2991 = vmatprep.subr.bf16.mxu0 0
      %2992 = vmatpush1.bf16.msra.mxu0 %v2932
      %2993 = vmatprep.subr.bf16.mxu0 0
      %2994 = vmatpush1.bf16.msra.mxu0 %v2933
      %2995 = vmatprep.subr.bf16.mxu0 0
      %2996 = vmatpush1.bf16.msra.mxu0 %v2934
      %2997 = vmatprep.subr.bf16.mxu0 0
      %2998 = vmatpush1.bf16.msra.mxu0 %v2935
      %2999 = vmatprep.subr.bf16.mxu0 0
      %3000 = vmatpush1.bf16.msra.mxu0 %v2936
      %3001 = vmatprep.mubr.bf16.mxu0 %v2681
      %3002 = vmatmul.mubr.bf16.gmra.mrb[0].mxu0 %v2617
      %v3003 = vpop.f32.mrb[0].mxu0
      %v3004 = vadd.f32 0.0, %v3003
      %v3005 = vpop.f32.mrb[0].mxu0
      %v3006 = vpop.f32.mrb[0].mxu0
      %v3007 = vadd.f32 0.0, %v3006
      %v3008 = vpop.f32.mrb[0].mxu0
      %3009 = vmatprep.mubr.bf16.mxu0 %v2682
      %3010 = vmatmul.mubr.bf16.gmra.mrb[0].mxu0 %v2618
      %v3011 = vpop.f32.mrb[0].mxu0
      %v3012 = vadd.f32 0.0, %v3011
      %v3013 = vpop.f32.mrb[0].mxu0
      %v3014 = vpop.f32.mrb[0].mxu0
      %v3015 = vadd.f32 0.0, %v3014
      %v3016 = vpop.f32.mrb[0].mxu0
      %3017 = vmatprep.mubr.bf16.mxu0 %v2683
      %3018 = vmatmul.mubr.bf16.gmra.mrb[0].mxu0 %v2619
      %v3019 = vpop.f32.mrb[0].mxu0
      %v3020 = vadd.f32 0.0, %v3019
      %v3021 = vpop.f32.mrb[0].mxu0
      %v3022 = vpop.f32.mrb[0].mxu0
      %v3023 = vadd.f32 0.0, %v3022
      %v3024 = vpop.f32.mrb[0].mxu0
      %3025 = vmatprep.mubr.bf16.mxu0 %v2684
      %3026 = vmatmul.mubr.bf16.gmra.mrb[0].mxu0 %v2620
      %v3027 = vpop.f32.mrb[0].mxu0
      %v3028 = vadd.f32 0.0, %v3027
      %v3029 = vpop.f32.mrb[0].mxu0
      %v3030 = vpop.f32.mrb[0].mxu0
      %v3031 = vadd.f32 0.0, %v3030
      %v3032 = vpop.f32.mrb[0].mxu0
      %3033 = vmatprep.mubr.bf16.mxu0 %v2685
      %3034 = vmatmul.mubr.bf16.gmra.mrb[0].mxu0 %v2621
      %v3035 = vpop.f32.mrb[0].mxu0
      %v3036 = vadd.f32 0.0, %v3035
      %v3037 = vpop.f32.mrb[0].mxu0
      %v3038 = vpop.f32.mrb[0].mxu0
      %v3039 = vadd.f32 0.0, %v3038
      %v3040 = vpop.f32.mrb[0].mxu0
      %3041 = vmatprep.mubr.bf16.mxu0 %v2686
      %3042 = vmatmul.mubr.bf16.gmra.mrb[0].mxu0 %v2622
      %v3043 = vpop.f32.mrb[0].mxu0
      %v3044 = vadd.f32 0.0, %v3043
      %v3045 = vpop.f32.mrb[0].mxu0
      %v3046 = vpop.f32.mrb[0].mxu0
      %v3047 = vadd.f32 0.0, %v3046
      %v3048 = vpop.f32.mrb[0].mxu0
      %3049 = vmatprep.mubr.bf16.mxu0 %v2687
      %3050 = vmatmul.mubr.bf16.gmra.mrb[0].mxu0 %v2623
      %v3051 = vpop.f32.mrb[0].mxu0
      %v3052 = vadd.f32 0.0, %v3051
      %v3053 = vpop.f32.mrb[0].mxu0
      %v3054 = vpop.f32.mrb[0].mxu0
      %v3055 = vadd.f32 0.0, %v3054
      %v3056 = vpop.f32.mrb[0].mxu0
      %3057 = vmatprep.mubr.bf16.mxu0 %v2688
      %3058 = vmatmul.mubr.bf16.gmra.mrb[0].mxu0 %v2624
      %v3059 = vpop.f32.mrb[0].mxu0
      %v3060 = vadd.f32 0.0, %v3059
      %v3061 = vpop.f32.mrb[0].mxu0
      %v3062 = vpop.f32.mrb[0].mxu0
      %v3063 = vadd.f32 0.0, %v3062
      %v3064 = vpop.f32.mrb[0].mxu0
      %3065 = vmatprep.mubr.bf16.mxu0 %v2689
      %3066 = vmatmul.mubr.bf16.gmra.mrb[0].mxu0 %v2625
      %v3067 = vpop.f32.mrb[0].mxu0
      %v3068 = vadd.f32 0.0, %v3067
      %v3069 = vpop.f32.mrb[0].mxu0
      %v3070 = vpop.f32.mrb[0].mxu0
      %v3071 = vadd.f32 0.0, %v3070
      %v3072 = vpop.f32.mrb[0].mxu0
      %3073 = vmatprep.mubr.bf16.mxu0 %v2690
      %3074 = vmatmul.mubr.bf16.gmra.mrb[0].mxu0 %v2626
      %v3075 = vpop.f32.mrb[0].mxu0
      %v3076 = vadd.f32 0.0, %v3075
      %v3077 = vpop.f32.mrb[0].mxu0
      %v3078 = vpop.f32.mrb[0].mxu0
      %v3079 = vadd.f32 0.0, %v3078
      %v3080 = vpop.f32.mrb[0].mxu0
      %3081 = vmatprep.mubr.bf16.mxu0 %v2691
      %3082 = vmatmul.mubr.bf16.gmra.mrb[0].mxu0 %v2627
      %v3083 = vpop.f32.mrb[0].mxu0
      %v3084 = vadd.f32 0.0, %v3083
      %v3085 = vpop.f32.mrb[0].mxu0
      %v3086 = vpop.f32.mrb[0].mxu0
      %v3087 = vadd.f32 0.0, %v3086
      %v3088 = vpop.f32.mrb[0].mxu0
      %3089 = vmatprep.mubr.bf16.mxu0 %v2692
      %3090 = vmatmul.mubr.bf16.gmra.mrb[0].mxu0 %v2628
      %v3091 = vpop.f32.mrb[0].mxu0
      %v3092 = vadd.f32 0.0, %v3091
      %v3093 = vpop.f32.mrb[0].mxu0
      %v3094 = vpop.f32.mrb[0].mxu0
      %v3095 = vadd.f32 0.0, %v3094
      %v3096 = vpop.f32.mrb[0].mxu0
      %3097 = vmatprep.mubr.bf16.mxu0 %v2693
      %3098 = vmatmul.mubr.bf16.gmra.mrb[0].mxu0 %v2629
      %v3099 = vpop.f32.mrb[0].mxu0
      %v3100 = vadd.f32 0.0, %v3099
      %v3101 = vpop.f32.mrb[0].mxu0
      %v3102 = vpop.f32.mrb[0].mxu0
      %v3103 = vadd.f32 0.0, %v3102
      %v3104 = vpop.f32.mrb[0].mxu0
      %3105 = vmatprep.mubr.bf16.mxu0 %v2694
      %3106 = vmatmul.mubr.bf16.gmra.mrb[0].mxu0 %v2630
      %v3107 = vpop.f32.mrb[0].mxu0
      %v3108 = vadd.f32 0.0, %v3107
      %v3109 = vpop.f32.mrb[0].mxu0
      %v3110 = vpop.f32.mrb[0].mxu0
      %v3111 = vadd.f32 0.0, %v3110
      %v3112 = vpop.f32.mrb[0].mxu0
      %3113 = vmatprep.mubr.bf16.mxu0 %v2695
      %3114 = vmatmul.mubr.bf16.gmra.mrb[0].mxu0 %v2631
      %v3115 = vpop.f32.mrb[0].mxu0
      %v3116 = vadd.f32 0.0, %v3115
      %v3117 = vpop.f32.mrb[0].mxu0
      %v3118 = vpop.f32.mrb[0].mxu0
      %v3119 = vadd.f32 0.0, %v3118
      %v3120 = vpop.f32.mrb[0].mxu0
      %3121 = vmatprep.mubr.bf16.mxu0 %v2696
      %3122 = vmatmul.mubr.bf16.gmra.mrb[0].mxu0 %v2632
      %v3123 = vpop.f32.mrb[0].mxu0
      %v3124 = vadd.f32 0.0, %v3123
      %v3125 = vpop.f32.mrb[0].mxu0
      %v3126 = vpop.f32.mrb[0].mxu0
      %v3127 = vadd.f32 0.0, %v3126
      %v3128 = vpop.f32.mrb[0].mxu0
      %3129 = vdwg.mxu0
      %3130 = vmatprep.subr.bf16.mxu0 0
      %3131 = vmatpush1.bf16.msra.mxu0 %v2937
      %3132 = vmatprep.subr.bf16.mxu0 0
      %3133 = vmatpush1.bf16.msra.mxu0 %v2938
      %3134 = vmatprep.subr.bf16.mxu0 0
      %3135 = vmatpush1.bf16.msra.mxu0 %v2939
      %3136 = vmatprep.subr.bf16.mxu0 0
      %3137 = vmatpush1.bf16.msra.mxu0 %v2940
      %3138 = vmatprep.subr.bf16.mxu0 0
      %3139 = vmatpush1.bf16.msra.mxu0 %v2941
      %3140 = vmatprep.subr.bf16.mxu0 0
      %3141 = vmatpush1.bf16.msra.mxu0 %v2942
      %3142 = vmatprep.subr.bf16.mxu0 0
      %3143 = vmatpush1.bf16.msra.mxu0 %v2943
      %3144 = vmatprep.subr.bf16.mxu0 0
      %3145 = vmatpush1.bf16.msra.mxu0 %v2944
      %3146 = vmatprep.subr.bf16.mxu0 0
      %3147 = vmatpush1.bf16.msra.mxu0 0
      %3148 = vmatprep.subr.bf16.mxu0 0
      %3149 = vmatpush1.bf16.msra.mxu0 0
      %3150 = vmatprep.subr.bf16.mxu0 0
      %3151 = vmatpush1.bf16.msra.mxu0 0
      %3152 = vmatprep.subr.bf16.mxu0 0
      %3153 = vmatpush1.bf16.msra.mxu0 0
      %3154 = vmatprep.subr.bf16.mxu0 0
      %3155 = vmatpush1.bf16.msra.mxu0 0
      %3156 = vmatprep.subr.bf16.mxu0 0
      %3157 = vmatpush1.bf16.msra.mxu0 0
      %3158 = vmatprep.subr.bf16.mxu0 0
      %3159 = vmatpush1.bf16.msra.mxu0 0
      %3160 = vmatprep.subr.bf16.mxu0 0
      %3161 = vmatpush1.bf16.msra.mxu0 0
      %3162 = vmatprep.mubr.bf16.mxu0 0
      %3163 = vmatmul.mubr.bf16.gmra.mrb[0].mxu0 %v2745
      %v3164 = vpop.f32.mrb[0].mxu0
      %v3165 = vadd.f32 %v3004, %v3164
      %v3166 = vpop.f32.mrb[0].mxu0
      %v3167 = vpop.f32.mrb[0].mxu0
      %v3168 = vadd.f32 %v3007, %v3167
      %v3169 = vpop.f32.mrb[0].mxu0
      %3170 = vmatprep.mubr.bf16.mxu0 0
      %3171 = vmatmul.mubr.bf16.gmra.mrb[0].mxu0 %v2746
      %v3172 = vpop.f32.mrb[0].mxu0
      %v3173 = vadd.f32 %v3012, %v3172
      %v3174 = vpop.f32.mrb[0].mxu0
      %v3175 = vpop.f32.mrb[0].mxu0
      %v3176 = vadd.f32 %v3015, %v3175
      %v3177 = vpop.f32.mrb[0].mxu0
      %3178 = vmatprep.mubr.bf16.mxu0 0
      %3179 = vmatmul.mubr.bf16.gmra.mrb[0].mxu0 %v2747
      %v3180 = vpop.f32.mrb[0].mxu0
      %v3181 = vadd.f32 %v3020, %v3180
      %v3182 = vpop.f32.mrb[0].mxu0
      %v3183 = vpop.f32.mrb[0].mxu0
      %v3184 = vadd.f32 %v3023, %v3183
      %v3185 = vpop.f32.mrb[0].mxu0
      %3186 = vmatprep.mubr.bf16.mxu0 0
      %3187 = vmatmul.mubr.bf16.gmra.mrb[0].mxu0 %v2748
      %v3188 = vpop.f32.mrb[0].mxu0
      %v3189 = vadd.f32 %v3028, %v3188
      %v3190 = vpop.f32.mrb[0].mxu0
      %v3191 = vpop.f32.mrb[0].mxu0
      %v3192 = vadd.f32 %v3031, %v3191
      %v3193 = vpop.f32.mrb[0].mxu0
      %3194 = vmatprep.mubr.bf16.mxu0 0
      %3195 = vmatmul.mubr.bf16.gmra.mrb[0].mxu0 %v2749
      %v3196 = vpop.f32.mrb[0].mxu0
      %v3197 = vadd.f32 %v3036, %v3196
      %v3198 = vpop.f32.mrb[0].mxu0
      %v3199 = vpop.f32.mrb[0].mxu0
      %v3200 = vadd.f32 %v3039, %v3199
      %v3201 = vpop.f32.mrb[0].mxu0
      %3202 = vmatprep.mubr.bf16.mxu0 0
      %3203 = vmatmul.mubr.bf16.gmra.mrb[0].mxu0 %v2750
      %v3204 = vpop.f32.mrb[0].mxu0
      %v3205 = vadd.f32 %v3044, %v3204
      %v3206 = vpop.f32.mrb[0].mxu0
      %v3207 = vpop.f32.mrb[0].mxu0
      %v3208 = vadd.f32 %v3047, %v3207
      %v3209 = vpop.f32.mrb[0].mxu0
      %3210 = vmatprep.mubr.bf16.mxu0 0
      %3211 = vmatmul.mubr.bf16.gmra.mrb[0].mxu0 %v2751
      %v3212 = vpop.f32.mrb[0].mxu0
      %v3213 = vadd.f32 %v3052, %v3212
      %v3214 = vpop.f32.mrb[0].mxu0
      %v3215 = vpop.f32.mrb[0].mxu0
      %v3216 = vadd.f32 %v3055, %v3215
      %v3217 = vpop.f32.mrb[0].mxu0
      %3218 = vmatprep.mubr.bf16.mxu0 0
      %3219 = vmatmul.mubr.bf16.gmra.mrb[0].mxu0 %v2752
      %v3220 = vpop.f32.mrb[0].mxu0
      %v3221 = vadd.f32 %v3060, %v3220
      %v3222 = vpop.f32.mrb[0].mxu0
      %v3223 = vpop.f32.mrb[0].mxu0
      %v3224 = vadd.f32 %v3063, %v3223
      %v3225 = vpop.f32.mrb[0].mxu0
      %3226 = vmatprep.mubr.bf16.mxu0 0
      %3227 = vmatmul.mubr.bf16.gmra.mrb[0].mxu0 %v2753
      %v3228 = vpop.f32.mrb[0].mxu0
      %v3229 = vadd.f32 %v3068, %v3228
      %v3230 = vpop.f32.mrb[0].mxu0
      %v3231 = vpop.f32.mrb[0].mxu0
      %v3232 = vadd.f32 %v3071, %v3231
      %v3233 = vpop.f32.mrb[0].mxu0
      %3234 = vmatprep.mubr.bf16.mxu0 0
      %3235 = vmatmul.mubr.bf16.gmra.mrb[0].mxu0 %v2754
      %v3236 = vpop.f32.mrb[0].mxu0
      %v3237 = vadd.f32 %v3076, %v3236
      %v3238 = vpop.f32.mrb[0].mxu0
      %v3239 = vpop.f32.mrb[0].mxu0
      %v3240 = vadd.f32 %v3079, %v3239
      %v3241 = vpop.f32.mrb[0].mxu0
      %3242 = vmatprep.mubr.bf16.mxu0 0
      %3243 = vmatmul.mubr.bf16.gmra.mrb[0].mxu0 %v2755
      %v3244 = vpop.f32.mrb[0].mxu0
      %v3245 = vadd.f32 %v3084, %v3244
      %v3246 = vpop.f32.mrb[0].mxu0
      %v3247 = vpop.f32.mrb[0].mxu0
      %v3248 = vadd.f32 %v3087, %v3247
      %v3249 = vpop.f32.mrb[0].mxu0
      %3250 = vmatprep.mubr.bf16.mxu0 0
      %3251 = vmatmul.mubr.bf16.gmra.mrb[0].mxu0 %v2756
      %v3252 = vpop.f32.mrb[0].mxu0
      %v3253 = vadd.f32 %v3092, %v3252
      %v3254 = vpop.f32.mrb[0].mxu0
      %v3255 = vpop.f32.mrb[0].mxu0
      %v3256 = vadd.f32 %v3095, %v3255
      %v3257 = vpop.f32.mrb[0].mxu0
      %3258 = vmatprep.mubr.bf16.mxu0 0
      %3259 = vmatmul.mubr.bf16.gmra.mrb[0].mxu0 %v2757
      %v3260 = vpop.f32.mrb[0].mxu0
      %v3261 = vadd.f32 %v3100, %v3260
      %v3262 = vpop.f32.mrb[0].mxu0
      %v3263 = vpop.f32.mrb[0].mxu0
      %v3264 = vadd.f32 %v3103, %v3263
      %v3265 = vpop.f32.mrb[0].mxu0
      %3266 = vmatprep.mubr.bf16.mxu0 0
      %3267 = vmatmul.mubr.bf16.gmra.mrb[0].mxu0 %v2758
      %v3268 = vpop.f32.mrb[0].mxu0
      %v3269 = vadd.f32 %v3108, %v3268
      %v3270 = vpop.f32.mrb[0].mxu0
      %v3271 = vpop.f32.mrb[0].mxu0
      %v3272 = vadd.f32 %v3111, %v3271
      %v3273 = vpop.f32.mrb[0].mxu0
      %3274 = vmatprep.mubr.bf16.mxu0 0
      %3275 = vmatmul.mubr.bf16.gmra.mrb[0].mxu0 %v2759
      %v3276 = vpop.f32.mrb[0].mxu0
      %v3277 = vadd.f32 %v3116, %v3276
      %v3278 = vpop.f32.mrb[0].mxu0
      %v3279 = vpop.f32.mrb[0].mxu0
      %v3280 = vadd.f32 %v3119, %v3279
      %v3281 = vpop.f32.mrb[0].mxu0
      %3282 = vmatprep.mubr.bf16.mxu0 0
      %3283 = vmatmul.mubr.bf16.gmra.mrb[0].mxu0 %v2760
      %v3284 = vpop.f32.mrb[0].mxu0
      %v3285 = vadd.f32 %v3124, %v3284
      %v3286 = vpop.f32.mrb[0].mxu0
      %v3287 = vpop.f32.mrb[0].mxu0
      %v3288 = vadd.f32 %v3127, %v3287
      %v3289 = vpop.f32.mrb[0].mxu0
      %3290 = vdwg.mxu0
      %v3339 = vunpack.c.l.b16 %v1913
      %v3340 = vunpack.c.l.b16 %v1914
      %v3341 = vunpack.c.l.b16 %v1915
      %v3342 = vunpack.c.l.b16 %v1916
      %v3343 = vunpack.c.l.b16 %v1917
      %v3344 = vunpack.c.l.b16 %v1918
      %v3345 = vunpack.c.l.b16 %v1919
      %v3346 = vunpack.c.l.b16 %v1920
      %v3347 = vunpack.c.l.b16 %v1921
      %v3348 = vunpack.c.l.b16 %v1922
      %v3349 = vunpack.c.l.b16 %v1923
      %v3350 = vunpack.c.l.b16 %v1924
      %v3351 = vunpack.c.l.b16 %v1925
      %v3352 = vunpack.c.l.b16 %v1926
      %v3353 = vunpack.c.l.b16 %v1927
      %v3354 = vunpack.c.l.b16 %v1928
      %v3355 = vunpack.c.l.b16 %v1929
      %v3356 = vunpack.c.l.b16 %v1930
      %v3357 = vunpack.c.l.b16 %v1931
      %v3358 = vunpack.c.l.b16 %v1932
      %v3359 = vunpack.c.l.b16 %v1933
      %v3360 = vunpack.c.l.b16 %v1934
      %v3361 = vunpack.c.l.b16 %v1935
      %v3362 = vunpack.c.l.b16 %v1936
      %v3363 = vunpack.c.l.b16 %v1937
      %v3364 = vunpack.c.l.b16 %v1938
      %v3365 = vunpack.c.l.b16 %v1939
      %v3366 = vunpack.c.l.b16 %v1940
      %v3367 = vunpack.c.l.b16 %v1941
      %v3368 = vunpack.c.l.b16 %v1942
      %v3369 = vunpack.c.l.b16 %v1943
      %v3370 = vunpack.c.l.b16 %v1944
      %v3371 = vunpack.c.l.b16 %v1945
      %v3372 = vunpack.c.l.b16 %v1946
      %v3373 = vunpack.c.l.b16 %v1947
      %v3374 = vunpack.c.l.b16 %v1948
      %v3375 = vunpack.c.l.b16 %v1949
      %v3376 = vunpack.c.l.b16 %v1950
      %v3377 = vunpack.c.l.b16 %v1951
      %v3378 = vunpack.c.l.b16 %v1952
      %v3379 = vunpack.c.l.b16 %v1953
      %v3380 = vunpack.c.l.b16 %v1954
      %v3381 = vunpack.c.l.b16 %v1955
      %v3382 = vunpack.c.l.b16 %v1956
      %v3383 = vunpack.c.l.b16 %v1957
      %v3384 = vunpack.c.l.b16 %v1958
      %v3385 = vunpack.c.l.b16 %v1959
      %v3386 = vunpack.c.l.b16 %v1960
      %v3387 = vpack.c.b16 %v3340, %v3339
      %v3388 = vpack.c.b16 %v3342, %v3341
      %v3389 = vpack.c.b16 %v3344, %v3343
      %v3390 = vpack.c.b16 %v3346, %v3345
      %v3391 = vpack.c.b16 %v3348, %v3347
      %v3392 = vpack.c.b16 %v3350, %v3349
      %v3393 = vpack.c.b16 %v3352, %v3351
      %v3394 = vpack.c.b16 %v3354, %v3353
      %v3395 = vpack.c.b16 %v3356, %v3355
      %v3396 = vpack.c.b16 %v3358, %v3357
      %v3397 = vpack.c.b16 %v3360, %v3359
      %v3398 = vpack.c.b16 %v3362, %v3361
      %v3399 = vpack.c.b16 %v3364, %v3363
      %v3400 = vpack.c.b16 %v3366, %v3365
      %v3401 = vpack.c.b16 %v3368, %v3367
      %v3402 = vpack.c.b16 %v3370, %v3369
      %v3403 = vpack.c.b16 %v3372, %v3371
      %v3404 = vpack.c.b16 %v3374, %v3373
      %v3405 = vpack.c.b16 %v3376, %v3375
      %v3406 = vpack.c.b16 %v3378, %v3377
      %v3407 = vpack.c.b16 %v3380, %v3379
      %v3408 = vpack.c.b16 %v3382, %v3381
      %v3409 = vpack.c.b16 %v3384, %v3383
      %v3410 = vpack.c.b16 %v3386, %v3385
      %3435 = vmatprep.subr.bf16.mxu0 0
      %3436 = vmatpush1.bf16.msra.mxu0 %v3387
      %3437 = vmatprep.subr.bf16.mxu0 0
      %3438 = vmatpush1.bf16.msra.mxu0 %v3388
      %3439 = vmatprep.subr.bf16.mxu0 0
      %3440 = vmatpush1.bf16.msra.mxu0 %v3389
      %3441 = vmatprep.subr.bf16.mxu0 0
      %3442 = vmatpush1.bf16.msra.mxu0 %v3390
      %3443 = vmatprep.subr.bf16.mxu0 0
      %3444 = vmatpush1.bf16.msra.mxu0 %v3391
      %3445 = vmatprep.subr.bf16.mxu0 0
      %3446 = vmatpush1.bf16.msra.mxu0 %v3392
      %3447 = vmatprep.subr.bf16.mxu0 0
      %3448 = vmatpush1.bf16.msra.mxu0 %v3393
      %3449 = vmatprep.subr.bf16.mxu0 0
      %3450 = vmatpush1.bf16.msra.mxu0 %v3394
      %3451 = vmatprep.subr.bf16.mxu0 0
      %3452 = vmatpush1.bf16.msra.mxu0 %v3395
      %3453 = vmatprep.subr.bf16.mxu0 0
      %3454 = vmatpush1.bf16.msra.mxu0 %v3396
      %3455 = vmatprep.subr.bf16.mxu0 0
      %3456 = vmatpush1.bf16.msra.mxu0 %v3397
      %3457 = vmatprep.subr.bf16.mxu0 0
      %3458 = vmatpush1.bf16.msra.mxu0 %v3398
      %3459 = vmatprep.subr.bf16.mxu0 0
      %3460 = vmatpush1.bf16.msra.mxu0 %v3399
      %3461 = vmatprep.subr.bf16.mxu0 0
      %3462 = vmatpush1.bf16.msra.mxu0 %v3400
      %3463 = vmatprep.subr.bf16.mxu0 0
      %3464 = vmatpush1.bf16.msra.mxu0 %v3401
      %3465 = vmatprep.subr.bf16.mxu0 0
      %3466 = vmatpush1.bf16.msra.mxu0 %v3402
      %3467 = vmatprep.mubr.bf16.mxu0 %v1817
      %3468 = vmatmul.mubr.bf16.gmra.mrb[0].mxu0 %v1753
      %v3469 = vpop.f32.mrb[0].mxu0
      %v3470 = vadd.f32 %v3165, %v3469
      %v3471 = vpop.f32.mrb[0].mxu0
      %v3472 = vpop.f32.mrb[0].mxu0
      %v3473 = vadd.f32 %v3168, %v3472
      %v3474 = vpop.f32.mrb[0].mxu0
      %3475 = vmatprep.mubr.bf16.mxu0 %v1818
      %3476 = vmatmul.mubr.bf16.gmra.mrb[0].mxu0 %v1754
      %v3477 = vpop.f32.mrb[0].mxu0
      %v3478 = vadd.f32 %v3173, %v3477
      %v3479 = vpop.f32.mrb[0].mxu0
      %v3480 = vpop.f32.mrb[0].mxu0
      %v3481 = vadd.f32 %v3176, %v3480
      %v3482 = vpop.f32.mrb[0].mxu0
      %3483 = vmatprep.mubr.bf16.mxu0 %v1819
      %3484 = vmatmul.mubr.bf16.gmra.mrb[0].mxu0 %v1755
      %v3485 = vpop.f32.mrb[0].mxu0
      %v3486 = vadd.f32 %v3181, %v3485
      %v3487 = vpop.f32.mrb[0].mxu0
      %v3488 = vpop.f32.mrb[0].mxu0
      %v3489 = vadd.f32 %v3184, %v3488
      %v3490 = vpop.f32.mrb[0].mxu0
      %3491 = vmatprep.mubr.bf16.mxu0 %v1820
      %3492 = vmatmul.mubr.bf16.gmra.mrb[0].mxu0 %v1756
      %v3493 = vpop.f32.mrb[0].mxu0
      %v3494 = vadd.f32 %v3189, %v3493
      %v3495 = vpop.f32.mrb[0].mxu0
      %v3496 = vpop.f32.mrb[0].mxu0
      %v3497 = vadd.f32 %v3192, %v3496
      %v3498 = vpop.f32.mrb[0].mxu0
      %3499 = vmatprep.mubr.bf16.mxu0 %v1821
      %3500 = vmatmul.mubr.bf16.gmra.mrb[0].mxu0 %v1757
      %v3501 = vpop.f32.mrb[0].mxu0
      %v3502 = vadd.f32 %v3197, %v3501
      %v3503 = vpop.f32.mrb[0].mxu0
      %v3504 = vpop.f32.mrb[0].mxu0
      %v3505 = vadd.f32 %v3200, %v3504
      %v3506 = vpop.f32.mrb[0].mxu0
      %3507 = vmatprep.mubr.bf16.mxu0 %v1822
      %3508 = vmatmul.mubr.bf16.gmra.mrb[0].mxu0 %v1758
      %v3509 = vpop.f32.mrb[0].mxu0
      %v3510 = vadd.f32 %v3205, %v3509
      %v3511 = vpop.f32.mrb[0].mxu0
      %v3512 = vpop.f32.mrb[0].mxu0
      %v3513 = vadd.f32 %v3208, %v3512
      %v3514 = vpop.f32.mrb[0].mxu0
      %3515 = vmatprep.mubr.bf16.mxu0 %v1823
      %3516 = vmatmul.mubr.bf16.gmra.mrb[0].mxu0 %v1759
      %v3517 = vpop.f32.mrb[0].mxu0
      %v3518 = vadd.f32 %v3213, %v3517
      %v3519 = vpop.f32.mrb[0].mxu0
      %v3520 = vpop.f32.mrb[0].mxu0
      %v3521 = vadd.f32 %v3216, %v3520
      %v3522 = vpop.f32.mrb[0].mxu0
      %3523 = vmatprep.mubr.bf16.mxu0 %v1824
      %3524 = vmatmul.mubr.bf16.gmra.mrb[0].mxu0 %v1760
      %v3525 = vpop.f32.mrb[0].mxu0
      %v3526 = vadd.f32 %v3221, %v3525
      %v3527 = vpop.f32.mrb[0].mxu0
      %v3528 = vpop.f32.mrb[0].mxu0
      %v3529 = vadd.f32 %v3224, %v3528
      %v3530 = vpop.f32.mrb[0].mxu0
      %3531 = vmatprep.mubr.bf16.mxu0 %v1825
      %3532 = vmatmul.mubr.bf16.gmra.mrb[0].mxu0 %v1761
      %v3533 = vpop.f32.mrb[0].mxu0
      %v3534 = vadd.f32 %v3229, %v3533
      %v3535 = vpop.f32.mrb[0].mxu0
      %v3536 = vpop.f32.mrb[0].mxu0
      %v3537 = vadd.f32 %v3232, %v3536
      %v3538 = vpop.f32.mrb[0].mxu0
      %3539 = vmatprep.mubr.bf16.mxu0 %v1826
      %3540 = vmatmul.mubr.bf16.gmra.mrb[0].mxu0 %v1762
      %v3541 = vpop.f32.mrb[0].mxu0
      %v3542 = vadd.f32 %v3237, %v3541
      %v3543 = vpop.f32.mrb[0].mxu0
      %v3544 = vpop.f32.mrb[0].mxu0
      %v3545 = vadd.f32 %v3240, %v3544
      %v3546 = vpop.f32.mrb[0].mxu0
      %3547 = vmatprep.mubr.bf16.mxu0 %v1827
      %3548 = vmatmul.mubr.bf16.gmra.mrb[0].mxu0 %v1763
      %v3549 = vpop.f32.mrb[0].mxu0
      %v3550 = vadd.f32 %v3245, %v3549
      %v3551 = vpop.f32.mrb[0].mxu0
      %v3552 = vpop.f32.mrb[0].mxu0
      %v3553 = vadd.f32 %v3248, %v3552
      %v3554 = vpop.f32.mrb[0].mxu0
      %3555 = vmatprep.mubr.bf16.mxu0 %v1828
      %3556 = vmatmul.mubr.bf16.gmra.mrb[0].mxu0 %v1764
      %v3557 = vpop.f32.mrb[0].mxu0
      %v3558 = vadd.f32 %v3253, %v3557
      %v3559 = vpop.f32.mrb[0].mxu0
      %v3560 = vpop.f32.mrb[0].mxu0
      %v3561 = vadd.f32 %v3256, %v3560
      %v3562 = vpop.f32.mrb[0].mxu0
      %3563 = vmatprep.mubr.bf16.mxu0 %v1829
      %3564 = vmatmul.mubr.bf16.gmra.mrb[0].mxu0 %v1765
      %v3565 = vpop.f32.mrb[0].mxu0
      %v3566 = vadd.f32 %v3261, %v3565
      %v3567 = vpop.f32.mrb[0].mxu0
      %v3568 = vpop.f32.mrb[0].mxu0
      %v3569 = vadd.f32 %v3264, %v3568
      %v3570 = vpop.f32.mrb[0].mxu0
      %3571 = vmatprep.mubr.bf16.mxu0 %v1830
      %3572 = vmatmul.mubr.bf16.gmra.mrb[0].mxu0 %v1766
      %v3573 = vpop.f32.mrb[0].mxu0
      %v3574 = vadd.f32 %v3269, %v3573
      %v3575 = vpop.f32.mrb[0].mxu0
      %v3576 = vpop.f32.mrb[0].mxu0
      %v3577 = vadd.f32 %v3272, %v3576
      %v3578 = vpop.f32.mrb[0].mxu0
      %3579 = vmatprep.mubr.bf16.mxu0 %v1831
      %3580 = vmatmul.mubr.bf16.gmra.mrb[0].mxu0 %v1767
      %v3581 = vpop.f32.mrb[0].mxu0
      %v3582 = vadd.f32 %v3277, %v3581
      %v3583 = vpop.f32.mrb[0].mxu0
      %v3584 = vpop.f32.mrb[0].mxu0
      %v3585 = vadd.f32 %v3280, %v3584
      %v3586 = vpop.f32.mrb[0].mxu0
      %3587 = vmatprep.mubr.bf16.mxu0 %v1832
      %3588 = vmatmul.mubr.bf16.gmra.mrb[0].mxu0 %v1768
      %v3589 = vpop.f32.mrb[0].mxu0
      %v3590 = vadd.f32 %v3285, %v3589
      %v3591 = vpop.f32.mrb[0].mxu0
      %v3592 = vpop.f32.mrb[0].mxu0
      %v3593 = vadd.f32 %v3288, %v3592
      %v3594 = vpop.f32.mrb[0].mxu0
      %3595 = vdwg.mxu0
      %3596 = vmatprep.subr.bf16.mxu0 0
      %3597 = vmatpush1.bf16.msra.mxu0 %v3403
      %3598 = vmatprep.subr.bf16.mxu0 0
      %3599 = vmatpush1.bf16.msra.mxu0 %v3404
      %3600 = vmatprep.subr.bf16.mxu0 0
      %3601 = vmatpush1.bf16.msra.mxu0 %v3405
      %3602 = vmatprep.subr.bf16.mxu0 0
      %3603 = vmatpush1.bf16.msra.mxu0 %v3406
      %3604 = vmatprep.subr.bf16.mxu0 0
      %3605 = vmatpush1.bf16.msra.mxu0 %v3407
      %3606 = vmatprep.subr.bf16.mxu0 0
      %3607 = vmatpush1.bf16.msra.mxu0 %v3408
      %3608 = vmatprep.subr.bf16.mxu0 0
      %3609 = vmatpush1.bf16.msra.mxu0 %v3409
      %3610 = vmatprep.subr.bf16.mxu0 0
      %3611 = vmatpush1.bf16.msra.mxu0 %v3410
      %3612 = vmatprep.subr.bf16.mxu0 0
      %3613 = vmatpush1.bf16.msra.mxu0 0
      %3614 = vmatprep.subr.bf16.mxu0 0
      %3615 = vmatpush1.bf16.msra.mxu0 0
      %3616 = vmatprep.subr.bf16.mxu0 0
      %3617 = vmatpush1.bf16.msra.mxu0 0
      %3618 = vmatprep.subr.bf16.mxu0 0
      %3619 = vmatpush1.bf16.msra.mxu0 0
      %3620 = vmatprep.subr.bf16.mxu0 0
      %3621 = vmatpush1.bf16.msra.mxu0 0
      %3622 = vmatprep.subr.bf16.mxu0 0
      %3623 = vmatpush1.bf16.msra.mxu0 0
      %3624 = vmatprep.subr.bf16.mxu0 0
      %3625 = vmatpush1.bf16.msra.mxu0 0
      %3626 = vmatprep.subr.bf16.mxu0 0
      %3627 = vmatpush1.bf16.msra.mxu0 0
      %3628 = vmatprep.mubr.bf16.mxu0 0
      %3629 = vmatmul.mubr.bf16.gmra.mrb[0].mxu0 %v1881
      %v3630 = vpop.f32.mrb[0].mxu0
      %v3631 = vadd.f32 %v3470, %v3630
      %v3632 = vpop.f32.mrb[0].mxu0
      %v3633 = vpop.f32.mrb[0].mxu0
      %v3634 = vadd.f32 %v3473, %v3633
      %v3635 = vpop.f32.mrb[0].mxu0
      %3636 = vmatprep.mubr.bf16.mxu0 0
      %3637 = vmatmul.mubr.bf16.gmra.mrb[0].mxu0 %v1882
      %v3638 = vpop.f32.mrb[0].mxu0
      %v3639 = vadd.f32 %v3478, %v3638
      %v3640 = vpop.f32.mrb[0].mxu0
      %v3641 = vpop.f32.mrb[0].mxu0
      %v3642 = vadd.f32 %v3481, %v3641
      %v3643 = vpop.f32.mrb[0].mxu0
      %3644 = vmatprep.mubr.bf16.mxu0 0
      %3645 = vmatmul.mubr.bf16.gmra.mrb[0].mxu0 %v1883
      %v3646 = vpop.f32.mrb[0].mxu0
      %v3647 = vadd.f32 %v3486, %v3646
      %v3648 = vpop.f32.mrb[0].mxu0
      %v3649 = vpop.f32.mrb[0].mxu0
      %v3650 = vadd.f32 %v3489, %v3649
      %v3651 = vpop.f32.mrb[0].mxu0
      %3652 = vmatprep.mubr.bf16.mxu0 0
      %3653 = vmatmul.mubr.bf16.gmra.mrb[0].mxu0 %v1884
      %v3654 = vpop.f32.mrb[0].mxu0
      %v3655 = vadd.f32 %v3494, %v3654
      %v3656 = vpop.f32.mrb[0].mxu0
      %v3657 = vpop.f32.mrb[0].mxu0
      %v3658 = vadd.f32 %v3497, %v3657
      %v3659 = vpop.f32.mrb[0].mxu0
      %3660 = vmatprep.mubr.bf16.mxu0 0
      %3661 = vmatmul.mubr.bf16.gmra.mrb[0].mxu0 %v1885
      %v3662 = vpop.f32.mrb[0].mxu0
      %v3663 = vadd.f32 %v3502, %v3662
      %v3664 = vpop.f32.mrb[0].mxu0
      %v3665 = vpop.f32.mrb[0].mxu0
      %v3666 = vadd.f32 %v3505, %v3665
      %v3667 = vpop.f32.mrb[0].mxu0
      %3668 = vmatprep.mubr.bf16.mxu0 0
      %3669 = vmatmul.mubr.bf16.gmra.mrb[0].mxu0 %v1886
      %v3670 = vpop.f32.mrb[0].mxu0
      %v3671 = vadd.f32 %v3510, %v3670
      %v3672 = vpop.f32.mrb[0].mxu0
      %v3673 = vpop.f32.mrb[0].mxu0
      %v3674 = vadd.f32 %v3513, %v3673
      %v3675 = vpop.f32.mrb[0].mxu0
      %3676 = vmatprep.mubr.bf16.mxu0 0
      %3677 = vmatmul.mubr.bf16.gmra.mrb[0].mxu0 %v1887
      %v3678 = vpop.f32.mrb[0].mxu0
      %v3679 = vadd.f32 %v3518, %v3678
      %v3680 = vpop.f32.mrb[0].mxu0
      %v3681 = vpop.f32.mrb[0].mxu0
      %v3682 = vadd.f32 %v3521, %v3681
      %v3683 = vpop.f32.mrb[0].mxu0
      %3684 = vmatprep.mubr.bf16.mxu0 0
      %3685 = vmatmul.mubr.bf16.gmra.mrb[0].mxu0 %v1888
      %v3686 = vpop.f32.mrb[0].mxu0
      %v3687 = vadd.f32 %v3526, %v3686
      %v3688 = vpop.f32.mrb[0].mxu0
      %v3689 = vpop.f32.mrb[0].mxu0
      %v3690 = vadd.f32 %v3529, %v3689
      %v3691 = vpop.f32.mrb[0].mxu0
      %3692 = vmatprep.mubr.bf16.mxu0 0
      %3693 = vmatmul.mubr.bf16.gmra.mrb[0].mxu0 %v1889
      %v3694 = vpop.f32.mrb[0].mxu0
      %v3695 = vadd.f32 %v3534, %v3694
      %v3696 = vpop.f32.mrb[0].mxu0
      %v3697 = vpop.f32.mrb[0].mxu0
      %v3698 = vadd.f32 %v3537, %v3697
      %v3699 = vpop.f32.mrb[0].mxu0
      %3700 = vmatprep.mubr.bf16.mxu0 0
      %3701 = vmatmul.mubr.bf16.gmra.mrb[0].mxu0 %v1890
      %v3702 = vpop.f32.mrb[0].mxu0
      %v3703 = vadd.f32 %v3542, %v3702
      %v3704 = vpop.f32.mrb[0].mxu0
      %v3705 = vpop.f32.mrb[0].mxu0
      %v3706 = vadd.f32 %v3545, %v3705
      %v3707 = vpop.f32.mrb[0].mxu0
      %3708 = vmatprep.mubr.bf16.mxu0 0
      %3709 = vmatmul.mubr.bf16.gmra.mrb[0].mxu0 %v1891
      %v3710 = vpop.f32.mrb[0].mxu0
      %v3711 = vadd.f32 %v3550, %v3710
      %v3712 = vpop.f32.mrb[0].mxu0
      %v3713 = vpop.f32.mrb[0].mxu0
      %v3714 = vadd.f32 %v3553, %v3713
      %v3715 = vpop.f32.mrb[0].mxu0
      %3716 = vmatprep.mubr.bf16.mxu0 0
      %3717 = vmatmul.mubr.bf16.gmra.mrb[0].mxu0 %v1892
      %v3718 = vpop.f32.mrb[0].mxu0
      %v3719 = vadd.f32 %v3558, %v3718
      %v3720 = vpop.f32.mrb[0].mxu0
      %v3721 = vpop.f32.mrb[0].mxu0
      %v3722 = vadd.f32 %v3561, %v3721
      %v3723 = vpop.f32.mrb[0].mxu0
      %3724 = vmatprep.mubr.bf16.mxu0 0
      %3725 = vmatmul.mubr.bf16.gmra.mrb[0].mxu0 %v1893
      %v3726 = vpop.f32.mrb[0].mxu0
      %v3727 = vadd.f32 %v3566, %v3726
      %v3728 = vpop.f32.mrb[0].mxu0
      %v3729 = vpop.f32.mrb[0].mxu0
      %v3730 = vadd.f32 %v3569, %v3729
      %v3731 = vpop.f32.mrb[0].mxu0
      %3732 = vmatprep.mubr.bf16.mxu0 0
      %3733 = vmatmul.mubr.bf16.gmra.mrb[0].mxu0 %v1894
      %v3734 = vpop.f32.mrb[0].mxu0
      %v3735 = vadd.f32 %v3574, %v3734
      %v3736 = vpop.f32.mrb[0].mxu0
      %v3737 = vpop.f32.mrb[0].mxu0
      %v3738 = vadd.f32 %v3577, %v3737
      %v3739 = vpop.f32.mrb[0].mxu0
      %3740 = vmatprep.mubr.bf16.mxu0 0
      %3741 = vmatmul.mubr.bf16.gmra.mrb[0].mxu0 %v1895
      %v3742 = vpop.f32.mrb[0].mxu0
      %v3743 = vadd.f32 %v3582, %v3742
      %v3744 = vpop.f32.mrb[0].mxu0
      %v3745 = vpop.f32.mrb[0].mxu0
      %v3746 = vadd.f32 %v3585, %v3745
      %v3747 = vpop.f32.mrb[0].mxu0
      %3748 = vmatprep.mubr.bf16.mxu0 0
      %3749 = vmatmul.mubr.bf16.gmra.mrb[0].mxu0 %v1896
      %v3750 = vpop.f32.mrb[0].mxu0
      %v3751 = vadd.f32 %v3590, %v3750
      %v3752 = vpop.f32.mrb[0].mxu0
      %v3753 = vpop.f32.mrb[0].mxu0
      %v3754 = vadd.f32 %v3593, %v3753
      %v3755 = vpop.f32.mrb[0].mxu0
      %3756 = vdwg.mxu0
      %s3757 = scalar_lea.vmem [#allocation2], 24
      %v3758 = vld [vmem:[%s3757] sm:$0xf]
      %v3759 = vld [vmem:[%s3757 + $0x4] sm:$0xf]
      %v3760 = vld [vmem:[%s3757 + $0xc] sm:$0xf]
      %v3761 = vld [vmem:[%s3757 + $0x10] sm:$0xf]
      %v3762 = vld [vmem:[%s3757 + $0x18] sm:$0xf]
      %v3763 = vld [vmem:[%s3757 + $0x1c] sm:$0xf]
      %v3764 = vld [vmem:[%s3757 + $0x24] sm:$0xf]
      %v3765 = vld [vmem:[%s3757 + $0x28] sm:$0xf]
      %v3766 = vld [vmem:[%s3757 + $0x30] sm:$0xf]
      %v3767 = vld [vmem:[%s3757 + $0x34] sm:$0xf]
      %v3768 = vld [vmem:[%s3757 + $0x3c] sm:$0xf]
      %v3769 = vld [vmem:[%s3757 + $0x40] sm:$0xf]
      %v3770 = vld [vmem:[%s3757 + $0x48] sm:$0xf]
      %v3771 = vld [vmem:[%s3757 + $0x4c] sm:$0xf]
      %v3772 = vld [vmem:[%s3757 + $0x54] sm:$0xf]
      %v3773 = vld [vmem:[%s3757 + $0x58] sm:$0xf]
      %v3774 = vld [vmem:[%s3757 + $0x60] sm:$0xf]
      %v3775 = vld [vmem:[%s3757 + $0x64] sm:$0xf]
      %v3776 = vld [vmem:[%s3757 + $0x6c] sm:$0xf]
      %v3777 = vld [vmem:[%s3757 + $0x70] sm:$0xf]
      %v3778 = vld [vmem:[%s3757 + $0x78] sm:$0xf]
      %v3779 = vld [vmem:[%s3757 + $0x7c] sm:$0xf]
      %v3780 = vld [vmem:[%s3757 + $0x84] sm:$0xf]
      %v3781 = vld [vmem:[%s3757 + $0x88] sm:$0xf]
      %v3782 = vld [vmem:[%s3757 + $0x90] sm:$0xf]
      %v3783 = vld [vmem:[%s3757 + $0x94] sm:$0xf]
      %v3784 = vld [vmem:[%s3757 + $0x9c] sm:$0xf]
      %v3785 = vld [vmem:[%s3757 + $0xa0] sm:$0xf]
      %v3786 = vld [vmem:[%s3757 + $0xa8] sm:$0xf]
      %v3787 = vld [vmem:[%s3757 + $0xac] sm:$0xf]
      %v3788 = vld [vmem:[%s3757 + $0xb4] sm:$0xf]
      %v3789 = vld [vmem:[%s3757 + $0xb8] sm:$0xf]
      %v3790 = vld [vmem:[%s3757 + $0x8] sm:$0x1]
      %v3791 = vld [vmem:[%s3757 + $0x14] sm:$0x1]
      %v3792 = vld [vmem:[%s3757 + $0x20] sm:$0x1]
      %v3793 = vld [vmem:[%s3757 + $0x2c] sm:$0x1]
      %v3794 = vld [vmem:[%s3757 + $0x38] sm:$0x1]
      %v3795 = vld [vmem:[%s3757 + $0x44] sm:$0x1]
      %v3796 = vld [vmem:[%s3757 + $0x50] sm:$0x1]
      %v3797 = vld [vmem:[%s3757 + $0x5c] sm:$0x1]
      %v3798 = vld [vmem:[%s3757 + $0x68] sm:$0x1]
      %v3799 = vld [vmem:[%s3757 + $0x74] sm:$0x1]
      %v3800 = vld [vmem:[%s3757 + $0x80] sm:$0x1]
      %v3801 = vld [vmem:[%s3757 + $0x8c] sm:$0x1]
      %v3802 = vld [vmem:[%s3757 + $0x98] sm:$0x1]
      %v3803 = vld [vmem:[%s3757 + $0xa4] sm:$0x1]
      %v3804 = vld [vmem:[%s3757 + $0xb0] sm:$0x1]
      %v3805 = vld [vmem:[%s3757 + $0xbc] sm:$0x1]
      %v3807 = vshrl.u32 %v3758, 16
      %v3809 = vrot.slane %v3807, 4
      %v3810 = vshll.u32 %v3758, 16
      %v3812 = vrot.slane %v3810, 5
      %v3813 = vor.u32 %v3809, %v3812
      %v3814 = vrot.slane %v3813, 4
      %v3816 = vshll.u32 %v3759, 16
      %v3818 = vrot.slane %v3816, 5
      %v3819 = vsel %vm1141, %v3814, %v3818
      %v3820 = vshrl.u32 %v3759, 16
      %v3822 = vrot.slane %v3820, 4
      %v3823 = vor.u32 %v3822, %v3818
      %v3824 = vrot.slane %v3823, 4
      %v3826 = vshll.u32 %v3790, 16
      %v3828 = vrot.slane %v3826, 5
      %v3829 = vsel %vm1141, %v3824, %v3828
      %v3831 = vshrl.u32 %v3760, 16
      %v3833 = vrot.slane %v3831, 4
      %v3834 = vshll.u32 %v3760, 16
      %v3836 = vrot.slane %v3834, 5
      %v3837 = vor.u32 %v3833, %v3836
      %v3838 = vrot.slane %v3837, 4
      %v3840 = vshll.u32 %v3761, 16
      %v3842 = vrot.slane %v3840, 5
      %v3843 = vsel %vm1141, %v3838, %v3842
      %v3844 = vshrl.u32 %v3761, 16
      %v3846 = vrot.slane %v3844, 4
      %v3847 = vor.u32 %v3846, %v3842
      %v3848 = vrot.slane %v3847, 4
      %v3850 = vshll.u32 %v3791, 16
      %v3852 = vrot.slane %v3850, 5
      %v3853 = vsel %vm1141, %v3848, %v3852
      %v3855 = vshrl.u32 %v3762, 16
      %v3857 = vrot.slane %v3855, 4
      %v3858 = vshll.u32 %v3762, 16
      %v3860 = vrot.slane %v3858, 5
      %v3861 = vor.u32 %v3857, %v3860
      %v3862 = vrot.slane %v3861, 4
      %v3864 = vshll.u32 %v3763, 16
      %v3866 = vrot.slane %v3864, 5
      %v3867 = vsel %vm1141, %v3862, %v3866
      %v3868 = vshrl.u32 %v3763, 16
      %v3870 = vrot.slane %v3868, 4
      %v3871 = vor.u32 %v3870, %v3866
      %v3872 = vrot.slane %v3871, 4
      %v3874 = vshll.u32 %v3792, 16
      %v3876 = vrot.slane %v3874, 5
      %v3877 = vsel %vm1141, %v3872, %v3876
      %v3879 = vshrl.u32 %v3764, 16
      %v3881 = vrot.slane %v3879, 4
      %v3882 = vshll.u32 %v3764, 16
      %v3884 = vrot.slane %v3882, 5
      %v3885 = vor.u32 %v3881, %v3884
      %v3886 = vrot.slane %v3885, 4
      %v3888 = vshll.u32 %v3765, 16
      %v3890 = vrot.slane %v3888, 5
      %v3891 = vsel %vm1141, %v3886, %v3890
      %v3892 = vshrl.u32 %v3765, 16
      %v3894 = vrot.slane %v3892, 4
      %v3895 = vor.u32 %v3894, %v3890
      %v3896 = vrot.slane %v3895, 4
      %v3898 = vshll.u32 %v3793, 16
      %v3900 = vrot.slane %v3898, 5
      %v3901 = vsel %vm1141, %v3896, %v3900
      %v3903 = vshrl.u32 %v3766, 16
      %v3905 = vrot.slane %v3903, 4
      %v3906 = vshll.u32 %v3766, 16
      %v3908 = vrot.slane %v3906, 5
      %v3909 = vor.u32 %v3905, %v3908
      %v3910 = vrot.slane %v3909, 4
      %v3912 = vshll.u32 %v3767, 16
      %v3914 = vrot.slane %v3912, 5
      %v3915 = vsel %vm1141, %v3910, %v3914
      %v3916 = vshrl.u32 %v3767, 16
      %v3918 = vrot.slane %v3916, 4
      %v3919 = vor.u32 %v3918, %v3914
      %v3920 = vrot.slane %v3919, 4
      %v3922 = vshll.u32 %v3794, 16
      %v3924 = vrot.slane %v3922, 5
      %v3925 = vsel %vm1141, %v3920, %v3924
      %v3927 = vshrl.u32 %v3768, 16
      %v3929 = vrot.slane %v3927, 4
      %v3930 = vshll.u32 %v3768, 16
      %v3932 = vrot.slane %v3930, 5
      %v3933 = vor.u32 %v3929, %v3932
      %v3934 = vrot.slane %v3933, 4
      %v3936 = vshll.u32 %v3769, 16
      %v3938 = vrot.slane %v3936, 5
      %v3939 = vsel %vm1141, %v3934, %v3938
      %v3940 = vshrl.u32 %v3769, 16
      %v3942 = vrot.slane %v3940, 4
      %v3943 = vor.u32 %v3942, %v3938
      %v3944 = vrot.slane %v3943, 4
      %v3946 = vshll.u32 %v3795, 16
      %v3948 = vrot.slane %v3946, 5
      %v3949 = vsel %vm1141, %v3944, %v3948
      %v3951 = vshrl.u32 %v3770, 16
      %v3953 = vrot.slane %v3951, 4
      %v3954 = vshll.u32 %v3770, 16
      %v3956 = vrot.slane %v3954, 5
      %v3957 = vor.u32 %v3953, %v3956
      %v3958 = vrot.slane %v3957, 4
      %v3960 = vshll.u32 %v3771, 16
      %v3962 = vrot.slane %v3960, 5
      %v3963 = vsel %vm1141, %v3958, %v3962
      %v3964 = vshrl.u32 %v3771, 16
      %v3966 = vrot.slane %v3964, 4
      %v3967 = vor.u32 %v3966, %v3962
      %v3968 = vrot.slane %v3967, 4
      %v3970 = vshll.u32 %v3796, 16
      %v3972 = vrot.slane %v3970, 5
      %v3973 = vsel %vm1141, %v3968, %v3972
      %v3975 = vshrl.u32 %v3772, 16
      %v3977 = vrot.slane %v3975, 4
      %v3978 = vshll.u32 %v3772, 16
      %v3980 = vrot.slane %v3978, 5
      %v3981 = vor.u32 %v3977, %v3980
      %v3982 = vrot.slane %v3981, 4
      %v3984 = vshll.u32 %v3773, 16
      %v3986 = vrot.slane %v3984, 5
      %v3987 = vsel %vm1141, %v3982, %v3986
      %v3988 = vshrl.u32 %v3773, 16
      %v3990 = vrot.slane %v3988, 4
      %v3991 = vor.u32 %v3990, %v3986
      %v3992 = vrot.slane %v3991, 4
      %v3994 = vshll.u32 %v3797, 16
      %v3996 = vrot.slane %v3994, 5
      %v3997 = vsel %vm1141, %v3992, %v3996
      %v3999 = vshrl.u32 %v3774, 16
      %v4001 = vrot.slane %v3999, 4
      %v4002 = vshll.u32 %v3774, 16
      %v4004 = vrot.slane %v4002, 5
      %v4005 = vor.u32 %v4001, %v4004
      %v4006 = vrot.slane %v4005, 4
      %v4008 = vshll.u32 %v3775, 16
      %v4010 = vrot.slane %v4008, 5
      %v4011 = vsel %vm1141, %v4006, %v4010
      %v4012 = vshrl.u32 %v3775, 16
      %v4014 = vrot.slane %v4012, 4
      %v4015 = vor.u32 %v4014, %v4010
      %v4016 = vrot.slane %v4015, 4
      %v4018 = vshll.u32 %v3798, 16
      %v4020 = vrot.slane %v4018, 5
      %v4021 = vsel %vm1141, %v4016, %v4020
      %v4023 = vshrl.u32 %v3776, 16
      %v4025 = vrot.slane %v4023, 4
      %v4026 = vshll.u32 %v3776, 16
      %v4028 = vrot.slane %v4026, 5
      %v4029 = vor.u32 %v4025, %v4028
      %v4030 = vrot.slane %v4029, 4
      %v4032 = vshll.u32 %v3777, 16
      %v4034 = vrot.slane %v4032, 5
      %v4035 = vsel %vm1141, %v4030, %v4034
      %v4036 = vshrl.u32 %v3777, 16
      %v4038 = vrot.slane %v4036, 4
      %v4039 = vor.u32 %v4038, %v4034
      %v4040 = vrot.slane %v4039, 4
      %v4042 = vshll.u32 %v3799, 16
      %v4044 = vrot.slane %v4042, 5
      %v4045 = vsel %vm1141, %v4040, %v4044
      %v4047 = vshrl.u32 %v3778, 16
      %v4049 = vrot.slane %v4047, 4
      %v4050 = vshll.u32 %v3778, 16
      %v4052 = vrot.slane %v4050, 5
      %v4053 = vor.u32 %v4049, %v4052
      %v4054 = vrot.slane %v4053, 4
      %v4056 = vshll.u32 %v3779, 16
      %v4058 = vrot.slane %v4056, 5
      %v4059 = vsel %vm1141, %v4054, %v4058
      %v4060 = vshrl.u32 %v3779, 16
      %v4062 = vrot.slane %v4060, 4
      %v4063 = vor.u32 %v4062, %v4058
      %v4064 = vrot.slane %v4063, 4
      %v4066 = vshll.u32 %v3800, 16
      %v4068 = vrot.slane %v4066, 5
      %v4069 = vsel %vm1141, %v4064, %v4068
      %v4071 = vshrl.u32 %v3780, 16
      %v4073 = vrot.slane %v4071, 4
      %v4074 = vshll.u32 %v3780, 16
      %v4076 = vrot.slane %v4074, 5
      %v4077 = vor.u32 %v4073, %v4076
      %v4078 = vrot.slane %v4077, 4
      %v4080 = vshll.u32 %v3781, 16
      %v4082 = vrot.slane %v4080, 5
      %v4083 = vsel %vm1141, %v4078, %v4082
      %v4084 = vshrl.u32 %v3781, 16
      %v4086 = vrot.slane %v4084, 4
      %v4087 = vor.u32 %v4086, %v4082
      %v4088 = vrot.slane %v4087, 4
      %v4090 = vshll.u32 %v3801, 16
      %v4092 = vrot.slane %v4090, 5
      %v4093 = vsel %vm1141, %v4088, %v4092
      %v4095 = vshrl.u32 %v3782, 16
      %v4097 = vrot.slane %v4095, 4
      %v4098 = vshll.u32 %v3782, 16
      %v4100 = vrot.slane %v4098, 5
      %v4101 = vor.u32 %v4097, %v4100
      %v4102 = vrot.slane %v4101, 4
      %v4104 = vshll.u32 %v3783, 16
      %v4106 = vrot.slane %v4104, 5
      %v4107 = vsel %vm1141, %v4102, %v4106
      %v4108 = vshrl.u32 %v3783, 16
      %v4110 = vrot.slane %v4108, 4
      %v4111 = vor.u32 %v4110, %v4106
      %v4112 = vrot.slane %v4111, 4
      %v4114 = vshll.u32 %v3802, 16
      %v4116 = vrot.slane %v4114, 5
      %v4117 = vsel %vm1141, %v4112, %v4116
      %v4119 = vshrl.u32 %v3784, 16
      %v4121 = vrot.slane %v4119, 4
      %v4122 = vshll.u32 %v3784, 16
      %v4124 = vrot.slane %v4122, 5
      %v4125 = vor.u32 %v4121, %v4124
      %v4126 = vrot.slane %v4125, 4
      %v4128 = vshll.u32 %v3785, 16
      %v4130 = vrot.slane %v4128, 5
      %v4131 = vsel %vm1141, %v4126, %v4130
      %v4132 = vshrl.u32 %v3785, 16
      %v4134 = vrot.slane %v4132, 4
      %v4135 = vor.u32 %v4134, %v4130
      %v4136 = vrot.slane %v4135, 4
      %v4138 = vshll.u32 %v3803, 16
      %v4140 = vrot.slane %v4138, 5
      %v4141 = vsel %vm1141, %v4136, %v4140
      %v4143 = vshrl.u32 %v3786, 16
      %v4145 = vrot.slane %v4143, 4
      %v4146 = vshll.u32 %v3786, 16
      %v4148 = vrot.slane %v4146, 5
      %v4149 = vor.u32 %v4145, %v4148
      %v4150 = vrot.slane %v4149, 4
      %v4152 = vshll.u32 %v3787, 16
      %v4154 = vrot.slane %v4152, 5
      %v4155 = vsel %vm1141, %v4150, %v4154
      %v4156 = vshrl.u32 %v3787, 16
      %v4158 = vrot.slane %v4156, 4
      %v4159 = vor.u32 %v4158, %v4154
      %v4160 = vrot.slane %v4159, 4
      %v4162 = vshll.u32 %v3804, 16
      %v4164 = vrot.slane %v4162, 5
      %v4165 = vsel %vm1141, %v4160, %v4164
      %v4167 = vshrl.u32 %v3788, 16
      %v4169 = vrot.slane %v4167, 4
      %v4170 = vshll.u32 %v3788, 16
      %v4172 = vrot.slane %v4170, 5
      %v4173 = vor.u32 %v4169, %v4172
      %v4174 = vrot.slane %v4173, 4
      %v4176 = vshll.u32 %v3789, 16
      %v4178 = vrot.slane %v4176, 5
      %v4179 = vsel %vm1141, %v4174, %v4178
      %v4180 = vshrl.u32 %v3789, 16
      %v4182 = vrot.slane %v4180, 4
      %v4183 = vor.u32 %v4182, %v4178
      %v4184 = vrot.slane %v4183, 4
      %v4186 = vshll.u32 %v3805, 16
      %v4188 = vrot.slane %v4186, 5
      %v4189 = vsel %vm1141, %v4184, %v4188
      %v4190 = vld [vmem:[%s3757] sm:$0xe]
      %v4191 = vld [vmem:[%s3757 + $0xc] sm:$0xe]
      %v4192 = vld [vmem:[%s3757 + $0x18] sm:$0xe]
      %v4193 = vld [vmem:[%s3757 + $0x24] sm:$0xe]
      %v4194 = vld [vmem:[%s3757 + $0x30] sm:$0xe]
      %v4195 = vld [vmem:[%s3757 + $0x3c] sm:$0xe]
      %v4196 = vld [vmem:[%s3757 + $0x48] sm:$0xe]
      %v4197 = vld [vmem:[%s3757 + $0x54] sm:$0xe]
      %v4198 = vld [vmem:[%s3757 + $0x60] sm:$0xe]
      %v4199 = vld [vmem:[%s3757 + $0x6c] sm:$0xe]
      %v4200 = vld [vmem:[%s3757 + $0x78] sm:$0xe]
      %v4201 = vld [vmem:[%s3757 + $0x84] sm:$0xe]
      %v4202 = vld [vmem:[%s3757 + $0x90] sm:$0xe]
      %v4203 = vld [vmem:[%s3757 + $0x9c] sm:$0xe]
      %v4204 = vld [vmem:[%s3757 + $0xa8] sm:$0xe]
      %v4205 = vld [vmem:[%s3757 + $0xb4] sm:$0xe]
      %v4254 = vrot.slane %v4190, 5
      %v4255 = vrot.slane %v4254, 4
      %v4256 = vrot.slane %v3759, 5
      %v4257 = vsel %vm1592, %v4255, %v4256
      %v4258 = vrot.slane %v4256, 4
      %v4259 = vrot.slane %v3790, 5
      %v4260 = vsel %vm1592, %v4258, %v4259
      %v4261 = vrot.slane %v4191, 5
      %v4262 = vrot.slane %v4261, 4
      %v4263 = vrot.slane %v3761, 5
      %v4264 = vsel %vm1592, %v4262, %v4263
      %v4265 = vrot.slane %v4263, 4
      %v4266 = vrot.slane %v3791, 5
      %v4267 = vsel %vm1592, %v4265, %v4266
      %v4268 = vrot.slane %v4192, 5
      %v4269 = vrot.slane %v4268, 4
      %v4270 = vrot.slane %v3763, 5
      %v4271 = vsel %vm1592, %v4269, %v4270
      %v4272 = vrot.slane %v4270, 4
      %v4273 = vrot.slane %v3792, 5
      %v4274 = vsel %vm1592, %v4272, %v4273
      %v4275 = vrot.slane %v4193, 5
      %v4276 = vrot.slane %v4275, 4
      %v4277 = vrot.slane %v3765, 5
      %v4278 = vsel %vm1592, %v4276, %v4277
      %v4279 = vrot.slane %v4277, 4
      %v4280 = vrot.slane %v3793, 5
      %v4281 = vsel %vm1592, %v4279, %v4280
      %v4282 = vrot.slane %v4194, 5
      %v4283 = vrot.slane %v4282, 4
      %v4284 = vrot.slane %v3767, 5
      %v4285 = vsel %vm1592, %v4283, %v4284
      %v4286 = vrot.slane %v4284, 4
      %v4287 = vrot.slane %v3794, 5
      %v4288 = vsel %vm1592, %v4286, %v4287
      %v4289 = vrot.slane %v4195, 5
      %v4290 = vrot.slane %v4289, 4
      %v4291 = vrot.slane %v3769, 5
      %v4292 = vsel %vm1592, %v4290, %v4291
      %v4293 = vrot.slane %v4291, 4
      %v4294 = vrot.slane %v3795, 5
      %v4295 = vsel %vm1592, %v4293, %v4294
      %v4296 = vrot.slane %v4196, 5
      %v4297 = vrot.slane %v4296, 4
      %v4298 = vrot.slane %v3771, 5
      %v4299 = vsel %vm1592, %v4297, %v4298
      %v4300 = vrot.slane %v4298, 4
      %v4301 = vrot.slane %v3796, 5
      %v4302 = vsel %vm1592, %v4300, %v4301
      %v4303 = vrot.slane %v4197, 5
      %v4304 = vrot.slane %v4303, 4
      %v4305 = vrot.slane %v3773, 5
      %v4306 = vsel %vm1592, %v4304, %v4305
      %v4307 = vrot.slane %v4305, 4
      %v4308 = vrot.slane %v3797, 5
      %v4309 = vsel %vm1592, %v4307, %v4308
      %v4310 = vrot.slane %v4198, 5
      %v4311 = vrot.slane %v4310, 4
      %v4312 = vrot.slane %v3775, 5
      %v4313 = vsel %vm1592, %v4311, %v4312
      %v4314 = vrot.slane %v4312, 4
      %v4315 = vrot.slane %v3798, 5
      %v4316 = vsel %vm1592, %v4314, %v4315
      %v4317 = vrot.slane %v4199, 5
      %v4318 = vrot.slane %v4317, 4
      %v4319 = vrot.slane %v3777, 5
      %v4320 = vsel %vm1592, %v4318, %v4319
      %v4321 = vrot.slane %v4319, 4
      %v4322 = vrot.slane %v3799, 5
      %v4323 = vsel %vm1592, %v4321, %v4322
      %v4324 = vrot.slane %v4200, 5
      %v4325 = vrot.slane %v4324, 4
      %v4326 = vrot.slane %v3779, 5
      %v4327 = vsel %vm1592, %v4325, %v4326
      %v4328 = vrot.slane %v4326, 4
      %v4329 = vrot.slane %v3800, 5
      %v4330 = vsel %vm1592, %v4328, %v4329
      %v4331 = vrot.slane %v4201, 5
      %v4332 = vrot.slane %v4331, 4
      %v4333 = vrot.slane %v3781, 5
      %v4334 = vsel %vm1592, %v4332, %v4333
      %v4335 = vrot.slane %v4333, 4
      %v4336 = vrot.slane %v3801, 5
      %v4337 = vsel %vm1592, %v4335, %v4336
      %v4338 = vrot.slane %v4202, 5
      %v4339 = vrot.slane %v4338, 4
      %v4340 = vrot.slane %v3783, 5
      %v4341 = vsel %vm1592, %v4339, %v4340
      %v4342 = vrot.slane %v4340, 4
      %v4343 = vrot.slane %v3802, 5
      %v4344 = vsel %vm1592, %v4342, %v4343
      %v4345 = vrot.slane %v4203, 5
      %v4346 = vrot.slane %v4345, 4
      %v4347 = vrot.slane %v3785, 5
      %v4348 = vsel %vm1592, %v4346, %v4347
      %v4349 = vrot.slane %v4347, 4
      %v4350 = vrot.slane %v3803, 5
      %v4351 = vsel %vm1592, %v4349, %v4350
      %v4352 = vrot.slane %v4204, 5
      %v4353 = vrot.slane %v4352, 4
      %v4354 = vrot.slane %v3787, 5
      %v4355 = vsel %vm1592, %v4353, %v4354
      %v4356 = vrot.slane %v4354, 4
      %v4357 = vrot.slane %v3804, 5
      %v4358 = vsel %vm1592, %v4356, %v4357
      %v4359 = vrot.slane %v4205, 5
      %v4360 = vrot.slane %v4359, 4
      %v4361 = vrot.slane %v3789, 5
      %v4362 = vsel %vm1592, %v4360, %v4361
      %v4363 = vrot.slane %v4361, 4
      %v4364 = vrot.slane %v3805, 5
      %v4365 = vsel %vm1592, %v4363, %v4364
      %v4382 = vunpack.c.l.b16 %v3758
      %v4383 = vunpack.c.l.b16 %v3759
      %v4384 = vunpack.c.l.b16 %v3760
      %v4385 = vunpack.c.l.b16 %v3761
      %v4386 = vunpack.c.l.b16 %v3762
      %v4387 = vunpack.c.l.b16 %v3763
      %v4388 = vunpack.c.l.b16 %v3764
      %v4389 = vunpack.c.l.b16 %v3765
      %v4390 = vunpack.c.l.b16 %v3766
      %v4391 = vunpack.c.l.b16 %v3767
      %v4392 = vunpack.c.l.b16 %v3768
      %v4393 = vunpack.c.l.b16 %v3769
      %v4394 = vunpack.c.l.b16 %v3770
      %v4395 = vunpack.c.l.b16 %v3771
      %v4396 = vunpack.c.l.b16 %v3772
      %v4397 = vunpack.c.l.b16 %v3773
      %v4398 = vunpack.c.l.b16 %v3774
      %v4399 = vunpack.c.l.b16 %v3775
      %v4400 = vunpack.c.l.b16 %v3776
      %v4401 = vunpack.c.l.b16 %v3777
      %v4402 = vunpack.c.l.b16 %v3778
      %v4403 = vunpack.c.l.b16 %v3779
      %v4404 = vunpack.c.l.b16 %v3780
      %v4405 = vunpack.c.l.b16 %v3781
      %v4406 = vunpack.c.l.b16 %v3782
      %v4407 = vunpack.c.l.b16 %v3783
      %v4408 = vunpack.c.l.b16 %v3784
      %v4409 = vunpack.c.l.b16 %v3785
      %v4410 = vunpack.c.l.b16 %v3786
      %v4411 = vunpack.c.l.b16 %v3787
      %v4412 = vunpack.c.l.b16 %v3788
      %v4413 = vunpack.c.l.b16 %v3789
      %v4414 = vpack.c.b16 %v4383, %v4382
      %v4415 = vpack.c.b16 %v4385, %v4384
      %v4416 = vpack.c.b16 %v4387, %v4386
      %v4417 = vpack.c.b16 %v4389, %v4388
      %v4418 = vpack.c.b16 %v4391, %v4390
      %v4419 = vpack.c.b16 %v4393, %v4392
      %v4420 = vpack.c.b16 %v4395, %v4394
      %v4421 = vpack.c.b16 %v4397, %v4396
      %v4422 = vpack.c.b16 %v4399, %v4398
      %v4423 = vpack.c.b16 %v4401, %v4400
      %v4424 = vpack.c.b16 %v4403, %v4402
      %v4425 = vpack.c.b16 %v4405, %v4404
      %v4426 = vpack.c.b16 %v4407, %v4406
      %v4427 = vpack.c.b16 %v4409, %v4408
      %v4428 = vpack.c.b16 %v4411, %v4410
      %v4429 = vpack.c.b16 %v4413, %v4412
      %v4446 = vunpack.c.l.b16 %v3819
      %v4447 = vunpack.c.l.b16 %v3829
      %v4448 = vunpack.c.l.b16 %v3843
      %v4449 = vunpack.c.l.b16 %v3853
      %v4450 = vunpack.c.l.b16 %v3867
      %v4451 = vunpack.c.l.b16 %v3877
      %v4452 = vunpack.c.l.b16 %v3891
      %v4453 = vunpack.c.l.b16 %v3901
      %v4454 = vunpack.c.l.b16 %v3915
      %v4455 = vunpack.c.l.b16 %v3925
      %v4456 = vunpack.c.l.b16 %v3939
      %v4457 = vunpack.c.l.b16 %v3949
      %v4458 = vunpack.c.l.b16 %v3963
      %v4459 = vunpack.c.l.b16 %v3973
      %v4460 = vunpack.c.l.b16 %v3987
      %v4461 = vunpack.c.l.b16 %v3997
      %v4462 = vunpack.c.l.b16 %v4011
      %v4463 = vunpack.c.l.b16 %v4021
      %v4464 = vunpack.c.l.b16 %v4035
      %v4465 = vunpack.c.l.b16 %v4045
      %v4466 = vunpack.c.l.b16 %v4059
      %v4467 = vunpack.c.l.b16 %v4069
      %v4468 = vunpack.c.l.b16 %v4083
      %v4469 = vunpack.c.l.b16 %v4093
      %v4470 = vunpack.c.l.b16 %v4107
      %v4471 = vunpack.c.l.b16 %v4117
      %v4472 = vunpack.c.l.b16 %v4131
      %v4473 = vunpack.c.l.b16 %v4141
      %v4474 = vunpack.c.l.b16 %v4155
      %v4475 = vunpack.c.l.b16 %v4165
      %v4476 = vunpack.c.l.b16 %v4179
      %v4477 = vunpack.c.l.b16 %v4189
      %v4478 = vpack.c.b16 %v4447, %v4446
      %v4479 = vpack.c.b16 %v4449, %v4448
      %v4480 = vpack.c.b16 %v4451, %v4450
      %v4481 = vpack.c.b16 %v4453, %v4452
      %v4482 = vpack.c.b16 %v4455, %v4454
      %v4483 = vpack.c.b16 %v4457, %v4456
      %v4484 = vpack.c.b16 %v4459, %v4458
      %v4485 = vpack.c.b16 %v4461, %v4460
      %v4486 = vpack.c.b16 %v4463, %v4462
      %v4487 = vpack.c.b16 %v4465, %v4464
      %v4488 = vpack.c.b16 %v4467, %v4466
      %v4489 = vpack.c.b16 %v4469, %v4468
      %v4490 = vpack.c.b16 %v4471, %v4470
      %v4491 = vpack.c.b16 %v4473, %v4472
      %v4492 = vpack.c.b16 %v4475, %v4474
      %v4493 = vpack.c.b16 %v4477, %v4476
      %v4510 = vunpack.c.l.b16 %v4257
      %v4511 = vunpack.c.l.b16 %v4260
      %v4512 = vunpack.c.l.b16 %v4264
      %v4513 = vunpack.c.l.b16 %v4267
      %v4514 = vunpack.c.l.b16 %v4271
      %v4515 = vunpack.c.l.b16 %v4274
      %v4516 = vunpack.c.l.b16 %v4278
      %v4517 = vunpack.c.l.b16 %v4281
      %v4518 = vunpack.c.l.b16 %v4285
      %v4519 = vunpack.c.l.b16 %v4288
      %v4520 = vunpack.c.l.b16 %v4292
      %v4521 = vunpack.c.l.b16 %v4295
      %v4522 = vunpack.c.l.b16 %v4299
      %v4523 = vunpack.c.l.b16 %v4302
      %v4524 = vunpack.c.l.b16 %v4306
      %v4525 = vunpack.c.l.b16 %v4309
      %v4526 = vunpack.c.l.b16 %v4313
      %v4527 = vunpack.c.l.b16 %v4316
      %v4528 = vunpack.c.l.b16 %v4320
      %v4529 = vunpack.c.l.b16 %v4323
      %v4530 = vunpack.c.l.b16 %v4327
      %v4531 = vunpack.c.l.b16 %v4330
      %v4532 = vunpack.c.l.b16 %v4334
      %v4533 = vunpack.c.l.b16 %v4337
      %v4534 = vunpack.c.l.b16 %v4341
      %v4535 = vunpack.c.l.b16 %v4344
      %v4536 = vunpack.c.l.b16 %v4348
      %v4537 = vunpack.c.l.b16 %v4351
      %v4538 = vunpack.c.l.b16 %v4355
      %v4539 = vunpack.c.l.b16 %v4358
      %v4540 = vunpack.c.l.b16 %v4362
      %v4541 = vunpack.c.l.b16 %v4365
      %v4542 = vpack.c.b16 %v4511, %v4510
      %v4543 = vpack.c.b16 %v4513, %v4512
      %v4544 = vpack.c.b16 %v4515, %v4514
      %v4545 = vpack.c.b16 %v4517, %v4516
      %v4546 = vpack.c.b16 %v4519, %v4518
      %v4547 = vpack.c.b16 %v4521, %v4520
      %v4548 = vpack.c.b16 %v4523, %v4522
      %v4549 = vpack.c.b16 %v4525, %v4524
      %v4550 = vpack.c.b16 %v4527, %v4526
      %v4551 = vpack.c.b16 %v4529, %v4528
      %v4552 = vpack.c.b16 %v4531, %v4530
      %v4553 = vpack.c.b16 %v4533, %v4532
      %v4554 = vpack.c.b16 %v4535, %v4534
      %v4555 = vpack.c.b16 %v4537, %v4536
      %v4556 = vpack.c.b16 %v4539, %v4538
      %v4557 = vpack.c.b16 %v4541, %v4540
      %v4574 = vld [vmem:[%s3 + $0x180] sm:$0xf]
      %v4575 = vld [vmem:[%s3 + $0x184] sm:$0xf]
      %v4576 = vld [vmem:[%s3 + $0x188] sm:$0xf]
      %v4577 = vld [vmem:[%s3 + $0x18c] sm:$0xf]
      %v4578 = vld [vmem:[%s3 + $0x190] sm:$0xf]
      %v4579 = vld [vmem:[%s3 + $0x194] sm:$0xf]
      %v4580 = vld [vmem:[%s3 + $0x198] sm:$0xf]
      %v4581 = vld [vmem:[%s3 + $0x19c] sm:$0xf]
      %v4582 = vld [vmem:[%s3 + $0x1a0] sm:$0xf]
      %v4583 = vld [vmem:[%s3 + $0x1a4] sm:$0xf]
      %v4584 = vld [vmem:[%s3 + $0x1a8] sm:$0xf]
      %v4585 = vld [vmem:[%s3 + $0x1ac] sm:$0xf]
      %v4586 = vld [vmem:[%s3 + $0x1b0] sm:$0xf]
      %v4587 = vld [vmem:[%s3 + $0x1b4] sm:$0xf]
      %v4588 = vld [vmem:[%s3 + $0x1b8] sm:$0xf]
      %v4589 = vld [vmem:[%s3 + $0x1bc] sm:$0xf]
      %v4590 = vld [vmem:[%s3 + $0x1c0] sm:$0xf]
      %v4591 = vld [vmem:[%s3 + $0x1c4] sm:$0xf]
      %v4592 = vld [vmem:[%s3 + $0x1c8] sm:$0xf]
      %v4593 = vld [vmem:[%s3 + $0x1cc] sm:$0xf]
      %v4594 = vld [vmem:[%s3 + $0x1d0] sm:$0xf]
      %v4595 = vld [vmem:[%s3 + $0x1d4] sm:$0xf]
      %v4596 = vld [vmem:[%s3 + $0x1d8] sm:$0xf]
      %v4597 = vld [vmem:[%s3 + $0x1dc] sm:$0xf]
      %v4598 = vld [vmem:[%s3 + $0x1e0] sm:$0xf]
      %v4599 = vld [vmem:[%s3 + $0x1e4] sm:$0xf]
      %v4600 = vld [vmem:[%s3 + $0x1e8] sm:$0xf]
      %v4601 = vld [vmem:[%s3 + $0x1ec] sm:$0xf]
      %v4602 = vld [vmem:[%s3 + $0x1f0] sm:$0xf]
      %v4603 = vld [vmem:[%s3 + $0x1f4] sm:$0xf]
      %v4604 = vld [vmem:[%s3 + $0x1f8] sm:$0xf]
      %v4605 = vld [vmem:[%s3 + $0x1fc] sm:$0xf]
      %v4606 = vld [vmem:[%s3 + $0x200] sm:$0xf]
      %v4607 = vld [vmem:[%s3 + $0x204] sm:$0xf]
      %v4608 = vld [vmem:[%s3 + $0x208] sm:$0xf]
      %v4609 = vld [vmem:[%s3 + $0x20c] sm:$0xf]
      %v4610 = vld [vmem:[%s3 + $0x210] sm:$0xf]
      %v4611 = vld [vmem:[%s3 + $0x214] sm:$0xf]
      %v4612 = vld [vmem:[%s3 + $0x218] sm:$0xf]
      %v4613 = vld [vmem:[%s3 + $0x21c] sm:$0xf]
      %v4614 = vld [vmem:[%s3 + $0x220] sm:$0xf]
      %v4615 = vld [vmem:[%s3 + $0x224] sm:$0xf]
      %v4616 = vld [vmem:[%s3 + $0x228] sm:$0xf]
      %v4617 = vld [vmem:[%s3 + $0x22c] sm:$0xf]
      %v4618 = vld [vmem:[%s3 + $0x230] sm:$0xf]
      %v4619 = vld [vmem:[%s3 + $0x234] sm:$0xf]
      %v4620 = vld [vmem:[%s3 + $0x238] sm:$0xf]
      %v4621 = vld [vmem:[%s3 + $0x23c] sm:$0xf]
      %v4670 = vunpack.c.l.b16 %v4574
      %v4671 = vunpack.c.l.b16 %v4575
      %v4672 = vunpack.c.l.b16 %v4576
      %v4673 = vunpack.c.l.b16 %v4577
      %v4674 = vunpack.c.l.b16 %v4578
      %v4675 = vunpack.c.l.b16 %v4579
      %v4676 = vunpack.c.l.b16 %v4580
      %v4677 = vunpack.c.l.b16 %v4581
      %v4678 = vunpack.c.l.b16 %v4582
      %v4679 = vunpack.c.l.b16 %v4583
      %v4680 = vunpack.c.l.b16 %v4584
      %v4681 = vunpack.c.l.b16 %v4585
      %v4682 = vunpack.c.l.b16 %v4586
      %v4683 = vunpack.c.l.b16 %v4587
      %v4684 = vunpack.c.l.b16 %v4588
      %v4685 = vunpack.c.l.b16 %v4589
      %v4686 = vunpack.c.l.b16 %v4590
      %v4687 = vunpack.c.l.b16 %v4591
      %v4688 = vunpack.c.l.b16 %v4592
      %v4689 = vunpack.c.l.b16 %v4593
      %v4690 = vunpack.c.l.b16 %v4594
      %v4691 = vunpack.c.l.b16 %v4595
      %v4692 = vunpack.c.l.b16 %v4596
      %v4693 = vunpack.c.l.b16 %v4597
      %v4694 = vunpack.c.l.b16 %v4598
      %v4695 = vunpack.c.l.b16 %v4599
      %v4696 = vunpack.c.l.b16 %v4600
      %v4697 = vunpack.c.l.b16 %v4601
      %v4698 = vunpack.c.l.b16 %v4602
      %v4699 = vunpack.c.l.b16 %v4603
      %v4700 = vunpack.c.l.b16 %v4604
      %v4701 = vunpack.c.l.b16 %v4605
      %v4702 = vunpack.c.l.b16 %v4606
      %v4703 = vunpack.c.l.b16 %v4607
      %v4704 = vunpack.c.l.b16 %v4608
      %v4705 = vunpack.c.l.b16 %v4609
      %v4706 = vunpack.c.l.b16 %v4610
      %v4707 = vunpack.c.l.b16 %v4611
      %v4708 = vunpack.c.l.b16 %v4612
      %v4709 = vunpack.c.l.b16 %v4613
      %v4710 = vunpack.c.l.b16 %v4614
      %v4711 = vunpack.c.l.b16 %v4615
      %v4712 = vunpack.c.l.b16 %v4616
      %v4713 = vunpack.c.l.b16 %v4617
      %v4714 = vunpack.c.l.b16 %v4618
      %v4715 = vunpack.c.l.b16 %v4619
      %v4716 = vunpack.c.l.b16 %v4620
      %v4717 = vunpack.c.l.b16 %v4621
      %v4718 = vpack.c.b16 %v4671, %v4670
      %v4719 = vpack.c.b16 %v4673, %v4672
      %v4720 = vpack.c.b16 %v4675, %v4674
      %v4721 = vpack.c.b16 %v4677, %v4676
      %v4722 = vpack.c.b16 %v4679, %v4678
      %v4723 = vpack.c.b16 %v4681, %v4680
      %v4724 = vpack.c.b16 %v4683, %v4682
      %v4725 = vpack.c.b16 %v4685, %v4684
      %v4726 = vpack.c.b16 %v4687, %v4686
      %v4727 = vpack.c.b16 %v4689, %v4688
      %v4728 = vpack.c.b16 %v4691, %v4690
      %v4729 = vpack.c.b16 %v4693, %v4692
      %v4730 = vpack.c.b16 %v4695, %v4694
      %v4731 = vpack.c.b16 %v4697, %v4696
      %v4732 = vpack.c.b16 %v4699, %v4698
      %v4733 = vpack.c.b16 %v4701, %v4700
      %v4734 = vpack.c.b16 %v4703, %v4702
      %v4735 = vpack.c.b16 %v4705, %v4704
      %v4736 = vpack.c.b16 %v4707, %v4706
      %v4737 = vpack.c.b16 %v4709, %v4708
      %v4738 = vpack.c.b16 %v4711, %v4710
      %v4739 = vpack.c.b16 %v4713, %v4712
      %v4740 = vpack.c.b16 %v4715, %v4714
      %v4741 = vpack.c.b16 %v4717, %v4716
      %4766 = vmatprep.subr.bf16.mxu0 0
      %4767 = vmatpush1.bf16.msra.mxu0 %v4718
      %4768 = vmatprep.subr.bf16.mxu0 0
      %4769 = vmatpush1.bf16.msra.mxu0 %v4719
      %4770 = vmatprep.subr.bf16.mxu0 0
      %4771 = vmatpush1.bf16.msra.mxu0 %v4720
      %4772 = vmatprep.subr.bf16.mxu0 0
      %4773 = vmatpush1.bf16.msra.mxu0 %v4721
      %4774 = vmatprep.subr.bf16.mxu0 0
      %4775 = vmatpush1.bf16.msra.mxu0 %v4722
      %4776 = vmatprep.subr.bf16.mxu0 0
      %4777 = vmatpush1.bf16.msra.mxu0 %v4723
      %4778 = vmatprep.subr.bf16.mxu0 0
      %4779 = vmatpush1.bf16.msra.mxu0 %v4724
      %4780 = vmatprep.subr.bf16.mxu0 0
      %4781 = vmatpush1.bf16.msra.mxu0 %v4725
      %4782 = vmatprep.subr.bf16.mxu0 0
      %4783 = vmatpush1.bf16.msra.mxu0 %v4726
      %4784 = vmatprep.subr.bf16.mxu0 0
      %4785 = vmatpush1.bf16.msra.mxu0 %v4727
      %4786 = vmatprep.subr.bf16.mxu0 0
      %4787 = vmatpush1.bf16.msra.mxu0 %v4728
      %4788 = vmatprep.subr.bf16.mxu0 0
      %4789 = vmatpush1.bf16.msra.mxu0 %v4729
      %4790 = vmatprep.subr.bf16.mxu0 0
      %4791 = vmatpush1.bf16.msra.mxu0 %v4730
      %4792 = vmatprep.subr.bf16.mxu0 0
      %4793 = vmatpush1.bf16.msra.mxu0 %v4731
      %4794 = vmatprep.subr.bf16.mxu0 0
      %4795 = vmatpush1.bf16.msra.mxu0 %v4732
      %4796 = vmatprep.subr.bf16.mxu0 0
      %4797 = vmatpush1.bf16.msra.mxu0 %v4733
      %4798 = vmatprep.mubr.bf16.mxu0 %v4478
      %4799 = vmatmul.mubr.bf16.gmra.mrb[0].mxu0 %v4414
      %v4800 = vpop.f32.mrb[0].mxu0
      %v4801 = vadd.f32 0.0, %v4800
      %v4802 = vpop.f32.mrb[0].mxu0
      %v4803 = vpop.f32.mrb[0].mxu0
      %v4804 = vadd.f32 0.0, %v4803
      %v4805 = vpop.f32.mrb[0].mxu0
      %4806 = vmatprep.mubr.bf16.mxu0 %v4479
      %4807 = vmatmul.mubr.bf16.gmra.mrb[0].mxu0 %v4415
      %v4808 = vpop.f32.mrb[0].mxu0
      %v4809 = vadd.f32 0.0, %v4808
      %v4810 = vpop.f32.mrb[0].mxu0
      %v4811 = vpop.f32.mrb[0].mxu0
      %v4812 = vadd.f32 0.0, %v4811
      %v4813 = vpop.f32.mrb[0].mxu0
      %4814 = vmatprep.mubr.bf16.mxu0 %v4480
      %4815 = vmatmul.mubr.bf16.gmra.mrb[0].mxu0 %v4416
      %v4816 = vpop.f32.mrb[0].mxu0
      %v4817 = vadd.f32 0.0, %v4816
      %v4818 = vpop.f32.mrb[0].mxu0
      %v4819 = vpop.f32.mrb[0].mxu0
      %v4820 = vadd.f32 0.0, %v4819
      %v4821 = vpop.f32.mrb[0].mxu0
      %4822 = vmatprep.mubr.bf16.mxu0 %v4481
      %4823 = vmatmul.mubr.bf16.gmra.mrb[0].mxu0 %v4417
      %v4824 = vpop.f32.mrb[0].mxu0
      %v4825 = vadd.f32 0.0, %v4824
      %v4826 = vpop.f32.mrb[0].mxu0
      %v4827 = vpop.f32.mrb[0].mxu0
      %v4828 = vadd.f32 0.0, %v4827
      %v4829 = vpop.f32.mrb[0].mxu0
      %4830 = vmatprep.mubr.bf16.mxu0 %v4482
      %4831 = vmatmul.mubr.bf16.gmra.mrb[0].mxu0 %v4418
      %v4832 = vpop.f32.mrb[0].mxu0
      %v4833 = vadd.f32 0.0, %v4832
      %v4834 = vpop.f32.mrb[0].mxu0
      %v4835 = vpop.f32.mrb[0].mxu0
      %v4836 = vadd.f32 0.0, %v4835
      %v4837 = vpop.f32.mrb[0].mxu0
      %4838 = vmatprep.mubr.bf16.mxu0 %v4483
      %4839 = vmatmul.mubr.bf16.gmra.mrb[0].mxu0 %v4419
      %v4840 = vpop.f32.mrb[0].mxu0
      %v4841 = vadd.f32 0.0, %v4840
      %v4842 = vpop.f32.mrb[0].mxu0
      %v4843 = vpop.f32.mrb[0].mxu0
      %v4844 = vadd.f32 0.0, %v4843
      %v4845 = vpop.f32.mrb[0].mxu0
      %4846 = vmatprep.mubr.bf16.mxu0 %v4484
      %4847 = vmatmul.mubr.bf16.gmra.mrb[0].mxu0 %v4420
      %v4848 = vpop.f32.mrb[0].mxu0
      %v4849 = vadd.f32 0.0, %v4848
      %v4850 = vpop.f32.mrb[0].mxu0
      %v4851 = vpop.f32.mrb[0].mxu0
      %v4852 = vadd.f32 0.0, %v4851
      %v4853 = vpop.f32.mrb[0].mxu0
      %4854 = vmatprep.mubr.bf16.mxu0 %v4485
      %4855 = vmatmul.mubr.bf16.gmra.mrb[0].mxu0 %v4421
      %v4856 = vpop.f32.mrb[0].mxu0
      %v4857 = vadd.f32 0.0, %v4856
      %v4858 = vpop.f32.mrb[0].mxu0
      %v4859 = vpop.f32.mrb[0].mxu0
      %v4860 = vadd.f32 0.0, %v4859
      %v4861 = vpop.f32.mrb[0].mxu0
      %4862 = vmatprep.mubr.bf16.mxu0 %v4486
      %4863 = vmatmul.mubr.bf16.gmra.mrb[0].mxu0 %v4422
      %v4864 = vpop.f32.mrb[0].mxu0
      %v4865 = vadd.f32 0.0, %v4864
      %v4866 = vpop.f32.mrb[0].mxu0
      %v4867 = vpop.f32.mrb[0].mxu0
      %v4868 = vadd.f32 0.0, %v4867
      %v4869 = vpop.f32.mrb[0].mxu0
      %4870 = vmatprep.mubr.bf16.mxu0 %v4487
      %4871 = vmatmul.mubr.bf16.gmra.mrb[0].mxu0 %v4423
      %v4872 = vpop.f32.mrb[0].mxu0
      %v4873 = vadd.f32 0.0, %v4872
      %v4874 = vpop.f32.mrb[0].mxu0
      %v4875 = vpop.f32.mrb[0].mxu0
      %v4876 = vadd.f32 0.0, %v4875
      %v4877 = vpop.f32.mrb[0].mxu0
      %4878 = vmatprep.mubr.bf16.mxu0 %v4488
      %4879 = vmatmul.mubr.bf16.gmra.mrb[0].mxu0 %v4424
      %v4880 = vpop.f32.mrb[0].mxu0
      %v4881 = vadd.f32 0.0, %v4880
      %v4882 = vpop.f32.mrb[0].mxu0
      %v4883 = vpop.f32.mrb[0].mxu0
      %v4884 = vadd.f32 0.0, %v4883
      %v4885 = vpop.f32.mrb[0].mxu0
      %4886 = vmatprep.mubr.bf16.mxu0 %v4489
      %4887 = vmatmul.mubr.bf16.gmra.mrb[0].mxu0 %v4425
      %v4888 = vpop.f32.mrb[0].mxu0
      %v4889 = vadd.f32 0.0, %v4888
      %v4890 = vpop.f32.mrb[0].mxu0
      %v4891 = vpop.f32.mrb[0].mxu0
      %v4892 = vadd.f32 0.0, %v4891
      %v4893 = vpop.f32.mrb[0].mxu0
      %4894 = vmatprep.mubr.bf16.mxu0 %v4490
      %4895 = vmatmul.mubr.bf16.gmra.mrb[0].mxu0 %v4426
      %v4896 = vpop.f32.mrb[0].mxu0
      %v4897 = vadd.f32 0.0, %v4896
      %v4898 = vpop.f32.mrb[0].mxu0
      %v4899 = vpop.f32.mrb[0].mxu0
      %v4900 = vadd.f32 0.0, %v4899
      %v4901 = vpop.f32.mrb[0].mxu0
      %4902 = vmatprep.mubr.bf16.mxu0 %v4491
      %4903 = vmatmul.mubr.bf16.gmra.mrb[0].mxu0 %v4427
      %v4904 = vpop.f32.mrb[0].mxu0
      %v4905 = vadd.f32 0.0, %v4904
      %v4906 = vpop.f32.mrb[0].mxu0
      %v4907 = vpop.f32.mrb[0].mxu0
      %v4908 = vadd.f32 0.0, %v4907
      %v4909 = vpop.f32.mrb[0].mxu0
      %4910 = vmatprep.mubr.bf16.mxu0 %v4492
      %4911 = vmatmul.mubr.bf16.gmra.mrb[0].mxu0 %v4428
      %v4912 = vpop.f32.mrb[0].mxu0
      %v4913 = vadd.f32 0.0, %v4912
      %v4914 = vpop.f32.mrb[0].mxu0
      %v4915 = vpop.f32.mrb[0].mxu0
      %v4916 = vadd.f32 0.0, %v4915
      %v4917 = vpop.f32.mrb[0].mxu0
      %4918 = vmatprep.mubr.bf16.mxu0 %v4493
      %4919 = vmatmul.mubr.bf16.gmra.mrb[0].mxu0 %v4429
      %v4920 = vpop.f32.mrb[0].mxu0
      %v4921 = vadd.f32 0.0, %v4920
      %v4922 = vpop.f32.mrb[0].mxu0
      %v4923 = vpop.f32.mrb[0].mxu0
      %v4924 = vadd.f32 0.0, %v4923
      %v4925 = vpop.f32.mrb[0].mxu0
      %4926 = vdwg.mxu0
      %4927 = vmatprep.subr.bf16.mxu0 0
      %4928 = vmatpush1.bf16.msra.mxu0 %v4734
      %4929 = vmatprep.subr.bf16.mxu0 0
      %4930 = vmatpush1.bf16.msra.mxu0 %v4735
      %4931 = vmatprep.subr.bf16.mxu0 0
      %4932 = vmatpush1.bf16.msra.mxu0 %v4736
      %4933 = vmatprep.subr.bf16.mxu0 0
      %4934 = vmatpush1.bf16.msra.mxu0 %v4737
      %4935 = vmatprep.subr.bf16.mxu0 0
      %4936 = vmatpush1.bf16.msra.mxu0 %v4738
      %4937 = vmatprep.subr.bf16.mxu0 0
      %4938 = vmatpush1.bf16.msra.mxu0 %v4739
      %4939 = vmatprep.subr.bf16.mxu0 0
      %4940 = vmatpush1.bf16.msra.mxu0 %v4740
      %4941 = vmatprep.subr.bf16.mxu0 0
      %4942 = vmatpush1.bf16.msra.mxu0 %v4741
      %4943 = vmatprep.subr.bf16.mxu0 0
      %4944 = vmatpush1.bf16.msra.mxu0 0
      %4945 = vmatprep.subr.bf16.mxu0 0
      %4946 = vmatpush1.bf16.msra.mxu0 0
      %4947 = vmatprep.subr.bf16.mxu0 0
      %4948 = vmatpush1.bf16.msra.mxu0 0
      %4949 = vmatprep.subr.bf16.mxu0 0
      %4950 = vmatpush1.bf16.msra.mxu0 0
      %4951 = vmatprep.subr.bf16.mxu0 0
      %4952 = vmatpush1.bf16.msra.mxu0 0
      %4953 = vmatprep.subr.bf16.mxu0 0
      %4954 = vmatpush1.bf16.msra.mxu0 0
      %4955 = vmatprep.subr.bf16.mxu0 0
      %4956 = vmatpush1.bf16.msra.mxu0 0
      %4957 = vmatprep.subr.bf16.mxu0 0
      %4958 = vmatpush1.bf16.msra.mxu0 0
      %4959 = vmatprep.mubr.bf16.mxu0 0
      %4960 = vmatmul.mubr.bf16.gmra.mrb[0].mxu0 %v4542
      %v4961 = vpop.f32.mrb[0].mxu0
      %v4962 = vadd.f32 %v4801, %v4961
      %v4963 = vpop.f32.mrb[0].mxu0
      %v4964 = vpop.f32.mrb[0].mxu0
      %v4965 = vadd.f32 %v4804, %v4964
      %v4966 = vpop.f32.mrb[0].mxu0
      %4967 = vmatprep.mubr.bf16.mxu0 0
      %4968 = vmatmul.mubr.bf16.gmra.mrb[0].mxu0 %v4543
      %v4969 = vpop.f32.mrb[0].mxu0
      %v4970 = vadd.f32 %v4809, %v4969
      %v4971 = vpop.f32.mrb[0].mxu0
      %v4972 = vpop.f32.mrb[0].mxu0
      %v4973 = vadd.f32 %v4812, %v4972
      %v4974 = vpop.f32.mrb[0].mxu0
      %4975 = vmatprep.mubr.bf16.mxu0 0
      %4976 = vmatmul.mubr.bf16.gmra.mrb[0].mxu0 %v4544
      %v4977 = vpop.f32.mrb[0].mxu0
      %v4978 = vadd.f32 %v4817, %v4977
      %v4979 = vpop.f32.mrb[0].mxu0
      %v4980 = vpop.f32.mrb[0].mxu0
      %v4981 = vadd.f32 %v4820, %v4980
      %v4982 = vpop.f32.mrb[0].mxu0
      %4983 = vmatprep.mubr.bf16.mxu0 0
      %4984 = vmatmul.mubr.bf16.gmra.mrb[0].mxu0 %v4545
      %v4985 = vpop.f32.mrb[0].mxu0
      %v4986 = vadd.f32 %v4825, %v4985
      %v4987 = vpop.f32.mrb[0].mxu0
      %v4988 = vpop.f32.mrb[0].mxu0
      %v4989 = vadd.f32 %v4828, %v4988
      %v4990 = vpop.f32.mrb[0].mxu0
      %4991 = vmatprep.mubr.bf16.mxu0 0
      %4992 = vmatmul.mubr.bf16.gmra.mrb[0].mxu0 %v4546
      %v4993 = vpop.f32.mrb[0].mxu0
      %v4994 = vadd.f32 %v4833, %v4993
      %v4995 = vpop.f32.mrb[0].mxu0
      %v4996 = vpop.f32.mrb[0].mxu0
      %v4997 = vadd.f32 %v4836, %v4996
      %v4998 = vpop.f32.mrb[0].mxu0
      %4999 = vmatprep.mubr.bf16.mxu0 0
      %5000 = vmatmul.mubr.bf16.gmra.mrb[0].mxu0 %v4547
      %v5001 = vpop.f32.mrb[0].mxu0
      %v5002 = vadd.f32 %v4841, %v5001
      %v5003 = vpop.f32.mrb[0].mxu0
      %v5004 = vpop.f32.mrb[0].mxu0
      %v5005 = vadd.f32 %v4844, %v5004
      %v5006 = vpop.f32.mrb[0].mxu0
      %5007 = vmatprep.mubr.bf16.mxu0 0
      %5008 = vmatmul.mubr.bf16.gmra.mrb[0].mxu0 %v4548
      %v5009 = vpop.f32.mrb[0].mxu0
      %v5010 = vadd.f32 %v4849, %v5009
      %v5011 = vpop.f32.mrb[0].mxu0
      %v5012 = vpop.f32.mrb[0].mxu0
      %v5013 = vadd.f32 %v4852, %v5012
      %v5014 = vpop.f32.mrb[0].mxu0
      %5015 = vmatprep.mubr.bf16.mxu0 0
      %5016 = vmatmul.mubr.bf16.gmra.mrb[0].mxu0 %v4549
      %v5017 = vpop.f32.mrb[0].mxu0
      %v5018 = vadd.f32 %v4857, %v5017
      %v5019 = vpop.f32.mrb[0].mxu0
      %v5020 = vpop.f32.mrb[0].mxu0
      %v5021 = vadd.f32 %v4860, %v5020
      %v5022 = vpop.f32.mrb[0].mxu0
      %5023 = vmatprep.mubr.bf16.mxu0 0
      %5024 = vmatmul.mubr.bf16.gmra.mrb[0].mxu0 %v4550
      %v5025 = vpop.f32.mrb[0].mxu0
      %v5026 = vadd.f32 %v4865, %v5025
      %v5027 = vpop.f32.mrb[0].mxu0
      %v5028 = vpop.f32.mrb[0].mxu0
      %v5029 = vadd.f32 %v4868, %v5028
      %v5030 = vpop.f32.mrb[0].mxu0
      %5031 = vmatprep.mubr.bf16.mxu0 0
      %5032 = vmatmul.mubr.bf16.gmra.mrb[0].mxu0 %v4551
      %v5033 = vpop.f32.mrb[0].mxu0
      %v5034 = vadd.f32 %v4873, %v5033
      %v5035 = vpop.f32.mrb[0].mxu0
      %v5036 = vpop.f32.mrb[0].mxu0
      %v5037 = vadd.f32 %v4876, %v5036
      %v5038 = vpop.f32.mrb[0].mxu0
      %5039 = vmatprep.mubr.bf16.mxu0 0
      %5040 = vmatmul.mubr.bf16.gmra.mrb[0].mxu0 %v4552
      %v5041 = vpop.f32.mrb[0].mxu0
      %v5042 = vadd.f32 %v4881, %v5041
      %v5043 = vpop.f32.mrb[0].mxu0
      %v5044 = vpop.f32.mrb[0].mxu0
      %v5045 = vadd.f32 %v4884, %v5044
      %v5046 = vpop.f32.mrb[0].mxu0
      %5047 = vmatprep.mubr.bf16.mxu0 0
      %5048 = vmatmul.mubr.bf16.gmra.mrb[0].mxu0 %v4553
      %v5049 = vpop.f32.mrb[0].mxu0
      %v5050 = vadd.f32 %v4889, %v5049
      %v5051 = vpop.f32.mrb[0].mxu0
      %v5052 = vpop.f32.mrb[0].mxu0
      %v5053 = vadd.f32 %v4892, %v5052
      %v5054 = vpop.f32.mrb[0].mxu0
      %5055 = vmatprep.mubr.bf16.mxu0 0
      %5056 = vmatmul.mubr.bf16.gmra.mrb[0].mxu0 %v4554
      %v5057 = vpop.f32.mrb[0].mxu0
      %v5058 = vadd.f32 %v4897, %v5057
      %v5059 = vpop.f32.mrb[0].mxu0
      %v5060 = vpop.f32.mrb[0].mxu0
      %v5061 = vadd.f32 %v4900, %v5060
      %v5062 = vpop.f32.mrb[0].mxu0
      %5063 = vmatprep.mubr.bf16.mxu0 0
      %5064 = vmatmul.mubr.bf16.gmra.mrb[0].mxu0 %v4555
      %v5065 = vpop.f32.mrb[0].mxu0
      %v5066 = vadd.f32 %v4905, %v5065
      %v5067 = vpop.f32.mrb[0].mxu0
      %v5068 = vpop.f32.mrb[0].mxu0
      %v5069 = vadd.f32 %v4908, %v5068
      %v5070 = vpop.f32.mrb[0].mxu0
      %5071 = vmatprep.mubr.bf16.mxu0 0
      %5072 = vmatmul.mubr.bf16.gmra.mrb[0].mxu0 %v4556
      %v5073 = vpop.f32.mrb[0].mxu0
      %v5074 = vadd.f32 %v4913, %v5073
      %v5075 = vpop.f32.mrb[0].mxu0
      %v5076 = vpop.f32.mrb[0].mxu0
      %v5077 = vadd.f32 %v4916, %v5076
      %v5078 = vpop.f32.mrb[0].mxu0
      %5079 = vmatprep.mubr.bf16.mxu0 0
      %5080 = vmatmul.mubr.bf16.gmra.mrb[0].mxu0 %v4557
      %v5081 = vpop.f32.mrb[0].mxu0
      %v5082 = vadd.f32 %v4921, %v5081
      %v5083 = vpop.f32.mrb[0].mxu0
      %v5084 = vpop.f32.mrb[0].mxu0
      %v5085 = vadd.f32 %v4924, %v5084
      %v5086 = vpop.f32.mrb[0].mxu0
      %5087 = vdwg.mxu0
      %v5088 = vadd.f32 %v3631, %v4962
      %v5089 = vadd.f32 %v3634, %v4965
      %v5090 = vadd.f32 %v3639, %v4970
      %v5091 = vadd.f32 %v3642, %v4973
      %v5092 = vadd.f32 %v3647, %v4978
      %v5093 = vadd.f32 %v3650, %v4981
      %v5094 = vadd.f32 %v3655, %v4986
      %v5095 = vadd.f32 %v3658, %v4989
      %v5096 = vadd.f32 %v3663, %v4994
      %v5097 = vadd.f32 %v3666, %v4997
      %v5098 = vadd.f32 %v3671, %v5002
      %v5099 = vadd.f32 %v3674, %v5005
      %v5100 = vadd.f32 %v3679, %v5010
      %v5101 = vadd.f32 %v3682, %v5013
      %v5102 = vadd.f32 %v3687, %v5018
      %v5103 = vadd.f32 %v3690, %v5021
      %v5104 = vadd.f32 %v3695, %v5026
      %v5105 = vadd.f32 %v3698, %v5029
      %v5106 = vadd.f32 %v3703, %v5034
      %v5107 = vadd.f32 %v3706, %v5037
      %v5108 = vadd.f32 %v3711, %v5042
      %v5109 = vadd.f32 %v3714, %v5045
      %v5110 = vadd.f32 %v3719, %v5050
      %v5111 = vadd.f32 %v3722, %v5053
      %v5112 = vadd.f32 %v3727, %v5058
      %v5113 = vadd.f32 %v3730, %v5061
      %v5114 = vadd.f32 %v3735, %v5066
      %v5115 = vadd.f32 %v3738, %v5069
      %v5116 = vadd.f32 %v3743, %v5074
      %v5117 = vadd.f32 %v3746, %v5077
      %v5118 = vadd.f32 %v3751, %v5082
      %v5119 = vadd.f32 %v3754, %v5085
      %v5120 = vld [vmem:[%s4] sm:$0x1]
      %v5122 = vlaneseq
      %v5123 = vshrl.u32 %v5122, 7
      %v5124 = vsub.s32 0, %v5123
      %v5125 = vrot.slane %v5120, %v5124
      %v5127 = vadd.f32 %v5088, %v5125
      %v5128 = vadd.f32 %v5089, %v5125
      %v5129 = vadd.f32 %v5090, %v5125
      %v5130 = vadd.f32 %v5091, %v5125
      %v5131 = vadd.f32 %v5092, %v5125
      %v5132 = vadd.f32 %v5093, %v5125
      %v5133 = vadd.f32 %v5094, %v5125
      %v5134 = vadd.f32 %v5095, %v5125
      %v5135 = vadd.f32 %v5096, %v5125
      %v5136 = vadd.f32 %v5097, %v5125
      %v5137 = vadd.f32 %v5098, %v5125
      %v5138 = vadd.f32 %v5099, %v5125
      %v5139 = vadd.f32 %v5100, %v5125
      %v5140 = vadd.f32 %v5101, %v5125
      %v5141 = vadd.f32 %v5102, %v5125
      %v5142 = vadd.f32 %v5103, %v5125
      %v5143 = vadd.f32 %v5104, %v5125
      %v5144 = vadd.f32 %v5105, %v5125
      %v5145 = vadd.f32 %v5106, %v5125
      %v5146 = vadd.f32 %v5107, %v5125
      %v5147 = vadd.f32 %v5108, %v5125
      %v5148 = vadd.f32 %v5109, %v5125
      %v5149 = vadd.f32 %v5110, %v5125
      %v5150 = vadd.f32 %v5111, %v5125
      %v5151 = vadd.f32 %v5112, %v5125
      %v5152 = vadd.f32 %v5113, %v5125
      %v5153 = vadd.f32 %v5114, %v5125
      %v5154 = vadd.f32 %v5115, %v5125
      %v5155 = vadd.f32 %v5116, %v5125
      %v5156 = vadd.f32 %v5117, %v5125
      %v5157 = vadd.f32 %v5118, %v5125
      %v5158 = vadd.f32 %v5119, %v5125
      %v5159 = vadd.f32 %v5127, %v5128
      %v5160 = vadd.f32 %v5159, %v5129
      %v5161 = vadd.f32 %v5160, %v5130
      %v5162 = vadd.f32 %v5161, %v5131
      %v5163 = vadd.f32 %v5162, %v5132
      %v5164 = vadd.f32 %v5163, %v5133
      %v5165 = vadd.f32 %v5164, %v5134
      %v5166 = vadd.f32 %v5165, %v5135
      %v5167 = vadd.f32 %v5166, %v5136
      %v5168 = vadd.f32 %v5167, %v5137
      %v5169 = vadd.f32 %v5168, %v5138
      %v5170 = vadd.f32 %v5169, %v5139
      %v5171 = vadd.f32 %v5170, %v5140
      %v5172 = vadd.f32 %v5171, %v5141
      %v5173 = vadd.f32 %v5172, %v5142
      %v5174 = vadd.f32 %v5173, %v5143
      %v5175 = vadd.f32 %v5174, %v5144
      %v5176 = vadd.f32 %v5175, %v5145
      %v5177 = vadd.f32 %v5176, %v5146
      %v5178 = vadd.f32 %v5177, %v5147
      %v5179 = vadd.f32 %v5178, %v5148
      %v5180 = vadd.f32 %v5179, %v5149
      %v5181 = vadd.f32 %v5180, %v5150
      %v5182 = vadd.f32 %v5181, %v5151
      %v5183 = vadd.f32 %v5182, %v5152
      %v5184 = vadd.f32 %v5183, %v5153
      %v5185 = vadd.f32 %v5184, %v5154
      %v5186 = vadd.f32 %v5185, %v5155
      %v5187 = vadd.f32 %v5186, %v5156
      %v5188 = vadd.f32 %v5187, %v5157
      %v5189 = vadd.f32 %v5188, %v5158
      %v5190 = vrot.slane %v5189, 4
      %v5191 = vadd.f32 %v5189, %v5190
      %v5192 = vrot.slane %v5191, 2
      %v5193 = vadd.f32 %v5191, %v5192
      %v5194 = vrot.slane %v5193, 1
      %v5195 = vadd.f32 %v5193, %v5194
      %5196 = vst [vmem:[%s262] sm:$0x1] %v5195
      %v5197 = vmul.f32 %v5127, %v5127
      %v5198 = vmul.f32 %v5128, %v5128
      %v5199 = vmul.f32 %v5129, %v5129
      %v5200 = vmul.f32 %v5130, %v5130
      %v5201 = vmul.f32 %v5131, %v5131
      %v5202 = vmul.f32 %v5132, %v5132
      %v5203 = vmul.f32 %v5133, %v5133
      %v5204 = vmul.f32 %v5134, %v5134
      %v5205 = vmul.f32 %v5135, %v5135
      %v5206 = vmul.f32 %v5136, %v5136
      %v5207 = vmul.f32 %v5137, %v5137
      %v5208 = vmul.f32 %v5138, %v5138
      %v5209 = vmul.f32 %v5139, %v5139
      %v5210 = vmul.f32 %v5140, %v5140
      %v5211 = vmul.f32 %v5141, %v5141
      %v5212 = vmul.f32 %v5142, %v5142
      %v5213 = vmul.f32 %v5143, %v5143
      %v5214 = vmul.f32 %v5144, %v5144
      %v5215 = vmul.f32 %v5145, %v5145
      %v5216 = vmul.f32 %v5146, %v5146
      %v5217 = vmul.f32 %v5147, %v5147
      %v5218 = vmul.f32 %v5148, %v5148
      %v5219 = vmul.f32 %v5149, %v5149
      %v5220 = vmul.f32 %v5150, %v5150
      %v5221 = vmul.f32 %v5151, %v5151
      %v5222 = vmul.f32 %v5152, %v5152
      %v5223 = vmul.f32 %v5153, %v5153
      %v5224 = vmul.f32 %v5154, %v5154
      %v5225 = vmul.f32 %v5155, %v5155
      %v5226 = vmul.f32 %v5156, %v5156
      %v5227 = vmul.f32 %v5157, %v5157
      %v5228 = vmul.f32 %v5158, %v5158
      %v5229 = vadd.f32 %v5197, %v5198
      %v5230 = vadd.f32 %v5229, %v5199
      %v5231 = vadd.f32 %v5230, %v5200
      %v5232 = vadd.f32 %v5231, %v5201
      %v5233 = vadd.f32 %v5232, %v5202
      %v5234 = vadd.f32 %v5233, %v5203
      %v5235 = vadd.f32 %v5234, %v5204
      %v5236 = vadd.f32 %v5235, %v5205
      %v5237 = vadd.f32 %v5236, %v5206
      %v5238 = vadd.f32 %v5237, %v5207
      %v5239 = vadd.f32 %v5238, %v5208
      %v5240 = vadd.f32 %v5239, %v5209
      %v5241 = vadd.f32 %v5240, %v5210
      %v5242 = vadd.f32 %v5241, %v5211
      %v5243 = vadd.f32 %v5242, %v5212
      %v5244 = vadd.f32 %v5243, %v5213
      %v5245 = vadd.f32 %v5244, %v5214
      %v5246 = vadd.f32 %v5245, %v5215
      %v5247 = vadd.f32 %v5246, %v5216
      %v5248 = vadd.f32 %v5247, %v5217
      %v5249 = vadd.f32 %v5248, %v5218
      %v5250 = vadd.f32 %v5249, %v5219
      %v5251 = vadd.f32 %v5250, %v5220
      %v5252 = vadd.f32 %v5251, %v5221
      %v5253 = vadd.f32 %v5252, %v5222
      %v5254 = vadd.f32 %v5253, %v5223
      %v5255 = vadd.f32 %v5254, %v5224
      %v5256 = vadd.f32 %v5255, %v5225
      %v5257 = vadd.f32 %v5256, %v5226
      %v5258 = vadd.f32 %v5257, %v5227
      %v5259 = vadd.f32 %v5258, %v5228
      %v5260 = vrot.slane %v5259, 4
      %v5261 = vadd.f32 %v5259, %v5260
      %v5262 = vrot.slane %v5261, 2
      %v5263 = vadd.f32 %v5261, %v5262
      %v5264 = vrot.slane %v5263, 1
      %v5265 = vadd.f32 %v5263, %v5264
      %5266 = vst [vmem:[%s262 + $0x1] sm:$0x1] %v5265
      %v5267 = vpack.c.bf16 %v5128, %v5127
      %v5268 = vpack.c.bf16 %v5130, %v5129
      %v5269 = vpack.c.bf16 %v5132, %v5131
      %v5270 = vpack.c.bf16 %v5134, %v5133
      %v5271 = vpack.c.bf16 %v5136, %v5135
      %v5272 = vpack.c.bf16 %v5138, %v5137
      %v5273 = vpack.c.bf16 %v5140, %v5139
      %v5274 = vpack.c.bf16 %v5142, %v5141
      %v5275 = vpack.c.bf16 %v5144, %v5143
      %v5276 = vpack.c.bf16 %v5146, %v5145
      %v5277 = vpack.c.bf16 %v5148, %v5147
      %v5278 = vpack.c.bf16 %v5150, %v5149
      %v5279 = vpack.c.bf16 %v5152, %v5151
      %v5280 = vpack.c.bf16 %v5154, %v5153
      %v5281 = vpack.c.bf16 %v5156, %v5155
      %v5282 = vpack.c.bf16 %v5158, %v5157
      %v5299 = vunpack.c.l.b16 %v5267
      %v5300 = vunpack.c.h.b16 %v5267
      %v5301 = vunpack.c.l.b16 %v5268
      %v5302 = vunpack.c.h.b16 %v5268
      %v5303 = vunpack.c.l.b16 %v5269
      %v5304 = vunpack.c.h.b16 %v5269
      %v5305 = vunpack.c.l.b16 %v5270
      %v5306 = vunpack.c.h.b16 %v5270
      %v5307 = vunpack.c.l.b16 %v5271
      %v5308 = vunpack.c.h.b16 %v5271
      %v5309 = vunpack.c.l.b16 %v5272
      %v5310 = vunpack.c.h.b16 %v5272
      %v5311 = vunpack.c.l.b16 %v5273
      %v5312 = vunpack.c.h.b16 %v5273
      %v5313 = vunpack.c.l.b16 %v5274
      %v5314 = vunpack.c.h.b16 %v5274
      %v5315 = vunpack.c.l.b16 %v5275
      %v5316 = vunpack.c.h.b16 %v5275
      %v5317 = vunpack.c.l.b16 %v5276
      %v5318 = vunpack.c.h.b16 %v5276
      %v5319 = vunpack.c.l.b16 %v5277
      %v5320 = vunpack.c.h.b16 %v5277
      %v5321 = vunpack.c.l.b16 %v5278
      %v5322 = vunpack.c.h.b16 %v5278
      %v5323 = vunpack.c.l.b16 %v5279
      %v5324 = vunpack.c.h.b16 %v5279
      %v5325 = vunpack.c.l.b16 %v5280
      %v5326 = vunpack.c.h.b16 %v5280
      %v5327 = vunpack.c.l.b16 %v5281
      %v5328 = vunpack.c.h.b16 %v5281
      %v5329 = vunpack.c.l.b16 %v5282
      %v5330 = vunpack.c.h.b16 %v5282
      %v5331 = vpack.c.b16 %v5299, %v5299
      %v5332 = vpack.c.b16 %v5300, %v5300
      %v5333 = vpack.c.b16 %v5301, %v5301
      %v5334 = vpack.c.b16 %v5302, %v5302
      %v5335 = vpack.c.b16 %v5303, %v5303
      %v5336 = vpack.c.b16 %v5304, %v5304
      %v5337 = vpack.c.b16 %v5305, %v5305
      %v5338 = vpack.c.b16 %v5306, %v5306
      %v5339 = vpack.c.b16 %v5307, %v5307
      %v5340 = vpack.c.b16 %v5308, %v5308
      %v5341 = vpack.c.b16 %v5309, %v5309
      %v5342 = vpack.c.b16 %v5310, %v5310
      %v5343 = vpack.c.b16 %v5311, %v5311
      %v5344 = vpack.c.b16 %v5312, %v5312
      %v5345 = vpack.c.b16 %v5313, %v5313
      %v5346 = vpack.c.b16 %v5314, %v5314
      %v5347 = vpack.c.b16 %v5315, %v5315
      %v5348 = vpack.c.b16 %v5316, %v5316
      %v5349 = vpack.c.b16 %v5317, %v5317
      %v5350 = vpack.c.b16 %v5318, %v5318
      %v5351 = vpack.c.b16 %v5319, %v5319
      %v5352 = vpack.c.b16 %v5320, %v5320
      %v5353 = vpack.c.b16 %v5321, %v5321
      %v5354 = vpack.c.b16 %v5322, %v5322
      %v5355 = vpack.c.b16 %v5323, %v5323
      %v5356 = vpack.c.b16 %v5324, %v5324
      %v5357 = vpack.c.b16 %v5325, %v5325
      %v5358 = vpack.c.b16 %v5326, %v5326
      %v5359 = vpack.c.b16 %v5327, %v5327
      %v5360 = vpack.c.b16 %v5328, %v5328
      %v5361 = vpack.c.b16 %v5329, %v5329
      %v5362 = vpack.c.b16 %v5330, %v5330
      %5395 = vst [vmem:[%s258] sm:$0xf] %v5331
      %5396 = vst [vmem:[%s258 + $0x4] sm:$0xf] %v5332
      %5397 = vst [vmem:[%s258 + $0x8] sm:$0xf] %v5333
      %5398 = vst [vmem:[%s258 + $0xc] sm:$0xf] %v5334
      %5399 = vst [vmem:[%s258 + $0x10] sm:$0xf] %v5335
      %5400 = vst [vmem:[%s258 + $0x14] sm:$0xf] %v5336
      %5401 = vst [vmem:[%s258 + $0x18] sm:$0xf] %v5337
      %5402 = vst [vmem:[%s258 + $0x1c] sm:$0xf] %v5338
      %5403 = vst [vmem:[%s258 + $0x20] sm:$0xf] %v5339
      %5404 = vst [vmem:[%s258 + $0x24] sm:$0xf] %v5340
      %5405 = vst [vmem:[%s258 + $0x28] sm:$0xf] %v5341
      %5406 = vst [vmem:[%s258 + $0x2c] sm:$0xf] %v5342
      %5407 = vst [vmem:[%s258 + $0x30] sm:$0xf] %v5343
      %5408 = vst [vmem:[%s258 + $0x34] sm:$0xf] %v5344
      %5409 = vst [vmem:[%s258 + $0x38] sm:$0xf] %v5345
      %5410 = vst [vmem:[%s258 + $0x3c] sm:$0xf] %v5346
      %5411 = vst [vmem:[%s258 + $0x40] sm:$0xf] %v5347
      %5412 = vst [vmem:[%s258 + $0x44] sm:$0xf] %v5348
      %5413 = vst [vmem:[%s258 + $0x48] sm:$0xf] %v5349
      %5414 = vst [vmem:[%s258 + $0x4c] sm:$0xf] %v5350
      %5415 = vst [vmem:[%s258 + $0x50] sm:$0xf] %v5351
      %5416 = vst [vmem:[%s258 + $0x54] sm:$0xf] %v5352
      %5417 = vst [vmem:[%s258 + $0x58] sm:$0xf] %v5353
      %5418 = vst [vmem:[%s258 + $0x5c] sm:$0xf] %v5354
      %5419 = vst [vmem:[%s258 + $0x60] sm:$0xf] %v5355
      %5420 = vst [vmem:[%s258 + $0x64] sm:$0xf] %v5356
      %5421 = vst [vmem:[%s258 + $0x68] sm:$0xf] %v5357
      %5422 = vst [vmem:[%s258 + $0x6c] sm:$0xf] %v5358
      %5423 = vst [vmem:[%s258 + $0x70] sm:$0xf] %v5359
      %5424 = vst [vmem:[%s258 + $0x74] sm:$0xf] %v5360
      %5425 = vst [vmem:[%s258 + $0x78] sm:$0xf] %v5361
      %5426 = vst [vmem:[%s258 + $0x7c] sm:$0xf] %v5362
      %p5427 = scmp.lt.s32.totalorder %s18, 1
      %s5428 = scalar_select %p5427, %s18, 1
      %s5429 = smul.addr %s5428, 32
      %s5430 = smul.addr %s5429, 4
      %s5431 = scalar_lea.vmem %s5, %s5430
      %p5432 = scmp.lt.s32.totalorder %s18, 1
      %s5433 = scalar_select %p5432, %s18, 1
      %s5434 = smul.addr %s5433, 2
      %s5435 = scalar_lea.vmem %s6, %s5434
      // Predicated region
      $region41: #{residual_block_nchw.4} parent=39 // pred_check
        %p5436 = pneg %p146
      $region42: #{residual_block_nchw.4} parent=39 // pred_check_branch
        %5438 = sbr.rel (%p5436) target = $region44
      $region43: #{residual_block_nchw.4} parent=39 // pred_region
        _
      $region44: #{residual_block_nchw.4} parent=39 // pred_fallthru
        _
      // Predicated region
      $region45: #{residual_block_nchw.4} parent=39 // pred_check
        %p5439 = pneg %p172
      $region46: #{residual_block_nchw.4} parent=39 // pred_check_branch
        %5441 = sbr.rel (%p5439) target = $region48
      $region47: #{residual_block_nchw.4} parent=39 // pred_region
        _
      $region48: #{residual_block_nchw.4} parent=39 // pred_fallthru
        _
    $region40: #{residual_block_nchw.4} parent=5 // pred_fallthru
      _
    %p5442 = scmp.le.s32.totalorder 2, %s13
    // Predicated region
    $region49: #{residual_block_nchw.4} parent=5 // pred_check
      %p5443 = pneg %p5442
    $region50: #{residual_block_nchw.4} parent=5 // pred_check_branch
      %5445 = sbr.rel (%p5443) target = $region52
    $region51: #{residual_block_nchw.4} parent=5 // pred_region
      %s5446 = ssub.s32 %s13, 2
      // Predicated region
      $region53: #{residual_block_nchw.4} parent=51 // pred_check
        %p5447 = pneg %p152
      $region54: #{residual_block_nchw.4} parent=51 // pred_check_branch
        %5449 = sbr.rel (%p5447) target = $region56
      $region55: #{residual_block_nchw.4} parent=51 // pred_region
        %p5450 = scmp.lt.s32.totalorder %s19, 1
        %s5451 = scalar_select %p5450, %s19, 1
        %s5452 = smul.addr %s5451, 32
        %s5453 = smul.addr %s5452, 4
        %s5454 = scalar_lea.vmem %s5, %s5453
      $region56: #{residual_block_nchw.4} parent=51 // pred_fallthru
        _
      // Predicated region
      $region57: #{residual_block_nchw.4} parent=51 // pred_check
        %p5455 = pneg %p178
      $region58: #{residual_block_nchw.4} parent=51 // pred_check_branch
        %5457 = sbr.rel (%p5455) target = $region60
      $region59: #{residual_block_nchw.4} parent=51 // pred_region
        %p5458 = scmp.lt.s32.totalorder %s19, 1
        %s5459 = scalar_select %p5458, %s19, 1
        %s5460 = smul.addr %s5459, 2
        %s5461 = scalar_lea.vmem %s6, %s5460
      $region60: #{residual_block_nchw.4} parent=51 // pred_fallthru
        _
    $region52: #{residual_block_nchw.4} parent=5 // pred_fallthru
      _
  $region6: #{residual_block_nchw.4} parent=0 // loop_footer
    %s17 = sadd.s32 1, %s13
  $region7: #{residual_block_nchw.4} parent=0 // loop_footer_branch
    %12 = sbr.rel target = $region3
  $region8: #{residual_block_nchw.4} parent=0 // loop_exit
    _

</llo_original>
